<compile_context>
chip_gen: v7x
topology: tpu7x:2x2x1
jax: 0.10.0
libtpu: 0.0.40
codegen_flags: <defaults>
</compile_context>

<pallas_src>
import functools

import numpy as np
import jax
import jax.numpy as jnp
from jax.experimental import pallas as pl
from jax.experimental.pallas import tpu as pltpu

_VMEM_LIMIT = 32 * 1024 * 1024  # safe on v5e/v6e (128 MiB) and v7x (64 MiB physical)


# ----------------------------------------------------------------------------
# Tiling helper
# ----------------------------------------------------------------------------
def _tile(dim, target, align):
    """Largest multiple of `align` <= target that divides `dim`, else full dim."""
    if dim <= target or dim % align != 0:
        return dim
    t = (target // align) * align
    while dim % t != 0:
        t -= align
    return t


# ----------------------------------------------------------------------------
# Tiled linear: o = act(x @ w + b [+ addend])   (bf16 MXU inputs, f32 accum)
# ----------------------------------------------------------------------------
def _matmul_kernel(x_ref, w_ref, b_ref, *rest, activation, has_addend):
    if has_addend:
        a_ref, o_ref, acc_ref = rest
    else:
        a_ref = None
        o_ref, acc_ref = rest

    @pl.when(pl.program_id(2) == 0)
    def _():
        acc_ref[...] = jnp.zeros_like(acc_ref)

    acc_ref[...] += jnp.dot(x_ref[...], w_ref[...],
                            preferred_element_type=jnp.float32)

    @pl.when(pl.program_id(2) == pl.num_programs(2) - 1)
    def _():
        y = acc_ref[...] + b_ref[...]
        if a_ref is not None:
            y = y + a_ref[...]
        if activation == "relu":
            y = jnp.maximum(y, 0.0)
        elif activation == "gelu":  # exact (erf) gelu == F.gelu(approximate='none')
            y = 0.5 * y * (1.0 + jax.lax.erf(y * 0.7071067811865476))
        o_ref[...] = y.astype(o_ref.dtype)


def pallas_linear(x, w, b, activation="none", out_dtype=jnp.bfloat16, addend=None):
    M, K = x.shape
    N = w.shape[1]
    if addend is not None:
        rows = addend.shape[0]                    # addend repeats every `rows` rows
        tm = _tile(rows, 512, 16)
    else:
        rows = None
        tm = _tile(M, 512, 16)
    tk = _tile(K, 512, 128)
    tn = _tile(N, 256, 128)
    grid = (M // tm, N // tn, K // tk)

    in_specs = [
        pl.BlockSpec((tm, tk), lambda i, j, k: (i, k)),
        pl.BlockSpec((tk, tn), lambda i, j, k: (k, j)),
        pl.BlockSpec((1, tn), lambda i, j, k: (0, j)),
    ]
    args = [x.astype(jnp.bfloat16), w.astype(jnp.bfloat16),
            b.reshape(1, N).astype(jnp.float32)]
    if addend is not None:
        period = rows // tm
        in_specs.append(pl.BlockSpec((tm, tn), lambda i, j, k: (i % period, j)))
        args.append(addend.reshape(rows, N).astype(jnp.float32))

    cost = pl.CostEstimate(
        flops=2 * M * N * K,
        transcendentals=M * N if activation == "gelu" else 0,
        bytes_accessed=2 * (M * K + K * N + M * N) + 4 * N)

    return pl.pallas_call(
        functools.partial(_matmul_kernel, activation=activation,
                          has_addend=addend is not None),
        out_shape=jax.ShapeDtypeStruct((M, N), out_dtype),
        grid=grid,
        in_specs=in_specs,
        out_specs=pl.BlockSpec((tm, tn), lambda i, j, k: (i, j)),
        scratch_shapes=[pltpu.VMEM((tm, tn), jnp.float32)],
        compiler_params=pltpu.CompilerParams(
            dimension_semantics=("parallel", "parallel", "arbitrary"),
            vmem_limit_bytes=_VMEM_LIMIT),
        cost_estimate=cost,
    )(*args)


# ----------------------------------------------------------------------------
# Flash-style multi-head attention (online softmax, no (H,N,N) materialization)
#   qkv: (B, N, 3D) with columns [Q | K | V]; Q is pre-scaled by head_dim**-0.5.
#   output: (B, N, D) — lane-dense, heads concatenated on the last dim.
# ----------------------------------------------------------------------------
def _flash_mha_kernel(q_ref, k_ref, v_ref, o_ref, m_ref, l_ref, acc_ref,
                      *, num_heads, head_dim):
    ki = pl.program_id(2)

    @pl.when(ki == 0)
    def _():
        m_ref[...] = jnp.full_like(m_ref, -jnp.inf)
        l_ref[...] = jnp.zeros_like(l_ref)
        acc_ref[...] = jnp.zeros_like(acc_ref)

    for h in range(num_heads):
        cs = slice(h * head_dim, (h + 1) * head_dim)
        q = q_ref[:, cs]                                       # (tq,  Dh) bf16
        k = k_ref[:, cs]                                       # (tkv, Dh) bf16
        v = v_ref[:, cs]                                       # (tkv, Dh) bf16
        s = jax.lax.dot_general(q, k, (((1,), (1,)), ((), ())),
                                preferred_element_type=jnp.float32)  # (tq, tkv)
        m_prev = m_ref[h]                                      # (tq, 1)
        m_new = jnp.maximum(m_prev, jnp.max(s, axis=-1, keepdims=True))
        alpha = jnp.exp(m_prev - m_new)
        p = jnp.exp(s - m_new)
        l_ref[h] = alpha * l_ref[h] + jnp.sum(p, axis=-1, keepdims=True)
        m_ref[h] = m_new
        pv = jnp.dot(p.astype(jnp.bfloat16), v,
                     preferred_element_type=jnp.float32)       # (tq, Dh)
        acc_ref[:, cs] = alpha * acc_ref[:, cs] + pv

    @pl.when(ki == pl.num_programs(2) - 1)
    def _():
        for h in range(num_heads):
            cs = slice(h * head_dim, (h + 1) * head_dim)
            inv = pl.reciprocal(l_ref[h], approx=True)         # (tq, 1)
            o_ref[:, cs] = (acc_ref[:, cs] * inv).astype(o_ref.dtype)


def pallas_flash_attention(qkv, num_heads):
    B, N, threeD = qkv.shape
    D = threeD // 3
    Dh = D // num_heads
    assert D % 128 == 0, "embed_dim must be a multiple of 128 for lane-dense QKV slicing"
    tq = _tile(N, 128, 16)
    tkv = _tile(N, 128, 16)
    grid = (B, N // tq, N // tkv)

    q_spec = pl.BlockSpec((None, tq, D), lambda b, qi, ki: (b, qi, 0))
    k_spec = pl.BlockSpec((None, tkv, D), lambda b, qi, ki: (b, ki, 1))
    v_spec = pl.BlockSpec((None, tkv, D), lambda b, qi, ki: (b, ki, 2))
    o_spec = pl.BlockSpec((None, tq, D), lambda b, qi, ki: (b, qi, 0))

    cost = pl.CostEstimate(
        flops=4 * B * N * N * D,
        transcendentals=B * num_heads * N * N,
        bytes_accessed=2 * (3 * B * N * D + B * N * D))

    return pl.pallas_call(
        functools.partial(_flash_mha_kernel, num_heads=num_heads, head_dim=Dh),
        out_shape=jax.ShapeDtypeStruct((B, N, D), jnp.bfloat16),
        grid=grid,
        in_specs=[q_spec, k_spec, v_spec],
        out_specs=o_spec,
        scratch_shapes=[
            pltpu.VMEM((num_heads, tq, 1), jnp.float32),   # running max per head
            pltpu.VMEM((num_heads, tq, 1), jnp.float32),   # running denom per head
            pltpu.VMEM((tq, D), jnp.float32),              # output accumulator
        ],
        compiler_params=pltpu.CompilerParams(
            dimension_semantics=("parallel", "parallel", "arbitrary"),
            vmem_limit_bytes=_VMEM_LIMIT),
        cost_estimate=cost,
    )(qkv, qkv, qkv)


# ----------------------------------------------------------------------------
# Fused residual-add + LayerNorm (+ optional layer_scale * LN + identity)
# ----------------------------------------------------------------------------
def _add_ln_kernel(x_ref, y_ref, g_ref, b_ref, o_ref, *, eps):
    z = x_ref[...].astype(jnp.float32) + y_ref[...].astype(jnp.float32)
    mu = jnp.mean(z, axis=-1, keepdims=True)
    var = jnp.mean(jnp.square(z - mu), axis=-1, keepdims=True)
    zn = (z - mu) * jax.lax.rsqrt(var + eps)
    o_ref[...] = (zn * g_ref[...] + b_ref[...]).astype(o_ref.dtype)


def _add_ln_scale_res_kernel(x_ref, y_ref, g_ref, b_ref, r_ref, o_ref, *, eps, scale):
    z = x_ref[...].astype(jnp.float32) + y_ref[...].astype(jnp.float32)
    mu = jnp.mean(z, axis=-1, keepdims=True)
    var = jnp.mean(jnp.square(z - mu), axis=-1, keepdims=True)
    ln = (z - mu) * jax.lax.rsqrt(var + eps) * g_ref[...] + b_ref[...]
    o_ref[...] = (ln * scale + r_ref[...].astype(jnp.float32)).astype(o_ref.dtype)


def pallas_add_layernorm(x, y, gamma, beta, eps=1e-5, scale=None, residual=None):
    shape = x.shape
    D = shape[-1]
    x2 = x.reshape(-1, D).astype(jnp.bfloat16)
    y2 = y.reshape(-1, D).astype(jnp.bfloat16)
    M = x2.shape[0]
    tm = _tile(M, 1024, 16)
    row_spec = pl.BlockSpec((tm, D), lambda i: (i, 0))
    vec_spec = pl.BlockSpec((1, D), lambda i: (0, 0))
    cp = pltpu.CompilerParams(dimension_semantics=("parallel",),
                              vmem_limit_bytes=_VMEM_LIMIT)
    g2 = gamma.reshape(1, D).astype(jnp.float32)
    b2 = beta.reshape(1, D).astype(jnp.float32)
    if residual is None:
        out = pl.pallas_call(
            functools.partial(_add_ln_kernel, eps=eps),
            out_shape=jax.ShapeDtypeStruct((M, D), jnp.bfloat16),
            grid=(M // tm,),
            in_specs=[row_spec, row_spec, vec_spec, vec_spec],
            out_specs=row_spec,
            compiler_params=cp,
        )(x2, y2, g2, b2)
    else:
        r2 = residual.reshape(-1, D).astype(jnp.bfloat16)
        out = pl.pallas_call(
            functools.partial(_add_ln_scale_res_kernel, eps=eps, scale=float(scale)),
            out_shape=jax.ShapeDtypeStruct((M, D), jnp.bfloat16),
            grid=(M // tm,),
            in_specs=[row_spec, row_spec, vec_spec, vec_spec, row_spec],
            out_specs=row_spec,
            compiler_params=cp,
        )(x2, y2, g2, b2, r2)
    return out.reshape(shape)


# ----------------------------------------------------------------------------
# Batched left-matmul: out[g] = A @ x[g]   (separable bilinear upsample)
#   - groups several batch entries per grid step (amortize step overhead)
#   - tiles the lane (N) dimension so large Wp*D blocks never blow VMEM
# ----------------------------------------------------------------------------
def _bmm_left_kernel(a_ref, x_ref, o_ref):
    a = a_ref[...]
    for g in range(x_ref.shape[0]):
        o_ref[g] = jnp.dot(a, x_ref[g],
                           preferred_element_type=jnp.float32).astype(o_ref.dtype)


def pallas_bmm_left(a, x, out_dtype=jnp.bfloat16):
    G, K, N = x.shape
    M = a.shape[0]
    gblk = _tile(G, 8, 1)
    tn = _tile(N, 2048, 128)
    grid = (G // gblk, N // tn)
    return pl.pallas_call(
        _bmm_left_kernel,
        out_shape=jax.ShapeDtypeStruct((G, M, N), out_dtype),
        grid=grid,
        in_specs=[
            pl.BlockSpec((M, K), lambda g, n: (0, 0)),
            pl.BlockSpec((gblk, K, tn), lambda g, n: (g, 0, n)),
        ],
        out_specs=pl.BlockSpec((gblk, M, tn), lambda g, n: (g, 0, n)),
        compiler_params=pltpu.CompilerParams(
            dimension_semantics=("parallel", "parallel"),
            vmem_limit_bytes=_VMEM_LIMIT),
    )(a.astype(jnp.bfloat16), x.astype(jnp.bfloat16))


# ----------------------------------------------------------------------------
# Model pieces (plain-JAX glue around the Pallas kernels)
# ----------------------------------------------------------------------------
def multihead_attention(x, p, num_heads):
    """Fused-QKV multi-head attention (SelfAttention / nn.MultiheadAttention).
    Attention scale is folded into the Q columns of w_qkv/b_qkv."""
    B, N, D = x.shape
    qkv = pallas_linear(x.reshape(B * N, D), p["w_qkv"], p["b_qkv"])   # (B*N, 3D)
    o = pallas_flash_attention(qkv.reshape(B, N, 3 * D), num_heads)    # (B, N, D)
    return pallas_linear(o.reshape(B * N, D), p["wo"], p["bo"]).reshape(B, N, D)


def transformer_encoder_layer(x, p, num_heads, layer_scale, identity):
    """nn.TransformerEncoderLayer (post-norm, gelu, batch_first, eval mode),
    with the wrapper's  out*layer_scale + identity  fused into the final LN."""
    attn = multihead_attention(x, p["attn"], num_heads)
    x = pallas_add_layernorm(x, attn, p["ln1_g"], p["ln1_b"])
    B, N, D = x.shape
    h = pallas_linear(x.reshape(B * N, D), p["w1"], p["b1"], activation="gelu")
    h = pallas_linear(h, p["w2"], p["b2"]).reshape(B, N, D)
    return pallas_add_layernorm(x, h, p["ln2_g"], p["ln2_b"],
                                scale=layer_scale, residual=identity)


def _bilinear_resize_matrix(in_size, out_size):
    """Interpolation matrix replicating F.interpolate(bilinear, align_corners=False)."""
    scale = in_size / out_size
    dst = np.arange(out_size, dtype=np.float64)
    src = np.maximum((dst + 0.5) * scale - 0.5, 0.0)
    i0 = np.minimum(np.floor(src).astype(np.int64), in_size - 1)
    i1 = np.minimum(i0 + 1, in_size - 1)
    w1 = src - i0
    w0 = 1.0 - w1
    R = np.zeros((out_size, in_size), dtype=np.float64)
    np.add.at(R, (np.arange(out_size), i0), w0)
    np.add.at(R, (np.arange(out_size), i1), w1)
    return R


def segmenter_vit_forward(x, params, cfg):
    B, C, H, W = x.shape
    P = cfg["patch_size"]
    D = cfg["embed_dim"]
    Hp, Wp = H // P, W // P
    N = Hp * Wp

    # ---- PatchEmbedding: stride-P conv == per-patch linear projection ----
    patches = (x.reshape(B, C, Hp, P, Wp, P)
                .transpose(0, 2, 4, 1, 3, 5)                 # (B, Hp, Wp, C, P, P)
                .reshape(B * N, C * P * P))
    # pos_embed add fused into the projection epilogue (no extra HBM pass)
    tokens = pallas_linear(patches, params["patch_w"], params["patch_b"],
                           addend=params["pos_embed"]).reshape(B, N, D)

    # ---- TransformerEncoder ----
    attn = multihead_attention(tokens, params["rsa"], cfg["num_heads"])
    xx = pallas_add_layernorm(tokens, attn, params["rsa_ln_g"], params["rsa_ln_b"])
    identity = xx
    L = cfg["num_layers"]
    for i in range(L):
        layer_scale = 1.0 - i / L
        xx = transformer_encoder_layer(xx, params["layers"][i], cfg["num_heads"],
                                       layer_scale, identity)

    # ---- SegmentationHead (channel-last; separable bilinear upsample) ----
    t = pallas_bmm_left(params["ry"], xx.reshape(B, Hp, Wp * D))    # (B, H, Wp*D)
    u = pallas_bmm_left(params["rx"], t.reshape(B * H, Wp, D))      # (B*H, W, D)
    z = u.reshape(B * H * W, D)
    z = pallas_linear(z, params["dec1_w"], params["dec1_b"], activation="relu")
    z = pallas_linear(z, params["dec2_w"], params["dec2_b"], out_dtype=jnp.float32)
    return z.reshape(B, H, W, D).transpose(0, 3, 1, 2)              # NCHW out


# ----------------------------------------------------------------------------
# Deterministic synthetic parameter init
# ----------------------------------------------------------------------------
def _dense(key, fan_in, fan_out, wscale=0.05):
    kw, kb = jax.random.split(key)
    w = jax.random.normal(kw, (fan_in, fan_out), jnp.float32) * wscale
    b = jax.random.normal(kb, (fan_out,), jnp.float32) * 0.02
    return w, b


def _attn_params(key, D, num_heads):
    ks = jax.random.split(key, 4)
    wq, bq = _dense(ks[0], D, D)
    wk, bk = _dense(ks[1], D, D)
    wv, bv = _dense(ks[2], D, D)
    wo, bo = _dense(ks[3], D, D)
    scale = float((D // num_heads) ** -0.5)          # fold attention scale into Q
    return dict(w_qkv=jnp.concatenate([wq * scale, wk, wv], axis=1),
                b_qkv=jnp.concatenate([bq * scale, bk, bv], axis=0),
                wo=wo, bo=bo)


def init_params(key, cfg):
    P, C, D = cfg["patch_size"], cfg["in_channels"], cfg["embed_dim"]
    img, L, nh = cfg["img_size"], cfg["num_layers"], cfg["num_heads"]
    Hp = img // P
    N = Hp * Hp
    keys = jax.random.split(key, 5 + L)

    patch_w, patch_b = _dense(keys[0], C * P * P, D)
    pos_embed = jax.random.normal(keys[1], (N, D), jnp.float32) * 0.02

    rsa = _attn_params(keys[2], D, nh)
    rsa_ln_g = jnp.ones((D,), jnp.float32)
    rsa_ln_b = jnp.zeros((D,), jnp.float32)

    layers = []
    for i in range(L):
        ks = jax.random.split(keys[3 + i], 3)
        w1, b1 = _dense(ks[1], D, 4 * D)
        w2, b2 = _dense(ks[2], 4 * D, D)
        layers.append(dict(
            attn=_attn_params(ks[0], D, nh),
            ln1_g=jnp.ones((D,), jnp.float32), ln1_b=jnp.zeros((D,), jnp.float32),
            w1=w1, b1=b1, w2=w2, b2=b2,
            ln2_g=jnp.ones((D,), jnp.float32), ln2_b=jnp.zeros((D,), jnp.float32),
        ))

    dec1_w, dec1_b = _dense(keys[3 + L], D, D)
    dec2_w, dec2_b = _dense(keys[4 + L], D, D)

    ry = jnp.asarray(_bilinear_resize_matrix(Hp, img), jnp.float32)   # (H, Hp)
    rx = jnp.asarray(_bilinear_resize_matrix(Hp, img), jnp.float32)   # (W, Wp)

    return dict(patch_w=patch_w, patch_b=patch_b, pos_embed=pos_embed,
                rsa=rsa, rsa_ln_g=rsa_ln_g, rsa_ln_b=rsa_ln_b, layers=layers,
                dec1_w=dec1_w, dec1_b=dec1_b, dec2_w=dec2_w, dec2_b=dec2_b,
                ry=ry, rx=rx)


# ----------------------------------------------------------------------------
if __name__ == "__main__":
    # embed_dim kept at 128 so the head-concat dim is lane-dense (multiple of 128),
    # matching real Segmenter configurations (D = 768 / 1024).
    cfg = dict(img_size=16, patch_size=4, in_channels=4,
               embed_dim=128, num_heads=4, num_layers=2, dropout_rate=0.1)

    key = jax.random.PRNGKey(0)
    kx, kp = jax.random.split(key)
    x = jax.random.normal(kx, (2, cfg["in_channels"], cfg["img_size"], cfg["img_size"]),
                          jnp.float32)
    params = init_params(kp, cfg)

    fwd = jax.jit(functools.partial(segmenter_vit_forward, cfg=cfg))
    out = fwd(x, params)
    out = jax.block_until_ready(out)
    assert out.shape == (2, cfg["embed_dim"], cfg["img_size"], cfg["img_size"])
    assert bool(jnp.all(jnp.isfinite(out)))
    print("KERNEL_OK")
</pallas_src>

<mosaic_0001>
module attributes {stable_mosaic.version = 11 : i64} {
  func.func @_matmul_kernel(%arg0: i32, %arg1: i32, %arg2: i32, %arg3: memref<32x128xbf16, #tpu.memory_space<vmem>>, %arg4: memref<128x128xbf16, #tpu.memory_space<vmem>>, %arg5: memref<1x128xf32, #tpu.memory_space<vmem>>, %arg6: memref<32x128xbf16, #tpu.memory_space<vmem>>, %arg7: memref<32x128xf32, #tpu.memory_space<vmem>>) attributes {dimension_semantics = [#tpu.dimension_semantics<parallel>, #tpu.dimension_semantics<parallel>, #tpu.dimension_semantics<arbitrary>], iteration_bounds = array<i64: 1, 3, 1>, scalar_prefetch = 0 : i64, scratch_operands = 1 : i64, tpu.core_type = #tpu.core_type<tc>, window_params = [{transform_indices = @transform_0, window_bounds = array<i64: 32, 128>}, {transform_indices = @transform_1, window_bounds = array<i64: 128, 128>}, {transform_indices = @transform_2, window_bounds = array<i64: 1, 128>}, {transform_indices = @transform_3, window_bounds = array<i64: 32, 128>}]} {
    %c0_i32 = arith.constant 0 : i32
    %0 = arith.cmpi eq, %arg2, %c0_i32 : i32
    %1 = arith.extui %0 : i1 to i32
    %c0_i32_0 = arith.constant 0 : i32
    %2 = arith.cmpi ne, %1, %c0_i32_0 : i32
    scf.if %2 {
      %cst_10 = arith.constant 0.000000e+00 : f32
      %12 = vector.broadcast %cst_10 : f32 to vector<32x128xf32>
      %c0_11 = arith.constant 0 : index
      %c0_12 = arith.constant 0 : index
      %13 = vector.load %arg7[%c0_11, %c0_12] : memref<32x128xf32, #tpu.memory_space<vmem>>, vector<32x128xf32>
      tpu.vector_store %arg7[%c0_11, %c0_12], %12 {strides = array<i32>} : memref<32x128xf32, #tpu.memory_space<vmem>>, vector<32x128xf32>,
    } else {
    }
    %c0 = arith.constant 0 : index
    %c0_1 = arith.constant 0 : index
    %3 = vector.load %arg7[%c0, %c0_1] : memref<32x128xf32, #tpu.memory_space<vmem>>, vector<32x128xf32>
    %c0_2 = arith.constant 0 : index
    %c0_3 = arith.constant 0 : index
    %4 = vector.load %arg3[%c0_2, %c0_3] : memref<32x128xbf16, #tpu.memory_space<vmem>>, vector<32x128xbf16>
    %c0_4 = arith.constant 0 : index
    %c0_5 = arith.constant 0 : index
    %5 = vector.load %arg4[%c0_4, %c0_5] : memref<128x128xbf16, #tpu.memory_space<vmem>>, vector<128x128xbf16>
    %cst = arith.constant dense<0.000000e+00> : vector<32x128xf32>
    %6 = tpu.matmul %4, %5, %cst {dimension_numbers = #tpu.dot_dimension_numbers<[1], [0], [0], [1], [0, 0, 1, 1], [], []>} : vector<32x128xbf16>, vector<128x128xbf16>, vector<32x128xf32> -> vector<32x128xf32>
    %7 = arith.addf %3, %6 : vector<32x128xf32>
    %c0_6 = arith.constant 0 : index
    %c0_7 = arith.constant 0 : index
    %8 = vector.load %arg7[%c0_6, %c0_7] : memref<32x128xf32, #tpu.memory_space<vmem>>, vector<32x128xf32>
    tpu.vector_store %arg7[%c0_6, %c0_7], %7 {strides = array<i32>} : memref<32x128xf32, #tpu.memory_space<vmem>>, vector<32x128xf32>,
    %c0_i32_8 = arith.constant 0 : i32
    %9 = arith.cmpi eq, %arg2, %c0_i32_8 : i32
    %10 = arith.extui %9 : i1 to i32
    %c0_i32_9 = arith.constant 0 : i32
    %11 = arith.cmpi ne, %10, %c0_i32_9 : i32
    scf.if %11 {
      %c0_10 = arith.constant 0 : index
      %c0_11 = arith.constant 0 : index
      %12 = vector.load %arg7[%c0_10, %c0_11] : memref<32x128xf32, #tpu.memory_space<vmem>>, vector<32x128xf32>
      %c0_12 = arith.constant 0 : index
      %c0_13 = arith.constant 0 : index
      %13 = vector.load %arg5[%c0_12, %c0_13] : memref<1x128xf32, #tpu.memory_space<vmem>>, vector<1x128xf32>
      %14 = vector.broadcast %13 : vector<1x128xf32> to vector<32x128xf32>
      %15 = arith.addf %12, %14 : vector<32x128xf32>
      %16 = arith.truncf %15 : vector<32x128xf32> to vector<32x128xbf16>
      %c0_14 = arith.constant 0 : index
      %c0_15 = arith.constant 0 : index
      %17 = vector.load %arg6[%c0_14, %c0_15] : memref<32x128xbf16, #tpu.memory_space<vmem>>, vector<32x128xbf16>
      tpu.vector_store %arg6[%c0_14, %c0_15], %16 {strides = array<i32>} : memref<32x128xbf16, #tpu.memory_space<vmem>>, vector<32x128xbf16>,
    } else {
    }
    return
  }
  func.func @transform_0(%arg0: i32, %arg1: i32, %arg2: i32) -> (i32, i32) {
    %c0_i32 = arith.constant 0 : i32
    return %arg0, %arg2 : i32, i32
  }
  func.func @transform_1(%arg0: i32, %arg1: i32, %arg2: i32) -> (i32, i32) {
    %c0_i32 = arith.constant 0 : i32
    return %arg2, %arg1 : i32, i32
  }
  func.func @transform_2(%arg0: i32, %arg1: i32, %arg2: i32) -> (i32, i32) {
    %c0_i32 = arith.constant 0 : i32
    %c0_i32_0 = arith.constant 0 : i32
    return %c0_i32, %arg1 : i32, i32
  }
  func.func @transform_3(%arg0: i32, %arg1: i32, %arg2: i32) -> (i32, i32) {
    %c0_i32 = arith.constant 0 : i32
    return %arg0, %arg1 : i32, i32
  }
}

module attributes {stable_mosaic.version = 11 : i64} {
  func.func @_matmul_kernel(%arg0: i32, %arg1: i32, %arg2: i32, %arg3: memref<16x64xbf16, #tpu.memory_space<vmem>>, %arg4: memref<64x128xbf16, #tpu.memory_space<vmem>>, %arg5: memref<1x128xf32, #tpu.memory_space<vmem>>, %arg6: memref<16x128xf32, #tpu.memory_space<vmem>>, %arg7: memref<16x128xbf16, #tpu.memory_space<vmem>>, %arg8: memref<16x128xf32, #tpu.memory_space<vmem>>) attributes {dimension_semantics = [#tpu.dimension_semantics<parallel>, #tpu.dimension_semantics<parallel>, #tpu.dimension_semantics<arbitrary>], iteration_bounds = array<i64: 2, 1, 1>, scalar_prefetch = 0 : i64, scratch_operands = 1 : i64, tpu.core_type = #tpu.core_type<tc>, window_params = [{transform_indices = @transform_0, window_bounds = array<i64: 16, 64>}, {transform_indices = @transform_1, window_bounds = array<i64: 64, 128>}, {transform_indices = @transform_2, window_bounds = array<i64: 1, 128>}, {transform_indices = @transform_3, window_bounds = array<i64: 16, 128>}, {transform_indices = @transform_4, window_bounds = array<i64: 16, 128>}]} {
    %c0_i32 = arith.constant 0 : i32
    %0 = arith.cmpi eq, %arg2, %c0_i32 : i32
    %1 = arith.extui %0 : i1 to i32
    %c0_i32_0 = arith.constant 0 : i32
    %2 = arith.cmpi ne, %1, %c0_i32_0 : i32
    scf.if %2 {
      %cst_10 = arith.constant 0.000000e+00 : f32
      %12 = vector.broadcast %cst_10 : f32 to vector<16x128xf32>
      %c0_11 = arith.constant 0 : index
      %c0_12 = arith.constant 0 : index
      %13 = vector.load %arg8[%c0_11, %c0_12] : memref<16x128xf32, #tpu.memory_space<vmem>>, vector<16x128xf32>
      tpu.vector_store %arg8[%c0_11, %c0_12], %12 {strides = array<i32>} : memref<16x128xf32, #tpu.memory_space<vmem>>, vector<16x128xf32>,
    } else {
    }
    %c0 = arith.constant 0 : index
    %c0_1 = arith.constant 0 : index
    %3 = vector.load %arg8[%c0, %c0_1] : memref<16x128xf32, #tpu.memory_space<vmem>>, vector<16x128xf32>
    %c0_2 = arith.constant 0 : index
    %c0_3 = arith.constant 0 : index
    %4 = vector.load %arg3[%c0_2, %c0_3] : memref<16x64xbf16, #tpu.memory_space<vmem>>, vector<16x64xbf16>
    %c0_4 = arith.constant 0 : index
    %c0_5 = arith.constant 0 : index
    %5 = vector.load %arg4[%c0_4, %c0_5] : memref<64x128xbf16, #tpu.memory_space<vmem>>, vector<64x128xbf16>
    %cst = arith.constant dense<0.000000e+00> : vector<16x128xf32>
    %6 = tpu.matmul %4, %5, %cst {dimension_numbers = #tpu.dot_dimension_numbers<[1], [0], [0], [1], [0, 0, 1, 1], [], []>} : vector<16x64xbf16>, vector<64x128xbf16>, vector<16x128xf32> -> vector<16x128xf32>
    %7 = arith.addf %3, %6 : vector<16x128xf32>
    %c0_6 = arith.constant 0 : index
    %c0_7 = arith.constant 0 : index
    %8 = vector.load %arg8[%c0_6, %c0_7] : memref<16x128xf32, #tpu.memory_space<vmem>>, vector<16x128xf32>
    tpu.vector_store %arg8[%c0_6, %c0_7], %7 {strides = array<i32>} : memref<16x128xf32, #tpu.memory_space<vmem>>, vector<16x128xf32>,
    %c0_i32_8 = arith.constant 0 : i32
    %9 = arith.cmpi eq, %arg2, %c0_i32_8 : i32
    %10 = arith.extui %9 : i1 to i32
    %c0_i32_9 = arith.constant 0 : i32
    %11 = arith.cmpi ne, %10, %c0_i32_9 : i32
    scf.if %11 {
      %c0_10 = arith.constant 0 : index
      %c0_11 = arith.constant 0 : index
      %12 = vector.load %arg8[%c0_10, %c0_11] : memref<16x128xf32, #tpu.memory_space<vmem>>, vector<16x128xf32>
      %c0_12 = arith.constant 0 : index
      %c0_13 = arith.constant 0 : index
      %13 = vector.load %arg5[%c0_12, %c0_13] : memref<1x128xf32, #tpu.memory_space<vmem>>, vector<1x128xf32>
      %14 = vector.broadcast %13 : vector<1x128xf32> to vector<16x128xf32>
      %15 = arith.addf %12, %14 : vector<16x128xf32>
      %c0_14 = arith.constant 0 : index
      %c0_15 = arith.constant 0 : index
      %16 = vector.load %arg6[%c0_14, %c0_15] : memref<16x128xf32, #tpu.memory_space<vmem>>, vector<16x128xf32>
      %17 = arith.addf %15, %16 : vector<16x128xf32>
      %18 = arith.truncf %17 : vector<16x128xf32> to vector<16x128xbf16>
      %c0_16 = arith.constant 0 : index
      %c0_17 = arith.constant 0 : index
      %19 = vector.load %arg7[%c0_16, %c0_17] : memref<16x128xbf16, #tpu.memory_space<vmem>>, vector<16x128xbf16>
      tpu.vector_store %arg7[%c0_16, %c0_17], %18 {strides = array<i32>} : memref<16x128xbf16, #tpu.memory_space<vmem>>, vector<16x128xbf16>,
    } else {
    }
    return
  }
  func.func @transform_0(%arg0: i32, %arg1: i32, %arg2: i32) -> (i32, i32) {
    %c0_i32 = arith.constant 0 : i32
    return %arg0, %arg2 : i32, i32
  }
  func.func @transform_1(%arg0: i32, %arg1: i32, %arg2: i32) -> (i32, i32) {
    %c0_i32 = arith.constant 0 : i32
    return %arg2, %arg1 : i32, i32
  }
  func.func @transform_2(%arg0: i32, %arg1: i32, %arg2: i32) -> (i32, i32) {
    %c0_i32 = arith.constant 0 : i32
    %c0_i32_0 = arith.constant 0 : i32
    return %c0_i32, %arg1 : i32, i32
  }
  func.func @transform_3(%arg0: i32, %arg1: i32, %arg2: i32) -> (i32, i32) {
    %c1_i32 = arith.constant 1 : i32
    %c0_i32 = arith.constant 0 : i32
    %0 = arith.cmpi eq, %c1_i32, %c0_i32 : i32
    %c1_i32_0 = arith.constant 1 : i32
    %1 = arith.select %0, %c1_i32_0, %c1_i32 : i32
    %2 = arith.remsi %arg0, %1 : i32
    %c0_i32_1 = arith.constant 0 : i32
    %3 = arith.cmpi ne, %2, %c0_i32_1 : i32
    %c0_i32_2 = arith.constant 0 : i32
    %4 = arith.cmpi slt, %2, %c0_i32_2 : i32
    %c0_i32_3 = arith.constant 0 : i32
    %5 = arith.cmpi slt, %1, %c0_i32_3 : i32
    %6 = arith.xori %4, %5 : i1
    %7 = arith.andi %6, %3 : i1
    %8 = arith.addi %2, %1 : i32
    %9 = arith.select %7, %8, %2 : i32
    %c0_i32_4 = arith.constant 0 : i32
    return %9, %arg1 : i32, i32
  }
  func.func @transform_4(%arg0: i32, %arg1: i32, %arg2: i32) -> (i32, i32) {
    %c0_i32 = arith.constant 0 : i32
    return %arg0, %arg1 : i32, i32
  }
}

module attributes {stable_mosaic.version = 11 : i64} {
  func.func @_flash_mha_kernel(%arg0: i32, %arg1: i32, %arg2: i32, %arg3: memref<1x16x128xbf16, #tpu.memory_space<vmem>>, %arg4: memref<1x16x128xbf16, #tpu.memory_space<vmem>>, %arg5: memref<1x16x128xbf16, #tpu.memory_space<vmem>>, %arg6: memref<1x16x128xbf16, #tpu.memory_space<vmem>>, %arg7: memref<4x16x1xf32, #tpu.memory_space<vmem>>, %arg8: memref<4x16x1xf32, #tpu.memory_space<vmem>>, %arg9: memref<16x128xf32, #tpu.memory_space<vmem>>) attributes {dimension_semantics = [#tpu.dimension_semantics<parallel>, #tpu.dimension_semantics<parallel>, #tpu.dimension_semantics<arbitrary>], iteration_bounds = array<i64: 2, 1, 1>, scalar_prefetch = 0 : i64, scratch_operands = 3 : i64, tpu.core_type = #tpu.core_type<tc>, window_params = [{transform_indices = @transform_0, window_bounds = array<i64: 1, 16, 128>}, {transform_indices = @transform_1, window_bounds = array<i64: 1, 16, 128>}, {transform_indices = @transform_2, window_bounds = array<i64: 1, 16, 128>}, {transform_indices = @transform_3, window_bounds = array<i64: 1, 16, 128>}]} {
    %c0_i32 = arith.constant 0 : i32
    %0 = arith.cmpi eq, %arg2, %c0_i32 : i32
    %1 = arith.extui %0 : i1 to i32
    %c0_i32_0 = arith.constant 0 : i32
    %2 = arith.cmpi ne, %1, %c0_i32_0 : i32
    scf.if %2 {
      %cst_111 = arith.constant 0xFF800000 : f32
      %150 = vector.broadcast %cst_111 : f32 to vector<4x16x1xf32>
      %c0_112 = arith.constant 0 : index
      %c0_113 = arith.constant 0 : index
      %c0_114 = arith.constant 0 : index
      %151 = vector.load %arg7[%c0_112, %c0_113, %c0_114] : memref<4x16x1xf32, #tpu.memory_space<vmem>>, vector<4x16x1xf32>
      tpu.vector_store %arg7[%c0_112, %c0_113, %c0_114], %150 {strides = array<i32>} : memref<4x16x1xf32, #tpu.memory_space<vmem>>, vector<4x16x1xf32>,
      %cst_115 = arith.constant 0.000000e+00 : f32
      %152 = vector.broadcast %cst_115 : f32 to vector<4x16x1xf32>
      %c0_116 = arith.constant 0 : index
      %c0_117 = arith.constant 0 : index
      %c0_118 = arith.constant 0 : index
      %153 = vector.load %arg8[%c0_116, %c0_117, %c0_118] : memref<4x16x1xf32, #tpu.memory_space<vmem>>, vector<4x16x1xf32>
      tpu.vector_store %arg8[%c0_116, %c0_117, %c0_118], %152 {strides = array<i32>} : memref<4x16x1xf32, #tpu.memory_space<vmem>>, vector<4x16x1xf32>,
      %cst_119 = arith.constant 0.000000e+00 : f32
      %154 = vector.broadcast %cst_119 : f32 to vector<16x128xf32>
      %c0_120 = arith.constant 0 : index
      %c0_121 = arith.constant 0 : index
      %155 = vector.load %arg9[%c0_120, %c0_121] : memref<16x128xf32, #tpu.memory_space<vmem>>, vector<16x128xf32>
      tpu.vector_store %arg9[%c0_120, %c0_121], %154 {strides = array<i32>} : memref<16x128xf32, #tpu.memory_space<vmem>>, vector<16x128xf32>,
    } else {
    }
    %c0 = arith.constant 0 : index
    %c0_1 = arith.constant 0 : index
    %c0_2 = arith.constant 0 : index
    %3 = vector.load %arg3[%c0, %c0_1, %c0_2] : memref<1x16x128xbf16, #tpu.memory_space<vmem>>, vector<1x16x32xbf16>
    %4 = vector.shape_cast %3 : vector<1x16x32xbf16> to vector<16x32xbf16>
    %c0_3 = arith.constant 0 : index
    %c0_4 = arith.constant 0 : index
    %c0_5 = arith.constant 0 : index
    %5 = vector.load %arg4[%c0_3, %c0_4, %c0_5] : memref<1x16x128xbf16, #tpu.memory_space<vmem>>, vector<1x16x32xbf16>
    %6 = vector.shape_cast %5 : vector<1x16x32xbf16> to vector<16x32xbf16>
    %c0_6 = arith.constant 0 : index
    %c0_7 = arith.constant 0 : index
    %c0_8 = arith.constant 0 : index
    %7 = vector.load %arg5[%c0_6, %c0_7, %c0_8] : memref<1x16x128xbf16, #tpu.memory_space<vmem>>, vector<1x16x32xbf16>
    %8 = vector.shape_cast %7 : vector<1x16x32xbf16> to vector<16x32xbf16>
    %cst = arith.constant dense<0.000000e+00> : vector<16x16xf32>
    %9 = tpu.matmul %4, %6, %cst {dimension_numbers = #tpu.dot_dimension_numbers<[1], [1], [0], [0], [0, 0, 1, 0], [], []>} : vector<16x32xbf16>, vector<16x32xbf16>, vector<16x16xf32> -> vector<16x16xf32>
    %c0_9 = arith.constant 0 : index
    %c0_10 = arith.constant 0 : index
    %c0_11 = arith.constant 0 : index
    %10 = vector.load %arg7[%c0_9, %c0_10, %c0_11] : memref<4x16x1xf32, #tpu.memory_space<vmem>>, vector<1x16x1xf32>
    %11 = vector.shape_cast %10 : vector<1x16x1xf32> to vector<16x1xf32>
    %cst_12 = arith.constant dense<0xFF800000> : vector<16xf32>
    %12 = vector.multi_reduction <maximumf>, %9, %cst_12 [1] : vector<16x16xf32> to vector<16xf32>
    %13 = vector.shape_cast %12 : vector<16xf32> to vector<16x1xf32>
    %14 = arith.maximumf %11, %13 : vector<16x1xf32>
    %15 = arith.subf %11, %14 : vector<16x1xf32>
    %16 = math.exp %15 : vector<16x1xf32>
    %17 = vector.broadcast %14 : vector<16x1xf32> to vector<16x16xf32>
    %18 = arith.subf %9, %17 : vector<16x16xf32>
    %19 = math.exp %18 : vector<16x16xf32>
    %c0_13 = arith.constant 0 : index
    %c0_14 = arith.constant 0 : index
    %c0_15 = arith.constant 0 : index
    %20 = vector.load %arg8[%c0_13, %c0_14, %c0_15] : memref<4x16x1xf32, #tpu.memory_space<vmem>>, vector<1x16x1xf32>
    %21 = vector.shape_cast %20 : vector<1x16x1xf32> to vector<16x1xf32>
    %22 = arith.mulf %16, %21 : vector<16x1xf32>
    %cst_16 = arith.constant dense<0.000000e+00> : vector<16xf32>
    %23 = vector.multi_reduction <add>, %19, %cst_16 [1] : vector<16x16xf32> to vector<16xf32>
    %24 = vector.shape_cast %23 : vector<16xf32> to vector<16x1xf32>
    %25 = arith.addf %22, %24 : vector<16x1xf32>
    %c0_17 = arith.constant 0 : index
    %c0_18 = arith.constant 0 : index
    %c0_19 = arith.constant 0 : index
    %26 = vector.load %arg8[%c0_17, %c0_18, %c0_19] : memref<4x16x1xf32, #tpu.memory_space<vmem>>, vector<1x16x1xf32>
    %27 = vector.shape_cast %26 : vector<1x16x1xf32> to vector<16x1xf32>
    %28 = vector.shape_cast %25 : vector<16x1xf32> to vector<1x16x1xf32>
    tpu.vector_store %arg8[%c0_17, %c0_18, %c0_19], %28 {strides = array<i32>} : memref<4x16x1xf32, #tpu.memory_space<vmem>>, vector<1x16x1xf32>,
    %c0_20 = arith.constant 0 : index
    %c0_21 = arith.constant 0 : index
    %c0_22 = arith.constant 0 : index
    %29 = vector.load %arg7[%c0_20, %c0_21, %c0_22] : memref<4x16x1xf32, #tpu.memory_space<vmem>>, vector<1x16x1xf32>
    %30 = vector.shape_cast %29 : vector<1x16x1xf32> to vector<16x1xf32>
    %31 = vector.shape_cast %14 : vector<16x1xf32> to vector<1x16x1xf32>
    tpu.vector_store %arg7[%c0_20, %c0_21, %c0_22], %31 {strides = array<i32>} : memref<4x16x1xf32, #tpu.memory_space<vmem>>, vector<1x16x1xf32>,
    %32 = arith.truncf %19 : vector<16x16xf32> to vector<16x16xbf16>
    %cst_23 = arith.constant dense<0.000000e+00> : vector<16x32xf32>
    %33 = tpu.matmul %32, %8, %cst_23 {dimension_numbers = #tpu.dot_dimension_numbers<[1], [0], [0], [1], [0, 0, 1, 1], [], []>} : vector<16x16xbf16>, vector<16x32xbf16>, vector<16x32xf32> -> vector<16x32xf32>
    %c0_24 = arith.constant 0 : index
    %c0_25 = arith.constant 0 : index
    %34 = vector.load %arg9[%c0_24, %c0_25] : memref<16x128xf32, #tpu.memory_space<vmem>>, vector<16x32xf32>
    %35 = vector.broadcast %16 : vector<16x1xf32> to vector<16x32xf32>
    %36 = arith.mulf %35, %34 : vector<16x32xf32>
    %37 = arith.addf %36, %33 : vector<16x32xf32>
    %c0_26 = arith.constant 0 : index
    %c0_27 = arith.constant 0 : index
    %38 = vector.load %arg9[%c0_26, %c0_27] : memref<16x128xf32, #tpu.memory_space<vmem>>, vector<16x32xf32>
    tpu.vector_store %arg9[%c0_26, %c0_27], %37 {strides = array<i32>} : memref<16x128xf32, #tpu.memory_space<vmem>>, vector<16x32xf32>,
    %c0_28 = arith.constant 0 : index
    %c0_29 = arith.constant 0 : index
    %c32 = arith.constant 32 : index
    %39 = vector.load %arg3[%c0_28, %c0_29, %c32] : memref<1x16x128xbf16, #tpu.memory_space<vmem>>, vector<1x16x32xbf16>
    %40 = vector.shape_cast %39 : vector<1x16x32xbf16> to vector<16x32xbf16>
    %c0_30 = arith.constant 0 : index
    %c0_31 = arith.constant 0 : index
    %c32_32 = arith.constant 32 : index
    %41 = vector.load %arg4[%c0_30, %c0_31, %c32_32] : memref<1x16x128xbf16, #tpu.memory_space<vmem>>, vector<1x16x32xbf16>
    %42 = vector.shape_cast %41 : vector<1x16x32xbf16> to vector<16x32xbf16>
    %c0_33 = arith.constant 0 : index
    %c0_34 = arith.constant 0 : index
    %c32_35 = arith.constant 32 : index
    %43 = vector.load %arg5[%c0_33, %c0_34, %c32_35] : memref<1x16x128xbf16, #tpu.memory_space<vmem>>, vector<1x16x32xbf16>
    %44 = vector.shape_cast %43 : vector<1x16x32xbf16> to vector<16x32xbf16>
    %cst_36 = arith.constant dense<0.000000e+00> : vector<16x16xf32>
    %45 = tpu.matmul %40, %42, %cst_36 {dimension_numbers = #tpu.dot_dimension_numbers<[1], [1], [0], [0], [0, 0, 1, 0], [], []>} : vector<16x32xbf16>, vector<16x32xbf16>, vector<16x16xf32> -> vector<16x16xf32>
    %c1 = arith.constant 1 : index
    %c0_37 = arith.constant 0 : index
    %c0_38 = arith.constant 0 : index
    %46 = vector.load %arg7[%c1, %c0_37, %c0_38] : memref<4x16x1xf32, #tpu.memory_space<vmem>>, vector<1x16x1xf32>
    %47 = vector.shape_cast %46 : vector<1x16x1xf32> to vector<16x1xf32>
    %cst_39 = arith.constant dense<0xFF800000> : vector<16xf32>
    %48 = vector.multi_reduction <maximumf>, %45, %cst_39 [1] : vector<16x16xf32> to vector<16xf32>
    %49 = vector.shape_cast %48 : vector<16xf32> to vector<16x1xf32>
    %50 = arith.maximumf %47, %49 : vector<16x1xf32>
    %51 = arith.subf %47, %50 : vector<16x1xf32>
    %52 = math.exp %51 : vector<16x1xf32>
    %53 = vector.broadcast %50 : vector<16x1xf32> to vector<16x16xf32>
    %54 = arith.subf %45, %53 : vector<16x16xf32>
    %55 = math.exp %54 : vector<16x16xf32>
    %c1_40 = arith.constant 1 : index
    %c0_41 = arith.constant 0 : index
    %c0_42 = arith.constant 0 : index
    %56 = vector.load %arg8[%c1_40, %c0_41, %c0_42] : memref<4x16x1xf32, #tpu.memory_space<vmem>>, vector<1x16x1xf32>
    %57 = vector.shape_cast %56 : vector<1x16x1xf32> to vector<16x1xf32>
    %58 = arith.mulf %52, %57 : vector<16x1xf32>
    %cst_43 = arith.constant dense<0.000000e+00> : vector<16xf32>
    %59 = vector.multi_reduction <add>, %55, %cst_43 [1] : vector<16x16xf32> to vector<16xf32>
    %60 = vector.shape_cast %59 : vector<16xf32> to vector<16x1xf32>
    %61 = arith.addf %58, %60 : vector<16x1xf32>
    %c1_44 = arith.constant 1 : index
    %c0_45 = arith.constant 0 : index
    %c0_46 = arith.constant 0 : index
    %62 = vector.load %arg8[%c1_44, %c0_45, %c0_46] : memref<4x16x1xf32, #tpu.memory_space<vmem>>, vector<1x16x1xf32>
    %63 = vector.shape_cast %62 : vector<1x16x1xf32> to vector<16x1xf32>
    %64 = vector.shape_cast %61 : vector<16x1xf32> to vector<1x16x1xf32>
    tpu.vector_store %arg8[%c1_44, %c0_45, %c0_46], %64 {strides = array<i32>} : memref<4x16x1xf32, #tpu.memory_space<vmem>>, vector<1x16x1xf32>,
    %c1_47 = arith.constant 1 : index
    %c0_48 = arith.constant 0 : index
    %c0_49 = arith.constant 0 : index
    %65 = vector.load %arg7[%c1_47, %c0_48, %c0_49] : memref<4x16x1xf32, #tpu.memory_space<vmem>>, vector<1x16x1xf32>
    %66 = vector.shape_cast %65 : vector<1x16x1xf32> to vector<16x1xf32>
    %67 = vector.shape_cast %50 : vector<16x1xf32> to vector<1x16x1xf32>
    tpu.vector_store %arg7[%c1_47, %c0_48, %c0_49], %67 {strides = array<i32>} : memref<4x16x1xf32, #tpu.memory_space<vmem>>, vector<1x16x1xf32>,
    %68 = arith.truncf %55 : vector<16x16xf32> to vector<16x16xbf16>
    %cst_50 = arith.constant dense<0.000000e+00> : vector<16x32xf32>
    %69 = tpu.matmul %68, %44, %cst_50 {dimension_numbers = #tpu.dot_dimension_numbers<[1], [0], [0], [1], [0, 0, 1, 1], [], []>} : vector<16x16xbf16>, vector<16x32xbf16>, vector<16x32xf32> -> vector<16x32xf32>
    %c0_51 = arith.constant 0 : index
    %c32_52 = arith.constant 32 : index
    %70 = vector.load %arg9[%c0_51, %c32_52] : memref<16x128xf32, #tpu.memory_space<vmem>>, vector<16x32xf32>
    %71 = vector.broadcast %52 : vector<16x1xf32> to vector<16x32xf32>
    %72 = arith.mulf %71, %70 : vector<16x32xf32>
    %73 = arith.addf %72, %69 : vector<16x32xf32>
    %c0_53 = arith.constant 0 : index
    %c32_54 = arith.constant 32 : index
    %74 = vector.load %arg9[%c0_53, %c32_54] : memref<16x128xf32, #tpu.memory_space<vmem>>, vector<16x32xf32>
    tpu.vector_store %arg9[%c0_53, %c32_54], %73 {strides = array<i32>} : memref<16x128xf32, #tpu.memory_space<vmem>>, vector<16x32xf32>,
    %c0_55 = arith.constant 0 : index
    %c0_56 = arith.constant 0 : index
    %c64 = arith.constant 64 : index
    %75 = vector.load %arg3[%c0_55, %c0_56, %c64] : memref<1x16x128xbf16, #tpu.memory_space<vmem>>, vector<1x16x32xbf16>
    %76 = vector.shape_cast %75 : vector<1x16x32xbf16> to vector<16x32xbf16>
    %c0_57 = arith.constant 0 : index
    %c0_58 = arith.constant 0 : index
    %c64_59 = arith.constant 64 : index
    %77 = vector.load %arg4[%c0_57, %c0_58, %c64_59] : memref<1x16x128xbf16, #tpu.memory_space<vmem>>, vector<1x16x32xbf16>
    %78 = vector.shape_cast %77 : vector<1x16x32xbf16> to vector<16x32xbf16>
    %c0_60 = arith.constant 0 : index
    %c0_61 = arith.constant 0 : index
    %c64_62 = arith.constant 64 : index
    %79 = vector.load %arg5[%c0_60, %c0_61, %c64_62] : memref<1x16x128xbf16, #tpu.memory_space<vmem>>, vector<1x16x32xbf16>
    %80 = vector.shape_cast %79 : vector<1x16x32xbf16> to vector<16x32xbf16>
    %cst_63 = arith.constant dense<0.000000e+00> : vector<16x16xf32>
    %81 = tpu.matmul %76, %78, %cst_63 {dimension_numbers = #tpu.dot_dimension_numbers<[1], [1], [0], [0], [0, 0, 1, 0], [], []>} : vector<16x32xbf16>, vector<16x32xbf16>, vector<16x16xf32> -> vector<16x16xf32>
    %c2 = arith.constant 2 : index
    %c0_64 = arith.constant 0 : index
    %c0_65 = arith.constant 0 : index
    %82 = vector.load %arg7[%c2, %c0_64, %c0_65] : memref<4x16x1xf32, #tpu.memory_space<vmem>>, vector<1x16x1xf32>
    %83 = vector.shape_cast %82 : vector<1x16x1xf32> to vector<16x1xf32>
    %cst_66 = arith.constant dense<0xFF800000> : vector<16xf32>
    %84 = vector.multi_reduction <maximumf>, %81, %cst_66 [1] : vector<16x16xf32> to vector<16xf32>
    %85 = vector.shape_cast %84 : vector<16xf32> to vector<16x1xf32>
    %86 = arith.maximumf %83, %85 : vector<16x1xf32>
    %87 = arith.subf %83, %86 : vector<16x1xf32>
    %88 = math.exp %87 : vector<16x1xf32>
    %89 = vector.broadcast %86 : vector<16x1xf32> to vector<16x16xf32>
    %90 = arith.subf %81, %89 : vector<16x16xf32>
    %91 = math.exp %90 : vector<16x16xf32>
    %c2_67 = arith.constant 2 : index
    %c0_68 = arith.constant 0 : index
    %c0_69 = arith.constant 0 : index
    %92 = vector.load %arg8[%c2_67, %c0_68, %c0_69] : memref<4x16x1xf32, #tpu.memory_space<vmem>>, vector<1x16x1xf32>
    %93 = vector.shape_cast %92 : vector<1x16x1xf32> to vector<16x1xf32>
    %94 = arith.mulf %88, %93 : vector<16x1xf32>
    %cst_70 = arith.constant dense<0.000000e+00> : vector<16xf32>
    %95 = vector.multi_reduction <add>, %91, %cst_70 [1] : vector<16x16xf32> to vector<16xf32>
    %96 = vector.shape_cast %95 : vector<16xf32> to vector<16x1xf32>
    %97 = arith.addf %94, %96 : vector<16x1xf32>
    %c2_71 = arith.constant 2 : index
    %c0_72 = arith.constant 0 : index
    %c0_73 = arith.constant 0 : index
    %98 = vector.load %arg8[%c2_71, %c0_72, %c0_73] : memref<4x16x1xf32, #tpu.memory_space<vmem>>, vector<1x16x1xf32>
    %99 = vector.shape_cast %98 : vector<1x16x1xf32> to vector<16x1xf32>
    %100 = vector.shape_cast %97 : vector<16x1xf32> to vector<1x16x1xf32>
    tpu.vector_store %arg8[%c2_71, %c0_72, %c0_73], %100 {strides = array<i32>} : memref<4x16x1xf32, #tpu.memory_space<vmem>>, vector<1x16x1xf32>,
    %c2_74 = arith.constant 2 : index
    %c0_75 = arith.constant 0 : index
    %c0_76 = arith.constant 0 : index
    %101 = vector.load %arg7[%c2_74, %c0_75, %c0_76] : memref<4x16x1xf32, #tpu.memory_space<vmem>>, vector<1x16x1xf32>
    %102 = vector.shape_cast %101 : vector<1x16x1xf32> to vector<16x1xf32>
    %103 = vector.shape_cast %86 : vector<16x1xf32> to vector<1x16x1xf32>
    tpu.vector_store %arg7[%c2_74, %c0_75, %c0_76], %103 {strides = array<i32>} : memref<4x16x1xf32, #tpu.memory_space<vmem>>, vector<1x16x1xf32>,
    %104 = arith.truncf %91 : vector<16x16xf32> to vector<16x16xbf16>
    %cst_77 = arith.constant dense<0.000000e+00> : vector<16x32xf32>
    %105 = tpu.matmul %104, %80, %cst_77 {dimension_numbers = #tpu.dot_dimension_numbers<[1], [0], [0], [1], [0, 0, 1, 1], [], []>} : vector<16x16xbf16>, vector<16x32xbf16>, vector<16x32xf32> -> vector<16x32xf32>
    %c0_78 = arith.constant 0 : index
    %c64_79 = arith.constant 64 : index
    %106 = vector.load %arg9[%c0_78, %c64_79] : memref<16x128xf32, #tpu.memory_space<vmem>>, vector<16x32xf32>
    %107 = vector.broadcast %88 : vector<16x1xf32> to vector<16x32xf32>
    %108 = arith.mulf %107, %106 : vector<16x32xf32>
    %109 = arith.addf %108, %105 : vector<16x32xf32>
    %c0_80 = arith.constant 0 : index
    %c64_81 = arith.constant 64 : index
    %110 = vector.load %arg9[%c0_80, %c64_81] : memref<16x128xf32, #tpu.memory_space<vmem>>, vector<16x32xf32>
    tpu.vector_store %arg9[%c0_80, %c64_81], %109 {strides = array<i32>} : memref<16x128xf32, #tpu.memory_space<vmem>>, vector<16x32xf32>,
    %c0_82 = arith.constant 0 : index
    %c0_83 = arith.constant 0 : index
    %c96 = arith.constant 96 : index
    %111 = vector.load %arg3[%c0_82, %c0_83, %c96] : memref<1x16x128xbf16, #tpu.memory_space<vmem>>, vector<1x16x32xbf16>
    %112 = vector.shape_cast %111 : vector<1x16x32xbf16> to vector<16x32xbf16>
    %c0_84 = arith.constant 0 : index
    %c0_85 = arith.constant 0 : index
    %c96_86 = arith.constant 96 : index
    %113 = vector.load %arg4[%c0_84, %c0_85, %c96_86] : memref<1x16x128xbf16, #tpu.memory_space<vmem>>, vector<1x16x32xbf16>
    %114 = vector.shape_cast %113 : vector<1x16x32xbf16> to vector<16x32xbf16>
    %c0_87 = arith.constant 0 : index
    %c0_88 = arith.constant 0 : index
    %c96_89 = arith.constant 96 : index
    %115 = vector.load %arg5[%c0_87, %c0_88, %c96_89] : memref<1x16x128xbf16, #tpu.memory_space<vmem>>, vector<1x16x32xbf16>
    %116 = vector.shape_cast %115 : vector<1x16x32xbf16> to vector<16x32xbf16>
    %cst_90 = arith.constant dense<0.000000e+00> : vector<16x16xf32>
    %117 = tpu.matmul %112, %114, %cst_90 {dimension_numbers = #tpu.dot_dimension_numbers<[1], [1], [0], [0], [0, 0, 1, 0], [], []>} : vector<16x32xbf16>, vector<16x32xbf16>, vector<16x16xf32> -> vector<16x16xf32>
    %c3 = arith.constant 3 : index
    %c0_91 = arith.constant 0 : index
    %c0_92 = arith.constant 0 : index
    %118 = vector.load %arg7[%c3, %c0_91, %c0_92] : memref<4x16x1xf32, #tpu.memory_space<vmem>>, vector<1x16x1xf32>
    %119 = vector.shape_cast %118 : vector<1x16x1xf32> to vector<16x1xf32>
    %cst_93 = arith.constant dense<0xFF800000> : vector<16xf32>
    %120 = vector.multi_reduction <maximumf>, %117, %cst_93 [1] : vector<16x16xf32> to vector<16xf32>
    %121 = vector.shape_cast %120 : vector<16xf32> to vector<16x1xf32>
    %122 = arith.maximumf %119, %121 : vector<16x1xf32>
    %123 = arith.subf %119, %122 : vector<16x1xf32>
    %124 = math.exp %123 : vector<16x1xf32>
    %125 = vector.broadcast %122 : vector<16x1xf32> to vector<16x16xf32>
    %126 = arith.subf %117, %125 : vector<16x16xf32>
    %127 = math.exp %126 : vector<16x16xf32>
    %c3_94 = arith.constant 3 : index
    %c0_95 = arith.constant 0 : index
    %c0_96 = arith.constant 0 : index
    %128 = vector.load %arg8[%c3_94, %c0_95, %c0_96] : memref<4x16x1xf32, #tpu.memory_space<vmem>>, vector<1x16x1xf32>
    %129 = vector.shape_cast %128 : vector<1x16x1xf32> to vector<16x1xf32>
    %130 = arith.mulf %124, %129 : vector<16x1xf32>
    %cst_97 = arith.constant dense<0.000000e+00> : vector<16xf32>
    %131 = vector.multi_reduction <add>, %127, %cst_97 [1] : vector<16x16xf32> to vector<16xf32>
    %132 = vector.shape_cast %131 : vector<16xf32> to vector<16x1xf32>
    %133 = arith.addf %130, %132 : vector<16x1xf32>
    %c3_98 = arith.constant 3 : index
    %c0_99 = arith.constant 0 : index
    %c0_100 = arith.constant 0 : index
    %134 = vector.load %arg8[%c3_98, %c0_99, %c0_100] : memref<4x16x1xf32, #tpu.memory_space<vmem>>, vector<1x16x1xf32>
    %135 = vector.shape_cast %134 : vector<1x16x1xf32> to vector<16x1xf32>
    %136 = vector.shape_cast %133 : vector<16x1xf32> to vector<1x16x1xf32>
    tpu.vector_store %arg8[%c3_98, %c0_99, %c0_100], %136 {strides = array<i32>} : memref<4x16x1xf32, #tpu.memory_space<vmem>>, vector<1x16x1xf32>,
    %c3_101 = arith.constant 3 : index
    %c0_102 = arith.constant 0 : index
    %c0_103 = arith.constant 0 : index
    %137 = vector.load %arg7[%c3_101, %c0_102, %c0_103] : memref<4x16x1xf32, #tpu.memory_space<vmem>>, vector<1x16x1xf32>
    %138 = vector.shape_cast %137 : vector<1x16x1xf32> to vector<16x1xf32>
    %139 = vector.shape_cast %122 : vector<16x1xf32> to vector<1x16x1xf32>
    tpu.vector_store %arg7[%c3_101, %c0_102, %c0_103], %139 {strides = array<i32>} : memref<4x16x1xf32, #tpu.memory_space<vmem>>, vector<1x16x1xf32>,
    %140 = arith.truncf %127 : vector<16x16xf32> to vector<16x16xbf16>
    %cst_104 = arith.constant dense<0.000000e+00> : vector<16x32xf32>
    %141 = tpu.matmul %140, %116, %cst_104 {dimension_numbers = #tpu.dot_dimension_numbers<[1], [0], [0], [1], [0, 0, 1, 1], [], []>} : vector<16x16xbf16>, vector<16x32xbf16>, vector<16x32xf32> -> vector<16x32xf32>
    %c0_105 = arith.constant 0 : index
    %c96_106 = arith.constant 96 : index
    %142 = vector.load %arg9[%c0_105, %c96_106] : memref<16x128xf32, #tpu.memory_space<vmem>>, vector<16x32xf32>
    %143 = vector.broadcast %124 : vector<16x1xf32> to vector<16x32xf32>
    %144 = arith.mulf %143, %142 : vector<16x32xf32>
    %145 = arith.addf %144, %141 : vector<16x32xf32>
    %c0_107 = arith.constant 0 : index
    %c96_108 = arith.constant 96 : index
    %146 = vector.load %arg9[%c0_107, %c96_108] : memref<16x128xf32, #tpu.memory_space<vmem>>, vector<16x32xf32>
    tpu.vector_store %arg9[%c0_107, %c96_108], %145 {strides = array<i32>} : memref<16x128xf32, #tpu.memory_space<vmem>>, vector<16x32xf32>,
    %c0_i32_109 = arith.constant 0 : i32
    %147 = arith.cmpi eq, %arg2, %c0_i32_109 : i32
    %148 = arith.extui %147 : i1 to i32
    %c0_i32_110 = arith.constant 0 : i32
    %149 = arith.cmpi ne, %148, %c0_i32_110 : i32
    scf.if %149 {
      %c0_111 = arith.constant 0 : index
      %c0_112 = arith.constant 0 : index
      %c0_113 = arith.constant 0 : index
      %150 = vector.load %arg8[%c0_111, %c0_112, %c0_113] : memref<4x16x1xf32, #tpu.memory_space<vmem>>, vector<1x16x1xf32>
      %151 = vector.shape_cast %150 : vector<1x16x1xf32> to vector<16x1xf32>
      %152 = tpu.reciprocal %151 {approx = true} : vector<16x1xf32> -> vector<16x1xf32>
      %c0_114 = arith.constant 0 : index
      %c0_115 = arith.constant 0 : index
      %153 = vector.load %arg9[%c0_114, %c0_115] : memref<16x128xf32, #tpu.memory_space<vmem>>, vector<16x32xf32>
      %154 = vector.broadcast %152 : vector<16x1xf32> to vector<16x32xf32>
      %155 = arith.mulf %153, %154 : vector<16x32xf32>
      %156 = arith.truncf %155 : vector<16x32xf32> to vector<16x32xbf16>
      %c0_116 = arith.constant 0 : index
      %c0_117 = arith.constant 0 : index
      %c0_118 = arith.constant 0 : index
      %157 = vector.load %arg6[%c0_116, %c0_117, %c0_118] : memref<1x16x128xbf16, #tpu.memory_space<vmem>>, vector<1x16x32xbf16>
      %158 = vector.shape_cast %157 : vector<1x16x32xbf16> to vector<16x32xbf16>
      %159 = vector.shape_cast %156 : vector<16x32xbf16> to vector<1x16x32xbf16>
      tpu.vector_store %arg6[%c0_116, %c0_117, %c0_118], %159 {strides = array<i32>} : memref<1x16x128xbf16, #tpu.memory_space<vmem>>, vector<1x16x32xbf16>,
      %c1_119 = arith.constant 1 : index
      %c0_120 = arith.constant 0 : index
      %c0_121 = arith.constant 0 : index
      %160 = vector.load %arg8[%c1_119, %c0_120, %c0_121] : memref<4x16x1xf32, #tpu.memory_space<vmem>>, vector<1x16x1xf32>
      %161 = vector.shape_cast %160 : vector<1x16x1xf32> to vector<16x1xf32>
      %162 = tpu.reciprocal %161 {approx = true} : vector<16x1xf32> -> vector<16x1xf32>
      %c0_122 = arith.constant 0 : index
      %c32_123 = arith.constant 32 : index
      %163 = vector.load %arg9[%c0_122, %c32_123] : memref<16x128xf32, #tpu.memory_space<vmem>>, vector<16x32xf32>
      %164 = vector.broadcast %162 : vector<16x1xf32> to vector<16x32xf32>
      %165 = arith.mulf %163, %164 : vector<16x32xf32>
      %166 = arith.truncf %165 : vector<16x32xf32> to vector<16x32xbf16>
      %c0_124 = arith.constant 0 : index
      %c0_125 = arith.constant 0 : index
      %c32_126 = arith.constant 32 : index
      %167 = vector.load %arg6[%c0_124, %c0_125, %c32_126] : memref<1x16x128xbf16, #tpu.memory_space<vmem>>, vector<1x16x32xbf16>
      %168 = vector.shape_cast %167 : vector<1x16x32xbf16> to vector<16x32xbf16>
      %169 = vector.shape_cast %166 : vector<16x32xbf16> to vector<1x16x32xbf16>
      tpu.vector_store %arg6[%c0_124, %c0_125, %c32_126], %169 {strides = array<i32>} : memref<1x16x128xbf16, #tpu.memory_space<vmem>>, vector<1x16x32xbf16>,
      %c2_127 = arith.constant 2 : index
      %c0_128 = arith.constant 0 : index
      %c0_129 = arith.constant 0 : index
      %170 = vector.load %arg8[%c2_127, %c0_128, %c0_129] : memref<4x16x1xf32, #tpu.memory_space<vmem>>, vector<1x16x1xf32>
      %171 = vector.shape_cast %170 : vector<1x16x1xf32> to vector<16x1xf32>
      %172 = tpu.reciprocal %171 {approx = true} : vector<16x1xf32> -> vector<16x1xf32>
      %c0_130 = arith.constant 0 : index
      %c64_131 = arith.constant 64 : index
      %173 = vector.load %arg9[%c0_130, %c64_131] : memref<16x128xf32, #tpu.memory_space<vmem>>, vector<16x32xf32>
      %174 = vector.broadcast %172 : vector<16x1xf32> to vector<16x32xf32>
      %175 = arith.mulf %173, %174 : vector<16x32xf32>
      %176 = arith.truncf %175 : vector<16x32xf32> to vector<16x32xbf16>
      %c0_132 = arith.constant 0 : index
      %c0_133 = arith.constant 0 : index
      %c64_134 = arith.constant 64 : index
      %177 = vector.load %arg6[%c0_132, %c0_133, %c64_134] : memref<1x16x128xbf16, #tpu.memory_space<vmem>>, vector<1x16x32xbf16>
      %178 = vector.shape_cast %177 : vector<1x16x32xbf16> to vector<16x32xbf16>
      %179 = vector.shape_cast %176 : vector<16x32xbf16> to vector<1x16x32xbf16>
      tpu.vector_store %arg6[%c0_132, %c0_133, %c64_134], %179 {strides = array<i32>} : memref<1x16x128xbf16, #tpu.memory_space<vmem>>, vector<1x16x32xbf16>,
      %c3_135 = arith.constant 3 : index
      %c0_136 = arith.constant 0 : index
      %c0_137 = arith.constant 0 : index
      %180 = vector.load %arg8[%c3_135, %c0_136, %c0_137] : memref<4x16x1xf32, #tpu.memory_space<vmem>>, vector<1x16x1xf32>
      %181 = vector.shape_cast %180 : vector<1x16x1xf32> to vector<16x1xf32>
      %182 = tpu.reciprocal %181 {approx = true} : vector<16x1xf32> -> vector<16x1xf32>
      %c0_138 = arith.constant 0 : index
      %c96_139 = arith.constant 96 : index
      %183 = vector.load %arg9[%c0_138, %c96_139] : memref<16x128xf32, #tpu.memory_space<vmem>>, vector<16x32xf32>
      %184 = vector.broadcast %182 : vector<16x1xf32> to vector<16x32xf32>
      %185 = arith.mulf %183, %184 : vector<16x32xf32>
      %186 = arith.truncf %185 : vector<16x32xf32> to vector<16x32xbf16>
      %c0_140 = arith.constant 0 : index
      %c0_141 = arith.constant 0 : index
      %c96_142 = arith.constant 96 : index
      %187 = vector.load %arg6[%c0_140, %c0_141, %c96_142] : memref<1x16x128xbf16, #tpu.memory_space<vmem>>, vector<1x16x32xbf16>
      %188 = vector.shape_cast %187 : vector<1x16x32xbf16> to vector<16x32xbf16>
      %189 = vector.shape_cast %186 : vector<16x32xbf16> to vector<1x16x32xbf16>
      tpu.vector_store %arg6[%c0_140, %c0_141, %c96_142], %189 {strides = array<i32>} : memref<1x16x128xbf16, #tpu.memory_space<vmem>>, vector<1x16x32xbf16>,
    } else {
    }
    return
  }
  func.func @transform_0(%arg0: i32, %arg1: i32, %arg2: i32) -> (i32, i32, i32) {
    %c0_i32 = arith.constant 0 : i32
    %c0_i32_0 = arith.constant 0 : i32
    return %arg0, %arg1, %c0_i32 : i32, i32, i32
  }
  func.func @transform_1(%arg0: i32, %arg1: i32, %arg2: i32) -> (i32, i32, i32) {
    %c1_i32 = arith.constant 1 : i32
    %c0_i32 = arith.constant 0 : i32
    return %arg0, %arg2, %c1_i32 : i32, i32, i32
  }
  func.func @transform_2(%arg0: i32, %arg1: i32, %arg2: i32) -> (i32, i32, i32) {
    %c2_i32 = arith.constant 2 : i32
    %c0_i32 = arith.constant 0 : i32
    return %arg0, %arg2, %c2_i32 : i32, i32, i32
  }
  func.func @transform_3(%arg0: i32, %arg1: i32, %arg2: i32) -> (i32, i32, i32) {
    %c0_i32 = arith.constant 0 : i32
    %c0_i32_0 = arith.constant 0 : i32
    return %arg0, %arg1, %c0_i32 : i32, i32, i32
  }
}

module attributes {stable_mosaic.version = 11 : i64} {
  func.func @_matmul_kernel(%arg0: i32, %arg1: i32, %arg2: i32, %arg3: memref<32x128xbf16, #tpu.memory_space<vmem>>, %arg4: memref<128x128xbf16, #tpu.memory_space<vmem>>, %arg5: memref<1x128xf32, #tpu.memory_space<vmem>>, %arg6: memref<32x128xbf16, #tpu.memory_space<vmem>>, %arg7: memref<32x128xf32, #tpu.memory_space<vmem>>) attributes {dimension_semantics = [#tpu.dimension_semantics<parallel>, #tpu.dimension_semantics<parallel>, #tpu.dimension_semantics<arbitrary>], iteration_bounds = array<i64: 1, 1, 1>, scalar_prefetch = 0 : i64, scratch_operands = 1 : i64, tpu.core_type = #tpu.core_type<tc>, window_params = [{transform_indices = @transform_0, window_bounds = array<i64: 32, 128>}, {transform_indices = @transform_1, window_bounds = array<i64: 128, 128>}, {transform_indices = @transform_2, window_bounds = array<i64: 1, 128>}, {transform_indices = @transform_3, window_bounds = array<i64: 32, 128>}]} {
    %c0_i32 = arith.constant 0 : i32
    %0 = arith.cmpi eq, %arg2, %c0_i32 : i32
    %1 = arith.extui %0 : i1 to i32
    %c0_i32_0 = arith.constant 0 : i32
    %2 = arith.cmpi ne, %1, %c0_i32_0 : i32
    scf.if %2 {
      %cst_10 = arith.constant 0.000000e+00 : f32
      %12 = vector.broadcast %cst_10 : f32 to vector<32x128xf32>
      %c0_11 = arith.constant 0 : index
      %c0_12 = arith.constant 0 : index
      %13 = vector.load %arg7[%c0_11, %c0_12] : memref<32x128xf32, #tpu.memory_space<vmem>>, vector<32x128xf32>
      tpu.vector_store %arg7[%c0_11, %c0_12], %12 {strides = array<i32>} : memref<32x128xf32, #tpu.memory_space<vmem>>, vector<32x128xf32>,
    } else {
    }
    %c0 = arith.constant 0 : index
    %c0_1 = arith.constant 0 : index
    %3 = vector.load %arg7[%c0, %c0_1] : memref<32x128xf32, #tpu.memory_space<vmem>>, vector<32x128xf32>
    %c0_2 = arith.constant 0 : index
    %c0_3 = arith.constant 0 : index
    %4 = vector.load %arg3[%c0_2, %c0_3] : memref<32x128xbf16, #tpu.memory_space<vmem>>, vector<32x128xbf16>
    %c0_4 = arith.constant 0 : index
    %c0_5 = arith.constant 0 : index
    %5 = vector.load %arg4[%c0_4, %c0_5] : memref<128x128xbf16, #tpu.memory_space<vmem>>, vector<128x128xbf16>
    %cst = arith.constant dense<0.000000e+00> : vector<32x128xf32>
    %6 = tpu.matmul %4, %5, %cst {dimension_numbers = #tpu.dot_dimension_numbers<[1], [0], [0], [1], [0, 0, 1, 1], [], []>} : vector<32x128xbf16>, vector<128x128xbf16>, vector<32x128xf32> -> vector<32x128xf32>
    %7 = arith.addf %3, %6 : vector<32x128xf32>
    %c0_6 = arith.constant 0 : index
    %c0_7 = arith.constant 0 : index
    %8 = vector.load %arg7[%c0_6, %c0_7] : memref<32x128xf32, #tpu.memory_space<vmem>>, vector<32x128xf32>
    tpu.vector_store %arg7[%c0_6, %c0_7], %7 {strides = array<i32>} : memref<32x128xf32, #tpu.memory_space<vmem>>, vector<32x128xf32>,
    %c0_i32_8 = arith.constant 0 : i32
    %9 = arith.cmpi eq, %arg2, %c0_i32_8 : i32
    %10 = arith.extui %9 : i1 to i32
    %c0_i32_9 = arith.constant 0 : i32
    %11 = arith.cmpi ne, %10, %c0_i32_9 : i32
    scf.if %11 {
      %c0_10 = arith.constant 0 : index
      %c0_11 = arith.constant 0 : index
      %12 = vector.load %arg7[%c0_10, %c0_11] : memref<32x128xf32, #tpu.memory_space<vmem>>, vector<32x128xf32>
      %c0_12 = arith.constant 0 : index
      %c0_13 = arith.constant 0 : index
      %13 = vector.load %arg5[%c0_12, %c0_13] : memref<1x128xf32, #tpu.memory_space<vmem>>, vector<1x128xf32>
      %14 = vector.broadcast %13 : vector<1x128xf32> to vector<32x128xf32>
      %15 = arith.addf %12, %14 : vector<32x128xf32>
      %16 = arith.truncf %15 : vector<32x128xf32> to vector<32x128xbf16>
      %c0_14 = arith.constant 0 : index
      %c0_15 = arith.constant 0 : index
      %17 = vector.load %arg6[%c0_14, %c0_15] : memref<32x128xbf16, #tpu.memory_space<vmem>>, vector<32x128xbf16>
      tpu.vector_store %arg6[%c0_14, %c0_15], %16 {strides = array<i32>} : memref<32x128xbf16, #tpu.memory_space<vmem>>, vector<32x128xbf16>,
    } else {
    }
    return
  }
  func.func @transform_0(%arg0: i32, %arg1: i32, %arg2: i32) -> (i32, i32) {
    %c0_i32 = arith.constant 0 : i32
    return %arg0, %arg2 : i32, i32
  }
  func.func @transform_1(%arg0: i32, %arg1: i32, %arg2: i32) -> (i32, i32) {
    %c0_i32 = arith.constant 0 : i32
    return %arg2, %arg1 : i32, i32
  }
  func.func @transform_2(%arg0: i32, %arg1: i32, %arg2: i32) -> (i32, i32) {
    %c0_i32 = arith.constant 0 : i32
    %c0_i32_0 = arith.constant 0 : i32
    return %c0_i32, %arg1 : i32, i32
  }
  func.func @transform_3(%arg0: i32, %arg1: i32, %arg2: i32) -> (i32, i32) {
    %c0_i32 = arith.constant 0 : i32
    return %arg0, %arg1 : i32, i32
  }
}

module attributes {stable_mosaic.version = 11 : i64} {
  func.func @_add_ln_kernel(%arg0: i32, %arg1: memref<32x128xbf16, #tpu.memory_space<vmem>>, %arg2: memref<32x128xbf16, #tpu.memory_space<vmem>>, %arg3: memref<1x128xf32, #tpu.memory_space<vmem>>, %arg4: memref<1x128xf32, #tpu.memory_space<vmem>>, %arg5: memref<32x128xbf16, #tpu.memory_space<vmem>>) attributes {dimension_semantics = [#tpu.dimension_semantics<parallel>], iteration_bounds = array<i64: 1>, scalar_prefetch = 0 : i64, scratch_operands = 0 : i64, tpu.core_type = #tpu.core_type<tc>, window_params = [{transform_indices = @transform_0, window_bounds = array<i64: 32, 128>}, {transform_indices = @transform_1, window_bounds = array<i64: 32, 128>}, {pipeline_mode = #tpu.pipeline_mode<synchronous>, transform_indices = @transform_2, window_bounds = array<i64: 1, 128>}, {pipeline_mode = #tpu.pipeline_mode<synchronous>, transform_indices = @transform_3, window_bounds = array<i64: 1, 128>}, {transform_indices = @transform_4, window_bounds = array<i64: 32, 128>}]} {
    %c0 = arith.constant 0 : index
    %c0_0 = arith.constant 0 : index
    %0 = vector.load %arg1[%c0, %c0_0] : memref<32x128xbf16, #tpu.memory_space<vmem>>, vector<32x128xbf16>
    %1 = arith.extf %0 : vector<32x128xbf16> to vector<32x128xf32>
    %c0_1 = arith.constant 0 : index
    %c0_2 = arith.constant 0 : index
    %2 = vector.load %arg2[%c0_1, %c0_2] : memref<32x128xbf16, #tpu.memory_space<vmem>>, vector<32x128xbf16>
    %3 = arith.extf %2 : vector<32x128xbf16> to vector<32x128xf32>
    %4 = arith.addf %1, %3 : vector<32x128xf32>
    %cst = arith.constant dense<0.000000e+00> : vector<32xf32>
    %5 = vector.multi_reduction <add>, %4, %cst [1] : vector<32x128xf32> to vector<32xf32>
    %6 = vector.shape_cast %5 : vector<32xf32> to vector<32x1xf32>
    %cst_3 = arith.constant 1.280000e+02 : f32
    %7 = vector.broadcast %cst_3 : f32 to vector<32x1xf32>
    %8 = arith.divf %6, %7 : vector<32x1xf32>
    %9 = vector.broadcast %8 : vector<32x1xf32> to vector<32x128xf32>
    %10 = arith.subf %4, %9 : vector<32x128xf32>
    %11 = arith.mulf %10, %10 : vector<32x128xf32>
    %cst_4 = arith.constant dense<0.000000e+00> : vector<32xf32>
    %12 = vector.multi_reduction <add>, %11, %cst_4 [1] : vector<32x128xf32> to vector<32xf32>
    %13 = vector.shape_cast %12 : vector<32xf32> to vector<32x1xf32>
    %cst_5 = arith.constant 1.280000e+02 : f32
    %14 = vector.broadcast %cst_5 : f32 to vector<32x1xf32>
    %15 = arith.divf %13, %14 : vector<32x1xf32>
    %16 = vector.broadcast %8 : vector<32x1xf32> to vector<32x128xf32>
    %17 = arith.subf %4, %16 : vector<32x128xf32>
    %cst_6 = arith.constant 9.99999974E-6 : f32
    %18 = vector.broadcast %cst_6 : f32 to vector<32x1xf32>
    %19 = arith.addf %15, %18 : vector<32x1xf32>
    %20 = math.rsqrt %19 : vector<32x1xf32>
    %21 = vector.broadcast %20 : vector<32x1xf32> to vector<32x128xf32>
    %22 = arith.mulf %17, %21 : vector<32x128xf32>
    %c0_7 = arith.constant 0 : index
    %c0_8 = arith.constant 0 : index
    %23 = vector.load %arg3[%c0_7, %c0_8] : memref<1x128xf32, #tpu.memory_space<vmem>>, vector<1x128xf32>
    %24 = vector.broadcast %23 : vector<1x128xf32> to vector<32x128xf32>
    %25 = arith.mulf %22, %24 : vector<32x128xf32>
    %c0_9 = arith.constant 0 : index
    %c0_10 = arith.constant 0 : index
    %26 = vector.load %arg4[%c0_9, %c0_10] : memref<1x128xf32, #tpu.memory_space<vmem>>, vector<1x128xf32>
    %27 = vector.broadcast %26 : vector<1x128xf32> to vector<32x128xf32>
    %28 = arith.addf %25, %27 : vector<32x128xf32>
    %29 = arith.truncf %28 : vector<32x128xf32> to vector<32x128xbf16>
    %c0_11 = arith.constant 0 : index
    %c0_12 = arith.constant 0 : index
    %30 = vector.load %arg5[%c0_11, %c0_12] : memref<32x128xbf16, #tpu.memory_space<vmem>>, vector<32x128xbf16>
    tpu.vector_store %arg5[%c0_11, %c0_12], %29 {strides = array<i32>} : memref<32x128xbf16, #tpu.memory_space<vmem>>, vector<32x128xbf16>,
    return
  }
  func.func @transform_0(%arg0: i32) -> (i32, i32) {
    %c0_i32 = arith.constant 0 : i32
    %c0_i32_0 = arith.constant 0 : i32
    return %arg0, %c0_i32 : i32, i32
  }
  func.func @transform_1(%arg0: i32) -> (i32, i32) {
    %c0_i32 = arith.constant 0 : i32
    %c0_i32_0 = arith.constant 0 : i32
    return %arg0, %c0_i32 : i32, i32
  }
  func.func @transform_2(%arg0: i32) -> (i32, i32) {
    %c0_i32 = arith.constant 0 : i32
    %c0_i32_0 = arith.constant 0 : i32
    %c0_i32_1 = arith.constant 0 : i32
    return %c0_i32, %c0_i32_0 : i32, i32
  }
  func.func @transform_3(%arg0: i32) -> (i32, i32) {
    %c0_i32 = arith.constant 0 : i32
    %c0_i32_0 = arith.constant 0 : i32
    %c0_i32_1 = arith.constant 0 : i32
    return %c0_i32, %c0_i32_0 : i32, i32
  }
  func.func @transform_4(%arg0: i32) -> (i32, i32) {
    %c0_i32 = arith.constant 0 : i32
    %c0_i32_0 = arith.constant 0 : i32
    return %arg0, %c0_i32 : i32, i32
  }
}

module attributes {stable_mosaic.version = 11 : i64} {
  func.func @_matmul_kernel(%arg0: i32, %arg1: i32, %arg2: i32, %arg3: memref<32x128xbf16, #tpu.memory_space<vmem>>, %arg4: memref<128x256xbf16, #tpu.memory_space<vmem>>, %arg5: memref<1x256xf32, #tpu.memory_space<vmem>>, %arg6: memref<32x256xbf16, #tpu.memory_space<vmem>>, %arg7: memref<32x256xf32, #tpu.memory_space<vmem>>) attributes {dimension_semantics = [#tpu.dimension_semantics<parallel>, #tpu.dimension_semantics<parallel>, #tpu.dimension_semantics<arbitrary>], iteration_bounds = array<i64: 1, 2, 1>, scalar_prefetch = 0 : i64, scratch_operands = 1 : i64, tpu.core_type = #tpu.core_type<tc>, window_params = [{transform_indices = @transform_0, window_bounds = array<i64: 32, 128>}, {transform_indices = @transform_1, window_bounds = array<i64: 128, 256>}, {transform_indices = @transform_2, window_bounds = array<i64: 1, 256>}, {transform_indices = @transform_3, window_bounds = array<i64: 32, 256>}]} {
    %c0_i32 = arith.constant 0 : i32
    %0 = arith.cmpi eq, %arg2, %c0_i32 : i32
    %1 = arith.extui %0 : i1 to i32
    %c0_i32_0 = arith.constant 0 : i32
    %2 = arith.cmpi ne, %1, %c0_i32_0 : i32
    scf.if %2 {
      %cst_10 = arith.constant 0.000000e+00 : f32
      %12 = vector.broadcast %cst_10 : f32 to vector<32x256xf32>
      %c0_11 = arith.constant 0 : index
      %c0_12 = arith.constant 0 : index
      %13 = vector.load %arg7[%c0_11, %c0_12] : memref<32x256xf32, #tpu.memory_space<vmem>>, vector<32x256xf32>
      tpu.vector_store %arg7[%c0_11, %c0_12], %12 {strides = array<i32>} : memref<32x256xf32, #tpu.memory_space<vmem>>, vector<32x256xf32>,
    } else {
    }
    %c0 = arith.constant 0 : index
    %c0_1 = arith.constant 0 : index
    %3 = vector.load %arg7[%c0, %c0_1] : memref<32x256xf32, #tpu.memory_space<vmem>>, vector<32x256xf32>
    %c0_2 = arith.constant 0 : index
    %c0_3 = arith.constant 0 : index
    %4 = vector.load %arg3[%c0_2, %c0_3] : memref<32x128xbf16, #tpu.memory_space<vmem>>, vector<32x128xbf16>
    %c0_4 = arith.constant 0 : index
    %c0_5 = arith.constant 0 : index
    %5 = vector.load %arg4[%c0_4, %c0_5] : memref<128x256xbf16, #tpu.memory_space<vmem>>, vector<128x256xbf16>
    %cst = arith.constant dense<0.000000e+00> : vector<32x256xf32>
    %6 = tpu.matmul %4, %5, %cst {dimension_numbers = #tpu.dot_dimension_numbers<[1], [0], [0], [1], [0, 0, 1, 1], [], []>} : vector<32x128xbf16>, vector<128x256xbf16>, vector<32x256xf32> -> vector<32x256xf32>
    %7 = arith.addf %3, %6 : vector<32x256xf32>
    %c0_6 = arith.constant 0 : index
    %c0_7 = arith.constant 0 : index
    %8 = vector.load %arg7[%c0_6, %c0_7] : memref<32x256xf32, #tpu.memory_space<vmem>>, vector<32x256xf32>
    tpu.vector_store %arg7[%c0_6, %c0_7], %7 {strides = array<i32>} : memref<32x256xf32, #tpu.memory_space<vmem>>, vector<32x256xf32>,
    %c0_i32_8 = arith.constant 0 : i32
    %9 = arith.cmpi eq, %arg2, %c0_i32_8 : i32
    %10 = arith.extui %9 : i1 to i32
    %c0_i32_9 = arith.constant 0 : i32
    %11 = arith.cmpi ne, %10, %c0_i32_9 : i32
    scf.if %11 {
      %c0_10 = arith.constant 0 : index
      %c0_11 = arith.constant 0 : index
      %12 = vector.load %arg7[%c0_10, %c0_11] : memref<32x256xf32, #tpu.memory_space<vmem>>, vector<32x256xf32>
      %c0_12 = arith.constant 0 : index
      %c0_13 = arith.constant 0 : index
      %13 = vector.load %arg5[%c0_12, %c0_13] : memref<1x256xf32, #tpu.memory_space<vmem>>, vector<1x256xf32>
      %14 = vector.broadcast %13 : vector<1x256xf32> to vector<32x256xf32>
      %15 = arith.addf %12, %14 : vector<32x256xf32>
      %cst_14 = arith.constant 5.000000e-01 : f32
      %16 = vector.broadcast %cst_14 : f32 to vector<32x256xf32>
      %17 = arith.mulf %16, %15 : vector<32x256xf32>
      %cst_15 = arith.constant 0.707106769 : f32
      %18 = vector.broadcast %cst_15 : f32 to vector<32x256xf32>
      %19 = arith.mulf %15, %18 : vector<32x256xf32>
      %20 = math.erf %19 : vector<32x256xf32>
      %cst_16 = arith.constant 1.000000e+00 : f32
      %21 = vector.broadcast %cst_16 : f32 to vector<32x256xf32>
      %22 = arith.addf %21, %20 : vector<32x256xf32>
      %23 = arith.mulf %17, %22 : vector<32x256xf32>
      %24 = arith.truncf %23 : vector<32x256xf32> to vector<32x256xbf16>
      %c0_17 = arith.constant 0 : index
      %c0_18 = arith.constant 0 : index
      %25 = vector.load %arg6[%c0_17, %c0_18] : memref<32x256xbf16, #tpu.memory_space<vmem>>, vector<32x256xbf16>
      tpu.vector_store %arg6[%c0_17, %c0_18], %24 {strides = array<i32>} : memref<32x256xbf16, #tpu.memory_space<vmem>>, vector<32x256xbf16>,
    } else {
    }
    return
  }
  func.func @transform_0(%arg0: i32, %arg1: i32, %arg2: i32) -> (i32, i32) {
    %c0_i32 = arith.constant 0 : i32
    return %arg0, %arg2 : i32, i32
  }
  func.func @transform_1(%arg0: i32, %arg1: i32, %arg2: i32) -> (i32, i32) {
    %c0_i32 = arith.constant 0 : i32
    return %arg2, %arg1 : i32, i32
  }
  func.func @transform_2(%arg0: i32, %arg1: i32, %arg2: i32) -> (i32, i32) {
    %c0_i32 = arith.constant 0 : i32
    %c0_i32_0 = arith.constant 0 : i32
    return %c0_i32, %arg1 : i32, i32
  }
  func.func @transform_3(%arg0: i32, %arg1: i32, %arg2: i32) -> (i32, i32) {
    %c0_i32 = arith.constant 0 : i32
    return %arg0, %arg1 : i32, i32
  }
}

module attributes {stable_mosaic.version = 11 : i64} {
  func.func @_matmul_kernel(%arg0: i32, %arg1: i32, %arg2: i32, %arg3: memref<32x512xbf16, #tpu.memory_space<vmem>>, %arg4: memref<512x128xbf16, #tpu.memory_space<vmem>>, %arg5: memref<1x128xf32, #tpu.memory_space<vmem>>, %arg6: memref<32x128xbf16, #tpu.memory_space<vmem>>, %arg7: memref<32x128xf32, #tpu.memory_space<vmem>>) attributes {dimension_semantics = [#tpu.dimension_semantics<parallel>, #tpu.dimension_semantics<parallel>, #tpu.dimension_semantics<arbitrary>], iteration_bounds = array<i64: 1, 1, 1>, scalar_prefetch = 0 : i64, scratch_operands = 1 : i64, tpu.core_type = #tpu.core_type<tc>, window_params = [{transform_indices = @transform_0, window_bounds = array<i64: 32, 512>}, {transform_indices = @transform_1, window_bounds = array<i64: 512, 128>}, {transform_indices = @transform_2, window_bounds = array<i64: 1, 128>}, {transform_indices = @transform_3, window_bounds = array<i64: 32, 128>}]} {
    %c0_i32 = arith.constant 0 : i32
    %0 = arith.cmpi eq, %arg2, %c0_i32 : i32
    %1 = arith.extui %0 : i1 to i32
    %c0_i32_0 = arith.constant 0 : i32
    %2 = arith.cmpi ne, %1, %c0_i32_0 : i32
    scf.if %2 {
      %cst_10 = arith.constant 0.000000e+00 : f32
      %12 = vector.broadcast %cst_10 : f32 to vector<32x128xf32>
      %c0_11 = arith.constant 0 : index
      %c0_12 = arith.constant 0 : index
      %13 = vector.load %arg7[%c0_11, %c0_12] : memref<32x128xf32, #tpu.memory_space<vmem>>, vector<32x128xf32>
      tpu.vector_store %arg7[%c0_11, %c0_12], %12 {strides = array<i32>} : memref<32x128xf32, #tpu.memory_space<vmem>>, vector<32x128xf32>,
    } else {
    }
    %c0 = arith.constant 0 : index
    %c0_1 = arith.constant 0 : index
    %3 = vector.load %arg7[%c0, %c0_1] : memref<32x128xf32, #tpu.memory_space<vmem>>, vector<32x128xf32>
    %c0_2 = arith.constant 0 : index
    %c0_3 = arith.constant 0 : index
    %4 = vector.load %arg3[%c0_2, %c0_3] : memref<32x512xbf16, #tpu.memory_space<vmem>>, vector<32x512xbf16>
    %c0_4 = arith.constant 0 : index
    %c0_5 = arith.constant 0 : index
    %5 = vector.load %arg4[%c0_4, %c0_5] : memref<512x128xbf16, #tpu.memory_space<vmem>>, vector<512x128xbf16>
    %cst = arith.constant dense<0.000000e+00> : vector<32x128xf32>
    %6 = tpu.matmul %4, %5, %cst {dimension_numbers = #tpu.dot_dimension_numbers<[1], [0], [0], [1], [0, 0, 1, 1], [], []>} : vector<32x512xbf16>, vector<512x128xbf16>, vector<32x128xf32> -> vector<32x128xf32>
    %7 = arith.addf %3, %6 : vector<32x128xf32>
    %c0_6 = arith.constant 0 : index
    %c0_7 = arith.constant 0 : index
    %8 = vector.load %arg7[%c0_6, %c0_7] : memref<32x128xf32, #tpu.memory_space<vmem>>, vector<32x128xf32>
    tpu.vector_store %arg7[%c0_6, %c0_7], %7 {strides = array<i32>} : memref<32x128xf32, #tpu.memory_space<vmem>>, vector<32x128xf32>,
    %c0_i32_8 = arith.constant 0 : i32
    %9 = arith.cmpi eq, %arg2, %c0_i32_8 : i32
    %10 = arith.extui %9 : i1 to i32
    %c0_i32_9 = arith.constant 0 : i32
    %11 = arith.cmpi ne, %10, %c0_i32_9 : i32
    scf.if %11 {
      %c0_10 = arith.constant 0 : index
      %c0_11 = arith.constant 0 : index
      %12 = vector.load %arg7[%c0_10, %c0_11] : memref<32x128xf32, #tpu.memory_space<vmem>>, vector<32x128xf32>
      %c0_12 = arith.constant 0 : index
      %c0_13 = arith.constant 0 : index
      %13 = vector.load %arg5[%c0_12, %c0_13] : memref<1x128xf32, #tpu.memory_space<vmem>>, vector<1x128xf32>
      %14 = vector.broadcast %13 : vector<1x128xf32> to vector<32x128xf32>
      %15 = arith.addf %12, %14 : vector<32x128xf32>
      %16 = arith.truncf %15 : vector<32x128xf32> to vector<32x128xbf16>
      %c0_14 = arith.constant 0 : index
      %c0_15 = arith.constant 0 : index
      %17 = vector.load %arg6[%c0_14, %c0_15] : memref<32x128xbf16, #tpu.memory_space<vmem>>, vector<32x128xbf16>
      tpu.vector_store %arg6[%c0_14, %c0_15], %16 {strides = array<i32>} : memref<32x128xbf16, #tpu.memory_space<vmem>>, vector<32x128xbf16>,
    } else {
    }
    return
  }
  func.func @transform_0(%arg0: i32, %arg1: i32, %arg2: i32) -> (i32, i32) {
    %c0_i32 = arith.constant 0 : i32
    return %arg0, %arg2 : i32, i32
  }
  func.func @transform_1(%arg0: i32, %arg1: i32, %arg2: i32) -> (i32, i32) {
    %c0_i32 = arith.constant 0 : i32
    return %arg2, %arg1 : i32, i32
  }
  func.func @transform_2(%arg0: i32, %arg1: i32, %arg2: i32) -> (i32, i32) {
    %c0_i32 = arith.constant 0 : i32
    %c0_i32_0 = arith.constant 0 : i32
    return %c0_i32, %arg1 : i32, i32
  }
  func.func @transform_3(%arg0: i32, %arg1: i32, %arg2: i32) -> (i32, i32) {
    %c0_i32 = arith.constant 0 : i32
    return %arg0, %arg1 : i32, i32
  }
}

module attributes {stable_mosaic.version = 11 : i64} {
  func.func @_add_ln_scale_res_kernel(%arg0: i32, %arg1: memref<32x128xbf16, #tpu.memory_space<vmem>>, %arg2: memref<32x128xbf16, #tpu.memory_space<vmem>>, %arg3: memref<1x128xf32, #tpu.memory_space<vmem>>, %arg4: memref<1x128xf32, #tpu.memory_space<vmem>>, %arg5: memref<32x128xbf16, #tpu.memory_space<vmem>>, %arg6: memref<32x128xbf16, #tpu.memory_space<vmem>>) attributes {dimension_semantics = [#tpu.dimension_semantics<parallel>], iteration_bounds = array<i64: 1>, scalar_prefetch = 0 : i64, scratch_operands = 0 : i64, tpu.core_type = #tpu.core_type<tc>, window_params = [{transform_indices = @transform_0, window_bounds = array<i64: 32, 128>}, {transform_indices = @transform_1, window_bounds = array<i64: 32, 128>}, {pipeline_mode = #tpu.pipeline_mode<synchronous>, transform_indices = @transform_2, window_bounds = array<i64: 1, 128>}, {pipeline_mode = #tpu.pipeline_mode<synchronous>, transform_indices = @transform_3, window_bounds = array<i64: 1, 128>}, {transform_indices = @transform_4, window_bounds = array<i64: 32, 128>}, {transform_indices = @transform_5, window_bounds = array<i64: 32, 128>}]} {
    %c0 = arith.constant 0 : index
    %c0_0 = arith.constant 0 : index
    %0 = vector.load %arg1[%c0, %c0_0] : memref<32x128xbf16, #tpu.memory_space<vmem>>, vector<32x128xbf16>
    %1 = arith.extf %0 : vector<32x128xbf16> to vector<32x128xf32>
    %c0_1 = arith.constant 0 : index
    %c0_2 = arith.constant 0 : index
    %2 = vector.load %arg2[%c0_1, %c0_2] : memref<32x128xbf16, #tpu.memory_space<vmem>>, vector<32x128xbf16>
    %3 = arith.extf %2 : vector<32x128xbf16> to vector<32x128xf32>
    %4 = arith.addf %1, %3 : vector<32x128xf32>
    %cst = arith.constant dense<0.000000e+00> : vector<32xf32>
    %5 = vector.multi_reduction <add>, %4, %cst [1] : vector<32x128xf32> to vector<32xf32>
    %6 = vector.shape_cast %5 : vector<32xf32> to vector<32x1xf32>
    %cst_3 = arith.constant 1.280000e+02 : f32
    %7 = vector.broadcast %cst_3 : f32 to vector<32x1xf32>
    %8 = arith.divf %6, %7 : vector<32x1xf32>
    %9 = vector.broadcast %8 : vector<32x1xf32> to vector<32x128xf32>
    %10 = arith.subf %4, %9 : vector<32x128xf32>
    %11 = arith.mulf %10, %10 : vector<32x128xf32>
    %cst_4 = arith.constant dense<0.000000e+00> : vector<32xf32>
    %12 = vector.multi_reduction <add>, %11, %cst_4 [1] : vector<32x128xf32> to vector<32xf32>
    %13 = vector.shape_cast %12 : vector<32xf32> to vector<32x1xf32>
    %cst_5 = arith.constant 1.280000e+02 : f32
    %14 = vector.broadcast %cst_5 : f32 to vector<32x1xf32>
    %15 = arith.divf %13, %14 : vector<32x1xf32>
    %16 = vector.broadcast %8 : vector<32x1xf32> to vector<32x128xf32>
    %17 = arith.subf %4, %16 : vector<32x128xf32>
    %cst_6 = arith.constant 9.99999974E-6 : f32
    %18 = vector.broadcast %cst_6 : f32 to vector<32x1xf32>
    %19 = arith.addf %15, %18 : vector<32x1xf32>
    %20 = math.rsqrt %19 : vector<32x1xf32>
    %21 = vector.broadcast %20 : vector<32x1xf32> to vector<32x128xf32>
    %22 = arith.mulf %17, %21 : vector<32x128xf32>
    %c0_7 = arith.constant 0 : index
    %c0_8 = arith.constant 0 : index
    %23 = vector.load %arg3[%c0_7, %c0_8] : memref<1x128xf32, #tpu.memory_space<vmem>>, vector<1x128xf32>
    %24 = vector.broadcast %23 : vector<1x128xf32> to vector<32x128xf32>
    %25 = arith.mulf %22, %24 : vector<32x128xf32>
    %c0_9 = arith.constant 0 : index
    %c0_10 = arith.constant 0 : index
    %26 = vector.load %arg4[%c0_9, %c0_10] : memref<1x128xf32, #tpu.memory_space<vmem>>, vector<1x128xf32>
    %27 = vector.broadcast %26 : vector<1x128xf32> to vector<32x128xf32>
    %28 = arith.addf %25, %27 : vector<32x128xf32>
    %cst_11 = arith.constant 1.000000e+00 : f32
    %29 = vector.broadcast %cst_11 : f32 to vector<32x128xf32>
    %30 = arith.mulf %28, %29 : vector<32x128xf32>
    %c0_12 = arith.constant 0 : index
    %c0_13 = arith.constant 0 : index
    %31 = vector.load %arg5[%c0_12, %c0_13] : memref<32x128xbf16, #tpu.memory_space<vmem>>, vector<32x128xbf16>
    %32 = arith.extf %31 : vector<32x128xbf16> to vector<32x128xf32>
    %33 = arith.addf %30, %32 : vector<32x128xf32>
    %34 = arith.truncf %33 : vector<32x128xf32> to vector<32x128xbf16>
    %c0_14 = arith.constant 0 : index
    %c0_15 = arith.constant 0 : index
    %35 = vector.load %arg6[%c0_14, %c0_15] : memref<32x128xbf16, #tpu.memory_space<vmem>>, vector<32x128xbf16>
    tpu.vector_store %arg6[%c0_14, %c0_15], %34 {strides = array<i32>} : memref<32x128xbf16, #tpu.memory_space<vmem>>, vector<32x128xbf16>,
    return
  }
  func.func @transform_0(%arg0: i32) -> (i32, i32) {
    %c0_i32 = arith.constant 0 : i32
    %c0_i32_0 = arith.constant 0 : i32
    return %arg0, %c0_i32 : i32, i32
  }
  func.func @transform_1(%arg0: i32) -> (i32, i32) {
    %c0_i32 = arith.constant 0 : i32
    %c0_i32_0 = arith.constant 0 : i32
    return %arg0, %c0_i32 : i32, i32
  }
  func.func @transform_2(%arg0: i32) -> (i32, i32) {
    %c0_i32 = arith.constant 0 : i32
    %c0_i32_0 = arith.constant 0 : i32
    %c0_i32_1 = arith.constant 0 : i32
    return %c0_i32, %c0_i32_0 : i32, i32
  }
  func.func @transform_3(%arg0: i32) -> (i32, i32) {
    %c0_i32 = arith.constant 0 : i32
    %c0_i32_0 = arith.constant 0 : i32
    %c0_i32_1 = arith.constant 0 : i32
    return %c0_i32, %c0_i32_0 : i32, i32
  }
  func.func @transform_4(%arg0: i32) -> (i32, i32) {
    %c0_i32 = arith.constant 0 : i32
    %c0_i32_0 = arith.constant 0 : i32
    return %arg0, %c0_i32 : i32, i32
  }
  func.func @transform_5(%arg0: i32) -> (i32, i32) {
    %c0_i32 = arith.constant 0 : i32
    %c0_i32_0 = arith.constant 0 : i32
    return %arg0, %c0_i32 : i32, i32
  }
}

module attributes {stable_mosaic.version = 11 : i64} {
  func.func @_add_ln_scale_res_kernel(%arg0: i32, %arg1: memref<32x128xbf16, #tpu.memory_space<vmem>>, %arg2: memref<32x128xbf16, #tpu.memory_space<vmem>>, %arg3: memref<1x128xf32, #tpu.memory_space<vmem>>, %arg4: memref<1x128xf32, #tpu.memory_space<vmem>>, %arg5: memref<32x128xbf16, #tpu.memory_space<vmem>>, %arg6: memref<32x128xbf16, #tpu.memory_space<vmem>>) attributes {dimension_semantics = [#tpu.dimension_semantics<parallel>], iteration_bounds = array<i64: 1>, scalar_prefetch = 0 : i64, scratch_operands = 0 : i64, tpu.core_type = #tpu.core_type<tc>, window_params = [{transform_indices = @transform_0, window_bounds = array<i64: 32, 128>}, {transform_indices = @transform_1, window_bounds = array<i64: 32, 128>}, {pipeline_mode = #tpu.pipeline_mode<synchronous>, transform_indices = @transform_2, window_bounds = array<i64: 1, 128>}, {pipeline_mode = #tpu.pipeline_mode<synchronous>, transform_indices = @transform_3, window_bounds = array<i64: 1, 128>}, {transform_indices = @transform_4, window_bounds = array<i64: 32, 128>}, {transform_indices = @transform_5, window_bounds = array<i64: 32, 128>}]} {
    %c0 = arith.constant 0 : index
    %c0_0 = arith.constant 0 : index
    %0 = vector.load %arg1[%c0, %c0_0] : memref<32x128xbf16, #tpu.memory_space<vmem>>, vector<32x128xbf16>
    %1 = arith.extf %0 : vector<32x128xbf16> to vector<32x128xf32>
    %c0_1 = arith.constant 0 : index
    %c0_2 = arith.constant 0 : index
    %2 = vector.load %arg2[%c0_1, %c0_2] : memref<32x128xbf16, #tpu.memory_space<vmem>>, vector<32x128xbf16>
    %3 = arith.extf %2 : vector<32x128xbf16> to vector<32x128xf32>
    %4 = arith.addf %1, %3 : vector<32x128xf32>
    %cst = arith.constant dense<0.000000e+00> : vector<32xf32>
    %5 = vector.multi_reduction <add>, %4, %cst [1] : vector<32x128xf32> to vector<32xf32>
    %6 = vector.shape_cast %5 : vector<32xf32> to vector<32x1xf32>
    %cst_3 = arith.constant 1.280000e+02 : f32
    %7 = vector.broadcast %cst_3 : f32 to vector<32x1xf32>
    %8 = arith.divf %6, %7 : vector<32x1xf32>
    %9 = vector.broadcast %8 : vector<32x1xf32> to vector<32x128xf32>
    %10 = arith.subf %4, %9 : vector<32x128xf32>
    %11 = arith.mulf %10, %10 : vector<32x128xf32>
    %cst_4 = arith.constant dense<0.000000e+00> : vector<32xf32>
    %12 = vector.multi_reduction <add>, %11, %cst_4 [1] : vector<32x128xf32> to vector<32xf32>
    %13 = vector.shape_cast %12 : vector<32xf32> to vector<32x1xf32>
    %cst_5 = arith.constant 1.280000e+02 : f32
    %14 = vector.broadcast %cst_5 : f32 to vector<32x1xf32>
    %15 = arith.divf %13, %14 : vector<32x1xf32>
    %16 = vector.broadcast %8 : vector<32x1xf32> to vector<32x128xf32>
    %17 = arith.subf %4, %16 : vector<32x128xf32>
    %cst_6 = arith.constant 9.99999974E-6 : f32
    %18 = vector.broadcast %cst_6 : f32 to vector<32x1xf32>
    %19 = arith.addf %15, %18 : vector<32x1xf32>
    %20 = math.rsqrt %19 : vector<32x1xf32>
    %21 = vector.broadcast %20 : vector<32x1xf32> to vector<32x128xf32>
    %22 = arith.mulf %17, %21 : vector<32x128xf32>
    %c0_7 = arith.constant 0 : index
    %c0_8 = arith.constant 0 : index
    %23 = vector.load %arg3[%c0_7, %c0_8] : memref<1x128xf32, #tpu.memory_space<vmem>>, vector<1x128xf32>
    %24 = vector.broadcast %23 : vector<1x128xf32> to vector<32x128xf32>
    %25 = arith.mulf %22, %24 : vector<32x128xf32>
    %c0_9 = arith.constant 0 : index
    %c0_10 = arith.constant 0 : index
    %26 = vector.load %arg4[%c0_9, %c0_10] : memref<1x128xf32, #tpu.memory_space<vmem>>, vector<1x128xf32>
    %27 = vector.broadcast %26 : vector<1x128xf32> to vector<32x128xf32>
    %28 = arith.addf %25, %27 : vector<32x128xf32>
    %cst_11 = arith.constant 5.000000e-01 : f32
    %29 = vector.broadcast %cst_11 : f32 to vector<32x128xf32>
    %30 = arith.mulf %28, %29 : vector<32x128xf32>
    %c0_12 = arith.constant 0 : index
    %c0_13 = arith.constant 0 : index
    %31 = vector.load %arg5[%c0_12, %c0_13] : memref<32x128xbf16, #tpu.memory_space<vmem>>, vector<32x128xbf16>
    %32 = arith.extf %31 : vector<32x128xbf16> to vector<32x128xf32>
    %33 = arith.addf %30, %32 : vector<32x128xf32>
    %34 = arith.truncf %33 : vector<32x128xf32> to vector<32x128xbf16>
    %c0_14 = arith.constant 0 : index
    %c0_15 = arith.constant 0 : index
    %35 = vector.load %arg6[%c0_14, %c0_15] : memref<32x128xbf16, #tpu.memory_space<vmem>>, vector<32x128xbf16>
    tpu.vector_store %arg6[%c0_14, %c0_15], %34 {strides = array<i32>} : memref<32x128xbf16, #tpu.memory_space<vmem>>, vector<32x128xbf16>,
    return
  }
  func.func @transform_0(%arg0: i32) -> (i32, i32) {
    %c0_i32 = arith.constant 0 : i32
    %c0_i32_0 = arith.constant 0 : i32
    return %arg0, %c0_i32 : i32, i32
  }
  func.func @transform_1(%arg0: i32) -> (i32, i32) {
    %c0_i32 = arith.constant 0 : i32
    %c0_i32_0 = arith.constant 0 : i32
    return %arg0, %c0_i32 : i32, i32
  }
  func.func @transform_2(%arg0: i32) -> (i32, i32) {
    %c0_i32 = arith.constant 0 : i32
    %c0_i32_0 = arith.constant 0 : i32
    %c0_i32_1 = arith.constant 0 : i32
    return %c0_i32, %c0_i32_0 : i32, i32
  }
  func.func @transform_3(%arg0: i32) -> (i32, i32) {
    %c0_i32 = arith.constant 0 : i32
    %c0_i32_0 = arith.constant 0 : i32
    %c0_i32_1 = arith.constant 0 : i32
    return %c0_i32, %c0_i32_0 : i32, i32
  }
  func.func @transform_4(%arg0: i32) -> (i32, i32) {
    %c0_i32 = arith.constant 0 : i32
    %c0_i32_0 = arith.constant 0 : i32
    return %arg0, %c0_i32 : i32, i32
  }
  func.func @transform_5(%arg0: i32) -> (i32, i32) {
    %c0_i32 = arith.constant 0 : i32
    %c0_i32_0 = arith.constant 0 : i32
    return %arg0, %c0_i32 : i32, i32
  }
}

module attributes {stable_mosaic.version = 11 : i64} {
  func.func @_bmm_left_kernel(%arg0: i32, %arg1: i32, %arg2: memref<16x4xbf16, #tpu.memory_space<vmem>>, %arg3: memref<2x4x512xbf16, #tpu.memory_space<vmem>>, %arg4: memref<2x16x512xbf16, #tpu.memory_space<vmem>>) attributes {dimension_semantics = [#tpu.dimension_semantics<parallel>, #tpu.dimension_semantics<parallel>], iteration_bounds = array<i64: 1, 1>, scalar_prefetch = 0 : i64, scratch_operands = 0 : i64, tpu.core_type = #tpu.core_type<tc>, window_params = [{pipeline_mode = #tpu.pipeline_mode<synchronous>, transform_indices = @transform_0, window_bounds = array<i64: 16, 4>}, {transform_indices = @transform_1, window_bounds = array<i64: 2, 4, 512>}, {transform_indices = @transform_2, window_bounds = array<i64: 2, 16, 512>}]} {
    %c0 = arith.constant 0 : index
    %c0_0 = arith.constant 0 : index
    %0 = vector.load %arg2[%c0, %c0_0] : memref<16x4xbf16, #tpu.memory_space<vmem>>, vector<16x4xbf16>
    %c0_1 = arith.constant 0 : index
    %c0_2 = arith.constant 0 : index
    %c0_3 = arith.constant 0 : index
    %1 = vector.load %arg3[%c0_1, %c0_2, %c0_3] : memref<2x4x512xbf16, #tpu.memory_space<vmem>>, vector<1x4x512xbf16>
    %2 = vector.shape_cast %1 : vector<1x4x512xbf16> to vector<4x512xbf16>
    %cst = arith.constant dense<0.000000e+00> : vector<16x512xf32>
    %3 = tpu.matmul %0, %2, %cst {dimension_numbers = #tpu.dot_dimension_numbers<[1], [0], [0], [1], [0, 0, 1, 1], [], []>} : vector<16x4xbf16>, vector<4x512xbf16>, vector<16x512xf32> -> vector<16x512xf32>
    %4 = arith.truncf %3 : vector<16x512xf32> to vector<16x512xbf16>
    %c0_4 = arith.constant 0 : index
    %c0_5 = arith.constant 0 : index
    %c0_6 = arith.constant 0 : index
    %5 = vector.load %arg4[%c0_4, %c0_5, %c0_6] : memref<2x16x512xbf16, #tpu.memory_space<vmem>>, vector<1x16x512xbf16>
    %6 = vector.shape_cast %5 : vector<1x16x512xbf16> to vector<16x512xbf16>
    %7 = vector.shape_cast %4 : vector<16x512xbf16> to vector<1x16x512xbf16>
    tpu.vector_store %arg4[%c0_4, %c0_5, %c0_6], %7 {strides = array<i32>} : memref<2x16x512xbf16, #tpu.memory_space<vmem>>, vector<1x16x512xbf16>,
    %c1 = arith.constant 1 : index
    %c0_7 = arith.constant 0 : index
    %c0_8 = arith.constant 0 : index
    %8 = vector.load %arg3[%c1, %c0_7, %c0_8] : memref<2x4x512xbf16, #tpu.memory_space<vmem>>, vector<1x4x512xbf16>
    %9 = vector.shape_cast %8 : vector<1x4x512xbf16> to vector<4x512xbf16>
    %cst_9 = arith.constant dense<0.000000e+00> : vector<16x512xf32>
    %10 = tpu.matmul %0, %9, %cst_9 {dimension_numbers = #tpu.dot_dimension_numbers<[1], [0], [0], [1], [0, 0, 1, 1], [], []>} : vector<16x4xbf16>, vector<4x512xbf16>, vector<16x512xf32> -> vector<16x512xf32>
    %11 = arith.truncf %10 : vector<16x512xf32> to vector<16x512xbf16>
    %c1_10 = arith.constant 1 : index
    %c0_11 = arith.constant 0 : index
    %c0_12 = arith.constant 0 : index
    %12 = vector.load %arg4[%c1_10, %c0_11, %c0_12] : memref<2x16x512xbf16, #tpu.memory_space<vmem>>, vector<1x16x512xbf16>
    %13 = vector.shape_cast %12 : vector<1x16x512xbf16> to vector<16x512xbf16>
    %14 = vector.shape_cast %11 : vector<16x512xbf16> to vector<1x16x512xbf16>
    tpu.vector_store %arg4[%c1_10, %c0_11, %c0_12], %14 {strides = array<i32>} : memref<2x16x512xbf16, #tpu.memory_space<vmem>>, vector<1x16x512xbf16>,
    return
  }
  func.func @transform_0(%arg0: i32, %arg1: i32) -> (i32, i32) {
    %c0_i32 = arith.constant 0 : i32
    %c0_i32_0 = arith.constant 0 : i32
    %c0_i32_1 = arith.constant 0 : i32
    return %c0_i32, %c0_i32_0 : i32, i32
  }
  func.func @transform_1(%arg0: i32, %arg1: i32) -> (i32, i32, i32) {
    %c0_i32 = arith.constant 0 : i32
    %c0_i32_0 = arith.constant 0 : i32
    return %arg0, %c0_i32, %arg1 : i32, i32, i32
  }
  func.func @transform_2(%arg0: i32, %arg1: i32) -> (i32, i32, i32) {
    %c0_i32 = arith.constant 0 : i32
    %c0_i32_0 = arith.constant 0 : i32
    return %arg0, %c0_i32, %arg1 : i32, i32, i32
  }
}

module attributes {stable_mosaic.version = 11 : i64} {
  func.func @_bmm_left_kernel(%arg0: i32, %arg1: i32, %arg2: memref<16x4xbf16, #tpu.memory_space<vmem>>, %arg3: memref<8x4x128xbf16, #tpu.memory_space<vmem>>, %arg4: memref<8x16x128xbf16, #tpu.memory_space<vmem>>) attributes {dimension_semantics = [#tpu.dimension_semantics<parallel>, #tpu.dimension_semantics<parallel>], iteration_bounds = array<i64: 4, 1>, scalar_prefetch = 0 : i64, scratch_operands = 0 : i64, tpu.core_type = #tpu.core_type<tc>, window_params = [{pipeline_mode = #tpu.pipeline_mode<synchronous>, transform_indices = @transform_0, window_bounds = array<i64: 16, 4>}, {transform_indices = @transform_1, window_bounds = array<i64: 8, 4, 128>}, {transform_indices = @transform_2, window_bounds = array<i64: 8, 16, 128>}]} {
    %c0 = arith.constant 0 : index
    %c0_0 = arith.constant 0 : index
    %0 = vector.load %arg2[%c0, %c0_0] : memref<16x4xbf16, #tpu.memory_space<vmem>>, vector<16x4xbf16>
    %c0_1 = arith.constant 0 : index
    %c0_2 = arith.constant 0 : index
    %c0_3 = arith.constant 0 : index
    %1 = vector.load %arg3[%c0_1, %c0_2, %c0_3] : memref<8x4x128xbf16, #tpu.memory_space<vmem>>, vector<1x4x128xbf16>
    %2 = vector.shape_cast %1 : vector<1x4x128xbf16> to vector<4x128xbf16>
    %cst = arith.constant dense<0.000000e+00> : vector<16x128xf32>
    %3 = tpu.matmul %0, %2, %cst {dimension_numbers = #tpu.dot_dimension_numbers<[1], [0], [0], [1], [0, 0, 1, 1], [], []>} : vector<16x4xbf16>, vector<4x128xbf16>, vector<16x128xf32> -> vector<16x128xf32>
    %4 = arith.truncf %3 : vector<16x128xf32> to vector<16x128xbf16>
    %c0_4 = arith.constant 0 : index
    %c0_5 = arith.constant 0 : index
    %c0_6 = arith.constant 0 : index
    %5 = vector.load %arg4[%c0_4, %c0_5, %c0_6] : memref<8x16x128xbf16, #tpu.memory_space<vmem>>, vector<1x16x128xbf16>
    %6 = vector.shape_cast %5 : vector<1x16x128xbf16> to vector<16x128xbf16>
    %7 = vector.shape_cast %4 : vector<16x128xbf16> to vector<1x16x128xbf16>
    tpu.vector_store %arg4[%c0_4, %c0_5, %c0_6], %7 {strides = array<i32>} : memref<8x16x128xbf16, #tpu.memory_space<vmem>>, vector<1x16x128xbf16>,
    %c1 = arith.constant 1 : index
    %c0_7 = arith.constant 0 : index
    %c0_8 = arith.constant 0 : index
    %8 = vector.load %arg3[%c1, %c0_7, %c0_8] : memref<8x4x128xbf16, #tpu.memory_space<vmem>>, vector<1x4x128xbf16>
    %9 = vector.shape_cast %8 : vector<1x4x128xbf16> to vector<4x128xbf16>
    %cst_9 = arith.constant dense<0.000000e+00> : vector<16x128xf32>
    %10 = tpu.matmul %0, %9, %cst_9 {dimension_numbers = #tpu.dot_dimension_numbers<[1], [0], [0], [1], [0, 0, 1, 1], [], []>} : vector<16x4xbf16>, vector<4x128xbf16>, vector<16x128xf32> -> vector<16x128xf32>
    %11 = arith.truncf %10 : vector<16x128xf32> to vector<16x128xbf16>
    %c1_10 = arith.constant 1 : index
    %c0_11 = arith.constant 0 : index
    %c0_12 = arith.constant 0 : index
    %12 = vector.load %arg4[%c1_10, %c0_11, %c0_12] : memref<8x16x128xbf16, #tpu.memory_space<vmem>>, vector<1x16x128xbf16>
    %13 = vector.shape_cast %12 : vector<1x16x128xbf16> to vector<16x128xbf16>
    %14 = vector.shape_cast %11 : vector<16x128xbf16> to vector<1x16x128xbf16>
    tpu.vector_store %arg4[%c1_10, %c0_11, %c0_12], %14 {strides = array<i32>} : memref<8x16x128xbf16, #tpu.memory_space<vmem>>, vector<1x16x128xbf16>,
    %c2 = arith.constant 2 : index
    %c0_13 = arith.constant 0 : index
    %c0_14 = arith.constant 0 : index
    %15 = vector.load %arg3[%c2, %c0_13, %c0_14] : memref<8x4x128xbf16, #tpu.memory_space<vmem>>, vector<1x4x128xbf16>
    %16 = vector.shape_cast %15 : vector<1x4x128xbf16> to vector<4x128xbf16>
    %cst_15 = arith.constant dense<0.000000e+00> : vector<16x128xf32>
    %17 = tpu.matmul %0, %16, %cst_15 {dimension_numbers = #tpu.dot_dimension_numbers<[1], [0], [0], [1], [0, 0, 1, 1], [], []>} : vector<16x4xbf16>, vector<4x128xbf16>, vector<16x128xf32> -> vector<16x128xf32>
    %18 = arith.truncf %17 : vector<16x128xf32> to vector<16x128xbf16>
    %c2_16 = arith.constant 2 : index
    %c0_17 = arith.constant 0 : index
    %c0_18 = arith.constant 0 : index
    %19 = vector.load %arg4[%c2_16, %c0_17, %c0_18] : memref<8x16x128xbf16, #tpu.memory_space<vmem>>, vector<1x16x128xbf16>
    %20 = vector.shape_cast %19 : vector<1x16x128xbf16> to vector<16x128xbf16>
    %21 = vector.shape_cast %18 : vector<16x128xbf16> to vector<1x16x128xbf16>
    tpu.vector_store %arg4[%c2_16, %c0_17, %c0_18], %21 {strides = array<i32>} : memref<8x16x128xbf16, #tpu.memory_space<vmem>>, vector<1x16x128xbf16>,
    %c3 = arith.constant 3 : index
    %c0_19 = arith.constant 0 : index
    %c0_20 = arith.constant 0 : index
    %22 = vector.load %arg3[%c3, %c0_19, %c0_20] : memref<8x4x128xbf16, #tpu.memory_space<vmem>>, vector<1x4x128xbf16>
    %23 = vector.shape_cast %22 : vector<1x4x128xbf16> to vector<4x128xbf16>
    %cst_21 = arith.constant dense<0.000000e+00> : vector<16x128xf32>
    %24 = tpu.matmul %0, %23, %cst_21 {dimension_numbers = #tpu.dot_dimension_numbers<[1], [0], [0], [1], [0, 0, 1, 1], [], []>} : vector<16x4xbf16>, vector<4x128xbf16>, vector<16x128xf32> -> vector<16x128xf32>
    %25 = arith.truncf %24 : vector<16x128xf32> to vector<16x128xbf16>
    %c3_22 = arith.constant 3 : index
    %c0_23 = arith.constant 0 : index
    %c0_24 = arith.constant 0 : index
    %26 = vector.load %arg4[%c3_22, %c0_23, %c0_24] : memref<8x16x128xbf16, #tpu.memory_space<vmem>>, vector<1x16x128xbf16>
    %27 = vector.shape_cast %26 : vector<1x16x128xbf16> to vector<16x128xbf16>
    %28 = vector.shape_cast %25 : vector<16x128xbf16> to vector<1x16x128xbf16>
    tpu.vector_store %arg4[%c3_22, %c0_23, %c0_24], %28 {strides = array<i32>} : memref<8x16x128xbf16, #tpu.memory_space<vmem>>, vector<1x16x128xbf16>,
    %c4 = arith.constant 4 : index
    %c0_25 = arith.constant 0 : index
    %c0_26 = arith.constant 0 : index
    %29 = vector.load %arg3[%c4, %c0_25, %c0_26] : memref<8x4x128xbf16, #tpu.memory_space<vmem>>, vector<1x4x128xbf16>
    %30 = vector.shape_cast %29 : vector<1x4x128xbf16> to vector<4x128xbf16>
    %cst_27 = arith.constant dense<0.000000e+00> : vector<16x128xf32>
    %31 = tpu.matmul %0, %30, %cst_27 {dimension_numbers = #tpu.dot_dimension_numbers<[1], [0], [0], [1], [0, 0, 1, 1], [], []>} : vector<16x4xbf16>, vector<4x128xbf16>, vector<16x128xf32> -> vector<16x128xf32>
    %32 = arith.truncf %31 : vector<16x128xf32> to vector<16x128xbf16>
    %c4_28 = arith.constant 4 : index
    %c0_29 = arith.constant 0 : index
    %c0_30 = arith.constant 0 : index
    %33 = vector.load %arg4[%c4_28, %c0_29, %c0_30] : memref<8x16x128xbf16, #tpu.memory_space<vmem>>, vector<1x16x128xbf16>
    %34 = vector.shape_cast %33 : vector<1x16x128xbf16> to vector<16x128xbf16>
    %35 = vector.shape_cast %32 : vector<16x128xbf16> to vector<1x16x128xbf16>
    tpu.vector_store %arg4[%c4_28, %c0_29, %c0_30], %35 {strides = array<i32>} : memref<8x16x128xbf16, #tpu.memory_space<vmem>>, vector<1x16x128xbf16>,
    %c5 = arith.constant 5 : index
    %c0_31 = arith.constant 0 : index
    %c0_32 = arith.constant 0 : index
    %36 = vector.load %arg3[%c5, %c0_31, %c0_32] : memref<8x4x128xbf16, #tpu.memory_space<vmem>>, vector<1x4x128xbf16>
    %37 = vector.shape_cast %36 : vector<1x4x128xbf16> to vector<4x128xbf16>
    %cst_33 = arith.constant dense<0.000000e+00> : vector<16x128xf32>
    %38 = tpu.matmul %0, %37, %cst_33 {dimension_numbers = #tpu.dot_dimension_numbers<[1], [0], [0], [1], [0, 0, 1, 1], [], []>} : vector<16x4xbf16>, vector<4x128xbf16>, vector<16x128xf32> -> vector<16x128xf32>
    %39 = arith.truncf %38 : vector<16x128xf32> to vector<16x128xbf16>
    %c5_34 = arith.constant 5 : index
    %c0_35 = arith.constant 0 : index
    %c0_36 = arith.constant 0 : index
    %40 = vector.load %arg4[%c5_34, %c0_35, %c0_36] : memref<8x16x128xbf16, #tpu.memory_space<vmem>>, vector<1x16x128xbf16>
    %41 = vector.shape_cast %40 : vector<1x16x128xbf16> to vector<16x128xbf16>
    %42 = vector.shape_cast %39 : vector<16x128xbf16> to vector<1x16x128xbf16>
    tpu.vector_store %arg4[%c5_34, %c0_35, %c0_36], %42 {strides = array<i32>} : memref<8x16x128xbf16, #tpu.memory_space<vmem>>, vector<1x16x128xbf16>,
    %c6 = arith.constant 6 : index
    %c0_37 = arith.constant 0 : index
    %c0_38 = arith.constant 0 : index
    %43 = vector.load %arg3[%c6, %c0_37, %c0_38] : memref<8x4x128xbf16, #tpu.memory_space<vmem>>, vector<1x4x128xbf16>
    %44 = vector.shape_cast %43 : vector<1x4x128xbf16> to vector<4x128xbf16>
    %cst_39 = arith.constant dense<0.000000e+00> : vector<16x128xf32>
    %45 = tpu.matmul %0, %44, %cst_39 {dimension_numbers = #tpu.dot_dimension_numbers<[1], [0], [0], [1], [0, 0, 1, 1], [], []>} : vector<16x4xbf16>, vector<4x128xbf16>, vector<16x128xf32> -> vector<16x128xf32>
    %46 = arith.truncf %45 : vector<16x128xf32> to vector<16x128xbf16>
    %c6_40 = arith.constant 6 : index
    %c0_41 = arith.constant 0 : index
    %c0_42 = arith.constant 0 : index
    %47 = vector.load %arg4[%c6_40, %c0_41, %c0_42] : memref<8x16x128xbf16, #tpu.memory_space<vmem>>, vector<1x16x128xbf16>
    %48 = vector.shape_cast %47 : vector<1x16x128xbf16> to vector<16x128xbf16>
    %49 = vector.shape_cast %46 : vector<16x128xbf16> to vector<1x16x128xbf16>
    tpu.vector_store %arg4[%c6_40, %c0_41, %c0_42], %49 {strides = array<i32>} : memref<8x16x128xbf16, #tpu.memory_space<vmem>>, vector<1x16x128xbf16>,
    %c7 = arith.constant 7 : index
    %c0_43 = arith.constant 0 : index
    %c0_44 = arith.constant 0 : index
    %50 = vector.load %arg3[%c7, %c0_43, %c0_44] : memref<8x4x128xbf16, #tpu.memory_space<vmem>>, vector<1x4x128xbf16>
    %51 = vector.shape_cast %50 : vector<1x4x128xbf16> to vector<4x128xbf16>
    %cst_45 = arith.constant dense<0.000000e+00> : vector<16x128xf32>
    %52 = tpu.matmul %0, %51, %cst_45 {dimension_numbers = #tpu.dot_dimension_numbers<[1], [0], [0], [1], [0, 0, 1, 1], [], []>} : vector<16x4xbf16>, vector<4x128xbf16>, vector<16x128xf32> -> vector<16x128xf32>
    %53 = arith.truncf %52 : vector<16x128xf32> to vector<16x128xbf16>
    %c7_46 = arith.constant 7 : index
    %c0_47 = arith.constant 0 : index
    %c0_48 = arith.constant 0 : index
    %54 = vector.load %arg4[%c7_46, %c0_47, %c0_48] : memref<8x16x128xbf16, #tpu.memory_space<vmem>>, vector<1x16x128xbf16>
    %55 = vector.shape_cast %54 : vector<1x16x128xbf16> to vector<16x128xbf16>
    %56 = vector.shape_cast %53 : vector<16x128xbf16> to vector<1x16x128xbf16>
    tpu.vector_store %arg4[%c7_46, %c0_47, %c0_48], %56 {strides = array<i32>} : memref<8x16x128xbf16, #tpu.memory_space<vmem>>, vector<1x16x128xbf16>,
    return
  }
  func.func @transform_0(%arg0: i32, %arg1: i32) -> (i32, i32) {
    %c0_i32 = arith.constant 0 : i32
    %c0_i32_0 = arith.constant 0 : i32
    %c0_i32_1 = arith.constant 0 : i32
    return %c0_i32, %c0_i32_0 : i32, i32
  }
  func.func @transform_1(%arg0: i32, %arg1: i32) -> (i32, i32, i32) {
    %c0_i32 = arith.constant 0 : i32
    %c0_i32_0 = arith.constant 0 : i32
    return %arg0, %c0_i32, %arg1 : i32, i32, i32
  }
  func.func @transform_2(%arg0: i32, %arg1: i32) -> (i32, i32, i32) {
    %c0_i32 = arith.constant 0 : i32
    %c0_i32_0 = arith.constant 0 : i32
    return %arg0, %c0_i32, %arg1 : i32, i32, i32
  }
}

module attributes {stable_mosaic.version = 11 : i64} {
  func.func @_matmul_kernel(%arg0: i32, %arg1: i32, %arg2: i32, %arg3: memref<512x128xbf16, #tpu.memory_space<vmem>>, %arg4: memref<128x128xbf16, #tpu.memory_space<vmem>>, %arg5: memref<1x128xf32, #tpu.memory_space<vmem>>, %arg6: memref<512x128xbf16, #tpu.memory_space<vmem>>, %arg7: memref<512x128xf32, #tpu.memory_space<vmem>>) attributes {dimension_semantics = [#tpu.dimension_semantics<parallel>, #tpu.dimension_semantics<parallel>, #tpu.dimension_semantics<arbitrary>], iteration_bounds = array<i64: 1, 1, 1>, scalar_prefetch = 0 : i64, scratch_operands = 1 : i64, tpu.core_type = #tpu.core_type<tc>, window_params = [{transform_indices = @transform_0, window_bounds = array<i64: 512, 128>}, {transform_indices = @transform_1, window_bounds = array<i64: 128, 128>}, {transform_indices = @transform_2, window_bounds = array<i64: 1, 128>}, {transform_indices = @transform_3, window_bounds = array<i64: 512, 128>}]} {
    %c0_i32 = arith.constant 0 : i32
    %0 = arith.cmpi eq, %arg2, %c0_i32 : i32
    %1 = arith.extui %0 : i1 to i32
    %c0_i32_0 = arith.constant 0 : i32
    %2 = arith.cmpi ne, %1, %c0_i32_0 : i32
    scf.if %2 {
      %cst_10 = arith.constant 0.000000e+00 : f32
      %12 = vector.broadcast %cst_10 : f32 to vector<512x128xf32>
      %c0_11 = arith.constant 0 : index
      %c0_12 = arith.constant 0 : index
      %13 = vector.load %arg7[%c0_11, %c0_12] : memref<512x128xf32, #tpu.memory_space<vmem>>, vector<512x128xf32>
      tpu.vector_store %arg7[%c0_11, %c0_12], %12 {strides = array<i32>} : memref<512x128xf32, #tpu.memory_space<vmem>>, vector<512x128xf32>,
    } else {
    }
    %c0 = arith.constant 0 : index
    %c0_1 = arith.constant 0 : index
    %3 = vector.load %arg7[%c0, %c0_1] : memref<512x128xf32, #tpu.memory_space<vmem>>, vector<512x128xf32>
    %c0_2 = arith.constant 0 : index
    %c0_3 = arith.constant 0 : index
    %4 = vector.load %arg3[%c0_2, %c0_3] : memref<512x128xbf16, #tpu.memory_space<vmem>>, vector<512x128xbf16>
    %c0_4 = arith.constant 0 : index
    %c0_5 = arith.constant 0 : index
    %5 = vector.load %arg4[%c0_4, %c0_5] : memref<128x128xbf16, #tpu.memory_space<vmem>>, vector<128x128xbf16>
    %cst = arith.constant dense<0.000000e+00> : vector<512x128xf32>
    %6 = tpu.matmul %4, %5, %cst {dimension_numbers = #tpu.dot_dimension_numbers<[1], [0], [0], [1], [0, 0, 1, 1], [], []>} : vector<512x128xbf16>, vector<128x128xbf16>, vector<512x128xf32> -> vector<512x128xf32>
    %7 = arith.addf %3, %6 : vector<512x128xf32>
    %c0_6 = arith.constant 0 : index
    %c0_7 = arith.constant 0 : index
    %8 = vector.load %arg7[%c0_6, %c0_7] : memref<512x128xf32, #tpu.memory_space<vmem>>, vector<512x128xf32>
    tpu.vector_store %arg7[%c0_6, %c0_7], %7 {strides = array<i32>} : memref<512x128xf32, #tpu.memory_space<vmem>>, vector<512x128xf32>,
    %c0_i32_8 = arith.constant 0 : i32
    %9 = arith.cmpi eq, %arg2, %c0_i32_8 : i32
    %10 = arith.extui %9 : i1 to i32
    %c0_i32_9 = arith.constant 0 : i32
    %11 = arith.cmpi ne, %10, %c0_i32_9 : i32
    scf.if %11 {
      %c0_10 = arith.constant 0 : index
      %c0_11 = arith.constant 0 : index
      %12 = vector.load %arg7[%c0_10, %c0_11] : memref<512x128xf32, #tpu.memory_space<vmem>>, vector<512x128xf32>
      %c0_12 = arith.constant 0 : index
      %c0_13 = arith.constant 0 : index
      %13 = vector.load %arg5[%c0_12, %c0_13] : memref<1x128xf32, #tpu.memory_space<vmem>>, vector<1x128xf32>
      %14 = vector.broadcast %13 : vector<1x128xf32> to vector<512x128xf32>
      %15 = arith.addf %12, %14 : vector<512x128xf32>
      %cst_14 = arith.constant 0.000000e+00 : f32
      %16 = vector.broadcast %cst_14 : f32 to vector<512x128xf32>
      %17 = arith.maximumf %15, %16 : vector<512x128xf32>
      %18 = arith.truncf %17 : vector<512x128xf32> to vector<512x128xbf16>
      %c0_15 = arith.constant 0 : index
      %c0_16 = arith.constant 0 : index
      %19 = vector.load %arg6[%c0_15, %c0_16] : memref<512x128xbf16, #tpu.memory_space<vmem>>, vector<512x128xbf16>
      tpu.vector_store %arg6[%c0_15, %c0_16], %18 {strides = array<i32>} : memref<512x128xbf16, #tpu.memory_space<vmem>>, vector<512x128xbf16>,
    } else {
    }
    return
  }
  func.func @transform_0(%arg0: i32, %arg1: i32, %arg2: i32) -> (i32, i32) {
    %c0_i32 = arith.constant 0 : i32
    return %arg0, %arg2 : i32, i32
  }
  func.func @transform_1(%arg0: i32, %arg1: i32, %arg2: i32) -> (i32, i32) {
    %c0_i32 = arith.constant 0 : i32
    return %arg2, %arg1 : i32, i32
  }
  func.func @transform_2(%arg0: i32, %arg1: i32, %arg2: i32) -> (i32, i32) {
    %c0_i32 = arith.constant 0 : i32
    %c0_i32_0 = arith.constant 0 : i32
    return %c0_i32, %arg1 : i32, i32
  }
  func.func @transform_3(%arg0: i32, %arg1: i32, %arg2: i32) -> (i32, i32) {
    %c0_i32 = arith.constant 0 : i32
    return %arg0, %arg1 : i32, i32
  }
}

module attributes {stable_mosaic.version = 11 : i64} {
  func.func @_matmul_kernel(%arg0: i32, %arg1: i32, %arg2: i32, %arg3: memref<512x128xbf16, #tpu.memory_space<vmem>>, %arg4: memref<128x128xbf16, #tpu.memory_space<vmem>>, %arg5: memref<1x128xf32, #tpu.memory_space<vmem>>, %arg6: memref<512x128xf32, #tpu.memory_space<vmem>>, %arg7: memref<512x128xf32, #tpu.memory_space<vmem>>) attributes {dimension_semantics = [#tpu.dimension_semantics<parallel>, #tpu.dimension_semantics<parallel>, #tpu.dimension_semantics<arbitrary>], iteration_bounds = array<i64: 1, 1, 1>, scalar_prefetch = 0 : i64, scratch_operands = 1 : i64, tpu.core_type = #tpu.core_type<tc>, window_params = [{transform_indices = @transform_0, window_bounds = array<i64: 512, 128>}, {transform_indices = @transform_1, window_bounds = array<i64: 128, 128>}, {transform_indices = @transform_2, window_bounds = array<i64: 1, 128>}, {transform_indices = @transform_3, window_bounds = array<i64: 512, 128>}]} {
    %c0_i32 = arith.constant 0 : i32
    %0 = arith.cmpi eq, %arg2, %c0_i32 : i32
    %1 = arith.extui %0 : i1 to i32
    %c0_i32_0 = arith.constant 0 : i32
    %2 = arith.cmpi ne, %1, %c0_i32_0 : i32
    scf.if %2 {
      %cst_10 = arith.constant 0.000000e+00 : f32
      %12 = vector.broadcast %cst_10 : f32 to vector<512x128xf32>
      %c0_11 = arith.constant 0 : index
      %c0_12 = arith.constant 0 : index
      %13 = vector.load %arg7[%c0_11, %c0_12] : memref<512x128xf32, #tpu.memory_space<vmem>>, vector<512x128xf32>
      tpu.vector_store %arg7[%c0_11, %c0_12], %12 {strides = array<i32>} : memref<512x128xf32, #tpu.memory_space<vmem>>, vector<512x128xf32>,
    } else {
    }
    %c0 = arith.constant 0 : index
    %c0_1 = arith.constant 0 : index
    %3 = vector.load %arg7[%c0, %c0_1] : memref<512x128xf32, #tpu.memory_space<vmem>>, vector<512x128xf32>
    %c0_2 = arith.constant 0 : index
    %c0_3 = arith.constant 0 : index
    %4 = vector.load %arg3[%c0_2, %c0_3] : memref<512x128xbf16, #tpu.memory_space<vmem>>, vector<512x128xbf16>
    %c0_4 = arith.constant 0 : index
    %c0_5 = arith.constant 0 : index
    %5 = vector.load %arg4[%c0_4, %c0_5] : memref<128x128xbf16, #tpu.memory_space<vmem>>, vector<128x128xbf16>
    %cst = arith.constant dense<0.000000e+00> : vector<512x128xf32>
    %6 = tpu.matmul %4, %5, %cst {dimension_numbers = #tpu.dot_dimension_numbers<[1], [0], [0], [1], [0, 0, 1, 1], [], []>} : vector<512x128xbf16>, vector<128x128xbf16>, vector<512x128xf32> -> vector<512x128xf32>
    %7 = arith.addf %3, %6 : vector<512x128xf32>
    %c0_6 = arith.constant 0 : index
    %c0_7 = arith.constant 0 : index
    %8 = vector.load %arg7[%c0_6, %c0_7] : memref<512x128xf32, #tpu.memory_space<vmem>>, vector<512x128xf32>
    tpu.vector_store %arg7[%c0_6, %c0_7], %7 {strides = array<i32>} : memref<512x128xf32, #tpu.memory_space<vmem>>, vector<512x128xf32>,
    %c0_i32_8 = arith.constant 0 : i32
    %9 = arith.cmpi eq, %arg2, %c0_i32_8 : i32
    %10 = arith.extui %9 : i1 to i32
    %c0_i32_9 = arith.constant 0 : i32
    %11 = arith.cmpi ne, %10, %c0_i32_9 : i32
    scf.if %11 {
      %c0_10 = arith.constant 0 : index
      %c0_11 = arith.constant 0 : index
      %12 = vector.load %arg7[%c0_10, %c0_11] : memref<512x128xf32, #tpu.memory_space<vmem>>, vector<512x128xf32>
      %c0_12 = arith.constant 0 : index
      %c0_13 = arith.constant 0 : index
      %13 = vector.load %arg5[%c0_12, %c0_13] : memref<1x128xf32, #tpu.memory_space<vmem>>, vector<1x128xf32>
      %14 = vector.broadcast %13 : vector<1x128xf32> to vector<512x128xf32>
      %15 = arith.addf %12, %14 : vector<512x128xf32>
      %c0_14 = arith.constant 0 : index
      %c0_15 = arith.constant 0 : index
      %16 = vector.load %arg6[%c0_14, %c0_15] : memref<512x128xf32, #tpu.memory_space<vmem>>, vector<512x128xf32>
      tpu.vector_store %arg6[%c0_14, %c0_15], %15 {strides = array<i32>} : memref<512x128xf32, #tpu.memory_space<vmem>>, vector<512x128xf32>,
    } else {
    }
    return
  }
  func.func @transform_0(%arg0: i32, %arg1: i32, %arg2: i32) -> (i32, i32) {
    %c0_i32 = arith.constant 0 : i32
    return %arg0, %arg2 : i32, i32
  }
  func.func @transform_1(%arg0: i32, %arg1: i32, %arg2: i32) -> (i32, i32) {
    %c0_i32 = arith.constant 0 : i32
    return %arg2, %arg1 : i32, i32
  }
  func.func @transform_2(%arg0: i32, %arg1: i32, %arg2: i32) -> (i32, i32) {
    %c0_i32 = arith.constant 0 : i32
    %c0_i32_0 = arith.constant 0 : i32
    return %c0_i32, %arg1 : i32, i32
  }
  func.func @transform_3(%arg0: i32, %arg1: i32, %arg2: i32) -> (i32, i32) {
    %c0_i32 = arith.constant 0 : i32
    return %arg0, %arg1 : i32, i32
  }
}

</mosaic_0001>

<llo_original>
// kernel: segmenter_vit_forward.24
$region0: #{segmenter_vit_forward.24}
  #allocation0 [shape = 'u32[]', space=smem, size = 0x4, offset = 0x4, fixed_abs, tag = 'smem constant byte address 0x4 - core index']
  #allocation1 [shape = 'u32[144,128]{1,0:T(1,128)}', space=vmem, size = 0x12000, scoped, tag = 'internal scratch']
  #allocation2 [shape = 'f32[32,128]{1,0:T(8,128)}', space=vmem, size = 0x4000, scoped, tag = 'scratch operand']
  %s0 = inlined_call_operand.vmem [shape: bf16[32,128], index: 0, kind: input, shape index: {}]
  %s1 = inlined_call_operand.vmem [shape: bf16[128,384], index: 1, kind: input, shape index: {}]
  %s2 = inlined_call_operand.vmem [shape: f32[1,384], index: 2, kind: input, shape index: {}]
  %s3 = inlined_call_operand.vmem [shape: bf16[32,384], index: 3, kind: output, shape index: {}]
  %s4 = sld [smem:[#allocation0]]
  $region131: #{segmenter_vit_forward.24} parent=0
    _
  %s6 = ssub.s32 1, %s4
  %s7 = scalar_select 0, %s6, %s4
  $region1: #{segmenter_vit_forward.24} parent=0
    #allocation3 [shape = 'u8[65536]{0}', space=vmem, size = 0x10000, scoped, tag = 'input window, operand 1']
    #allocation4 [shape = 'u8[16384]{0}', space=vmem, size = 0x4000, scoped, tag = 'output window, operand 0']
    loop: start=0, step=1, limit=5
    $region2: #{segmenter_vit_forward.24} parent=1 // loop_pre_header
      _
    $region3: #{segmenter_vit_forward.24} parent=1 // loop_header
      %s9 = sphi 0, %s13
      %p10 = scmp.ge.s32.totalorder %s9, 5
      %s16 = sphi 0, %s35
      %s17 = sphi 0, %s31
      %s18 = sphi 0, %s27
      %s19 = sphi 0, %s16
      %s20 = sphi 0, %s17
      %s21 = sphi 0, %s18
      %s22 = sphi 0, %s19
      %s23 = sphi 0, %s20
      %s24 = sphi 0, %s21
      %s40 = sphi 0, %s42
      %s43 = sphi 0, %s40
      %s44 = sphi 0, %s43
      %s60 = sphi 0, %s44
      %s68 = sphi 0, %s70
      %s71 = sphi 0, %s68
      %s72 = sphi 0, %s71
      %s88 = sphi 0, %s72
      %s94 = sphi 0, %s96
      %s97 = sphi 0, %s94
      %s98 = sphi 0, %s97
      %s114 = sphi 0, %s98
      %s122 = sphi 0, %s124
      %s125 = sphi 0, %s122
      %s126 = sphi 0, %s125
      %s142 = sphi 0, %s126
    $region4: #{segmenter_vit_forward.24} parent=1 // loop_header_branch
      %12 = sbr.rel (%p10) target = $region8
    $region5: #{segmenter_vit_forward.24} parent=1 // loop_body
      %s14 = ssub.s32 %s9, 1
      %s15 = ssub.s32 %s9, 2
      %s25 = sadd.s32 1, %s18
      %p26 = scmp.ge.s32.totalorder %s25, 1
      %s27 = scalar_select %p26, 0, %s25
      %s28 = sadd.s32 1, %s17
      %s29 = scalar_select %p26, %s28, %s17
      %p30 = scmp.ge.s32.totalorder %s29, 3
      %s31 = scalar_select %p30, 0, %s29
      %s32 = sadd.s32 1, %s16
      %s33 = scalar_select %p30, %s32, %s16
      %p34 = scmp.ge.s32.totalorder %s33, 1
      %s35 = scalar_select %p34, 0, %s33
      %s36 = ssub.s32 %s16, %s35
      %s37 = ssub.s32 %s18, %s27
      %s38 = sor.u32 %s36, %s37
      %p39 = scmp.eq.s32.totalorder %s38, 0
      %s41 = sadd.s32 %s40, 1
      %s42 = scalar_select %p39, %s40, %s41
      %p45 = pneg %p39
      %p46 = scmp.eq.s32.totalorder %s9, 2
      %p47 = por %p45, %p46
      %p48 = scmp.ne.s32.totalorder %s40, %s43
      %p49 = scmp.eq.s32.totalorder %s9, 0
      %p50 = por %p48, %p49
      %p51 = scmp.ne.s32.totalorder %s40, %s43
      %p52 = scmp.eq.s32.totalorder %s14, 2
      %p53 = por %p51, %p52
      %p54 = scmp.ne.s32.totalorder %s43, %s44
      %p55 = scmp.eq.s32.totalorder %s14, 0
      %p56 = por %p54, %p55
      %p57 = scmp.ne.s32.totalorder %s43, %s44
      %p58 = scmp.eq.s32.totalorder %s15, 2
      %p59 = por %p57, %p58
      %p61 = scmp.ne.s32.totalorder %s44, %s60
      %p62 = scmp.eq.s32.totalorder %s15, 0
      %p63 = por %p61, %p62
      %s64 = ssub.s32 %s18, %s27
      %s65 = ssub.s32 %s17, %s31
      %s66 = sor.u32 %s64, %s65
      %p67 = scmp.eq.s32.totalorder %s66, 0
      %s69 = sadd.s32 %s68, 1
      %s70 = scalar_select %p67, %s68, %s69
      %p73 = pneg %p67
      %p74 = scmp.eq.s32.totalorder %s9, 2
      %p75 = por %p73, %p74
      %p76 = scmp.ne.s32.totalorder %s68, %s71
      %p77 = scmp.eq.s32.totalorder %s9, 0
      %p78 = por %p76, %p77
      %p79 = scmp.ne.s32.totalorder %s68, %s71
      %p80 = scmp.eq.s32.totalorder %s14, 2
      %p81 = por %p79, %p80
      %p82 = scmp.ne.s32.totalorder %s71, %s72
      %p83 = scmp.eq.s32.totalorder %s14, 0
      %p84 = por %p82, %p83
      %p85 = scmp.ne.s32.totalorder %s71, %s72
      %p86 = scmp.eq.s32.totalorder %s15, 2
      %p87 = por %p85, %p86
      %p89 = scmp.ne.s32.totalorder %s72, %s88
      %p90 = scmp.eq.s32.totalorder %s15, 0
      %p91 = por %p89, %p90
      %s92 = ssub.s32 %s17, %s31
      %p93 = scmp.eq.s32.totalorder %s92, 0
      %s95 = sadd.s32 %s94, 1
      %s96 = scalar_select %p93, %s94, %s95
      %p99 = pneg %p93
      %p100 = scmp.eq.s32.totalorder %s9, 2
      %p101 = por %p99, %p100
      %p102 = scmp.ne.s32.totalorder %s94, %s97
      %p103 = scmp.eq.s32.totalorder %s9, 0
      %p104 = por %p102, %p103
      %p105 = scmp.ne.s32.totalorder %s94, %s97
      %p106 = scmp.eq.s32.totalorder %s14, 2
      %p107 = por %p105, %p106
      %p108 = scmp.ne.s32.totalorder %s97, %s98
      %p109 = scmp.eq.s32.totalorder %s14, 0
      %p110 = por %p108, %p109
      %p111 = scmp.ne.s32.totalorder %s97, %s98
      %p112 = scmp.eq.s32.totalorder %s15, 2
      %p113 = por %p111, %p112
      %p115 = scmp.ne.s32.totalorder %s98, %s114
      %p116 = scmp.eq.s32.totalorder %s15, 0
      %p117 = por %p115, %p116
      %s118 = ssub.s32 %s16, %s35
      %s119 = ssub.s32 %s17, %s31
      %s120 = sor.u32 %s118, %s119
      %p121 = scmp.eq.s32.totalorder %s120, 0
      %s123 = sadd.s32 %s122, 1
      %s124 = scalar_select %p121, %s122, %s123
      %p127 = pneg %p121
      %p128 = scmp.eq.s32.totalorder %s9, 2
      %p129 = por %p127, %p128
      %p130 = scmp.ne.s32.totalorder %s122, %s125
      %p131 = scmp.eq.s32.totalorder %s9, 0
      %p132 = por %p130, %p131
      %p133 = scmp.ne.s32.totalorder %s122, %s125
      %p134 = scmp.eq.s32.totalorder %s14, 2
      %p135 = por %p133, %p134
      %p136 = scmp.ne.s32.totalorder %s125, %s126
      %p137 = scmp.eq.s32.totalorder %s14, 0
      %p138 = por %p136, %p137
      %p139 = scmp.ne.s32.totalorder %s125, %s126
      %p140 = scmp.eq.s32.totalorder %s15, 2
      %p141 = por %p139, %p140
      %p143 = scmp.ne.s32.totalorder %s126, %s142
      %p144 = scmp.eq.s32.totalorder %s15, 0
      %p145 = por %p143, %p144
      %p146 = scmp.le.s32.totalorder 1, %s9
      %p147 = scmp.lt.s32.totalorder %s9, 4
      %p148 = pnand %p146, %p147
      %p149 = pneg %p148
      // Predicated region
      $region9: #{segmenter_vit_forward.24} parent=5 // pred_check
        _
      $region10: #{segmenter_vit_forward.24} parent=5 // pred_check_branch
        %151 = sbr.rel (%p148) target = $region12
      $region11: #{segmenter_vit_forward.24} parent=5 // pred_region
        %s152 = ssub.s32 %s9, 1
        // Predicated region
        $region13: #{segmenter_vit_forward.24} parent=11 // pred_check
          %p153 = pneg %p56
        $region14: #{segmenter_vit_forward.24} parent=11 // pred_check_branch
          %155 = sbr.rel (%p153) target = $region16
        $region15: #{segmenter_vit_forward.24} parent=11 // pred_region
          %s156 = smul.u32 4, %s19
          %p157 = scmp.lt.s32.totalorder %s156, 3
          %s158 = scalar_select %p157, %s156, 3
          %p159 = scmp.lt.s32.totalorder %s21, 0
          %s160 = scalar_select %p159, %s21, 0
          %s161 = sadd.s32 %s160, %s158
          %s162 = smul.addr %s161, 4
          %s163 = scalar_lea.vmem %s0, %s162
          %s164 = smul.u32 4, %s19
        $region16: #{segmenter_vit_forward.24} parent=11 // pred_fallthru
          _
      $region12: #{segmenter_vit_forward.24} parent=5 // pred_fallthru
        _
      %p165 = scmp.lt.s32.totalorder %s9, 3
      // Predicated region
      $region17: #{segmenter_vit_forward.24} parent=5 // pred_check
        %p166 = pneg %p165
      $region18: #{segmenter_vit_forward.24} parent=5 // pred_check_branch
        %168 = sbr.rel (%p166) target = $region20
      $region19: #{segmenter_vit_forward.24} parent=5 // pred_region
        // Predicated region
        $region21: #{segmenter_vit_forward.24} parent=19 // pred_check
          %p169 = pneg %p78
        $region22: #{segmenter_vit_forward.24} parent=19 // pred_check_branch
          %171 = sbr.rel (%p169) target = $region24
        $region23: #{segmenter_vit_forward.24} parent=19 // pred_region
          %s172 = sand.u32 %s68, 1
          %s173 = sand.u32 %s68, 1
          %s174 = smul.addr %s173, 64
          %s175 = scalar_lea.vmem [#allocation3], %s174
          %s176 = smul.u32 16, %s18
          %s177 = smul.addr %s176, 3
          %s178 = sadd.s32 %s17, %s177
          %s179 = smul.addr %s178, 4
          %s180 = scalar_lea.vmem %s1, %s179
          // Predicated region
          $region25: #{segmenter_vit_forward.24} parent=23 // pred_check
            _
          $region26: #{segmenter_vit_forward.24} parent=23 // pred_check_branch
            %182 = sbr.rel (0) target = $region28
          $region27: #{segmenter_vit_forward.24} parent=23 // pred_region
            // Predicated region
            $region29: #{segmenter_vit_forward.24} parent=27 // pred_check
              _
            $region30: #{segmenter_vit_forward.24} parent=27 // pred_check_branch
              %184 = sbr.rel target = $region32
            $region31: #{segmenter_vit_forward.24} parent=27 // pred_region
              // Predicated region
              $region44: #{segmenter_vit_forward.24} parent=31 // pred_check
                _
              $region45: #{segmenter_vit_forward.24} parent=31 // pred_check_branch
                %229 = sbr.rel (0) target = $region47
              $region46: #{segmenter_vit_forward.24} parent=31 // pred_region
                loop: start=0, step=1, limit=1
                $region48: #{segmenter_vit_forward.24} parent=46 // loop_pre_header
                  _
                $region49: #{segmenter_vit_forward.24} parent=46 // loop_header
                  %s231 = sphi 0, %s235
                  %p232 = scmp.ge.s32.totalorder %s231, 1
                  %s236 = sphi %s180, %s180
                  %s237 = sphi %s175, %s175
                $region50: #{segmenter_vit_forward.24} parent=46 // loop_header_branch
                  %234 = sbr.rel (%p232) target = $region54
                $region51: #{segmenter_vit_forward.24} parent=46 // loop_body
                  _
                $region52: #{segmenter_vit_forward.24} parent=46 // loop_footer
                  %s235 = sadd.s32 1, %s231
                $region53: #{segmenter_vit_forward.24} parent=46 // loop_footer_branch
                  %230 = sbr.rel target = $region49
                $region54: #{segmenter_vit_forward.24} parent=46 // loop_exit
                  _
                loop: start=0, step=1, limit=1
                $region55: #{segmenter_vit_forward.24} parent=46 // loop_pre_header
                  _
                $region56: #{segmenter_vit_forward.24} parent=46 // loop_header
                  %s240 = sphi 0, %s244
                  %p241 = scmp.ge.s32.totalorder %s240, 1
                  %s245 = sphi %s180, %s180
                  %s246 = sphi %s175, %s175
                $region57: #{segmenter_vit_forward.24} parent=46 // loop_header_branch
                  %243 = sbr.rel (%p241) target = $region61
                $region58: #{segmenter_vit_forward.24} parent=46 // loop_body
                  %v247 = vld [vmem:[%s245] sm:$0xf]
                  %248 = vst [vmem:[%s246] sm:$0xf] %v247
                  %v249 = vld [vmem:[%s245 + $0xc] sm:$0xf]
                  %250 = vst [vmem:[%s246 + $0x4] sm:$0xf] %v249
                  %v251 = vld [vmem:[%s245 + $0x18] sm:$0xf]
                  %252 = vst [vmem:[%s246 + $0x8] sm:$0xf] %v251
                  %v253 = vld [vmem:[%s245 + $0x24] sm:$0xf]
                  %254 = vst [vmem:[%s246 + $0xc] sm:$0xf] %v253
                  %v255 = vld [vmem:[%s245 + $0x30] sm:$0xf]
                  %256 = vst [vmem:[%s246 + $0x10] sm:$0xf] %v255
                  %v257 = vld [vmem:[%s245 + $0x3c] sm:$0xf]
                  %258 = vst [vmem:[%s246 + $0x14] sm:$0xf] %v257
                  %v259 = vld [vmem:[%s245 + $0x48] sm:$0xf]
                  %260 = vst [vmem:[%s246 + $0x18] sm:$0xf] %v259
                  %v261 = vld [vmem:[%s245 + $0x54] sm:$0xf]
                  %262 = vst [vmem:[%s246 + $0x1c] sm:$0xf] %v261
                  %v263 = vld [vmem:[%s245 + $0x60] sm:$0xf]
                  %264 = vst [vmem:[%s246 + $0x20] sm:$0xf] %v263
                  %v265 = vld [vmem:[%s245 + $0x6c] sm:$0xf]
                  %266 = vst [vmem:[%s246 + $0x24] sm:$0xf] %v265
                  %v267 = vld [vmem:[%s245 + $0x78] sm:$0xf]
                  %268 = vst [vmem:[%s246 + $0x28] sm:$0xf] %v267
                  %v269 = vld [vmem:[%s245 + $0x84] sm:$0xf]
                  %270 = vst [vmem:[%s246 + $0x2c] sm:$0xf] %v269
                  %v271 = vld [vmem:[%s245 + $0x90] sm:$0xf]
                  %272 = vst [vmem:[%s246 + $0x30] sm:$0xf] %v271
                  %v273 = vld [vmem:[%s245 + $0x9c] sm:$0xf]
                  %274 = vst [vmem:[%s246 + $0x34] sm:$0xf] %v273
                  %v275 = vld [vmem:[%s245 + $0xa8] sm:$0xf]
                  %276 = vst [vmem:[%s246 + $0x38] sm:$0xf] %v275
                  %v277 = vld [vmem:[%s245 + $0xb4] sm:$0xf]
                  %278 = vst [vmem:[%s246 + $0x3c] sm:$0xf] %v277
                $region59: #{segmenter_vit_forward.24} parent=46 // loop_footer
                  %s244 = sadd.s32 1, %s240
                $region60: #{segmenter_vit_forward.24} parent=46 // loop_footer_branch
                  %239 = sbr.rel target = $region56
                $region61: #{segmenter_vit_forward.24} parent=46 // loop_exit
                  _
              $region47: #{segmenter_vit_forward.24} parent=31 // pred_fallthru
                _
            $region32: #{segmenter_vit_forward.24} parent=27 // pred_fallthru
              _
            // Predicated region
            $region33: #{segmenter_vit_forward.24} parent=27 // pred_check
              _
            $region34: #{segmenter_vit_forward.24} parent=27 // pred_check_branch
              %186 = sbr.rel (0) target = $region36
            $region35: #{segmenter_vit_forward.24} parent=27 // pred_region
              loop: start=0, step=1, limit=1
              $region37: #{segmenter_vit_forward.24} parent=35 // loop_pre_header
                _
              $region38: #{segmenter_vit_forward.24} parent=35 // loop_header
                %s189 = sphi 0, %s193
                %p190 = scmp.ge.s32.totalorder %s189, 1
                %s194 = sphi %s180, %s180
                %s195 = sphi %s175, %s175
              $region39: #{segmenter_vit_forward.24} parent=35 // loop_header_branch
                %192 = sbr.rel (%p190) target = $region43
              $region40: #{segmenter_vit_forward.24} parent=35 // loop_body
                %v196 = vld [vmem:[%s194] sm:$0xf]
                %197 = vst [vmem:[%s195] sm:$0xf] %v196
                %v198 = vld [vmem:[%s194 + $0xc] sm:$0xf]
                %199 = vst [vmem:[%s195 + $0x4] sm:$0xf] %v198
                %v200 = vld [vmem:[%s194 + $0x18] sm:$0xf]
                %201 = vst [vmem:[%s195 + $0x8] sm:$0xf] %v200
                %v202 = vld [vmem:[%s194 + $0x24] sm:$0xf]
                %203 = vst [vmem:[%s195 + $0xc] sm:$0xf] %v202
                %v204 = vld [vmem:[%s194 + $0x30] sm:$0xf]
                %205 = vst [vmem:[%s195 + $0x10] sm:$0xf] %v204
                %v206 = vld [vmem:[%s194 + $0x3c] sm:$0xf]
                %207 = vst [vmem:[%s195 + $0x14] sm:$0xf] %v206
                %v208 = vld [vmem:[%s194 + $0x48] sm:$0xf]
                %209 = vst [vmem:[%s195 + $0x18] sm:$0xf] %v208
                %v210 = vld [vmem:[%s194 + $0x54] sm:$0xf]
                %211 = vst [vmem:[%s195 + $0x1c] sm:$0xf] %v210
                %v212 = vld [vmem:[%s194 + $0x60] sm:$0xf]
                %213 = vst [vmem:[%s195 + $0x20] sm:$0xf] %v212
                %v214 = vld [vmem:[%s194 + $0x6c] sm:$0xf]
                %215 = vst [vmem:[%s195 + $0x24] sm:$0xf] %v214
                %v216 = vld [vmem:[%s194 + $0x78] sm:$0xf]
                %217 = vst [vmem:[%s195 + $0x28] sm:$0xf] %v216
                %v218 = vld [vmem:[%s194 + $0x84] sm:$0xf]
                %219 = vst [vmem:[%s195 + $0x2c] sm:$0xf] %v218
                %v220 = vld [vmem:[%s194 + $0x90] sm:$0xf]
                %221 = vst [vmem:[%s195 + $0x30] sm:$0xf] %v220
                %v222 = vld [vmem:[%s194 + $0x9c] sm:$0xf]
                %223 = vst [vmem:[%s195 + $0x34] sm:$0xf] %v222
                %v224 = vld [vmem:[%s194 + $0xa8] sm:$0xf]
                %225 = vst [vmem:[%s195 + $0x38] sm:$0xf] %v224
                %v226 = vld [vmem:[%s194 + $0xb4] sm:$0xf]
                %227 = vst [vmem:[%s195 + $0x3c] sm:$0xf] %v226
              $region41: #{segmenter_vit_forward.24} parent=35 // loop_footer
                %s193 = sadd.s32 1, %s189
              $region42: #{segmenter_vit_forward.24} parent=35 // loop_footer_branch
                %188 = sbr.rel target = $region38
              $region43: #{segmenter_vit_forward.24} parent=35 // loop_exit
                _
            $region36: #{segmenter_vit_forward.24} parent=27 // pred_fallthru
              _
          $region28: #{segmenter_vit_forward.24} parent=23 // pred_fallthru
            _
          %279 = vnop
        $region24: #{segmenter_vit_forward.24} parent=19 // pred_fallthru
          _
        // Predicated region
        $region62: #{segmenter_vit_forward.24} parent=19 // pred_check
          %p280 = pneg %p104
        $region63: #{segmenter_vit_forward.24} parent=19 // pred_check_branch
          %282 = sbr.rel (%p280) target = $region65
        $region64: #{segmenter_vit_forward.24} parent=19 // pred_region
          %p283 = scmp.lt.s32.totalorder %s17, 2
          %s284 = scalar_select %p283, %s17, 2
          %s285 = scalar_lea.vmem %s2, %s284
        $region65: #{segmenter_vit_forward.24} parent=19 // pred_fallthru
          _
      $region20: #{segmenter_vit_forward.24} parent=5 // pred_fallthru
        _
      %p286 = scmp.le.s32.totalorder 1, %s9
      %p287 = scmp.lt.s32.totalorder %s9, 4
      %p288 = pnand %p286, %p287
      %p289 = pneg %p288
      // Predicated region
      $region66: #{segmenter_vit_forward.24} parent=5 // pred_check
        _
      $region67: #{segmenter_vit_forward.24} parent=5 // pred_check_branch
        %291 = sbr.rel (%p288) target = $region69
      $region68: #{segmenter_vit_forward.24} parent=5 // pred_region
        %s292 = ssub.s32 %s9, 1
        %s293 = sand.u32 %s71, 1
        %s294 = sand.u32 %s71, 1
        %s295 = smul.addr %s294, 64
        %s296 = scalar_lea.vmem [#allocation3], %s295
        // Predicated region
        $region70: #{segmenter_vit_forward.24} parent=68 // pred_check
          %p297 = pneg %p84
        $region71: #{segmenter_vit_forward.24} parent=68 // pred_check_branch
          %299 = sbr.rel (%p297) target = $region73
        $region72: #{segmenter_vit_forward.24} parent=68 // pred_region
          _
        $region73: #{segmenter_vit_forward.24} parent=68 // pred_fallthru
          _
        %s300 = smul.u32 4, %s19
        %p301 = scmp.lt.s32.totalorder %s300, 3
        %s302 = scalar_select %p301, %s300, 3
        %p303 = scmp.lt.s32.totalorder %s21, 0
        %s304 = scalar_select %p303, %s21, 0
        %s305 = sadd.s32 %s304, %s302
        %s306 = smul.addr %s305, 4
        %s307 = scalar_lea.vmem %s0, %s306
        %p308 = pneg %p56
        %p309 = pneg %p53
        %s310 = sand.u32 %s71, 1
        %s311 = sand.u32 %s71, 1
        %s312 = smul.addr %s311, 64
        %s313 = scalar_lea.vmem [#allocation3], %s312
        %p314 = pneg %p84
        %p315 = pneg %p81
        %p316 = scmp.lt.s32.totalorder %s20, 2
        %s317 = scalar_select %p316, %s20, 2
        %s318 = scalar_lea.vmem %s2, %s317
        %p319 = pneg %p110
        %p320 = pneg %p107
        %p321 = pneg %p138
        %p322 = pneg %p135
        %s323 = sand.u32 %s125, 1
        %s324 = sand.u32 %s125, 1
        %s325 = smul.addr %s324, 16
        %s326 = scalar_lea.vmem [#allocation4], %s325
        %s327 = smul.u32 4, %s19
        %p328 = scmp.lt.s32.totalorder %s327, 3
        %s329 = scalar_select %p328, %s327, 3
        %p330 = scmp.lt.s32.totalorder %s21, 0
        %s331 = scalar_select %p330, %s21, 0
        %s332 = sadd.s32 %s331, %s329
        %s333 = smul.addr %s332, 4
        %s334 = scalar_lea.vmem %s0, %s333
        %s335 = smul.u32 4, %s19
        %s336 = smul.u32 16, %s21
        %p337 = scmp.lt.s32.totalorder %s20, 2
        %s338 = scalar_select %p337, %s20, 2
        %s339 = scalar_lea.vmem %s2, %s338
        %s340 = smul.u32 4, %s19
        %p342 = scmp.eq.s32.totalorder %s21, 0
        // Predicated region
        $region74: #{segmenter_vit_forward.24} parent=68 // pred_check
          %p343 = pneg %p342
        $region75: #{segmenter_vit_forward.24} parent=68 // pred_check_branch
          %345 = sbr.rel (%p343) target = $region77
        $region76: #{segmenter_vit_forward.24} parent=68 // pred_region
          %346 = vst [vmem:[#allocation2] sm:$0xff] 0.0
          %347 = vst [vmem:[#allocation2 + $0x8] sm:$0xff] 0.0
          %348 = vst [vmem:[#allocation2 + $0x10] sm:$0xff] 0.0
          %349 = vst [vmem:[#allocation2 + $0x18] sm:$0xff] 0.0
        $region77: #{segmenter_vit_forward.24} parent=68 // pred_fallthru
          _
        %v350 = vld [vmem:[#allocation2] sm:$0xff]
        %v351 = vld [vmem:[#allocation2 + $0x8] sm:$0xff]
        %v352 = vld [vmem:[#allocation2 + $0x10] sm:$0xff]
        %v353 = vld [vmem:[#allocation2 + $0x18] sm:$0xff]
        %v354 = vld [vmem:[%s334] sm:$0xf]
        %v355 = vld [vmem:[%s334 + $0x4] sm:$0xf]
        %v356 = vld [vmem:[%s334 + $0x8] sm:$0xf]
        %v357 = vld [vmem:[%s334 + $0xc] sm:$0xf]
        %v358 = vld [vmem:[%s296] sm:$0xf]
        %v359 = vld [vmem:[%s296 + $0x4] sm:$0xf]
        %v360 = vld [vmem:[%s296 + $0x8] sm:$0xf]
        %v361 = vld [vmem:[%s296 + $0xc] sm:$0xf]
        %v362 = vld [vmem:[%s296 + $0x10] sm:$0xf]
        %v363 = vld [vmem:[%s296 + $0x14] sm:$0xf]
        %v364 = vld [vmem:[%s296 + $0x18] sm:$0xf]
        %v365 = vld [vmem:[%s296 + $0x1c] sm:$0xf]
        %v366 = vld [vmem:[%s296 + $0x20] sm:$0xf]
        %v367 = vld [vmem:[%s296 + $0x24] sm:$0xf]
        %v368 = vld [vmem:[%s296 + $0x28] sm:$0xf]
        %v369 = vld [vmem:[%s296 + $0x2c] sm:$0xf]
        %v370 = vld [vmem:[%s296 + $0x30] sm:$0xf]
        %v371 = vld [vmem:[%s296 + $0x34] sm:$0xf]
        %v372 = vld [vmem:[%s296 + $0x38] sm:$0xf]
        %v373 = vld [vmem:[%s296 + $0x3c] sm:$0xf]
        %v378 = vunpack.c.l.b16 %v354
        %v379 = vunpack.c.l.b16 %v355
        %v380 = vunpack.c.l.b16 %v356
        %v381 = vunpack.c.l.b16 %v357
        %v382 = vpack.c.b16 %v379, %v378
        %v383 = vpack.c.b16 %v381, %v380
        %v402 = vunpack.c.l.b16 %v358
        %v403 = vunpack.c.l.b16 %v359
        %v404 = vunpack.c.l.b16 %v360
        %v405 = vunpack.c.l.b16 %v361
        %v406 = vunpack.c.l.b16 %v362
        %v407 = vunpack.c.l.b16 %v363
        %v408 = vunpack.c.l.b16 %v364
        %v409 = vunpack.c.l.b16 %v365
        %v410 = vunpack.c.l.b16 %v366
        %v411 = vunpack.c.l.b16 %v367
        %v412 = vunpack.c.l.b16 %v368
        %v413 = vunpack.c.l.b16 %v369
        %v414 = vunpack.c.l.b16 %v370
        %v415 = vunpack.c.l.b16 %v371
        %v416 = vunpack.c.l.b16 %v372
        %v417 = vunpack.c.l.b16 %v373
        %v418 = vpack.c.b16 %v403, %v402
        %v419 = vpack.c.b16 %v405, %v404
        %v420 = vpack.c.b16 %v407, %v406
        %v421 = vpack.c.b16 %v409, %v408
        %v422 = vpack.c.b16 %v411, %v410
        %v423 = vpack.c.b16 %v413, %v412
        %v424 = vpack.c.b16 %v415, %v414
        %v425 = vpack.c.b16 %v417, %v416
        %434 = vmatprep.subr.bf16.mxu0 0
        %435 = vmatpush1.bf16.msra.mxu0 %v418
        %436 = vmatprep.subr.bf16.mxu0 0
        %437 = vmatpush1.bf16.msra.mxu0 %v419
        %438 = vmatprep.subr.bf16.mxu0 0
        %439 = vmatpush1.bf16.msra.mxu0 %v420
        %440 = vmatprep.subr.bf16.mxu0 0
        %441 = vmatpush1.bf16.msra.mxu0 %v421
        %442 = vmatprep.subr.bf16.mxu0 0
        %443 = vmatpush1.bf16.msra.mxu0 %v422
        %444 = vmatprep.subr.bf16.mxu0 0
        %445 = vmatpush1.bf16.msra.mxu0 %v423
        %446 = vmatprep.subr.bf16.mxu0 0
        %447 = vmatpush1.bf16.msra.mxu0 %v424
        %448 = vmatprep.subr.bf16.mxu0 0
        %449 = vmatpush1.bf16.msra.mxu0 %v425
        %450 = vmatprep.subr.bf16.mxu0 0
        %451 = vmatpush1.bf16.msra.mxu0 0
        %452 = vmatprep.subr.bf16.mxu0 0
        %453 = vmatpush1.bf16.msra.mxu0 0
        %454 = vmatprep.subr.bf16.mxu0 0
        %455 = vmatpush1.bf16.msra.mxu0 0
        %456 = vmatprep.subr.bf16.mxu0 0
        %457 = vmatpush1.bf16.msra.mxu0 0
        %458 = vmatprep.subr.bf16.mxu0 0
        %459 = vmatpush1.bf16.msra.mxu0 0
        %460 = vmatprep.subr.bf16.mxu0 0
        %461 = vmatpush1.bf16.msra.mxu0 0
        %462 = vmatprep.subr.bf16.mxu0 0
        %463 = vmatpush1.bf16.msra.mxu0 0
        %464 = vmatprep.subr.bf16.mxu0 0
        %465 = vmatpush1.bf16.msra.mxu0 0
        %466 = vmatprep.mubr.bf16.mxu0 0
        %467 = vmatmul.mubr.bf16.gmra.mrb[0].mxu0 %v382
        %v468 = vpop.f32.mrb[0].mxu0
        %v469 = vadd.f32 0.0, %v468
        %v470 = vpop.f32.mrb[0].mxu0
        %v471 = vpop.f32.mrb[0].mxu0
        %v472 = vadd.f32 0.0, %v471
        %v473 = vpop.f32.mrb[0].mxu0
        %474 = vmatprep.mubr.bf16.mxu0 0
        %475 = vmatmul.mubr.bf16.gmra.mrb[0].mxu0 %v383
        %v476 = vpop.f32.mrb[0].mxu0
        %v477 = vadd.f32 0.0, %v476
        %v478 = vpop.f32.mrb[0].mxu0
        %v479 = vpop.f32.mrb[0].mxu0
        %v480 = vadd.f32 0.0, %v479
        %v481 = vpop.f32.mrb[0].mxu0
        %482 = vdwg.mxu0
        %v483 = vadd.f32 %v350, %v469
        %v484 = vadd.f32 %v351, %v472
        %v485 = vadd.f32 %v352, %v477
        %v486 = vadd.f32 %v353, %v480
        %487 = vst [vmem:[#allocation2] sm:$0xff] %v483
        %488 = vst [vmem:[#allocation2 + $0x8] sm:$0xff] %v484
        %489 = vst [vmem:[#allocation2 + $0x10] sm:$0xff] %v485
        %490 = vst [vmem:[#allocation2 + $0x18] sm:$0xff] %v486
        // Predicated region
        $region78: #{segmenter_vit_forward.24} parent=68 // pred_check
          %p491 = pneg %p342
        $region79: #{segmenter_vit_forward.24} parent=68 // pred_check_branch
          %493 = sbr.rel (%p491) target = $region81
        $region80: #{segmenter_vit_forward.24} parent=68 // pred_region
          %v494 = vld [vmem:[#allocation2] sm:$0xff]
          %v495 = vld [vmem:[#allocation2 + $0x8] sm:$0xff]
          %v496 = vld [vmem:[#allocation2 + $0x10] sm:$0xff]
          %v497 = vld [vmem:[#allocation2 + $0x18] sm:$0xff]
          %v498 = vld [vmem:[%s339] sm:$0x1]
          %v500 = vlaneseq
          %v501 = vshrl.u32 %v500, 7
          %v502 = vsub.s32 0, %v501
          %v503 = vrot.slane %v498, %v502
          %v505 = vadd.f32 %v494, %v503
          %v506 = vadd.f32 %v495, %v503
          %v507 = vadd.f32 %v496, %v503
          %v508 = vadd.f32 %v497, %v503
          %v509 = vpack.c.bf16 %v506, %v505
          %v510 = vpack.c.bf16 %v508, %v507
          %v513 = vunpack.c.l.b16 %v509
          %v514 = vunpack.c.h.b16 %v509
          %v515 = vunpack.c.l.b16 %v510
          %v516 = vunpack.c.h.b16 %v510
          %v517 = vpack.c.b16 %v513, %v513
          %v518 = vpack.c.b16 %v514, %v514
          %v519 = vpack.c.b16 %v515, %v515
          %v520 = vpack.c.b16 %v516, %v516
          %525 = vst [vmem:[%s326] sm:$0xf] %v517
          %526 = vst [vmem:[%s326 + $0x4] sm:$0xf] %v518
          %527 = vst [vmem:[%s326 + $0x8] sm:$0xf] %v519
          %528 = vst [vmem:[%s326 + $0xc] sm:$0xf] %v520
        $region81: #{segmenter_vit_forward.24} parent=68 // pred_fallthru
          _
        %s529 = sand.u32 %s125, 1
        %s530 = sand.u32 %s125, 1
        %s531 = smul.addr %s530, 16
        %s532 = scalar_lea.vmem [#allocation4], %s531
        // Predicated region
        $region82: #{segmenter_vit_forward.24} parent=68 // pred_check
          %p533 = pneg %p135
        $region83: #{segmenter_vit_forward.24} parent=68 // pred_check_branch
          %535 = sbr.rel (%p533) target = $region85
        $region84: #{segmenter_vit_forward.24} parent=68 // pred_region
          %s536 = smul.u32 4, %s19
          %s537 = smul.addr %s536, 3
          %s538 = sadd.s32 %s20, %s537
          %s539 = smul.addr %s538, 4
          %s540 = scalar_lea.vmem %s3, %s539
          // Predicated region
          $region86: #{segmenter_vit_forward.24} parent=84 // pred_check
            _
          $region87: #{segmenter_vit_forward.24} parent=84 // pred_check_branch
            %542 = sbr.rel (0) target = $region89
          $region88: #{segmenter_vit_forward.24} parent=84 // pred_region
            // Predicated region
            $region90: #{segmenter_vit_forward.24} parent=88 // pred_check
              _
            $region91: #{segmenter_vit_forward.24} parent=88 // pred_check_branch
              %544 = sbr.rel target = $region93
            $region92: #{segmenter_vit_forward.24} parent=88 // pred_region
              // Predicated region
              $region105: #{segmenter_vit_forward.24} parent=92 // pred_check
                _
              $region106: #{segmenter_vit_forward.24} parent=92 // pred_check_branch
                %565 = sbr.rel (0) target = $region108
              $region107: #{segmenter_vit_forward.24} parent=92 // pred_region
                loop: start=0, step=1, limit=1
                $region109: #{segmenter_vit_forward.24} parent=107 // loop_pre_header
                  _
                $region110: #{segmenter_vit_forward.24} parent=107 // loop_header
                  %s567 = sphi 0, %s571
                  %p568 = scmp.ge.s32.totalorder %s567, 1
                  %s572 = sphi %s532, %s532
                  %s573 = sphi %s540, %s540
                $region111: #{segmenter_vit_forward.24} parent=107 // loop_header_branch
                  %570 = sbr.rel (%p568) target = $region115
                $region112: #{segmenter_vit_forward.24} parent=107 // loop_body
                  _
                $region113: #{segmenter_vit_forward.24} parent=107 // loop_footer
                  %s571 = sadd.s32 1, %s567
                $region114: #{segmenter_vit_forward.24} parent=107 // loop_footer_branch
                  %566 = sbr.rel target = $region110
                $region115: #{segmenter_vit_forward.24} parent=107 // loop_exit
                  _
                loop: start=0, step=1, limit=1
                $region116: #{segmenter_vit_forward.24} parent=107 // loop_pre_header
                  _
                $region117: #{segmenter_vit_forward.24} parent=107 // loop_header
                  %s576 = sphi 0, %s580
                  %p577 = scmp.ge.s32.totalorder %s576, 1
                  %s581 = sphi %s532, %s532
                  %s582 = sphi %s540, %s540
                $region118: #{segmenter_vit_forward.24} parent=107 // loop_header_branch
                  %579 = sbr.rel (%p577) target = $region122
                $region119: #{segmenter_vit_forward.24} parent=107 // loop_body
                  %v583 = vld [vmem:[%s581] sm:$0xf]
                  %584 = vst [vmem:[%s582] sm:$0xf] %v583
                  %v585 = vld [vmem:[%s581 + $0x4] sm:$0xf]
                  %586 = vst [vmem:[%s582 + $0xc] sm:$0xf] %v585
                  %v587 = vld [vmem:[%s581 + $0x8] sm:$0xf]
                  %588 = vst [vmem:[%s582 + $0x18] sm:$0xf] %v587
                  %v589 = vld [vmem:[%s581 + $0xc] sm:$0xf]
                  %590 = vst [vmem:[%s582 + $0x24] sm:$0xf] %v589
                $region120: #{segmenter_vit_forward.24} parent=107 // loop_footer
                  %s580 = sadd.s32 1, %s576
                $region121: #{segmenter_vit_forward.24} parent=107 // loop_footer_branch
                  %575 = sbr.rel target = $region117
                $region122: #{segmenter_vit_forward.24} parent=107 // loop_exit
                  _
              $region108: #{segmenter_vit_forward.24} parent=92 // pred_fallthru
                _
            $region93: #{segmenter_vit_forward.24} parent=88 // pred_fallthru
              _
            // Predicated region
            $region94: #{segmenter_vit_forward.24} parent=88 // pred_check
              _
            $region95: #{segmenter_vit_forward.24} parent=88 // pred_check_branch
              %546 = sbr.rel (0) target = $region97
            $region96: #{segmenter_vit_forward.24} parent=88 // pred_region
              loop: start=0, step=1, limit=1
              $region98: #{segmenter_vit_forward.24} parent=96 // loop_pre_header
                _
              $region99: #{segmenter_vit_forward.24} parent=96 // loop_header
                %s549 = sphi 0, %s553
                %p550 = scmp.ge.s32.totalorder %s549, 1
                %s554 = sphi %s532, %s532
                %s555 = sphi %s540, %s540
              $region100: #{segmenter_vit_forward.24} parent=96 // loop_header_branch
                %552 = sbr.rel (%p550) target = $region104
              $region101: #{segmenter_vit_forward.24} parent=96 // loop_body
                %v556 = vld [vmem:[%s554] sm:$0xf]
                %557 = vst [vmem:[%s555] sm:$0xf] %v556
                %v558 = vld [vmem:[%s554 + $0x4] sm:$0xf]
                %559 = vst [vmem:[%s555 + $0xc] sm:$0xf] %v558
                %v560 = vld [vmem:[%s554 + $0x8] sm:$0xf]
                %561 = vst [vmem:[%s555 + $0x18] sm:$0xf] %v560
                %v562 = vld [vmem:[%s554 + $0xc] sm:$0xf]
                %563 = vst [vmem:[%s555 + $0x24] sm:$0xf] %v562
              $region102: #{segmenter_vit_forward.24} parent=96 // loop_footer
                %s553 = sadd.s32 1, %s549
              $region103: #{segmenter_vit_forward.24} parent=96 // loop_footer_branch
                %548 = sbr.rel target = $region99
              $region104: #{segmenter_vit_forward.24} parent=96 // loop_exit
                _
            $region97: #{segmenter_vit_forward.24} parent=88 // pred_fallthru
              _
          $region89: #{segmenter_vit_forward.24} parent=84 // pred_fallthru
            _
          %591 = vnop
        $region85: #{segmenter_vit_forward.24} parent=68 // pred_fallthru
          _
      $region69: #{segmenter_vit_forward.24} parent=5 // pred_fallthru
        _
      %p592 = scmp.le.s32.totalorder 2, %s9
      // Predicated region
      $region123: #{segmenter_vit_forward.24} parent=5 // pred_check
        %p593 = pneg %p592
      $region124: #{segmenter_vit_forward.24} parent=5 // pred_check_branch
        %595 = sbr.rel (%p593) target = $region126
      $region125: #{segmenter_vit_forward.24} parent=5 // pred_region
        %s596 = ssub.s32 %s9, 2
        // Predicated region
        $region127: #{segmenter_vit_forward.24} parent=125 // pred_check
          %p597 = pneg %p141
        $region128: #{segmenter_vit_forward.24} parent=125 // pred_check_branch
          %599 = sbr.rel (%p597) target = $region130
        $region129: #{segmenter_vit_forward.24} parent=125 // pred_region
          %s600 = sand.u32 %s126, 1
          %s601 = sand.u32 %s126, 1
          %s602 = smul.addr %s601, 16
          %s603 = scalar_lea.vmem [#allocation4], %s602
        $region130: #{segmenter_vit_forward.24} parent=125 // pred_fallthru
          _
      $region126: #{segmenter_vit_forward.24} parent=5 // pred_fallthru
        _
    $region6: #{segmenter_vit_forward.24} parent=1 // loop_footer
      %s13 = sadd.s32 1, %s9
    $region7: #{segmenter_vit_forward.24} parent=1 // loop_footer_branch
      %8 = sbr.rel target = $region3
    $region8: #{segmenter_vit_forward.24} parent=1 // loop_exit
      _

// kernel: segmenter_vit_forward.23
$region0: #{segmenter_vit_forward.23}
  #allocation0 [shape = 'u32[]', space=smem, size = 0x4, offset = 0x4, fixed_abs, tag = 'smem constant byte address 0x4 - core index']
  #allocation1 [shape = 'u32[144,128]{1,0:T(1,128)}', space=vmem, size = 0x12000, scoped, tag = 'internal scratch']
  #allocation2 [shape = 'f32[16,128]{1,0:T(8,128)}', space=vmem, size = 0x2000, scoped, tag = 'scratch operand']
  %s0 = inlined_call_operand.vmem [shape: bf16[32,64], index: 0, kind: input, shape index: {}]
  %s1 = inlined_call_operand.vmem [shape: bf16[64,128], index: 1, kind: input, shape index: {}]
  %s2 = inlined_call_operand.vmem [shape: f32[1,128], index: 2, kind: input, shape index: {}]
  %s3 = inlined_call_operand.vmem [shape: f32[16,128], index: 3, kind: input, shape index: {}]
  %s4 = inlined_call_operand.vmem [shape: bf16[32,128], index: 4, kind: output, shape index: {}]
  %s5 = sld [smem:[#allocation0]]
  $region57: #{segmenter_vit_forward.23} parent=0
    _
  %s7 = ssub.s32 1, %s5
  %s8 = scalar_select 0, %s7, %s5
  loop: start=0, step=1, limit=4
  $region2: #{segmenter_vit_forward.23} parent=0 // loop_pre_header
    _
  $region3: #{segmenter_vit_forward.23} parent=0 // loop_header
    %s10 = sphi 0, %s14
    %p11 = scmp.ge.s32.totalorder %s10, 4
    %s17 = sphi 0, %s36
    %s18 = sphi 0, %s32
    %s19 = sphi 0, %s28
    %s20 = sphi 0, %s17
    %s21 = sphi 0, %s18
    %s22 = sphi 0, %s19
    %s23 = sphi 0, %s20
    %s24 = sphi 0, %s21
    %s25 = sphi 0, %s22
    %s41 = sphi 0, %s43
    %s44 = sphi 0, %s41
    %s45 = sphi 0, %s44
    %s61 = sphi 0, %s45
    %s69 = sphi 0, %s71
    %s72 = sphi 0, %s69
    %s73 = sphi 0, %s72
    %s89 = sphi 0, %s73
    %s95 = sphi 0, %s97
    %s98 = sphi 0, %s95
    %s99 = sphi 0, %s98
    %s115 = sphi 0, %s99
    %s121 = sphi 0, %s123
    %s124 = sphi 0, %s121
    %s125 = sphi 0, %s124
    %s141 = sphi 0, %s125
    %s149 = sphi 0, %s151
    %s152 = sphi 0, %s149
    %s153 = sphi 0, %s152
    %s169 = sphi 0, %s153
  $region4: #{segmenter_vit_forward.23} parent=0 // loop_header_branch
    %13 = sbr.rel (%p11) target = $region8
  $region5: #{segmenter_vit_forward.23} parent=0 // loop_body
    %s15 = ssub.s32 %s10, 1
    %s16 = ssub.s32 %s10, 2
    %s26 = sadd.s32 1, %s19
    %p27 = scmp.ge.s32.totalorder %s26, 1
    %s28 = scalar_select %p27, 0, %s26
    %s29 = sadd.s32 1, %s18
    %s30 = scalar_select %p27, %s29, %s18
    %p31 = scmp.ge.s32.totalorder %s30, 1
    %s32 = scalar_select %p31, 0, %s30
    %s33 = sadd.s32 1, %s17
    %s34 = scalar_select %p31, %s33, %s17
    %p35 = scmp.ge.s32.totalorder %s34, 2
    %s36 = scalar_select %p35, 0, %s34
    %s37 = ssub.s32 %s17, %s36
    %s38 = ssub.s32 %s19, %s28
    %s39 = sor.u32 %s37, %s38
    %p40 = scmp.eq.s32.totalorder %s39, 0
    %s42 = sadd.s32 %s41, 1
    %s43 = scalar_select %p40, %s41, %s42
    %p46 = pneg %p40
    %p47 = scmp.eq.s32.totalorder %s10, 1
    %p48 = por %p46, %p47
    %p49 = scmp.ne.s32.totalorder %s41, %s44
    %p50 = scmp.eq.s32.totalorder %s10, 0
    %p51 = por %p49, %p50
    %p52 = scmp.ne.s32.totalorder %s41, %s44
    %p53 = scmp.eq.s32.totalorder %s15, 1
    %p54 = por %p52, %p53
    %p55 = scmp.ne.s32.totalorder %s44, %s45
    %p56 = scmp.eq.s32.totalorder %s15, 0
    %p57 = por %p55, %p56
    %p58 = scmp.ne.s32.totalorder %s44, %s45
    %p59 = scmp.eq.s32.totalorder %s16, 1
    %p60 = por %p58, %p59
    %p62 = scmp.ne.s32.totalorder %s45, %s61
    %p63 = scmp.eq.s32.totalorder %s16, 0
    %p64 = por %p62, %p63
    %s65 = ssub.s32 %s19, %s28
    %s66 = ssub.s32 %s18, %s32
    %s67 = sor.u32 %s65, %s66
    %p68 = scmp.eq.s32.totalorder %s67, 0
    %s70 = sadd.s32 %s69, 1
    %s71 = scalar_select %p68, %s69, %s70
    %p74 = pneg %p68
    %p75 = scmp.eq.s32.totalorder %s10, 1
    %p76 = por %p74, %p75
    %p77 = scmp.ne.s32.totalorder %s69, %s72
    %p78 = scmp.eq.s32.totalorder %s10, 0
    %p79 = por %p77, %p78
    %p80 = scmp.ne.s32.totalorder %s69, %s72
    %p81 = scmp.eq.s32.totalorder %s15, 1
    %p82 = por %p80, %p81
    %p83 = scmp.ne.s32.totalorder %s72, %s73
    %p84 = scmp.eq.s32.totalorder %s15, 0
    %p85 = por %p83, %p84
    %p86 = scmp.ne.s32.totalorder %s72, %s73
    %p87 = scmp.eq.s32.totalorder %s16, 1
    %p88 = por %p86, %p87
    %p90 = scmp.ne.s32.totalorder %s73, %s89
    %p91 = scmp.eq.s32.totalorder %s16, 0
    %p92 = por %p90, %p91
    %s93 = ssub.s32 %s18, %s32
    %p94 = scmp.eq.s32.totalorder %s93, 0
    %s96 = sadd.s32 %s95, 1
    %s97 = scalar_select %p94, %s95, %s96
    %p100 = pneg %p94
    %p101 = scmp.eq.s32.totalorder %s10, 1
    %p102 = por %p100, %p101
    %p103 = scmp.ne.s32.totalorder %s95, %s98
    %p104 = scmp.eq.s32.totalorder %s10, 0
    %p105 = por %p103, %p104
    %p106 = scmp.ne.s32.totalorder %s95, %s98
    %p107 = scmp.eq.s32.totalorder %s15, 1
    %p108 = por %p106, %p107
    %p109 = scmp.ne.s32.totalorder %s98, %s99
    %p110 = scmp.eq.s32.totalorder %s15, 0
    %p111 = por %p109, %p110
    %p112 = scmp.ne.s32.totalorder %s98, %s99
    %p113 = scmp.eq.s32.totalorder %s16, 1
    %p114 = por %p112, %p113
    %p116 = scmp.ne.s32.totalorder %s99, %s115
    %p117 = scmp.eq.s32.totalorder %s16, 0
    %p118 = por %p116, %p117
    %s119 = ssub.s32 %s18, %s32
    %p120 = scmp.eq.s32.totalorder %s119, 0
    %s122 = sadd.s32 %s121, 1
    %s123 = scalar_select %p120, %s121, %s122
    %p126 = pneg %p120
    %p127 = scmp.eq.s32.totalorder %s10, 1
    %p128 = por %p126, %p127
    %p129 = scmp.ne.s32.totalorder %s121, %s124
    %p130 = scmp.eq.s32.totalorder %s10, 0
    %p131 = por %p129, %p130
    %p132 = scmp.ne.s32.totalorder %s121, %s124
    %p133 = scmp.eq.s32.totalorder %s15, 1
    %p134 = por %p132, %p133
    %p135 = scmp.ne.s32.totalorder %s124, %s125
    %p136 = scmp.eq.s32.totalorder %s15, 0
    %p137 = por %p135, %p136
    %p138 = scmp.ne.s32.totalorder %s124, %s125
    %p139 = scmp.eq.s32.totalorder %s16, 1
    %p140 = por %p138, %p139
    %p142 = scmp.ne.s32.totalorder %s125, %s141
    %p143 = scmp.eq.s32.totalorder %s16, 0
    %p144 = por %p142, %p143
    %s145 = ssub.s32 %s17, %s36
    %s146 = ssub.s32 %s18, %s32
    %s147 = sor.u32 %s145, %s146
    %p148 = scmp.eq.s32.totalorder %s147, 0
    %s150 = sadd.s32 %s149, 1
    %s151 = scalar_select %p148, %s149, %s150
    %p154 = pneg %p148
    %p155 = scmp.eq.s32.totalorder %s10, 1
    %p156 = por %p154, %p155
    %p157 = scmp.ne.s32.totalorder %s149, %s152
    %p158 = scmp.eq.s32.totalorder %s10, 0
    %p159 = por %p157, %p158
    %p160 = scmp.ne.s32.totalorder %s149, %s152
    %p161 = scmp.eq.s32.totalorder %s15, 1
    %p162 = por %p160, %p161
    %p163 = scmp.ne.s32.totalorder %s152, %s153
    %p164 = scmp.eq.s32.totalorder %s15, 0
    %p165 = por %p163, %p164
    %p166 = scmp.ne.s32.totalorder %s152, %s153
    %p167 = scmp.eq.s32.totalorder %s16, 1
    %p168 = por %p166, %p167
    %p170 = scmp.ne.s32.totalorder %s153, %s169
    %p171 = scmp.eq.s32.totalorder %s16, 0
    %p172 = por %p170, %p171
    %p173 = scmp.le.s32.totalorder 1, %s10
    %p174 = scmp.lt.s32.totalorder %s10, 3
    %p175 = pnand %p173, %p174
    %p176 = pneg %p175
    // Predicated region
    $region9: #{segmenter_vit_forward.23} parent=5 // pred_check
      _
    $region10: #{segmenter_vit_forward.23} parent=5 // pred_check_branch
      %178 = sbr.rel (%p175) target = $region12
    $region11: #{segmenter_vit_forward.23} parent=5 // pred_region
      %s179 = ssub.s32 %s10, 1
      // Predicated region
      $region13: #{segmenter_vit_forward.23} parent=11 // pred_check
        %p180 = pneg %p85
      $region14: #{segmenter_vit_forward.23} parent=11 // pred_check_branch
        %182 = sbr.rel (%p180) target = $region16
      $region15: #{segmenter_vit_forward.23} parent=11 // pred_region
        %s183 = smul.u32 8, %s22
        %p184 = scmp.lt.s32.totalorder %s183, 7
        %s185 = scalar_select %p184, %s183, 7
        %p186 = scmp.lt.s32.totalorder %s21, 0
        %s187 = scalar_select %p186, %s21, 0
        %s188 = sadd.s32 %s187, %s185
        %s189 = smul.addr %s188, 4
        %s190 = scalar_lea.vmem %s1, %s189
        %s191 = smul.u32 8, %s22
      $region16: #{segmenter_vit_forward.23} parent=11 // pred_fallthru
        _
      // Predicated region
      $region17: #{segmenter_vit_forward.23} parent=11 // pred_check
        %p192 = pneg %p111
      $region18: #{segmenter_vit_forward.23} parent=11 // pred_check_branch
        %194 = sbr.rel (%p192) target = $region20
      $region19: #{segmenter_vit_forward.23} parent=11 // pred_region
        %p195 = scmp.lt.s32.totalorder %s21, 0
        %s196 = scalar_select %p195, %s21, 0
        %s197 = scalar_lea.vmem %s2, %s196
      $region20: #{segmenter_vit_forward.23} parent=11 // pred_fallthru
        _
      // Predicated region
      $region21: #{segmenter_vit_forward.23} parent=11 // pred_check
        %p198 = pneg %p137
      $region22: #{segmenter_vit_forward.23} parent=11 // pred_check_branch
        %200 = sbr.rel (%p198) target = $region24
      $region23: #{segmenter_vit_forward.23} parent=11 // pred_region
        %p201 = scmp.lt.s32.totalorder %s21, 0
        %s202 = scalar_select %p201, %s21, 0
        %s203 = smul.addr %s202, 8
        %s204 = scalar_lea.vmem %s3, %s203
      $region24: #{segmenter_vit_forward.23} parent=11 // pred_fallthru
        _
    $region12: #{segmenter_vit_forward.23} parent=5 // pred_fallthru
      _
    %p205 = scmp.lt.s32.totalorder %s10, 2
    // Predicated region
    $region25: #{segmenter_vit_forward.23} parent=5 // pred_check
      %p206 = pneg %p205
    $region26: #{segmenter_vit_forward.23} parent=5 // pred_check_branch
      %208 = sbr.rel (%p206) target = $region28
    $region27: #{segmenter_vit_forward.23} parent=5 // pred_region
      // Predicated region
      $region29: #{segmenter_vit_forward.23} parent=27 // pred_check
        %p209 = pneg %p51
      $region30: #{segmenter_vit_forward.23} parent=27 // pred_check_branch
        %211 = sbr.rel (%p209) target = $region32
      $region31: #{segmenter_vit_forward.23} parent=27 // pred_region
        %s212 = smul.u32 2, %s17
        %p213 = scmp.lt.s32.totalorder %s212, 3
        %s214 = scalar_select %p213, %s212, 3
        %p215 = scmp.lt.s32.totalorder %s19, 0
        %s216 = scalar_select %p215, %s19, 0
        %s217 = sadd.s32 %s216, %s214
        %s218 = smul.addr %s217, 4
        %s219 = scalar_lea.vmem %s0, %s218
        %s220 = smul.u32 2, %s17
      $region32: #{segmenter_vit_forward.23} parent=27 // pred_fallthru
        _
    $region28: #{segmenter_vit_forward.23} parent=5 // pred_fallthru
      _
    %p221 = scmp.le.s32.totalorder 1, %s10
    %p222 = scmp.lt.s32.totalorder %s10, 3
    %p223 = pnand %p221, %p222
    %p224 = pneg %p223
    // Predicated region
    $region33: #{segmenter_vit_forward.23} parent=5 // pred_check
      _
    $region34: #{segmenter_vit_forward.23} parent=5 // pred_check_branch
      %226 = sbr.rel (%p223) target = $region36
    $region35: #{segmenter_vit_forward.23} parent=5 // pred_region
      %s227 = ssub.s32 %s10, 1
      %s228 = smul.u32 2, %s20
      %p229 = scmp.lt.s32.totalorder %s228, 3
      %s230 = scalar_select %p229, %s228, 3
      %p231 = scmp.lt.s32.totalorder %s22, 0
      %s232 = scalar_select %p231, %s22, 0
      %s233 = sadd.s32 %s232, %s230
      %s234 = smul.addr %s233, 4
      %s235 = scalar_lea.vmem %s0, %s234
      %p236 = pneg %p57
      %p237 = pneg %p54
      %s238 = smul.u32 8, %s22
      %p239 = scmp.lt.s32.totalorder %s238, 7
      %s240 = scalar_select %p239, %s238, 7
      %p241 = scmp.lt.s32.totalorder %s21, 0
      %s242 = scalar_select %p241, %s21, 0
      %s243 = sadd.s32 %s242, %s240
      %s244 = smul.addr %s243, 4
      %s245 = scalar_lea.vmem %s1, %s244
      %p246 = pneg %p85
      %p247 = pneg %p82
      %p248 = scmp.lt.s32.totalorder %s21, 0
      %s249 = scalar_select %p248, %s21, 0
      %s250 = scalar_lea.vmem %s2, %s249
      %p251 = pneg %p111
      %p252 = pneg %p108
      %p253 = scmp.lt.s32.totalorder %s21, 0
      %s254 = scalar_select %p253, %s21, 0
      %s255 = smul.addr %s254, 8
      %s256 = scalar_lea.vmem %s3, %s255
      %p257 = pneg %p137
      %p258 = pneg %p134
      %p259 = pneg %p165
      %p260 = pneg %p162
      %s261 = smul.u32 2, %s20
      %p262 = scmp.lt.s32.totalorder %s261, 3
      %s263 = scalar_select %p262, %s261, 3
      %p264 = scmp.lt.s32.totalorder %s21, 0
      %s265 = scalar_select %p264, %s21, 0
      %s266 = sadd.s32 %s265, %s263
      %s267 = smul.addr %s266, 4
      %s268 = scalar_lea.vmem %s4, %s267
      %s269 = smul.u32 2, %s20
      %p270 = scmp.lt.s32.totalorder %s269, 3
      %s271 = scalar_select %p270, %s269, 3
      %p272 = scmp.lt.s32.totalorder %s22, 0
      %s273 = scalar_select %p272, %s22, 0
      %s274 = sadd.s32 %s273, %s271
      %s275 = smul.addr %s274, 4
      %s276 = scalar_lea.vmem %s0, %s275
      %s277 = smul.u32 2, %s20
      %s278 = smul.u32 8, %s22
      %p279 = scmp.lt.s32.totalorder %s278, 7
      %s280 = scalar_select %p279, %s278, 7
      %p281 = scmp.lt.s32.totalorder %s21, 0
      %s282 = scalar_select %p281, %s21, 0
      %s283 = sadd.s32 %s282, %s280
      %s284 = smul.addr %s283, 4
      %s285 = scalar_lea.vmem %s1, %s284
      %s286 = smul.u32 8, %s22
      %p287 = scmp.lt.s32.totalorder %s21, 0
      %s288 = scalar_select %p287, %s21, 0
      %s289 = scalar_lea.vmem %s2, %s288
      %p290 = scmp.lt.s32.totalorder %s21, 0
      %s291 = scalar_select %p290, %s21, 0
      %s292 = smul.addr %s291, 8
      %s293 = scalar_lea.vmem %s3, %s292
      %s294 = smul.u32 2, %s20
      %p295 = scmp.lt.s32.totalorder %s294, 3
      %s296 = scalar_select %p295, %s294, 3
      %p297 = scmp.lt.s32.totalorder %s21, 0
      %s298 = scalar_select %p297, %s21, 0
      %s299 = sadd.s32 %s298, %s296
      %s300 = smul.addr %s299, 4
      %s301 = scalar_lea.vmem %s4, %s300
      %s302 = smul.u32 2, %s20
      %p304 = scmp.eq.s32.totalorder %s22, 0
      // Predicated region
      $region37: #{segmenter_vit_forward.23} parent=35 // pred_check
        %p305 = pneg %p304
      $region38: #{segmenter_vit_forward.23} parent=35 // pred_check_branch
        %307 = sbr.rel (%p305) target = $region40
      $region39: #{segmenter_vit_forward.23} parent=35 // pred_region
        %308 = vst [vmem:[#allocation2] sm:$0xff] 0.0
        %309 = vst [vmem:[#allocation2 + $0x8] sm:$0xff] 0.0
      $region40: #{segmenter_vit_forward.23} parent=35 // pred_fallthru
        _
      %v310 = vld [vmem:[#allocation2] sm:$0xff]
      %v311 = vld [vmem:[#allocation2 + $0x8] sm:$0xff]
      %v312 = vld [vmem:[%s276] sm:$0xf]
      %v313 = vld [vmem:[%s276 + $0x4] sm:$0xf]
      %v314 = vld [vmem:[%s285] sm:$0xf]
      %v315 = vld [vmem:[%s285 + $0x4] sm:$0xf]
      %v316 = vld [vmem:[%s285 + $0x8] sm:$0xf]
      %v317 = vld [vmem:[%s285 + $0xc] sm:$0xf]
      %v318 = vld [vmem:[%s285 + $0x10] sm:$0xf]
      %v319 = vld [vmem:[%s285 + $0x14] sm:$0xf]
      %v320 = vld [vmem:[%s285 + $0x18] sm:$0xf]
      %v321 = vld [vmem:[%s285 + $0x1c] sm:$0xf]
      %v324 = vunpack.c.l.b16 %v312
      %v325 = vunpack.c.l.b16 %v313
      %v326 = vpack.c.b16 %v325, %v324
      %v335 = vunpack.c.l.b16 %v314
      %v336 = vunpack.c.l.b16 %v315
      %v337 = vunpack.c.l.b16 %v316
      %v338 = vunpack.c.l.b16 %v317
      %v339 = vunpack.c.l.b16 %v318
      %v340 = vunpack.c.l.b16 %v319
      %v341 = vunpack.c.l.b16 %v320
      %v342 = vunpack.c.l.b16 %v321
      %v343 = vpack.c.b16 %v336, %v335
      %v344 = vpack.c.b16 %v338, %v337
      %v345 = vpack.c.b16 %v340, %v339
      %v346 = vpack.c.b16 %v342, %v341
      %vm351 = vcmask 523264
      %v353 = vsel %vm351, %v326, 0
      %355 = vmatprep.subr.bf16.mxu0 0
      %356 = vmatpush1.bf16.msra.mxu0 %v343
      %357 = vmatprep.subr.bf16.mxu0 0
      %358 = vmatpush1.bf16.msra.mxu0 %v344
      %359 = vmatprep.subr.bf16.mxu0 0
      %360 = vmatpush1.bf16.msra.mxu0 %v345
      %361 = vmatprep.subr.bf16.mxu0 0
      %362 = vmatpush1.bf16.msra.mxu0 %v346
      %363 = vmatprep.subr.bf16.mxu0 0
      %364 = vmatpush1.bf16.msra.mxu0 0
      %365 = vmatprep.subr.bf16.mxu0 0
      %366 = vmatpush1.bf16.msra.mxu0 0
      %367 = vmatprep.subr.bf16.mxu0 0
      %368 = vmatpush1.bf16.msra.mxu0 0
      %369 = vmatprep.subr.bf16.mxu0 0
      %370 = vmatpush1.bf16.msra.mxu0 0
      %371 = vmatprep.subr.bf16.mxu0 0
      %372 = vmatpush1.bf16.msra.mxu0 0
      %373 = vmatprep.subr.bf16.mxu0 0
      %374 = vmatpush1.bf16.msra.mxu0 0
      %375 = vmatprep.subr.bf16.mxu0 0
      %376 = vmatpush1.bf16.msra.mxu0 0
      %377 = vmatprep.subr.bf16.mxu0 0
      %378 = vmatpush1.bf16.msra.mxu0 0
      %379 = vmatprep.subr.bf16.mxu0 0
      %380 = vmatpush1.bf16.msra.mxu0 0
      %381 = vmatprep.subr.bf16.mxu0 0
      %382 = vmatpush1.bf16.msra.mxu0 0
      %383 = vmatprep.subr.bf16.mxu0 0
      %384 = vmatpush1.bf16.msra.mxu0 0
      %385 = vmatprep.subr.bf16.mxu0 0
      %386 = vmatpush1.bf16.msra.mxu0 0
      %387 = vmatprep.mubr.bf16.mxu0 0
      %388 = vmatmul.mubr.bf16.gmra.mrb[0].mxu0 %v353
      %v389 = vpop.f32.mrb[0].mxu0
      %v390 = vadd.f32 0.0, %v389
      %v391 = vpop.f32.mrb[0].mxu0
      %v392 = vpop.f32.mrb[0].mxu0
      %v393 = vadd.f32 0.0, %v392
      %v394 = vpop.f32.mrb[0].mxu0
      %395 = vdwg.mxu0
      %v396 = vadd.f32 %v310, %v390
      %v397 = vadd.f32 %v311, %v393
      %398 = vst [vmem:[#allocation2] sm:$0xff] %v396
      %399 = vst [vmem:[#allocation2 + $0x8] sm:$0xff] %v397
      // Predicated region
      $region41: #{segmenter_vit_forward.23} parent=35 // pred_check
        %p400 = pneg %p304
      $region42: #{segmenter_vit_forward.23} parent=35 // pred_check_branch
        %402 = sbr.rel (%p400) target = $region44
      $region43: #{segmenter_vit_forward.23} parent=35 // pred_region
        %v403 = vld [vmem:[#allocation2] sm:$0xff]
        %v404 = vld [vmem:[#allocation2 + $0x8] sm:$0xff]
        %v405 = vld [vmem:[%s289] sm:$0x1]
        %v407 = vlaneseq
        %v408 = vshrl.u32 %v407, 7
        %v409 = vsub.s32 0, %v408
        %v410 = vrot.slane %v405, %v409
        %v412 = vadd.f32 %v403, %v410
        %v413 = vadd.f32 %v404, %v410
        %v414 = vld [vmem:[%s293] sm:$0xff]
        %v415 = vld [vmem:[%s293 + $0x8] sm:$0xff]
        %v416 = vadd.f32 %v412, %v414
        %v417 = vadd.f32 %v413, %v415
        %v418 = vpack.c.bf16 %v417, %v416
        %v420 = vunpack.c.l.b16 %v418
        %v421 = vunpack.c.h.b16 %v418
        %v422 = vpack.c.b16 %v420, %v420
        %v423 = vpack.c.b16 %v421, %v421
        %426 = vst [vmem:[%s301] sm:$0xf] %v422
        %427 = vst [vmem:[%s301 + $0x4] sm:$0xf] %v423
      $region44: #{segmenter_vit_forward.23} parent=35 // pred_fallthru
        _
      %s428 = smul.u32 2, %s20
      %p429 = scmp.lt.s32.totalorder %s428, 3
      %s430 = scalar_select %p429, %s428, 3
      %p431 = scmp.lt.s32.totalorder %s21, 0
      %s432 = scalar_select %p431, %s21, 0
      %s433 = sadd.s32 %s432, %s430
      %s434 = smul.addr %s433, 4
      %s435 = scalar_lea.vmem %s4, %s434
      // Predicated region
      $region45: #{segmenter_vit_forward.23} parent=35 // pred_check
        %p436 = pneg %p162
      $region46: #{segmenter_vit_forward.23} parent=35 // pred_check_branch
        %438 = sbr.rel (%p436) target = $region48
      $region47: #{segmenter_vit_forward.23} parent=35 // pred_region
        %s439 = smul.u32 2, %s20
      $region48: #{segmenter_vit_forward.23} parent=35 // pred_fallthru
        _
    $region36: #{segmenter_vit_forward.23} parent=5 // pred_fallthru
      _
    %p440 = scmp.le.s32.totalorder 2, %s10
    // Predicated region
    $region49: #{segmenter_vit_forward.23} parent=5 // pred_check
      %p441 = pneg %p440
    $region50: #{segmenter_vit_forward.23} parent=5 // pred_check_branch
      %443 = sbr.rel (%p441) target = $region52
    $region51: #{segmenter_vit_forward.23} parent=5 // pred_region
      %s444 = ssub.s32 %s10, 2
      // Predicated region
      $region53: #{segmenter_vit_forward.23} parent=51 // pred_check
        %p445 = pneg %p168
      $region54: #{segmenter_vit_forward.23} parent=51 // pred_check_branch
        %447 = sbr.rel (%p445) target = $region56
      $region55: #{segmenter_vit_forward.23} parent=51 // pred_region
        %s448 = smul.u32 2, %s23
        %p449 = scmp.lt.s32.totalorder %s448, 3
        %s450 = scalar_select %p449, %s448, 3
        %p451 = scmp.lt.s32.totalorder %s24, 0
        %s452 = scalar_select %p451, %s24, 0
        %s453 = sadd.s32 %s452, %s450
        %s454 = smul.addr %s453, 4
        %s455 = scalar_lea.vmem %s4, %s454
      $region56: #{segmenter_vit_forward.23} parent=51 // pred_fallthru
        _
    $region52: #{segmenter_vit_forward.23} parent=5 // pred_fallthru
      _
  $region6: #{segmenter_vit_forward.23} parent=0 // loop_footer
    %s14 = sadd.s32 1, %s10
  $region7: #{segmenter_vit_forward.23} parent=0 // loop_footer_branch
    %9 = sbr.rel target = $region3
  $region8: #{segmenter_vit_forward.23} parent=0 // loop_exit
    _

// kernel: segmenter_vit_forward.26
$region0: #{segmenter_vit_forward.26}
  #allocation0 [shape = 'u32[]', space=smem, size = 0x4, offset = 0x4, fixed_abs, tag = 'smem constant byte address 0x4 - core index']
  #allocation1 [shape = 'u32[144,128]{1,0:T(1,128)}', space=vmem, size = 0x12000, scoped, tag = 'internal scratch']
  #allocation2 [shape = 'f32[32,128]{1,0:T(8,128)}', space=vmem, size = 0x4000, scoped, tag = 'scratch operand']
  %s0 = inlined_call_operand.vmem [shape: bf16[32,128], index: 0, kind: input, shape index: {}]
  %s1 = inlined_call_operand.vmem [shape: bf16[128,128], index: 1, kind: input, shape index: {}]
  %s2 = inlined_call_operand.vmem [shape: f32[1,128], index: 2, kind: input, shape index: {}]
  %s3 = inlined_call_operand.vmem [shape: bf16[32,128], index: 3, kind: output, shape index: {}]
  %s4 = sld [smem:[#allocation0]]
  $region30: #{segmenter_vit_forward.26} parent=0
    _
  %s6 = ssub.s32 1, %s4
  %s7 = scalar_select 0, %s6, %s4
  // Predicated region
  $region2: #{segmenter_vit_forward.26} parent=0 // pred_check
    _
  $region3: #{segmenter_vit_forward.26} parent=0 // pred_check_branch
    %9 = sbr.rel (0) target = $region5
  $region4: #{segmenter_vit_forward.26} parent=0 // pred_region
    _
  $region5: #{segmenter_vit_forward.26} parent=0 // pred_fallthru
    _
  // Predicated region
  $region6: #{segmenter_vit_forward.26} parent=0 // pred_check
    _
  $region7: #{segmenter_vit_forward.26} parent=0 // pred_check_branch
    %11 = sbr.rel (0) target = $region9
  $region8: #{segmenter_vit_forward.26} parent=0 // pred_region
    _
  $region9: #{segmenter_vit_forward.26} parent=0 // pred_fallthru
    _
  // Predicated region
  $region10: #{segmenter_vit_forward.26} parent=0 // pred_check
    _
  $region11: #{segmenter_vit_forward.26} parent=0 // pred_check_branch
    %13 = sbr.rel (0) target = $region13
  $region12: #{segmenter_vit_forward.26} parent=0 // pred_region
    _
  $region13: #{segmenter_vit_forward.26} parent=0 // pred_fallthru
    _
  %p15 = scmp.eq.s32.totalorder 0, 0
  // Predicated region
  $region14: #{segmenter_vit_forward.26} parent=0 // pred_check
    %p16 = pneg %p15
  $region15: #{segmenter_vit_forward.26} parent=0 // pred_check_branch
    %18 = sbr.rel (%p16) target = $region17
  $region16: #{segmenter_vit_forward.26} parent=0 // pred_region
    %19 = vst [vmem:[#allocation2] sm:$0xff] 0.0
    %20 = vst [vmem:[#allocation2 + $0x8] sm:$0xff] 0.0
    %21 = vst [vmem:[#allocation2 + $0x10] sm:$0xff] 0.0
    %22 = vst [vmem:[#allocation2 + $0x18] sm:$0xff] 0.0
  $region17: #{segmenter_vit_forward.26} parent=0 // pred_fallthru
    _
  %v23 = vld [vmem:[#allocation2] sm:$0xff]
  %v24 = vld [vmem:[#allocation2 + $0x8] sm:$0xff]
  %v25 = vld [vmem:[#allocation2 + $0x10] sm:$0xff]
  %v26 = vld [vmem:[#allocation2 + $0x18] sm:$0xff]
  %v27 = vld [vmem:[%s0] sm:$0xf]
  %v28 = vld [vmem:[%s0 + $0x4] sm:$0xf]
  %v29 = vld [vmem:[%s0 + $0x8] sm:$0xf]
  %v30 = vld [vmem:[%s0 + $0xc] sm:$0xf]
  %v31 = vld [vmem:[%s1] sm:$0xf]
  %v32 = vld [vmem:[%s1 + $0x4] sm:$0xf]
  %v33 = vld [vmem:[%s1 + $0x8] sm:$0xf]
  %v34 = vld [vmem:[%s1 + $0xc] sm:$0xf]
  %v35 = vld [vmem:[%s1 + $0x10] sm:$0xf]
  %v36 = vld [vmem:[%s1 + $0x14] sm:$0xf]
  %v37 = vld [vmem:[%s1 + $0x18] sm:$0xf]
  %v38 = vld [vmem:[%s1 + $0x1c] sm:$0xf]
  %v39 = vld [vmem:[%s1 + $0x20] sm:$0xf]
  %v40 = vld [vmem:[%s1 + $0x24] sm:$0xf]
  %v41 = vld [vmem:[%s1 + $0x28] sm:$0xf]
  %v42 = vld [vmem:[%s1 + $0x2c] sm:$0xf]
  %v43 = vld [vmem:[%s1 + $0x30] sm:$0xf]
  %v44 = vld [vmem:[%s1 + $0x34] sm:$0xf]
  %v45 = vld [vmem:[%s1 + $0x38] sm:$0xf]
  %v46 = vld [vmem:[%s1 + $0x3c] sm:$0xf]
  %v51 = vunpack.c.l.b16 %v27
  %v52 = vunpack.c.l.b16 %v28
  %v53 = vunpack.c.l.b16 %v29
  %v54 = vunpack.c.l.b16 %v30
  %v55 = vpack.c.b16 %v52, %v51
  %v56 = vpack.c.b16 %v54, %v53
  %v75 = vunpack.c.l.b16 %v31
  %v76 = vunpack.c.l.b16 %v32
  %v77 = vunpack.c.l.b16 %v33
  %v78 = vunpack.c.l.b16 %v34
  %v79 = vunpack.c.l.b16 %v35
  %v80 = vunpack.c.l.b16 %v36
  %v81 = vunpack.c.l.b16 %v37
  %v82 = vunpack.c.l.b16 %v38
  %v83 = vunpack.c.l.b16 %v39
  %v84 = vunpack.c.l.b16 %v40
  %v85 = vunpack.c.l.b16 %v41
  %v86 = vunpack.c.l.b16 %v42
  %v87 = vunpack.c.l.b16 %v43
  %v88 = vunpack.c.l.b16 %v44
  %v89 = vunpack.c.l.b16 %v45
  %v90 = vunpack.c.l.b16 %v46
  %v91 = vpack.c.b16 %v76, %v75
  %v92 = vpack.c.b16 %v78, %v77
  %v93 = vpack.c.b16 %v80, %v79
  %v94 = vpack.c.b16 %v82, %v81
  %v95 = vpack.c.b16 %v84, %v83
  %v96 = vpack.c.b16 %v86, %v85
  %v97 = vpack.c.b16 %v88, %v87
  %v98 = vpack.c.b16 %v90, %v89
  %107 = vmatprep.subr.bf16.mxu0 0
  %108 = vmatpush1.bf16.msra.mxu0 %v91
  %109 = vmatprep.subr.bf16.mxu0 0
  %110 = vmatpush1.bf16.msra.mxu0 %v92
  %111 = vmatprep.subr.bf16.mxu0 0
  %112 = vmatpush1.bf16.msra.mxu0 %v93
  %113 = vmatprep.subr.bf16.mxu0 0
  %114 = vmatpush1.bf16.msra.mxu0 %v94
  %115 = vmatprep.subr.bf16.mxu0 0
  %116 = vmatpush1.bf16.msra.mxu0 %v95
  %117 = vmatprep.subr.bf16.mxu0 0
  %118 = vmatpush1.bf16.msra.mxu0 %v96
  %119 = vmatprep.subr.bf16.mxu0 0
  %120 = vmatpush1.bf16.msra.mxu0 %v97
  %121 = vmatprep.subr.bf16.mxu0 0
  %122 = vmatpush1.bf16.msra.mxu0 %v98
  %123 = vmatprep.subr.bf16.mxu0 0
  %124 = vmatpush1.bf16.msra.mxu0 0
  %125 = vmatprep.subr.bf16.mxu0 0
  %126 = vmatpush1.bf16.msra.mxu0 0
  %127 = vmatprep.subr.bf16.mxu0 0
  %128 = vmatpush1.bf16.msra.mxu0 0
  %129 = vmatprep.subr.bf16.mxu0 0
  %130 = vmatpush1.bf16.msra.mxu0 0
  %131 = vmatprep.subr.bf16.mxu0 0
  %132 = vmatpush1.bf16.msra.mxu0 0
  %133 = vmatprep.subr.bf16.mxu0 0
  %134 = vmatpush1.bf16.msra.mxu0 0
  %135 = vmatprep.subr.bf16.mxu0 0
  %136 = vmatpush1.bf16.msra.mxu0 0
  %137 = vmatprep.subr.bf16.mxu0 0
  %138 = vmatpush1.bf16.msra.mxu0 0
  %139 = vmatprep.mubr.bf16.mxu0 0
  %140 = vmatmul.mubr.bf16.gmra.mrb[0].mxu0 %v55
  %v141 = vpop.f32.mrb[0].mxu0
  %v142 = vadd.f32 0.0, %v141
  %v143 = vpop.f32.mrb[0].mxu0
  %v144 = vpop.f32.mrb[0].mxu0
  %v145 = vadd.f32 0.0, %v144
  %v146 = vpop.f32.mrb[0].mxu0
  %147 = vmatprep.mubr.bf16.mxu0 0
  %148 = vmatmul.mubr.bf16.gmra.mrb[0].mxu0 %v56
  %v149 = vpop.f32.mrb[0].mxu0
  %v150 = vadd.f32 0.0, %v149
  %v151 = vpop.f32.mrb[0].mxu0
  %v152 = vpop.f32.mrb[0].mxu0
  %v153 = vadd.f32 0.0, %v152
  %v154 = vpop.f32.mrb[0].mxu0
  %155 = vdwg.mxu0
  %v156 = vadd.f32 %v23, %v142
  %v157 = vadd.f32 %v24, %v145
  %v158 = vadd.f32 %v25, %v150
  %v159 = vadd.f32 %v26, %v153
  %160 = vst [vmem:[#allocation2] sm:$0xff] %v156
  %161 = vst [vmem:[#allocation2 + $0x8] sm:$0xff] %v157
  %162 = vst [vmem:[#allocation2 + $0x10] sm:$0xff] %v158
  %163 = vst [vmem:[#allocation2 + $0x18] sm:$0xff] %v159
  // Predicated region
  $region18: #{segmenter_vit_forward.26} parent=0 // pred_check
    %p164 = pneg %p15
  $region19: #{segmenter_vit_forward.26} parent=0 // pred_check_branch
    %166 = sbr.rel (%p164) target = $region21
  $region20: #{segmenter_vit_forward.26} parent=0 // pred_region
    %v167 = vld [vmem:[#allocation2] sm:$0xff]
    %v168 = vld [vmem:[#allocation2 + $0x8] sm:$0xff]
    %v169 = vld [vmem:[#allocation2 + $0x10] sm:$0xff]
    %v170 = vld [vmem:[#allocation2 + $0x18] sm:$0xff]
    %v171 = vld [vmem:[%s2] sm:$0x1]
    %v173 = vlaneseq
    %v174 = vshrl.u32 %v173, 7
    %v175 = vsub.s32 0, %v174
    %v176 = vrot.slane %v171, %v175
    %v178 = vadd.f32 %v167, %v176
    %v179 = vadd.f32 %v168, %v176
    %v180 = vadd.f32 %v169, %v176
    %v181 = vadd.f32 %v170, %v176
    %v182 = vpack.c.bf16 %v179, %v178
    %v183 = vpack.c.bf16 %v181, %v180
    %v186 = vunpack.c.l.b16 %v182
    %v187 = vunpack.c.h.b16 %v182
    %v188 = vunpack.c.l.b16 %v183
    %v189 = vunpack.c.h.b16 %v183
    %v190 = vpack.c.b16 %v186, %v186
    %v191 = vpack.c.b16 %v187, %v187
    %v192 = vpack.c.b16 %v188, %v188
    %v193 = vpack.c.b16 %v189, %v189
    %198 = vst [vmem:[%s3] sm:$0xf] %v190
    %199 = vst [vmem:[%s3 + $0x4] sm:$0xf] %v191
    %200 = vst [vmem:[%s3 + $0x8] sm:$0xf] %v192
    %201 = vst [vmem:[%s3 + $0xc] sm:$0xf] %v193
  $region21: #{segmenter_vit_forward.26} parent=0 // pred_fallthru
    _
  // Predicated region
  $region22: #{segmenter_vit_forward.26} parent=0 // pred_check
    _
  $region23: #{segmenter_vit_forward.26} parent=0 // pred_check_branch
    %203 = sbr.rel (0) target = $region25
  $region24: #{segmenter_vit_forward.26} parent=0 // pred_region
    _
  $region25: #{segmenter_vit_forward.26} parent=0 // pred_fallthru
    _
  // Predicated region
  $region26: #{segmenter_vit_forward.26} parent=0 // pred_check
    _
  $region27: #{segmenter_vit_forward.26} parent=0 // pred_check_branch
    %205 = sbr.rel (0) target = $region29
  $region28: #{segmenter_vit_forward.26} parent=0 // pred_region
    _
  $region29: #{segmenter_vit_forward.26} parent=0 // pred_fallthru
    _

// kernel: segmenter_vit_forward.25
$region0: #{segmenter_vit_forward.25}
  #allocation0 [shape = 'u32[]', space=smem, size = 0x4, offset = 0x4, fixed_abs, tag = 'smem constant byte address 0x4 - core index']
  #allocation1 [shape = 'u32[144,128]{1,0:T(1,128)}', space=vmem, size = 0x12000, scoped, tag = 'internal scratch']
  #allocation2 [shape = 'f32[4,16,1]{2,1,0:T(8,128)}', space=vmem, size = 0x8000, scoped, tag = 'scratch operand']
  #allocation3 [shape = 'f32[4,16,1]{2,1,0:T(8,128)}', space=vmem, size = 0x8000, scoped, tag = 'scratch operand']
  #allocation4 [shape = 'f32[16,128]{1,0:T(8,128)}', space=vmem, size = 0x2000, scoped, tag = 'scratch operand']
  %s0 = inlined_call_operand.vmem [shape: bf16[2,16,384], index: 0, kind: input, shape index: {}, may-alias: {0,1,2}]
  %s1 = inlined_call_operand.vmem [shape: bf16[2,16,384], index: 1, kind: input, shape index: {}, may-alias: {0,1,2}]
  %s2 = inlined_call_operand.vmem [shape: bf16[2,16,384], index: 2, kind: input, shape index: {}, may-alias: {0,1,2}]
  %s3 = inlined_call_operand.vmem [shape: bf16[2,16,128], index: 3, kind: output, shape index: {}]
  %s4 = sld [smem:[#allocation0]]
  $region176: #{segmenter_vit_forward.25} parent=0
    _
  %s6 = ssub.s32 1, %s4
  %s7 = scalar_select 0, %s6, %s4
  $region1: #{segmenter_vit_forward.25} parent=0
    #allocation5 [shape = 'u8[8192]{0}', space=vmem, size = 0x2000, scoped, tag = 'input window, operand 0']
    #allocation6 [shape = 'u8[8192]{0}', space=vmem, size = 0x2000, scoped, tag = 'input window, operand 1']
    #allocation7 [shape = 'u8[8192]{0}', space=vmem, size = 0x2000, scoped, tag = 'input window, operand 2']
    loop: start=0, step=1, limit=4
    $region2: #{segmenter_vit_forward.25} parent=1 // loop_pre_header
      _
    $region3: #{segmenter_vit_forward.25} parent=1 // loop_header
      %s9 = sphi 0, %s13
      %p10 = scmp.ge.s32.totalorder %s9, 4
      %s16 = sphi 0, %s35
      %s17 = sphi 0, %s31
      %s18 = sphi 0, %s27
      %s19 = sphi 0, %s16
      %s20 = sphi 0, %s17
      %s21 = sphi 0, %s18
      %s22 = sphi 0, %s19
      %s23 = sphi 0, %s20
      %s24 = sphi 0, %s21
      %s40 = sphi 0, %s42
      %s43 = sphi 0, %s40
      %s44 = sphi 0, %s43
      %s60 = sphi 0, %s44
      %s68 = sphi 0, %s70
      %s71 = sphi 0, %s68
      %s72 = sphi 0, %s71
      %s88 = sphi 0, %s72
      %s96 = sphi 0, %s98
      %s99 = sphi 0, %s96
      %s100 = sphi 0, %s99
      %s116 = sphi 0, %s100
      %s124 = sphi 0, %s126
      %s127 = sphi 0, %s124
      %s128 = sphi 0, %s127
      %s144 = sphi 0, %s128
    $region4: #{segmenter_vit_forward.25} parent=1 // loop_header_branch
      %12 = sbr.rel (%p10) target = $region8
    $region5: #{segmenter_vit_forward.25} parent=1 // loop_body
      %s14 = ssub.s32 %s9, 1
      %s15 = ssub.s32 %s9, 2
      %s25 = sadd.s32 1, %s18
      %p26 = scmp.ge.s32.totalorder %s25, 1
      %s27 = scalar_select %p26, 0, %s25
      %s28 = sadd.s32 1, %s17
      %s29 = scalar_select %p26, %s28, %s17
      %p30 = scmp.ge.s32.totalorder %s29, 1
      %s31 = scalar_select %p30, 0, %s29
      %s32 = sadd.s32 1, %s16
      %s33 = scalar_select %p30, %s32, %s16
      %p34 = scmp.ge.s32.totalorder %s33, 2
      %s35 = scalar_select %p34, 0, %s33
      %s36 = ssub.s32 %s16, %s35
      %s37 = ssub.s32 %s17, %s31
      %s38 = sor.u32 %s36, %s37
      %p39 = scmp.eq.s32.totalorder %s38, 0
      %s41 = sadd.s32 %s40, 1
      %s42 = scalar_select %p39, %s40, %s41
      %p45 = pneg %p39
      %p46 = scmp.eq.s32.totalorder %s9, 1
      %p47 = por %p45, %p46
      %p48 = scmp.ne.s32.totalorder %s40, %s43
      %p49 = scmp.eq.s32.totalorder %s9, 0
      %p50 = por %p48, %p49
      %p51 = scmp.ne.s32.totalorder %s40, %s43
      %p52 = scmp.eq.s32.totalorder %s14, 1
      %p53 = por %p51, %p52
      %p54 = scmp.ne.s32.totalorder %s43, %s44
      %p55 = scmp.eq.s32.totalorder %s14, 0
      %p56 = por %p54, %p55
      %p57 = scmp.ne.s32.totalorder %s43, %s44
      %p58 = scmp.eq.s32.totalorder %s15, 1
      %p59 = por %p57, %p58
      %p61 = scmp.ne.s32.totalorder %s44, %s60
      %p62 = scmp.eq.s32.totalorder %s15, 0
      %p63 = por %p61, %p62
      %s64 = ssub.s32 %s16, %s35
      %s65 = ssub.s32 %s18, %s27
      %s66 = sor.u32 %s64, %s65
      %p67 = scmp.eq.s32.totalorder %s66, 0
      %s69 = sadd.s32 %s68, 1
      %s70 = scalar_select %p67, %s68, %s69
      %p73 = pneg %p67
      %p74 = scmp.eq.s32.totalorder %s9, 1
      %p75 = por %p73, %p74
      %p76 = scmp.ne.s32.totalorder %s68, %s71
      %p77 = scmp.eq.s32.totalorder %s9, 0
      %p78 = por %p76, %p77
      %p79 = scmp.ne.s32.totalorder %s68, %s71
      %p80 = scmp.eq.s32.totalorder %s14, 1
      %p81 = por %p79, %p80
      %p82 = scmp.ne.s32.totalorder %s71, %s72
      %p83 = scmp.eq.s32.totalorder %s14, 0
      %p84 = por %p82, %p83
      %p85 = scmp.ne.s32.totalorder %s71, %s72
      %p86 = scmp.eq.s32.totalorder %s15, 1
      %p87 = por %p85, %p86
      %p89 = scmp.ne.s32.totalorder %s72, %s88
      %p90 = scmp.eq.s32.totalorder %s15, 0
      %p91 = por %p89, %p90
      %s92 = ssub.s32 %s16, %s35
      %s93 = ssub.s32 %s18, %s27
      %s94 = sor.u32 %s92, %s93
      %p95 = scmp.eq.s32.totalorder %s94, 0
      %s97 = sadd.s32 %s96, 1
      %s98 = scalar_select %p95, %s96, %s97
      %p101 = pneg %p95
      %p102 = scmp.eq.s32.totalorder %s9, 1
      %p103 = por %p101, %p102
      %p104 = scmp.ne.s32.totalorder %s96, %s99
      %p105 = scmp.eq.s32.totalorder %s9, 0
      %p106 = por %p104, %p105
      %p107 = scmp.ne.s32.totalorder %s96, %s99
      %p108 = scmp.eq.s32.totalorder %s14, 1
      %p109 = por %p107, %p108
      %p110 = scmp.ne.s32.totalorder %s99, %s100
      %p111 = scmp.eq.s32.totalorder %s14, 0
      %p112 = por %p110, %p111
      %p113 = scmp.ne.s32.totalorder %s99, %s100
      %p114 = scmp.eq.s32.totalorder %s15, 1
      %p115 = por %p113, %p114
      %p117 = scmp.ne.s32.totalorder %s100, %s116
      %p118 = scmp.eq.s32.totalorder %s15, 0
      %p119 = por %p117, %p118
      %s120 = ssub.s32 %s16, %s35
      %s121 = ssub.s32 %s17, %s31
      %s122 = sor.u32 %s120, %s121
      %p123 = scmp.eq.s32.totalorder %s122, 0
      %s125 = sadd.s32 %s124, 1
      %s126 = scalar_select %p123, %s124, %s125
      %p129 = pneg %p123
      %p130 = scmp.eq.s32.totalorder %s9, 1
      %p131 = por %p129, %p130
      %p132 = scmp.ne.s32.totalorder %s124, %s127
      %p133 = scmp.eq.s32.totalorder %s9, 0
      %p134 = por %p132, %p133
      %p135 = scmp.ne.s32.totalorder %s124, %s127
      %p136 = scmp.eq.s32.totalorder %s14, 1
      %p137 = por %p135, %p136
      %p138 = scmp.ne.s32.totalorder %s127, %s128
      %p139 = scmp.eq.s32.totalorder %s14, 0
      %p140 = por %p138, %p139
      %p141 = scmp.ne.s32.totalorder %s127, %s128
      %p142 = scmp.eq.s32.totalorder %s15, 1
      %p143 = por %p141, %p142
      %p145 = scmp.ne.s32.totalorder %s128, %s144
      %p146 = scmp.eq.s32.totalorder %s15, 0
      %p147 = por %p145, %p146
      %p148 = scmp.le.s32.totalorder 1, %s9
      %p149 = scmp.lt.s32.totalorder %s9, 3
      %p150 = pnand %p148, %p149
      %p151 = pneg %p150
      // Predicated region
      $region9: #{segmenter_vit_forward.25} parent=5 // pred_check
        _
      $region10: #{segmenter_vit_forward.25} parent=5 // pred_check_branch
        %153 = sbr.rel (%p150) target = $region12
      $region11: #{segmenter_vit_forward.25} parent=5 // pred_region
        %s154 = ssub.s32 %s9, 1
      $region12: #{segmenter_vit_forward.25} parent=5 // pred_fallthru
        _
      %p155 = scmp.lt.s32.totalorder %s9, 2
      // Predicated region
      $region13: #{segmenter_vit_forward.25} parent=5 // pred_check
        %p156 = pneg %p155
      $region14: #{segmenter_vit_forward.25} parent=5 // pred_check_branch
        %158 = sbr.rel (%p156) target = $region16
      $region15: #{segmenter_vit_forward.25} parent=5 // pred_region
        // Predicated region
        $region17: #{segmenter_vit_forward.25} parent=15 // pred_check
          %p159 = pneg %p50
        $region18: #{segmenter_vit_forward.25} parent=15 // pred_check_branch
          %161 = sbr.rel (%p159) target = $region20
        $region19: #{segmenter_vit_forward.25} parent=15 // pred_region
          %s162 = sand.u32 %s40, 1
          %s163 = sand.u32 %s40, 1
          %s164 = smul.addr %s163, 8
          %s165 = scalar_lea.vmem [#allocation5], %s164
          %s166 = smul.u32 2, %s17
          %s167 = smul.addr %s166, 3
          %s168 = smul.addr %s16, 6
          %s169 = sadd.s32 %s167, %s168
          %s170 = smul.addr %s169, 4
          %s171 = scalar_lea.vmem %s0, %s170
          // Predicated region
          $region21: #{segmenter_vit_forward.25} parent=19 // pred_check
            _
          $region22: #{segmenter_vit_forward.25} parent=19 // pred_check_branch
            %173 = sbr.rel (0) target = $region24
          $region23: #{segmenter_vit_forward.25} parent=19 // pred_region
            // Predicated region
            $region25: #{segmenter_vit_forward.25} parent=23 // pred_check
              _
            $region26: #{segmenter_vit_forward.25} parent=23 // pred_check_branch
              %175 = sbr.rel target = $region28
            $region27: #{segmenter_vit_forward.25} parent=23 // pred_region
              // Predicated region
              $region40: #{segmenter_vit_forward.25} parent=27 // pred_check
                _
              $region41: #{segmenter_vit_forward.25} parent=27 // pred_check_branch
                %192 = sbr.rel (0) target = $region43
              $region42: #{segmenter_vit_forward.25} parent=27 // pred_region
                loop: start=0, step=1, limit=1
                $region44: #{segmenter_vit_forward.25} parent=42 // loop_pre_header
                  _
                $region45: #{segmenter_vit_forward.25} parent=42 // loop_header
                  %s194 = sphi 0, %s198
                  %p195 = scmp.ge.s32.totalorder %s194, 1
                  %s199 = sphi %s171, %s171
                  %s200 = sphi %s165, %s165
                $region46: #{segmenter_vit_forward.25} parent=42 // loop_header_branch
                  %197 = sbr.rel (%p195) target = $region50
                $region47: #{segmenter_vit_forward.25} parent=42 // loop_body
                  _
                $region48: #{segmenter_vit_forward.25} parent=42 // loop_footer
                  %s198 = sadd.s32 1, %s194
                $region49: #{segmenter_vit_forward.25} parent=42 // loop_footer_branch
                  %193 = sbr.rel target = $region45
                $region50: #{segmenter_vit_forward.25} parent=42 // loop_exit
                  _
                loop: start=0, step=1, limit=1
                $region51: #{segmenter_vit_forward.25} parent=42 // loop_pre_header
                  _
                $region52: #{segmenter_vit_forward.25} parent=42 // loop_header
                  %s203 = sphi 0, %s207
                  %p204 = scmp.ge.s32.totalorder %s203, 1
                  %s208 = sphi %s171, %s171
                  %s209 = sphi %s165, %s165
                $region53: #{segmenter_vit_forward.25} parent=42 // loop_header_branch
                  %206 = sbr.rel (%p204) target = $region57
                $region54: #{segmenter_vit_forward.25} parent=42 // loop_body
                  %v210 = vld [vmem:[%s208] sm:$0xf]
                  %211 = vst [vmem:[%s209] sm:$0xf] %v210
                  %v212 = vld [vmem:[%s208 + $0xc] sm:$0xf]
                  %213 = vst [vmem:[%s209 + $0x4] sm:$0xf] %v212
                $region55: #{segmenter_vit_forward.25} parent=42 // loop_footer
                  %s207 = sadd.s32 1, %s203
                $region56: #{segmenter_vit_forward.25} parent=42 // loop_footer_branch
                  %202 = sbr.rel target = $region52
                $region57: #{segmenter_vit_forward.25} parent=42 // loop_exit
                  _
              $region43: #{segmenter_vit_forward.25} parent=27 // pred_fallthru
                _
            $region28: #{segmenter_vit_forward.25} parent=23 // pred_fallthru
              _
            // Predicated region
            $region29: #{segmenter_vit_forward.25} parent=23 // pred_check
              _
            $region30: #{segmenter_vit_forward.25} parent=23 // pred_check_branch
              %177 = sbr.rel (0) target = $region32
            $region31: #{segmenter_vit_forward.25} parent=23 // pred_region
              loop: start=0, step=1, limit=1
              $region33: #{segmenter_vit_forward.25} parent=31 // loop_pre_header
                _
              $region34: #{segmenter_vit_forward.25} parent=31 // loop_header
                %s180 = sphi 0, %s184
                %p181 = scmp.ge.s32.totalorder %s180, 1
                %s185 = sphi %s171, %s171
                %s186 = sphi %s165, %s165
              $region35: #{segmenter_vit_forward.25} parent=31 // loop_header_branch
                %183 = sbr.rel (%p181) target = $region39
              $region36: #{segmenter_vit_forward.25} parent=31 // loop_body
                %v187 = vld [vmem:[%s185] sm:$0xf]
                %188 = vst [vmem:[%s186] sm:$0xf] %v187
                %v189 = vld [vmem:[%s185 + $0xc] sm:$0xf]
                %190 = vst [vmem:[%s186 + $0x4] sm:$0xf] %v189
              $region37: #{segmenter_vit_forward.25} parent=31 // loop_footer
                %s184 = sadd.s32 1, %s180
              $region38: #{segmenter_vit_forward.25} parent=31 // loop_footer_branch
                %179 = sbr.rel target = $region34
              $region39: #{segmenter_vit_forward.25} parent=31 // loop_exit
                _
            $region32: #{segmenter_vit_forward.25} parent=23 // pred_fallthru
              _
          $region24: #{segmenter_vit_forward.25} parent=19 // pred_fallthru
            _
          %214 = vnop
        $region20: #{segmenter_vit_forward.25} parent=15 // pred_fallthru
          _
        // Predicated region
        $region58: #{segmenter_vit_forward.25} parent=15 // pred_check
          %p215 = pneg %p78
        $region59: #{segmenter_vit_forward.25} parent=15 // pred_check_branch
          %217 = sbr.rel (%p215) target = $region61
        $region60: #{segmenter_vit_forward.25} parent=15 // pred_region
          %s218 = sand.u32 %s68, 1
          %s219 = sand.u32 %s68, 1
          %s220 = smul.addr %s219, 8
          %s221 = scalar_lea.vmem [#allocation6], %s220
          %s222 = smul.u32 2, %s18
          %s223 = smul.addr %s222, 3
          %s224 = sadd.s32 1, %s223
          %s225 = smul.addr %s16, 6
          %s226 = sadd.s32 %s224, %s225
          %s227 = smul.addr %s226, 4
          %s228 = scalar_lea.vmem %s1, %s227
          // Predicated region
          $region62: #{segmenter_vit_forward.25} parent=60 // pred_check
            _
          $region63: #{segmenter_vit_forward.25} parent=60 // pred_check_branch
            %230 = sbr.rel (0) target = $region65
          $region64: #{segmenter_vit_forward.25} parent=60 // pred_region
            // Predicated region
            $region66: #{segmenter_vit_forward.25} parent=64 // pred_check
              _
            $region67: #{segmenter_vit_forward.25} parent=64 // pred_check_branch
              %232 = sbr.rel target = $region69
            $region68: #{segmenter_vit_forward.25} parent=64 // pred_region
              // Predicated region
              $region81: #{segmenter_vit_forward.25} parent=68 // pred_check
                _
              $region82: #{segmenter_vit_forward.25} parent=68 // pred_check_branch
                %249 = sbr.rel (0) target = $region84
              $region83: #{segmenter_vit_forward.25} parent=68 // pred_region
                loop: start=0, step=1, limit=1
                $region85: #{segmenter_vit_forward.25} parent=83 // loop_pre_header
                  _
                $region86: #{segmenter_vit_forward.25} parent=83 // loop_header
                  %s251 = sphi 0, %s255
                  %p252 = scmp.ge.s32.totalorder %s251, 1
                  %s256 = sphi %s228, %s228
                  %s257 = sphi %s221, %s221
                $region87: #{segmenter_vit_forward.25} parent=83 // loop_header_branch
                  %254 = sbr.rel (%p252) target = $region91
                $region88: #{segmenter_vit_forward.25} parent=83 // loop_body
                  _
                $region89: #{segmenter_vit_forward.25} parent=83 // loop_footer
                  %s255 = sadd.s32 1, %s251
                $region90: #{segmenter_vit_forward.25} parent=83 // loop_footer_branch
                  %250 = sbr.rel target = $region86
                $region91: #{segmenter_vit_forward.25} parent=83 // loop_exit
                  _
                loop: start=0, step=1, limit=1
                $region92: #{segmenter_vit_forward.25} parent=83 // loop_pre_header
                  _
                $region93: #{segmenter_vit_forward.25} parent=83 // loop_header
                  %s260 = sphi 0, %s264
                  %p261 = scmp.ge.s32.totalorder %s260, 1
                  %s265 = sphi %s228, %s228
                  %s266 = sphi %s221, %s221
                $region94: #{segmenter_vit_forward.25} parent=83 // loop_header_branch
                  %263 = sbr.rel (%p261) target = $region98
                $region95: #{segmenter_vit_forward.25} parent=83 // loop_body
                  %v267 = vld [vmem:[%s265] sm:$0xf]
                  %268 = vst [vmem:[%s266] sm:$0xf] %v267
                  %v269 = vld [vmem:[%s265 + $0xc] sm:$0xf]
                  %270 = vst [vmem:[%s266 + $0x4] sm:$0xf] %v269
                $region96: #{segmenter_vit_forward.25} parent=83 // loop_footer
                  %s264 = sadd.s32 1, %s260
                $region97: #{segmenter_vit_forward.25} parent=83 // loop_footer_branch
                  %259 = sbr.rel target = $region93
                $region98: #{segmenter_vit_forward.25} parent=83 // loop_exit
                  _
              $region84: #{segmenter_vit_forward.25} parent=68 // pred_fallthru
                _
            $region69: #{segmenter_vit_forward.25} parent=64 // pred_fallthru
              _
            // Predicated region
            $region70: #{segmenter_vit_forward.25} parent=64 // pred_check
              _
            $region71: #{segmenter_vit_forward.25} parent=64 // pred_check_branch
              %234 = sbr.rel (0) target = $region73
            $region72: #{segmenter_vit_forward.25} parent=64 // pred_region
              loop: start=0, step=1, limit=1
              $region74: #{segmenter_vit_forward.25} parent=72 // loop_pre_header
                _
              $region75: #{segmenter_vit_forward.25} parent=72 // loop_header
                %s237 = sphi 0, %s241
                %p238 = scmp.ge.s32.totalorder %s237, 1
                %s242 = sphi %s228, %s228
                %s243 = sphi %s221, %s221
              $region76: #{segmenter_vit_forward.25} parent=72 // loop_header_branch
                %240 = sbr.rel (%p238) target = $region80
              $region77: #{segmenter_vit_forward.25} parent=72 // loop_body
                %v244 = vld [vmem:[%s242] sm:$0xf]
                %245 = vst [vmem:[%s243] sm:$0xf] %v244
                %v246 = vld [vmem:[%s242 + $0xc] sm:$0xf]
                %247 = vst [vmem:[%s243 + $0x4] sm:$0xf] %v246
              $region78: #{segmenter_vit_forward.25} parent=72 // loop_footer
                %s241 = sadd.s32 1, %s237
              $region79: #{segmenter_vit_forward.25} parent=72 // loop_footer_branch
                %236 = sbr.rel target = $region75
              $region80: #{segmenter_vit_forward.25} parent=72 // loop_exit
                _
            $region73: #{segmenter_vit_forward.25} parent=64 // pred_fallthru
              _
          $region65: #{segmenter_vit_forward.25} parent=60 // pred_fallthru
            _
          %271 = vnop
        $region61: #{segmenter_vit_forward.25} parent=15 // pred_fallthru
          _
        // Predicated region
        $region99: #{segmenter_vit_forward.25} parent=15 // pred_check
          %p272 = pneg %p106
        $region100: #{segmenter_vit_forward.25} parent=15 // pred_check_branch
          %274 = sbr.rel (%p272) target = $region102
        $region101: #{segmenter_vit_forward.25} parent=15 // pred_region
          %s275 = sand.u32 %s96, 1
          %s276 = sand.u32 %s96, 1
          %s277 = smul.addr %s276, 8
          %s278 = scalar_lea.vmem [#allocation7], %s277
          %s279 = smul.u32 2, %s18
          %s280 = smul.addr %s279, 3
          %s281 = sadd.s32 2, %s280
          %s282 = smul.addr %s16, 6
          %s283 = sadd.s32 %s281, %s282
          %s284 = smul.addr %s283, 4
          %s285 = scalar_lea.vmem %s2, %s284
          // Predicated region
          $region103: #{segmenter_vit_forward.25} parent=101 // pred_check
            _
          $region104: #{segmenter_vit_forward.25} parent=101 // pred_check_branch
            %287 = sbr.rel (0) target = $region106
          $region105: #{segmenter_vit_forward.25} parent=101 // pred_region
            // Predicated region
            $region107: #{segmenter_vit_forward.25} parent=105 // pred_check
              _
            $region108: #{segmenter_vit_forward.25} parent=105 // pred_check_branch
              %289 = sbr.rel target = $region110
            $region109: #{segmenter_vit_forward.25} parent=105 // pred_region
              // Predicated region
              $region122: #{segmenter_vit_forward.25} parent=109 // pred_check
                _
              $region123: #{segmenter_vit_forward.25} parent=109 // pred_check_branch
                %306 = sbr.rel (0) target = $region125
              $region124: #{segmenter_vit_forward.25} parent=109 // pred_region
                loop: start=0, step=1, limit=1
                $region126: #{segmenter_vit_forward.25} parent=124 // loop_pre_header
                  _
                $region127: #{segmenter_vit_forward.25} parent=124 // loop_header
                  %s308 = sphi 0, %s312
                  %p309 = scmp.ge.s32.totalorder %s308, 1
                  %s313 = sphi %s285, %s285
                  %s314 = sphi %s278, %s278
                $region128: #{segmenter_vit_forward.25} parent=124 // loop_header_branch
                  %311 = sbr.rel (%p309) target = $region132
                $region129: #{segmenter_vit_forward.25} parent=124 // loop_body
                  _
                $region130: #{segmenter_vit_forward.25} parent=124 // loop_footer
                  %s312 = sadd.s32 1, %s308
                $region131: #{segmenter_vit_forward.25} parent=124 // loop_footer_branch
                  %307 = sbr.rel target = $region127
                $region132: #{segmenter_vit_forward.25} parent=124 // loop_exit
                  _
                loop: start=0, step=1, limit=1
                $region133: #{segmenter_vit_forward.25} parent=124 // loop_pre_header
                  _
                $region134: #{segmenter_vit_forward.25} parent=124 // loop_header
                  %s317 = sphi 0, %s321
                  %p318 = scmp.ge.s32.totalorder %s317, 1
                  %s322 = sphi %s285, %s285
                  %s323 = sphi %s278, %s278
                $region135: #{segmenter_vit_forward.25} parent=124 // loop_header_branch
                  %320 = sbr.rel (%p318) target = $region139
                $region136: #{segmenter_vit_forward.25} parent=124 // loop_body
                  %v324 = vld [vmem:[%s322] sm:$0xf]
                  %325 = vst [vmem:[%s323] sm:$0xf] %v324
                  %v326 = vld [vmem:[%s322 + $0xc] sm:$0xf]
                  %327 = vst [vmem:[%s323 + $0x4] sm:$0xf] %v326
                $region137: #{segmenter_vit_forward.25} parent=124 // loop_footer
                  %s321 = sadd.s32 1, %s317
                $region138: #{segmenter_vit_forward.25} parent=124 // loop_footer_branch
                  %316 = sbr.rel target = $region134
                $region139: #{segmenter_vit_forward.25} parent=124 // loop_exit
                  _
              $region125: #{segmenter_vit_forward.25} parent=109 // pred_fallthru
                _
            $region110: #{segmenter_vit_forward.25} parent=105 // pred_fallthru
              _
            // Predicated region
            $region111: #{segmenter_vit_forward.25} parent=105 // pred_check
              _
            $region112: #{segmenter_vit_forward.25} parent=105 // pred_check_branch
              %291 = sbr.rel (0) target = $region114
            $region113: #{segmenter_vit_forward.25} parent=105 // pred_region
              loop: start=0, step=1, limit=1
              $region115: #{segmenter_vit_forward.25} parent=113 // loop_pre_header
                _
              $region116: #{segmenter_vit_forward.25} parent=113 // loop_header
                %s294 = sphi 0, %s298
                %p295 = scmp.ge.s32.totalorder %s294, 1
                %s299 = sphi %s285, %s285
                %s300 = sphi %s278, %s278
              $region117: #{segmenter_vit_forward.25} parent=113 // loop_header_branch
                %297 = sbr.rel (%p295) target = $region121
              $region118: #{segmenter_vit_forward.25} parent=113 // loop_body
                %v301 = vld [vmem:[%s299] sm:$0xf]
                %302 = vst [vmem:[%s300] sm:$0xf] %v301
                %v303 = vld [vmem:[%s299 + $0xc] sm:$0xf]
                %304 = vst [vmem:[%s300 + $0x4] sm:$0xf] %v303
              $region119: #{segmenter_vit_forward.25} parent=113 // loop_footer
                %s298 = sadd.s32 1, %s294
              $region120: #{segmenter_vit_forward.25} parent=113 // loop_footer_branch
                %293 = sbr.rel target = $region116
              $region121: #{segmenter_vit_forward.25} parent=113 // loop_exit
                _
            $region114: #{segmenter_vit_forward.25} parent=105 // pred_fallthru
              _
          $region106: #{segmenter_vit_forward.25} parent=101 // pred_fallthru
            _
          %328 = vnop
        $region102: #{segmenter_vit_forward.25} parent=15 // pred_fallthru
          _
      $region16: #{segmenter_vit_forward.25} parent=5 // pred_fallthru
        _
      %p329 = scmp.le.s32.totalorder 1, %s9
      %p330 = scmp.lt.s32.totalorder %s9, 3
      %p331 = pnand %p329, %p330
      %p332 = pneg %p331
      // Predicated region
      $region140: #{segmenter_vit_forward.25} parent=5 // pred_check
        _
      $region141: #{segmenter_vit_forward.25} parent=5 // pred_check_branch
        %334 = sbr.rel (%p331) target = $region143
      $region142: #{segmenter_vit_forward.25} parent=5 // pred_region
        %s335 = ssub.s32 %s9, 1
        %s336 = sand.u32 %s43, 1
        %s337 = sand.u32 %s43, 1
        %s338 = smul.addr %s337, 8
        %s339 = scalar_lea.vmem [#allocation5], %s338
        // Predicated region
        $region144: #{segmenter_vit_forward.25} parent=142 // pred_check
          %p340 = pneg %p56
        $region145: #{segmenter_vit_forward.25} parent=142 // pred_check_branch
          %342 = sbr.rel (%p340) target = $region147
        $region146: #{segmenter_vit_forward.25} parent=142 // pred_region
          _
        $region147: #{segmenter_vit_forward.25} parent=142 // pred_fallthru
          _
        %s343 = sand.u32 %s71, 1
        %s344 = sand.u32 %s71, 1
        %s345 = smul.addr %s344, 8
        %s346 = scalar_lea.vmem [#allocation6], %s345
        // Predicated region
        $region148: #{segmenter_vit_forward.25} parent=142 // pred_check
          %p347 = pneg %p84
        $region149: #{segmenter_vit_forward.25} parent=142 // pred_check_branch
          %349 = sbr.rel (%p347) target = $region151
        $region150: #{segmenter_vit_forward.25} parent=142 // pred_region
          _
        $region151: #{segmenter_vit_forward.25} parent=142 // pred_fallthru
          _
        %s350 = sand.u32 %s99, 1
        %s351 = sand.u32 %s99, 1
        %s352 = smul.addr %s351, 8
        %s353 = scalar_lea.vmem [#allocation7], %s352
        // Predicated region
        $region152: #{segmenter_vit_forward.25} parent=142 // pred_check
          %p354 = pneg %p112
        $region153: #{segmenter_vit_forward.25} parent=142 // pred_check_branch
          %356 = sbr.rel (%p354) target = $region155
        $region154: #{segmenter_vit_forward.25} parent=142 // pred_region
          _
        $region155: #{segmenter_vit_forward.25} parent=142 // pred_fallthru
          _
        %s357 = sand.u32 %s43, 1
        %s358 = sand.u32 %s43, 1
        %s359 = smul.addr %s358, 8
        %s360 = scalar_lea.vmem [#allocation5], %s359
        %p361 = pneg %p56
        %p362 = pneg %p53
        %s363 = sand.u32 %s71, 1
        %s364 = sand.u32 %s71, 1
        %s365 = smul.addr %s364, 8
        %s366 = scalar_lea.vmem [#allocation6], %s365
        %p367 = pneg %p84
        %p368 = pneg %p81
        %s369 = sand.u32 %s99, 1
        %s370 = sand.u32 %s99, 1
        %s371 = smul.addr %s370, 8
        %s372 = scalar_lea.vmem [#allocation7], %s371
        %p373 = pneg %p112
        %p374 = pneg %p109
        %p375 = pneg %p140
        %p376 = pneg %p137
        %s377 = smul.u32 2, %s20
        %p378 = scmp.lt.s32.totalorder %s19, 1
        %s379 = scalar_select %p378, %s19, 1
        %p380 = scmp.lt.s32.totalorder %s377, 1
        %s381 = scalar_select %p380, %s377, 1
        %s382 = smul.addr %s379, 2
        %s383 = sadd.s32 %s381, %s382
        %s384 = smul.addr %s383, 4
        %s385 = scalar_lea.vmem %s3, %s384
        %s386 = smul.u32 2, %s20
        %s387 = smul.u32 2, %s21
        %s388 = smul.u32 2, %s21
        %s389 = smul.u32 2, %s20
        %p390 = scmp.lt.s32.totalorder %s19, 1
        %s391 = scalar_select %p390, %s19, 1
        %p392 = scmp.lt.s32.totalorder %s389, 1
        %s393 = scalar_select %p392, %s389, 1
        %s394 = smul.addr %s391, 2
        %s395 = sadd.s32 %s393, %s394
        %s396 = smul.addr %s395, 4
        %s397 = scalar_lea.vmem %s3, %s396
        %s398 = smul.u32 2, %s20
        %p400 = scmp.eq.s32.totalorder %s21, 0
        // Predicated region
        $region156: #{segmenter_vit_forward.25} parent=142 // pred_check
          %p401 = pneg %p400
        $region157: #{segmenter_vit_forward.25} parent=142 // pred_check_branch
          %403 = sbr.rel (%p401) target = $region159
        $region158: #{segmenter_vit_forward.25} parent=142 // pred_region
          %vm404 = vcmask 7168
          %405 = vst.msk [vmem:[#allocation2] sm:$0xff] %vm404, -inf
          %406 = vst.msk [vmem:[#allocation2 + $0x8] sm:$0xff] %vm404, -inf
          %407 = vst.msk [vmem:[#allocation2 + $0x10] sm:$0xff] %vm404, -inf
          %408 = vst.msk [vmem:[#allocation2 + $0x18] sm:$0xff] %vm404, -inf
          %409 = vst.msk [vmem:[#allocation2 + $0x20] sm:$0xff] %vm404, -inf
          %410 = vst.msk [vmem:[#allocation2 + $0x28] sm:$0xff] %vm404, -inf
          %411 = vst.msk [vmem:[#allocation2 + $0x30] sm:$0xff] %vm404, -inf
          %412 = vst.msk [vmem:[#allocation2 + $0x38] sm:$0xff] %vm404, -inf
          %413 = vst.msk [vmem:[#allocation3] sm:$0xff] %vm404, 0.0
          %414 = vst.msk [vmem:[#allocation3 + $0x8] sm:$0xff] %vm404, 0.0
          %415 = vst.msk [vmem:[#allocation3 + $0x10] sm:$0xff] %vm404, 0.0
          %416 = vst.msk [vmem:[#allocation3 + $0x18] sm:$0xff] %vm404, 0.0
          %417 = vst.msk [vmem:[#allocation3 + $0x20] sm:$0xff] %vm404, 0.0
          %418 = vst.msk [vmem:[#allocation3 + $0x28] sm:$0xff] %vm404, 0.0
          %419 = vst.msk [vmem:[#allocation3 + $0x30] sm:$0xff] %vm404, 0.0
          %420 = vst.msk [vmem:[#allocation3 + $0x38] sm:$0xff] %vm404, 0.0
          %421 = vst [vmem:[#allocation4] sm:$0xff] 0.0
          %422 = vst [vmem:[#allocation4 + $0x8] sm:$0xff] 0.0
        $region159: #{segmenter_vit_forward.25} parent=142 // pred_fallthru
          _
        %v423 = vld [vmem:[%s339] sm:$0xf]
        %v424 = vld [vmem:[%s339 + $0x4] sm:$0xf]
        %v425 = vld [vmem:[%s346] sm:$0xf]
        %v426 = vld [vmem:[%s346 + $0x4] sm:$0xf]
        %v427 = vld [vmem:[%s353] sm:$0xf]
        %v428 = vld [vmem:[%s353 + $0x4] sm:$0xf]
        %v431 = vunpack.c.l.b16 %v423
        %v432 = vunpack.c.l.b16 %v424
        %v433 = vpack.c.b16 %v432, %v431
        %v436 = vunpack.c.l.b16 %v425
        %v437 = vunpack.c.l.b16 %v426
        %v438 = vpack.c.b16 %v437, %v436
        %vm439 = vcmask 261120
        %v441 = vsel %vm439, %v433, 0
        %v444 = vsel %vm439, %v438, 0
        %446 = vmatprep.subr.bf16.mxu0 0
        %447 = vmatpush1.bf16.xpose.msra.mxu0 %v444
        %448 = vmatprep.subr.bf16.mxu0 0
        %449 = vmatpush1.bf16.xpose.msra.mxu0 0
        %450 = vmatprep.subr.bf16.mxu0 0
        %451 = vmatpush1.bf16.xpose.msra.mxu0 0
        %452 = vmatprep.subr.bf16.mxu0 0
        %453 = vmatpush1.bf16.xpose.msra.mxu0 0
        %454 = vmatprep.subr.bf16.mxu0 0
        %455 = vmatpush1.bf16.xpose.msra.mxu0 0
        %456 = vmatprep.subr.bf16.mxu0 0
        %457 = vmatpush1.bf16.xpose.msra.mxu0 0
        %458 = vmatprep.subr.bf16.mxu0 0
        %459 = vmatpush1.bf16.xpose.msra.mxu0 0
        %460 = vmatprep.subr.bf16.mxu0 0
        %461 = vmatpush1.bf16.xpose.msra.mxu0 0
        %462 = vmatprep.subr.bf16.mxu0 0
        %463 = vmatpush1.bf16.xpose.msra.mxu0 0
        %464 = vmatprep.subr.bf16.mxu0 0
        %465 = vmatpush1.bf16.xpose.msra.mxu0 0
        %466 = vmatprep.subr.bf16.mxu0 0
        %467 = vmatpush1.bf16.xpose.msra.mxu0 0
        %468 = vmatprep.subr.bf16.mxu0 0
        %469 = vmatpush1.bf16.xpose.msra.mxu0 0
        %470 = vmatprep.subr.bf16.mxu0 0
        %471 = vmatpush1.bf16.xpose.msra.mxu0 0
        %472 = vmatprep.subr.bf16.mxu0 0
        %473 = vmatpush1.bf16.xpose.msra.mxu0 0
        %474 = vmatprep.subr.bf16.mxu0 0
        %475 = vmatpush1.bf16.xpose.msra.mxu0 0
        %476 = vmatprep.subr.bf16.mxu0 0
        %477 = vmatpush1.bf16.xpose.msra.mxu0 0
        %478 = vmatprep.mubr.bf16.mxu0 0
        %479 = vmatmul.mubr.bf16.gmra.mrb[0].mxu0 %v441
        %v480 = vpop.f32.mrb[0].mxu0
        %v481 = vadd.f32 0.0, %v480
        %v482 = vpop.f32.mrb[0].mxu0
        %v483 = vpop.f32.mrb[0].mxu0
        %v484 = vadd.f32 0.0, %v483
        %v485 = vpop.f32.mrb[0].mxu0
        %486 = vdwg.mxu0
        %v487 = vld [vmem:[#allocation2] sm:$0xff]
        %v488 = vld [vmem:[#allocation2 + $0x8] sm:$0xff]
        %vm489 = vcmask 130048
        %v490 = vsel %vm489, %v481, -inf
        %491 = vmax.xlane.f32.xlu0 %v490
        %v492 = vpop.xlane.xlu0 %491
        %v493 = vsel %vm489, %v484, -inf
        %494 = vmax.xlane.f32.xlu0 %v493
        %v495 = vpop.xlane.xlu0 %494
        %v496 = vmax.f32 %v487, %v492
        %v497 = vmax.f32 %v488, %v495
        %v498 = vsub.f32 %v487, %v496
        %v499 = vsub.f32 %v488, %v497
        %v500 = vmul.f32 %v498, 1.442695
        %v501 = vpow.pop %v500
        %v502 = vmul.f32 %v499, 1.442695
        %v503 = vpow.pop %v502
        %505 = vset.pattern.permute.xlu0 0
        %506 = vperm.xlu0 %505, %v496
        %v507 = vpop.permute.xlu0 %506
        %510 = vset.pattern.permute.xlu0 0
        %511 = vperm.xlu0 %510, %v497
        %v512 = vpop.permute.xlu0 %511
        %v514 = vsub.f32 %v481, %v507
        %v515 = vsub.f32 %v484, %v512
        %v516 = vmul.f32 %v514, 1.442695
        %v517 = vpow.pop %v516
        %v518 = vmul.f32 %v515, 1.442695
        %v519 = vpow.pop %v518
        %v520 = vld [vmem:[#allocation3] sm:$0xff]
        %v521 = vld [vmem:[#allocation3 + $0x8] sm:$0xff]
        %v522 = vmul.f32 %v501, %v520
        %v523 = vmul.f32 %v503, %v521
        %v524 = vsel %vm489, %v517, 0.0
        %525 = vadd.xlane.f32.xlu0 %v524
        %v526 = vpop.xlane.xlu0 %525
        %v527 = vsel %vm489, %v519, 0.0
        %528 = vadd.xlane.f32.xlu0 %v527
        %v529 = vpop.xlane.xlu0 %528
        %v530 = vadd.f32 %v522, %v526
        %v531 = vadd.f32 %v523, %v529
        %vm532 = vcmask 7168
        %533 = vst.msk [vmem:[#allocation3] sm:$0xff] %vm532, %v530
        %534 = vst.msk [vmem:[#allocation3 + $0x8] sm:$0xff] %vm532, %v531
        %535 = vst.msk [vmem:[#allocation2] sm:$0xff] %vm532, %v496
        %536 = vst.msk [vmem:[#allocation2 + $0x8] sm:$0xff] %vm532, %v497
        %v537 = vpack.c.bf16 %v519, %v517
        %v540 = vunpack.c.l.b16 %v427
        %v541 = vunpack.c.l.b16 %v428
        %v542 = vpack.c.b16 %v541, %v540
        %v545 = vsel %vm489, %v537, 0
        %547 = vmatprep.subr.bf16.mxu0 0
        %548 = vmatpush1.bf16.msra.mxu0 %v542
        %549 = vmatprep.subr.bf16.mxu0 0
        %550 = vmatpush1.bf16.msra.mxu0 0
        %551 = vmatprep.subr.bf16.mxu0 0
        %552 = vmatpush1.bf16.msra.mxu0 0
        %553 = vmatprep.subr.bf16.mxu0 0
        %554 = vmatpush1.bf16.msra.mxu0 0
        %555 = vmatprep.subr.bf16.mxu0 0
        %556 = vmatpush1.bf16.msra.mxu0 0
        %557 = vmatprep.subr.bf16.mxu0 0
        %558 = vmatpush1.bf16.msra.mxu0 0
        %559 = vmatprep.subr.bf16.mxu0 0
        %560 = vmatpush1.bf16.msra.mxu0 0
        %561 = vmatprep.subr.bf16.mxu0 0
        %562 = vmatpush1.bf16.msra.mxu0 0
        %563 = vmatprep.subr.bf16.mxu0 0
        %564 = vmatpush1.bf16.msra.mxu0 0
        %565 = vmatprep.subr.bf16.mxu0 0
        %566 = vmatpush1.bf16.msra.mxu0 0
        %567 = vmatprep.subr.bf16.mxu0 0
        %568 = vmatpush1.bf16.msra.mxu0 0
        %569 = vmatprep.subr.bf16.mxu0 0
        %570 = vmatpush1.bf16.msra.mxu0 0
        %571 = vmatprep.subr.bf16.mxu0 0
        %572 = vmatpush1.bf16.msra.mxu0 0
        %573 = vmatprep.subr.bf16.mxu0 0
        %574 = vmatpush1.bf16.msra.mxu0 0
        %575 = vmatprep.subr.bf16.mxu0 0
        %576 = vmatpush1.bf16.msra.mxu0 0
        %577 = vmatprep.subr.bf16.mxu0 0
        %578 = vmatpush1.bf16.msra.mxu0 0
        %579 = vmatprep.mubr.bf16.mxu0 0
        %580 = vmatmul.mubr.bf16.gmra.mrb[0].mxu0 %v545
        %v581 = vpop.f32.mrb[0].mxu0
        %v582 = vadd.f32 0.0, %v581
        %v583 = vpop.f32.mrb[0].mxu0
        %v584 = vpop.f32.mrb[0].mxu0
        %v585 = vadd.f32 0.0, %v584
        %v586 = vpop.f32.mrb[0].mxu0
        %587 = vdwg.mxu0
        %v588 = vld [vmem:[#allocation4] sm:$0xff]
        %v589 = vld [vmem:[#allocation4 + $0x8] sm:$0xff]
        %591 = vset.pattern.permute.xlu0 0
        %592 = vperm.xlu0 %591, %v501
        %v593 = vpop.permute.xlu0 %592
        %596 = vset.pattern.permute.xlu0 0
        %597 = vperm.xlu0 %596, %v503
        %v598 = vpop.permute.xlu0 %597
        %v600 = vmul.f32 %v593, %v588
        %v601 = vmul.f32 %v598, %v589
        %v602 = vadd.f32 %v600, %v582
        %v603 = vadd.f32 %v601, %v585
        %604 = vst.msk [vmem:[#allocation4] sm:$0xff] %vm439, %v602
        %605 = vst.msk [vmem:[#allocation4 + $0x8] sm:$0xff] %vm439, %v603
        %v606 = vld [vmem:[%s339] sm:$0xf]
        %v607 = vld [vmem:[%s339 + $0x4] sm:$0xf]
        %v608 = vld [vmem:[%s346] sm:$0xf]
        %v609 = vld [vmem:[%s346 + $0x4] sm:$0xf]
        %v610 = vld [vmem:[%s353] sm:$0xf]
        %v611 = vld [vmem:[%s353 + $0x4] sm:$0xf]
        %v614 = vunpack.c.l.b16 %v606
        %v615 = vunpack.c.l.b16 %v607
        %v616 = vpack.c.b16 %v615, %v614
        %617 = vrot.lane.b32.xlu0 %v616, 96
        %v618 = vpop.permute.xlu0 %617
        %v621 = vunpack.c.l.b16 %v608
        %v622 = vunpack.c.l.b16 %v609
        %v623 = vpack.c.b16 %v622, %v621
        %624 = vrot.lane.b32.xlu0 %v623, 96
        %v625 = vpop.permute.xlu0 %624
        %v627 = vsel %vm439, %v618, 0
        %v630 = vsel %vm439, %v625, 0
        %632 = vmatprep.subr.bf16.mxu0 0
        %633 = vmatpush1.bf16.xpose.msra.mxu0 %v630
        %634 = vmatprep.subr.bf16.mxu0 0
        %635 = vmatpush1.bf16.xpose.msra.mxu0 0
        %636 = vmatprep.subr.bf16.mxu0 0
        %637 = vmatpush1.bf16.xpose.msra.mxu0 0
        %638 = vmatprep.subr.bf16.mxu0 0
        %639 = vmatpush1.bf16.xpose.msra.mxu0 0
        %640 = vmatprep.subr.bf16.mxu0 0
        %641 = vmatpush1.bf16.xpose.msra.mxu0 0
        %642 = vmatprep.subr.bf16.mxu0 0
        %643 = vmatpush1.bf16.xpose.msra.mxu0 0
        %644 = vmatprep.subr.bf16.mxu0 0
        %645 = vmatpush1.bf16.xpose.msra.mxu0 0
        %646 = vmatprep.subr.bf16.mxu0 0
        %647 = vmatpush1.bf16.xpose.msra.mxu0 0
        %648 = vmatprep.subr.bf16.mxu0 0
        %649 = vmatpush1.bf16.xpose.msra.mxu0 0
        %650 = vmatprep.subr.bf16.mxu0 0
        %651 = vmatpush1.bf16.xpose.msra.mxu0 0
        %652 = vmatprep.subr.bf16.mxu0 0
        %653 = vmatpush1.bf16.xpose.msra.mxu0 0
        %654 = vmatprep.subr.bf16.mxu0 0
        %655 = vmatpush1.bf16.xpose.msra.mxu0 0
        %656 = vmatprep.subr.bf16.mxu0 0
        %657 = vmatpush1.bf16.xpose.msra.mxu0 0
        %658 = vmatprep.subr.bf16.mxu0 0
        %659 = vmatpush1.bf16.xpose.msra.mxu0 0
        %660 = vmatprep.subr.bf16.mxu0 0
        %661 = vmatpush1.bf16.xpose.msra.mxu0 0
        %662 = vmatprep.subr.bf16.mxu0 0
        %663 = vmatpush1.bf16.xpose.msra.mxu0 0
        %664 = vmatprep.mubr.bf16.mxu0 0
        %665 = vmatmul.mubr.bf16.gmra.mrb[0].mxu0 %v627
        %v666 = vpop.f32.mrb[0].mxu0
        %v667 = vadd.f32 0.0, %v666
        %v668 = vpop.f32.mrb[0].mxu0
        %v669 = vpop.f32.mrb[0].mxu0
        %v670 = vadd.f32 0.0, %v669
        %v671 = vpop.f32.mrb[0].mxu0
        %672 = vdwg.mxu0
        %s673 = scalar_lea.vmem [#allocation2], 16
        %v674 = vld [vmem:[%s673] sm:$0xff]
        %v675 = vld [vmem:[%s673 + $0x8] sm:$0xff]
        %v676 = vsel %vm489, %v667, -inf
        %677 = vmax.xlane.f32.xlu0 %v676
        %v678 = vpop.xlane.xlu0 %677
        %v679 = vsel %vm489, %v670, -inf
        %680 = vmax.xlane.f32.xlu0 %v679
        %v681 = vpop.xlane.xlu0 %680
        %v682 = vmax.f32 %v674, %v678
        %v683 = vmax.f32 %v675, %v681
        %v684 = vsub.f32 %v674, %v682
        %v685 = vsub.f32 %v675, %v683
        %v686 = vmul.f32 %v684, 1.442695
        %v687 = vpow.pop %v686
        %v688 = vmul.f32 %v685, 1.442695
        %v689 = vpow.pop %v688
        %691 = vset.pattern.permute.xlu0 0
        %692 = vperm.xlu0 %691, %v682
        %v693 = vpop.permute.xlu0 %692
        %696 = vset.pattern.permute.xlu0 0
        %697 = vperm.xlu0 %696, %v683
        %v698 = vpop.permute.xlu0 %697
        %v700 = vsub.f32 %v667, %v693
        %v701 = vsub.f32 %v670, %v698
        %v702 = vmul.f32 %v700, 1.442695
        %v703 = vpow.pop %v702
        %v704 = vmul.f32 %v701, 1.442695
        %v705 = vpow.pop %v704
        %s706 = scalar_lea.vmem [#allocation3], 16
        %v707 = vld [vmem:[%s706] sm:$0xff]
        %v708 = vld [vmem:[%s706 + $0x8] sm:$0xff]
        %v709 = vmul.f32 %v687, %v707
        %v710 = vmul.f32 %v689, %v708
        %v711 = vsel %vm489, %v703, 0.0
        %712 = vadd.xlane.f32.xlu0 %v711
        %v713 = vpop.xlane.xlu0 %712
        %v714 = vsel %vm489, %v705, 0.0
        %715 = vadd.xlane.f32.xlu0 %v714
        %v716 = vpop.xlane.xlu0 %715
        %v717 = vadd.f32 %v709, %v713
        %v718 = vadd.f32 %v710, %v716
        %719 = vst.msk [vmem:[%s706] sm:$0xff] %vm532, %v717
        %720 = vst.msk [vmem:[%s706 + $0x8] sm:$0xff] %vm532, %v718
        %721 = vst.msk [vmem:[%s673] sm:$0xff] %vm532, %v682
        %722 = vst.msk [vmem:[%s673 + $0x8] sm:$0xff] %vm532, %v683
        %v723 = vpack.c.bf16 %v705, %v703
        %v726 = vunpack.c.l.b16 %v610
        %v727 = vunpack.c.l.b16 %v611
        %v728 = vpack.c.b16 %v727, %v726
        %729 = vrot.lane.b32.xlu0 %v728, 96
        %v730 = vpop.permute.xlu0 %729
        %v733 = vsel %vm489, %v723, 0
        %735 = vmatprep.subr.bf16.mxu0 0
        %736 = vmatpush1.bf16.msra.mxu0 %v730
        %737 = vmatprep.subr.bf16.mxu0 0
        %738 = vmatpush1.bf16.msra.mxu0 0
        %739 = vmatprep.subr.bf16.mxu0 0
        %740 = vmatpush1.bf16.msra.mxu0 0
        %741 = vmatprep.subr.bf16.mxu0 0
        %742 = vmatpush1.bf16.msra.mxu0 0
        %743 = vmatprep.subr.bf16.mxu0 0
        %744 = vmatpush1.bf16.msra.mxu0 0
        %745 = vmatprep.subr.bf16.mxu0 0
        %746 = vmatpush1.bf16.msra.mxu0 0
        %747 = vmatprep.subr.bf16.mxu0 0
        %748 = vmatpush1.bf16.msra.mxu0 0
        %749 = vmatprep.subr.bf16.mxu0 0
        %750 = vmatpush1.bf16.msra.mxu0 0
        %751 = vmatprep.subr.bf16.mxu0 0
        %752 = vmatpush1.bf16.msra.mxu0 0
        %753 = vmatprep.subr.bf16.mxu0 0
        %754 = vmatpush1.bf16.msra.mxu0 0
        %755 = vmatprep.subr.bf16.mxu0 0
        %756 = vmatpush1.bf16.msra.mxu0 0
        %757 = vmatprep.subr.bf16.mxu0 0
        %758 = vmatpush1.bf16.msra.mxu0 0
        %759 = vmatprep.subr.bf16.mxu0 0
        %760 = vmatpush1.bf16.msra.mxu0 0
        %761 = vmatprep.subr.bf16.mxu0 0
        %762 = vmatpush1.bf16.msra.mxu0 0
        %763 = vmatprep.subr.bf16.mxu0 0
        %764 = vmatpush1.bf16.msra.mxu0 0
        %765 = vmatprep.subr.bf16.mxu0 0
        %766 = vmatpush1.bf16.msra.mxu0 0
        %767 = vmatprep.mubr.bf16.mxu0 0
        %768 = vmatmul.mubr.bf16.gmra.mrb[0].mxu0 %v733
        %v769 = vpop.f32.mrb[0].mxu0
        %v770 = vadd.f32 0.0, %v769
        %v771 = vpop.f32.mrb[0].mxu0
        %v772 = vpop.f32.mrb[0].mxu0
        %v773 = vadd.f32 0.0, %v772
        %v774 = vpop.f32.mrb[0].mxu0
        %775 = vdwg.mxu0
        %v776 = vld [vmem:[#allocation4] sm:$0xff]
        %v777 = vld [vmem:[#allocation4 + $0x8] sm:$0xff]
        %779 = vset.pattern.permute.xlu0 0
        %780 = vperm.xlu0 %779, %v687
        %v781 = vpop.permute.xlu0 %780
        %784 = vset.pattern.permute.xlu0 0
        %785 = vperm.xlu0 %784, %v689
        %v786 = vpop.permute.xlu0 %785
        %v788 = vmul.f32 %v781, %v776
        %v789 = vmul.f32 %v786, %v777
        %792 = vrot.lane.b32.xlu0 %v770, 32
        %v793 = vpop.permute.xlu0 %792
        %794 = vrot.lane.b32.xlu0 %v773, 32
        %v795 = vpop.permute.xlu0 %794
        %v798 = vadd.f32 %v788, %v793
        %v799 = vadd.f32 %v789, %v795
        %vm800 = vcmask 523520
        %801 = vst.msk [vmem:[#allocation4] sm:$0xff] %vm800, %v798
        %802 = vst.msk [vmem:[#allocation4 + $0x8] sm:$0xff] %vm800, %v799
        %v803 = vld [vmem:[%s339] sm:$0xf]
        %v804 = vld [vmem:[%s339 + $0x4] sm:$0xf]
        %v805 = vld [vmem:[%s346] sm:$0xf]
        %v806 = vld [vmem:[%s346 + $0x4] sm:$0xf]
        %v807 = vld [vmem:[%s353] sm:$0xf]
        %v808 = vld [vmem:[%s353 + $0x4] sm:$0xf]
        %v811 = vunpack.c.l.b16 %v803
        %v812 = vunpack.c.l.b16 %v804
        %v813 = vpack.c.b16 %v812, %v811
        %814 = vrot.lane.b32.xlu0 %v813, 64
        %v815 = vpop.permute.xlu0 %814
        %v818 = vunpack.c.l.b16 %v805
        %v819 = vunpack.c.l.b16 %v806
        %v820 = vpack.c.b16 %v819, %v818
        %821 = vrot.lane.b32.xlu0 %v820, 64
        %v822 = vpop.permute.xlu0 %821
        %v824 = vsel %vm439, %v815, 0
        %v827 = vsel %vm439, %v822, 0
        %829 = vmatprep.subr.bf16.mxu0 0
        %830 = vmatpush1.bf16.xpose.msra.mxu0 %v827
        %831 = vmatprep.subr.bf16.mxu0 0
        %832 = vmatpush1.bf16.xpose.msra.mxu0 0
        %833 = vmatprep.subr.bf16.mxu0 0
        %834 = vmatpush1.bf16.xpose.msra.mxu0 0
        %835 = vmatprep.subr.bf16.mxu0 0
        %836 = vmatpush1.bf16.xpose.msra.mxu0 0
        %837 = vmatprep.subr.bf16.mxu0 0
        %838 = vmatpush1.bf16.xpose.msra.mxu0 0
        %839 = vmatprep.subr.bf16.mxu0 0
        %840 = vmatpush1.bf16.xpose.msra.mxu0 0
        %841 = vmatprep.subr.bf16.mxu0 0
        %842 = vmatpush1.bf16.xpose.msra.mxu0 0
        %843 = vmatprep.subr.bf16.mxu0 0
        %844 = vmatpush1.bf16.xpose.msra.mxu0 0
        %845 = vmatprep.subr.bf16.mxu0 0
        %846 = vmatpush1.bf16.xpose.msra.mxu0 0
        %847 = vmatprep.subr.bf16.mxu0 0
        %848 = vmatpush1.bf16.xpose.msra.mxu0 0
        %849 = vmatprep.subr.bf16.mxu0 0
        %850 = vmatpush1.bf16.xpose.msra.mxu0 0
        %851 = vmatprep.subr.bf16.mxu0 0
        %852 = vmatpush1.bf16.xpose.msra.mxu0 0
        %853 = vmatprep.subr.bf16.mxu0 0
        %854 = vmatpush1.bf16.xpose.msra.mxu0 0
        %855 = vmatprep.subr.bf16.mxu0 0
        %856 = vmatpush1.bf16.xpose.msra.mxu0 0
        %857 = vmatprep.subr.bf16.mxu0 0
        %858 = vmatpush1.bf16.xpose.msra.mxu0 0
        %859 = vmatprep.subr.bf16.mxu0 0
        %860 = vmatpush1.bf16.xpose.msra.mxu0 0
        %861 = vmatprep.mubr.bf16.mxu0 0
        %862 = vmatmul.mubr.bf16.gmra.mrb[0].mxu0 %v824
        %v863 = vpop.f32.mrb[0].mxu0
        %v864 = vadd.f32 0.0, %v863
        %v865 = vpop.f32.mrb[0].mxu0
        %v866 = vpop.f32.mrb[0].mxu0
        %v867 = vadd.f32 0.0, %v866
        %v868 = vpop.f32.mrb[0].mxu0
        %869 = vdwg.mxu0
        %s870 = scalar_lea.vmem [#allocation2], 32
        %v871 = vld [vmem:[%s870] sm:$0xff]
        %v872 = vld [vmem:[%s870 + $0x8] sm:$0xff]
        %v873 = vsel %vm489, %v864, -inf
        %874 = vmax.xlane.f32.xlu0 %v873
        %v875 = vpop.xlane.xlu0 %874
        %v876 = vsel %vm489, %v867, -inf
        %877 = vmax.xlane.f32.xlu0 %v876
        %v878 = vpop.xlane.xlu0 %877
        %v879 = vmax.f32 %v871, %v875
        %v880 = vmax.f32 %v872, %v878
        %v881 = vsub.f32 %v871, %v879
        %v882 = vsub.f32 %v872, %v880
        %v883 = vmul.f32 %v881, 1.442695
        %v884 = vpow.pop %v883
        %v885 = vmul.f32 %v882, 1.442695
        %v886 = vpow.pop %v885
        %888 = vset.pattern.permute.xlu0 0
        %889 = vperm.xlu0 %888, %v879
        %v890 = vpop.permute.xlu0 %889
        %893 = vset.pattern.permute.xlu0 0
        %894 = vperm.xlu0 %893, %v880
        %v895 = vpop.permute.xlu0 %894
        %v897 = vsub.f32 %v864, %v890
        %v898 = vsub.f32 %v867, %v895
        %v899 = vmul.f32 %v897, 1.442695
        %v900 = vpow.pop %v899
        %v901 = vmul.f32 %v898, 1.442695
        %v902 = vpow.pop %v901
        %s903 = scalar_lea.vmem [#allocation3], 32
        %v904 = vld [vmem:[%s903] sm:$0xff]
        %v905 = vld [vmem:[%s903 + $0x8] sm:$0xff]
        %v906 = vmul.f32 %v884, %v904
        %v907 = vmul.f32 %v886, %v905
        %v908 = vsel %vm489, %v900, 0.0
        %909 = vadd.xlane.f32.xlu0 %v908
        %v910 = vpop.xlane.xlu0 %909
        %v911 = vsel %vm489, %v902, 0.0
        %912 = vadd.xlane.f32.xlu0 %v911
        %v913 = vpop.xlane.xlu0 %912
        %v914 = vadd.f32 %v906, %v910
        %v915 = vadd.f32 %v907, %v913
        %916 = vst.msk [vmem:[%s903] sm:$0xff] %vm532, %v914
        %917 = vst.msk [vmem:[%s903 + $0x8] sm:$0xff] %vm532, %v915
        %918 = vst.msk [vmem:[%s870] sm:$0xff] %vm532, %v879
        %919 = vst.msk [vmem:[%s870 + $0x8] sm:$0xff] %vm532, %v880
        %v920 = vpack.c.bf16 %v902, %v900
        %v923 = vunpack.c.l.b16 %v807
        %v924 = vunpack.c.l.b16 %v808
        %v925 = vpack.c.b16 %v924, %v923
        %926 = vrot.lane.b32.xlu0 %v925, 64
        %v927 = vpop.permute.xlu0 %926
        %v930 = vsel %vm489, %v920, 0
        %932 = vmatprep.subr.bf16.mxu0 0
        %933 = vmatpush1.bf16.msra.mxu0 %v927
        %934 = vmatprep.subr.bf16.mxu0 0
        %935 = vmatpush1.bf16.msra.mxu0 0
        %936 = vmatprep.subr.bf16.mxu0 0
        %937 = vmatpush1.bf16.msra.mxu0 0
        %938 = vmatprep.subr.bf16.mxu0 0
        %939 = vmatpush1.bf16.msra.mxu0 0
        %940 = vmatprep.subr.bf16.mxu0 0
        %941 = vmatpush1.bf16.msra.mxu0 0
        %942 = vmatprep.subr.bf16.mxu0 0
        %943 = vmatpush1.bf16.msra.mxu0 0
        %944 = vmatprep.subr.bf16.mxu0 0
        %945 = vmatpush1.bf16.msra.mxu0 0
        %946 = vmatprep.subr.bf16.mxu0 0
        %947 = vmatpush1.bf16.msra.mxu0 0
        %948 = vmatprep.subr.bf16.mxu0 0
        %949 = vmatpush1.bf16.msra.mxu0 0
        %950 = vmatprep.subr.bf16.mxu0 0
        %951 = vmatpush1.bf16.msra.mxu0 0
        %952 = vmatprep.subr.bf16.mxu0 0
        %953 = vmatpush1.bf16.msra.mxu0 0
        %954 = vmatprep.subr.bf16.mxu0 0
        %955 = vmatpush1.bf16.msra.mxu0 0
        %956 = vmatprep.subr.bf16.mxu0 0
        %957 = vmatpush1.bf16.msra.mxu0 0
        %958 = vmatprep.subr.bf16.mxu0 0
        %959 = vmatpush1.bf16.msra.mxu0 0
        %960 = vmatprep.subr.bf16.mxu0 0
        %961 = vmatpush1.bf16.msra.mxu0 0
        %962 = vmatprep.subr.bf16.mxu0 0
        %963 = vmatpush1.bf16.msra.mxu0 0
        %964 = vmatprep.mubr.bf16.mxu0 0
        %965 = vmatmul.mubr.bf16.gmra.mrb[0].mxu0 %v930
        %v966 = vpop.f32.mrb[0].mxu0
        %v967 = vadd.f32 0.0, %v966
        %v968 = vpop.f32.mrb[0].mxu0
        %v969 = vpop.f32.mrb[0].mxu0
        %v970 = vadd.f32 0.0, %v969
        %v971 = vpop.f32.mrb[0].mxu0
        %972 = vdwg.mxu0
        %v973 = vld [vmem:[#allocation4] sm:$0xff]
        %v974 = vld [vmem:[#allocation4 + $0x8] sm:$0xff]
        %976 = vset.pattern.permute.xlu0 0
        %977 = vperm.xlu0 %976, %v884
        %v978 = vpop.permute.xlu0 %977
        %981 = vset.pattern.permute.xlu0 0
        %982 = vperm.xlu0 %981, %v886
        %v983 = vpop.permute.xlu0 %982
        %v985 = vmul.f32 %v978, %v973
        %v986 = vmul.f32 %v983, %v974
        %989 = vrot.lane.b32.xlu0 %v967, 64
        %v990 = vpop.permute.xlu0 %989
        %991 = vrot.lane.b32.xlu0 %v970, 64
        %v992 = vpop.permute.xlu0 %991
        %v995 = vadd.f32 %v985, %v990
        %v996 = vadd.f32 %v986, %v992
        %vm997 = vcmask 785920
        %998 = vst.msk [vmem:[#allocation4] sm:$0xff] %vm997, %v995
        %999 = vst.msk [vmem:[#allocation4 + $0x8] sm:$0xff] %vm997, %v996
        %v1000 = vld [vmem:[%s339] sm:$0xf]
        %v1001 = vld [vmem:[%s339 + $0x4] sm:$0xf]
        %v1002 = vld [vmem:[%s346] sm:$0xf]
        %v1003 = vld [vmem:[%s346 + $0x4] sm:$0xf]
        %v1004 = vld [vmem:[%s353] sm:$0xf]
        %v1005 = vld [vmem:[%s353 + $0x4] sm:$0xf]
        %v1008 = vunpack.c.l.b16 %v1000
        %v1009 = vunpack.c.l.b16 %v1001
        %v1010 = vpack.c.b16 %v1009, %v1008
        %1011 = vrot.lane.b32.xlu0 %v1010, 32
        %v1012 = vpop.permute.xlu0 %1011
        %v1015 = vunpack.c.l.b16 %v1002
        %v1016 = vunpack.c.l.b16 %v1003
        %v1017 = vpack.c.b16 %v1016, %v1015
        %1018 = vrot.lane.b32.xlu0 %v1017, 32
        %v1019 = vpop.permute.xlu0 %1018
        %v1021 = vsel %vm439, %v1012, 0
        %v1024 = vsel %vm439, %v1019, 0
        %1026 = vmatprep.subr.bf16.mxu0 0
        %1027 = vmatpush1.bf16.xpose.msra.mxu0 %v1024
        %1028 = vmatprep.subr.bf16.mxu0 0
        %1029 = vmatpush1.bf16.xpose.msra.mxu0 0
        %1030 = vmatprep.subr.bf16.mxu0 0
        %1031 = vmatpush1.bf16.xpose.msra.mxu0 0
        %1032 = vmatprep.subr.bf16.mxu0 0
        %1033 = vmatpush1.bf16.xpose.msra.mxu0 0
        %1034 = vmatprep.subr.bf16.mxu0 0
        %1035 = vmatpush1.bf16.xpose.msra.mxu0 0
        %1036 = vmatprep.subr.bf16.mxu0 0
        %1037 = vmatpush1.bf16.xpose.msra.mxu0 0
        %1038 = vmatprep.subr.bf16.mxu0 0
        %1039 = vmatpush1.bf16.xpose.msra.mxu0 0
        %1040 = vmatprep.subr.bf16.mxu0 0
        %1041 = vmatpush1.bf16.xpose.msra.mxu0 0
        %1042 = vmatprep.subr.bf16.mxu0 0
        %1043 = vmatpush1.bf16.xpose.msra.mxu0 0
        %1044 = vmatprep.subr.bf16.mxu0 0
        %1045 = vmatpush1.bf16.xpose.msra.mxu0 0
        %1046 = vmatprep.subr.bf16.mxu0 0
        %1047 = vmatpush1.bf16.xpose.msra.mxu0 0
        %1048 = vmatprep.subr.bf16.mxu0 0
        %1049 = vmatpush1.bf16.xpose.msra.mxu0 0
        %1050 = vmatprep.subr.bf16.mxu0 0
        %1051 = vmatpush1.bf16.xpose.msra.mxu0 0
        %1052 = vmatprep.subr.bf16.mxu0 0
        %1053 = vmatpush1.bf16.xpose.msra.mxu0 0
        %1054 = vmatprep.subr.bf16.mxu0 0
        %1055 = vmatpush1.bf16.xpose.msra.mxu0 0
        %1056 = vmatprep.subr.bf16.mxu0 0
        %1057 = vmatpush1.bf16.xpose.msra.mxu0 0
        %1058 = vmatprep.mubr.bf16.mxu0 0
        %1059 = vmatmul.mubr.bf16.gmra.mrb[0].mxu0 %v1021
        %v1060 = vpop.f32.mrb[0].mxu0
        %v1061 = vadd.f32 0.0, %v1060
        %v1062 = vpop.f32.mrb[0].mxu0
        %v1063 = vpop.f32.mrb[0].mxu0
        %v1064 = vadd.f32 0.0, %v1063
        %v1065 = vpop.f32.mrb[0].mxu0
        %1066 = vdwg.mxu0
        %s1067 = scalar_lea.vmem [#allocation2], 48
        %v1068 = vld [vmem:[%s1067] sm:$0xff]
        %v1069 = vld [vmem:[%s1067 + $0x8] sm:$0xff]
        %v1070 = vsel %vm489, %v1061, -inf
        %1071 = vmax.xlane.f32.xlu0 %v1070
        %v1072 = vpop.xlane.xlu0 %1071
        %v1073 = vsel %vm489, %v1064, -inf
        %1074 = vmax.xlane.f32.xlu0 %v1073
        %v1075 = vpop.xlane.xlu0 %1074
        %v1076 = vmax.f32 %v1068, %v1072
        %v1077 = vmax.f32 %v1069, %v1075
        %v1078 = vsub.f32 %v1068, %v1076
        %v1079 = vsub.f32 %v1069, %v1077
        %v1080 = vmul.f32 %v1078, 1.442695
        %v1081 = vpow.pop %v1080
        %v1082 = vmul.f32 %v1079, 1.442695
        %v1083 = vpow.pop %v1082
        %1085 = vset.pattern.permute.xlu0 0
        %1086 = vperm.xlu0 %1085, %v1076
        %v1087 = vpop.permute.xlu0 %1086
        %1090 = vset.pattern.permute.xlu0 0
        %1091 = vperm.xlu0 %1090, %v1077
        %v1092 = vpop.permute.xlu0 %1091
        %v1094 = vsub.f32 %v1061, %v1087
        %v1095 = vsub.f32 %v1064, %v1092
        %v1096 = vmul.f32 %v1094, 1.442695
        %v1097 = vpow.pop %v1096
        %v1098 = vmul.f32 %v1095, 1.442695
        %v1099 = vpow.pop %v1098
        %s1100 = scalar_lea.vmem [#allocation3], 48
        %v1101 = vld [vmem:[%s1100] sm:$0xff]
        %v1102 = vld [vmem:[%s1100 + $0x8] sm:$0xff]
        %v1103 = vmul.f32 %v1081, %v1101
        %v1104 = vmul.f32 %v1083, %v1102
        %v1105 = vsel %vm489, %v1097, 0.0
        %1106 = vadd.xlane.f32.xlu0 %v1105
        %v1107 = vpop.xlane.xlu0 %1106
        %v1108 = vsel %vm489, %v1099, 0.0
        %1109 = vadd.xlane.f32.xlu0 %v1108
        %v1110 = vpop.xlane.xlu0 %1109
        %v1111 = vadd.f32 %v1103, %v1107
        %v1112 = vadd.f32 %v1104, %v1110
        %1113 = vst.msk [vmem:[%s1100] sm:$0xff] %vm532, %v1111
        %1114 = vst.msk [vmem:[%s1100 + $0x8] sm:$0xff] %vm532, %v1112
        %1115 = vst.msk [vmem:[%s1067] sm:$0xff] %vm532, %v1076
        %1116 = vst.msk [vmem:[%s1067 + $0x8] sm:$0xff] %vm532, %v1077
        %v1117 = vpack.c.bf16 %v1099, %v1097
        %v1120 = vunpack.c.l.b16 %v1004
        %v1121 = vunpack.c.l.b16 %v1005
        %v1122 = vpack.c.b16 %v1121, %v1120
        %1123 = vrot.lane.b32.xlu0 %v1122, 32
        %v1124 = vpop.permute.xlu0 %1123
        %v1127 = vsel %vm489, %v1117, 0
        %1129 = vmatprep.subr.bf16.mxu0 0
        %1130 = vmatpush1.bf16.msra.mxu0 %v1124
        %1131 = vmatprep.subr.bf16.mxu0 0
        %1132 = vmatpush1.bf16.msra.mxu0 0
        %1133 = vmatprep.subr.bf16.mxu0 0
        %1134 = vmatpush1.bf16.msra.mxu0 0
        %1135 = vmatprep.subr.bf16.mxu0 0
        %1136 = vmatpush1.bf16.msra.mxu0 0
        %1137 = vmatprep.subr.bf16.mxu0 0
        %1138 = vmatpush1.bf16.msra.mxu0 0
        %1139 = vmatprep.subr.bf16.mxu0 0
        %1140 = vmatpush1.bf16.msra.mxu0 0
        %1141 = vmatprep.subr.bf16.mxu0 0
        %1142 = vmatpush1.bf16.msra.mxu0 0
        %1143 = vmatprep.subr.bf16.mxu0 0
        %1144 = vmatpush1.bf16.msra.mxu0 0
        %1145 = vmatprep.subr.bf16.mxu0 0
        %1146 = vmatpush1.bf16.msra.mxu0 0
        %1147 = vmatprep.subr.bf16.mxu0 0
        %1148 = vmatpush1.bf16.msra.mxu0 0
        %1149 = vmatprep.subr.bf16.mxu0 0
        %1150 = vmatpush1.bf16.msra.mxu0 0
        %1151 = vmatprep.subr.bf16.mxu0 0
        %1152 = vmatpush1.bf16.msra.mxu0 0
        %1153 = vmatprep.subr.bf16.mxu0 0
        %1154 = vmatpush1.bf16.msra.mxu0 0
        %1155 = vmatprep.subr.bf16.mxu0 0
        %1156 = vmatpush1.bf16.msra.mxu0 0
        %1157 = vmatprep.subr.bf16.mxu0 0
        %1158 = vmatpush1.bf16.msra.mxu0 0
        %1159 = vmatprep.subr.bf16.mxu0 0
        %1160 = vmatpush1.bf16.msra.mxu0 0
        %1161 = vmatprep.mubr.bf16.mxu0 0
        %1162 = vmatmul.mubr.bf16.gmra.mrb[0].mxu0 %v1127
        %v1163 = vpop.f32.mrb[0].mxu0
        %v1164 = vadd.f32 0.0, %v1163
        %v1165 = vpop.f32.mrb[0].mxu0
        %v1166 = vpop.f32.mrb[0].mxu0
        %v1167 = vadd.f32 0.0, %v1166
        %v1168 = vpop.f32.mrb[0].mxu0
        %1169 = vdwg.mxu0
        %v1170 = vld [vmem:[#allocation4] sm:$0xff]
        %v1171 = vld [vmem:[#allocation4 + $0x8] sm:$0xff]
        %1173 = vset.pattern.permute.xlu0 0
        %1174 = vperm.xlu0 %1173, %v1081
        %v1175 = vpop.permute.xlu0 %1174
        %1178 = vset.pattern.permute.xlu0 0
        %1179 = vperm.xlu0 %1178, %v1083
        %v1180 = vpop.permute.xlu0 %1179
        %v1182 = vmul.f32 %v1175, %v1170
        %v1183 = vmul.f32 %v1180, %v1171
        %1186 = vrot.lane.b32.xlu0 %v1164, 96
        %v1187 = vpop.permute.xlu0 %1186
        %1188 = vrot.lane.b32.xlu0 %v1167, 96
        %v1189 = vpop.permute.xlu0 %1188
        %v1192 = vadd.f32 %v1182, %v1187
        %v1193 = vadd.f32 %v1183, %v1189
        %vm1194 = vcmask 1048320
        %1195 = vst.msk [vmem:[#allocation4] sm:$0xff] %vm1194, %v1192
        %1196 = vst.msk [vmem:[#allocation4 + $0x8] sm:$0xff] %vm1194, %v1193
        // Predicated region
        $region160: #{segmenter_vit_forward.25} parent=142 // pred_check
          %p1197 = pneg %p400
        $region161: #{segmenter_vit_forward.25} parent=142 // pred_check_branch
          %1199 = sbr.rel (%p1197) target = $region163
        $region162: #{segmenter_vit_forward.25} parent=142 // pred_region
          %v1200 = vld [vmem:[#allocation3] sm:$0xff]
          %v1201 = vld [vmem:[#allocation3 + $0x8] sm:$0xff]
          %v1202 = vrcp.pop %v1200
          %v1203 = vrcp.pop %v1201
          %v1204 = vld [vmem:[#allocation4] sm:$0xff]
          %v1205 = vld [vmem:[#allocation4 + $0x8] sm:$0xff]
          %1207 = vset.pattern.permute.xlu0 0
          %1208 = vperm.xlu0 %1207, %v1202
          %v1209 = vpop.permute.xlu0 %1208
          %1212 = vset.pattern.permute.xlu0 0
          %1213 = vperm.xlu0 %1212, %v1203
          %v1214 = vpop.permute.xlu0 %1213
          %v1216 = vmul.f32 %v1204, %v1209
          %v1217 = vmul.f32 %v1205, %v1214
          %v1218 = vpack.c.bf16 %v1217, %v1216
          %v1220 = vunpack.c.l.b16 %v1218
          %v1221 = vunpack.c.h.b16 %v1218
          %v1222 = vpack.c.b16 %v1220, %v1220
          %v1223 = vpack.c.b16 %v1221, %v1221
          %vm1226 = vcmask 257024
          %1227 = vst.msk [vmem:[%s397] sm:$0xf] %vm1226, %v1222
          %1228 = vst.msk [vmem:[%s397 + $0x4] sm:$0xf] %vm1226, %v1223
          %v1229 = vld [vmem:[%s706] sm:$0xff]
          %v1230 = vld [vmem:[%s706 + $0x8] sm:$0xff]
          %v1231 = vrcp.pop %v1229
          %v1232 = vrcp.pop %v1230
          %v1233 = vld [vmem:[#allocation4] sm:$0xff]
          %v1234 = vld [vmem:[#allocation4 + $0x8] sm:$0xff]
          %1236 = vset.pattern.permute.xlu0 0
          %1237 = vperm.xlu0 %1236, %v1231
          %v1238 = vpop.permute.xlu0 %1237
          %1241 = vset.pattern.permute.xlu0 0
          %1242 = vperm.xlu0 %1241, %v1232
          %v1243 = vpop.permute.xlu0 %1242
          %v1245 = vmul.f32 %v1233, %v1238
          %v1246 = vmul.f32 %v1234, %v1243
          %v1247 = vpack.c.bf16 %v1246, %v1245
          %v1249 = vunpack.c.l.b16 %v1247
          %v1250 = vunpack.c.h.b16 %v1247
          %v1251 = vpack.c.b16 %v1249, %v1249
          %v1252 = vpack.c.b16 %v1250, %v1250
          %vm1255 = vcmask 519424
          %1256 = vst.msk [vmem:[%s397] sm:$0xf] %vm1255, %v1251
          %1257 = vst.msk [vmem:[%s397 + $0x4] sm:$0xf] %vm1255, %v1252
          %v1258 = vld [vmem:[%s903] sm:$0xff]
          %v1259 = vld [vmem:[%s903 + $0x8] sm:$0xff]
          %v1260 = vrcp.pop %v1258
          %v1261 = vrcp.pop %v1259
          %v1262 = vld [vmem:[#allocation4] sm:$0xff]
          %v1263 = vld [vmem:[#allocation4 + $0x8] sm:$0xff]
          %1265 = vset.pattern.permute.xlu0 0
          %1266 = vperm.xlu0 %1265, %v1260
          %v1267 = vpop.permute.xlu0 %1266
          %1270 = vset.pattern.permute.xlu0 0
          %1271 = vperm.xlu0 %1270, %v1261
          %v1272 = vpop.permute.xlu0 %1271
          %v1274 = vmul.f32 %v1262, %v1267
          %v1275 = vmul.f32 %v1263, %v1272
          %v1276 = vpack.c.bf16 %v1275, %v1274
          %v1278 = vunpack.c.l.b16 %v1276
          %v1279 = vunpack.c.h.b16 %v1276
          %v1280 = vpack.c.b16 %v1278, %v1278
          %v1281 = vpack.c.b16 %v1279, %v1279
          %vm1284 = vcmask 781824
          %1285 = vst.msk [vmem:[%s397] sm:$0xf] %vm1284, %v1280
          %1286 = vst.msk [vmem:[%s397 + $0x4] sm:$0xf] %vm1284, %v1281
          %v1287 = vld [vmem:[%s1100] sm:$0xff]
          %v1288 = vld [vmem:[%s1100 + $0x8] sm:$0xff]
          %v1289 = vrcp.pop %v1287
          %v1290 = vrcp.pop %v1288
          %v1291 = vld [vmem:[#allocation4] sm:$0xff]
          %v1292 = vld [vmem:[#allocation4 + $0x8] sm:$0xff]
          %1294 = vset.pattern.permute.xlu0 0
          %1295 = vperm.xlu0 %1294, %v1289
          %v1296 = vpop.permute.xlu0 %1295
          %1299 = vset.pattern.permute.xlu0 0
          %1300 = vperm.xlu0 %1299, %v1290
          %v1301 = vpop.permute.xlu0 %1300
          %v1303 = vmul.f32 %v1291, %v1296
          %v1304 = vmul.f32 %v1292, %v1301
          %v1305 = vpack.c.bf16 %v1304, %v1303
          %v1307 = vunpack.c.l.b16 %v1305
          %v1308 = vunpack.c.h.b16 %v1305
          %v1309 = vpack.c.b16 %v1307, %v1307
          %v1310 = vpack.c.b16 %v1308, %v1308
          %vm1313 = vcmask 1044224
          %1314 = vst.msk [vmem:[%s397] sm:$0xf] %vm1313, %v1309
          %1315 = vst.msk [vmem:[%s397 + $0x4] sm:$0xf] %vm1313, %v1310
        $region163: #{segmenter_vit_forward.25} parent=142 // pred_fallthru
          _
        %s1316 = smul.u32 2, %s20
        %p1317 = scmp.lt.s32.totalorder %s19, 1
        %s1318 = scalar_select %p1317, %s19, 1
        %p1319 = scmp.lt.s32.totalorder %s1316, 1
        %s1320 = scalar_select %p1319, %s1316, 1
        %s1321 = smul.addr %s1318, 2
        %s1322 = sadd.s32 %s1320, %s1321
        %s1323 = smul.addr %s1322, 4
        %s1324 = scalar_lea.vmem %s3, %s1323
        // Predicated region
        $region164: #{segmenter_vit_forward.25} parent=142 // pred_check
          %p1325 = pneg %p137
        $region165: #{segmenter_vit_forward.25} parent=142 // pred_check_branch
          %1327 = sbr.rel (%p1325) target = $region167
        $region166: #{segmenter_vit_forward.25} parent=142 // pred_region
          %s1328 = smul.u32 2, %s20
        $region167: #{segmenter_vit_forward.25} parent=142 // pred_fallthru
          _
      $region143: #{segmenter_vit_forward.25} parent=5 // pred_fallthru
        _
      %p1329 = scmp.le.s32.totalorder 2, %s9
      // Predicated region
      $region168: #{segmenter_vit_forward.25} parent=5 // pred_check
        %p1330 = pneg %p1329
      $region169: #{segmenter_vit_forward.25} parent=5 // pred_check_branch
        %1332 = sbr.rel (%p1330) target = $region171
      $region170: #{segmenter_vit_forward.25} parent=5 // pred_region
        %s1333 = ssub.s32 %s9, 2
        // Predicated region
        $region172: #{segmenter_vit_forward.25} parent=170 // pred_check
          %p1334 = pneg %p143
        $region173: #{segmenter_vit_forward.25} parent=170 // pred_check_branch
          %1336 = sbr.rel (%p1334) target = $region175
        $region174: #{segmenter_vit_forward.25} parent=170 // pred_region
          %s1337 = smul.u32 2, %s23
          %p1338 = scmp.lt.s32.totalorder %s22, 1
          %s1339 = scalar_select %p1338, %s22, 1
          %p1340 = scmp.lt.s32.totalorder %s1337, 1
          %s1341 = scalar_select %p1340, %s1337, 1
          %s1342 = smul.addr %s1339, 2
          %s1343 = sadd.s32 %s1341, %s1342
          %s1344 = smul.addr %s1343, 4
          %s1345 = scalar_lea.vmem %s3, %s1344
        $region175: #{segmenter_vit_forward.25} parent=170 // pred_fallthru
          _
      $region171: #{segmenter_vit_forward.25} parent=5 // pred_fallthru
        _
    $region6: #{segmenter_vit_forward.25} parent=1 // loop_footer
      %s13 = sadd.s32 1, %s9
    $region7: #{segmenter_vit_forward.25} parent=1 // loop_footer_branch
      %8 = sbr.rel target = $region3
    $region8: #{segmenter_vit_forward.25} parent=1 // loop_exit
      _

// kernel: segmenter_vit_forward.27
$region0: #{segmenter_vit_forward.27}
  #allocation0 [shape = 'u32[]', space=smem, size = 0x4, offset = 0x4, fixed_abs, tag = 'smem constant byte address 0x4 - core index']
  #allocation1 [shape = 'u32[144,128]{1,0:T(1,128)}', space=vmem, size = 0x12000, scoped, tag = 'internal scratch']
  %s0 = inlined_call_operand.vmem [shape: bf16[32,128], index: 0, kind: input, shape index: {}]
  %s1 = inlined_call_operand.vmem [shape: bf16[32,128], index: 1, kind: input, shape index: {}]
  %s2 = inlined_call_operand.vmem [shape: f32[1,128], index: 2, kind: input, shape index: {}]
  %s3 = inlined_call_operand.vmem [shape: f32[1,128], index: 3, kind: input, shape index: {}]
  %s4 = inlined_call_operand.vmem [shape: bf16[32,128], index: 4, kind: output, shape index: {}]
  %s5 = sld [smem:[#allocation0]]
  $region26: #{segmenter_vit_forward.27} parent=0
    _
  %s7 = ssub.s32 1, %s5
  %s8 = scalar_select 0, %s7, %s5
  // Predicated region
  $region2: #{segmenter_vit_forward.27} parent=0 // pred_check
    _
  $region3: #{segmenter_vit_forward.27} parent=0 // pred_check_branch
    %10 = sbr.rel (0) target = $region5
  $region4: #{segmenter_vit_forward.27} parent=0 // pred_region
    _
  $region5: #{segmenter_vit_forward.27} parent=0 // pred_fallthru
    _
  // Predicated region
  $region6: #{segmenter_vit_forward.27} parent=0 // pred_check
    _
  $region7: #{segmenter_vit_forward.27} parent=0 // pred_check_branch
    %12 = sbr.rel (0) target = $region9
  $region8: #{segmenter_vit_forward.27} parent=0 // pred_region
    _
  $region9: #{segmenter_vit_forward.27} parent=0 // pred_fallthru
    _
  // Predicated region
  $region10: #{segmenter_vit_forward.27} parent=0 // pred_check
    _
  $region11: #{segmenter_vit_forward.27} parent=0 // pred_check_branch
    %14 = sbr.rel (0) target = $region13
  $region12: #{segmenter_vit_forward.27} parent=0 // pred_region
    _
  $region13: #{segmenter_vit_forward.27} parent=0 // pred_fallthru
    _
  // Predicated region
  $region14: #{segmenter_vit_forward.27} parent=0 // pred_check
    _
  $region15: #{segmenter_vit_forward.27} parent=0 // pred_check_branch
    %16 = sbr.rel (0) target = $region17
  $region16: #{segmenter_vit_forward.27} parent=0 // pred_region
    _
  $region17: #{segmenter_vit_forward.27} parent=0 // pred_fallthru
    _
  %v17 = vld [vmem:[%s0] sm:$0xf]
  %v18 = vld [vmem:[%s0 + $0x4] sm:$0xf]
  %v19 = vld [vmem:[%s0 + $0x8] sm:$0xf]
  %v20 = vld [vmem:[%s0 + $0xc] sm:$0xf]
  %v21 = vunpack.c.l.bf16 %v17
  %v22 = vunpack.c.l.bf16 %v18
  %v23 = vunpack.c.l.bf16 %v19
  %v24 = vunpack.c.l.bf16 %v20
  %v25 = vld [vmem:[%s1] sm:$0xf]
  %v26 = vld [vmem:[%s1 + $0x4] sm:$0xf]
  %v27 = vld [vmem:[%s1 + $0x8] sm:$0xf]
  %v28 = vld [vmem:[%s1 + $0xc] sm:$0xf]
  %v29 = vunpack.c.l.bf16 %v25
  %v30 = vunpack.c.l.bf16 %v26
  %v31 = vunpack.c.l.bf16 %v27
  %v32 = vunpack.c.l.bf16 %v28
  %v33 = vadd.f32 %v21, %v29
  %v34 = vadd.f32 %v22, %v30
  %v35 = vadd.f32 %v23, %v31
  %v36 = vadd.f32 %v24, %v32
  %37 = vadd.xlane.f32.xlu0 %v33
  %v38 = vpop.xlane.xlu0 %37
  %39 = vadd.xlane.f32.xlu0 %v34
  %v40 = vpop.xlane.xlu0 %39
  %41 = vadd.xlane.f32.xlu0 %v35
  %v42 = vpop.xlane.xlu0 %41
  %43 = vadd.xlane.f32.xlu0 %v36
  %v44 = vpop.xlane.xlu0 %43
  %v45 = vrcp.pop 128.0
  %v46 = vmul.f32 %v38, %v45
  %v47 = vmul.f32 %v40, %v45
  %v48 = vmul.f32 %v42, %v45
  %v49 = vmul.f32 %v44, %v45
  %v50 = vsub.f32 %v33, %v46
  %v51 = vsub.f32 %v34, %v47
  %v52 = vsub.f32 %v35, %v48
  %v53 = vsub.f32 %v36, %v49
  %v54 = vmul.f32 %v50, %v50
  %v55 = vmul.f32 %v51, %v51
  %v56 = vmul.f32 %v52, %v52
  %v57 = vmul.f32 %v53, %v53
  %58 = vadd.xlane.f32.xlu0 %v54
  %v59 = vpop.xlane.xlu0 %58
  %60 = vadd.xlane.f32.xlu0 %v55
  %v61 = vpop.xlane.xlu0 %60
  %62 = vadd.xlane.f32.xlu0 %v56
  %v63 = vpop.xlane.xlu0 %62
  %64 = vadd.xlane.f32.xlu0 %v57
  %v65 = vpop.xlane.xlu0 %64
  %v66 = vmul.f32 %v59, %v45
  %v67 = vmul.f32 %v61, %v45
  %v68 = vmul.f32 %v63, %v45
  %v69 = vmul.f32 %v65, %v45
  %v70 = vadd.f32 %v66, 1e-05
  %v71 = vadd.f32 %v67, 1e-05
  %v72 = vadd.f32 %v68, 1e-05
  %v73 = vadd.f32 %v69, 1e-05
  %v74 = vrsqrt.pop %v70
  %v75 = vrsqrt.pop %v71
  %v76 = vrsqrt.pop %v72
  %v77 = vrsqrt.pop %v73
  %v78 = vmul.f32 %v50, %v74
  %v79 = vmul.f32 %v51, %v75
  %v80 = vmul.f32 %v52, %v76
  %v81 = vmul.f32 %v53, %v77
  %v82 = vld [vmem:[%s2] sm:$0x1]
  %v84 = vlaneseq
  %v85 = vshrl.u32 %v84, 7
  %v86 = vsub.s32 0, %v85
  %v87 = vrot.slane %v82, %v86
  %v89 = vmul.f32 %v78, %v87
  %v90 = vmul.f32 %v79, %v87
  %v91 = vmul.f32 %v80, %v87
  %v92 = vmul.f32 %v81, %v87
  %v93 = vld [vmem:[%s3] sm:$0x1]
  %v95 = vlaneseq
  %v96 = vshrl.u32 %v95, 7
  %v97 = vsub.s32 0, %v96
  %v98 = vrot.slane %v93, %v97
  %v100 = vadd.f32 %v89, %v98
  %v101 = vadd.f32 %v90, %v98
  %v102 = vadd.f32 %v91, %v98
  %v103 = vadd.f32 %v92, %v98
  %v104 = vpack.c.bf16 %v101, %v100
  %v105 = vpack.c.bf16 %v103, %v102
  %v108 = vunpack.c.l.b16 %v104
  %v109 = vunpack.c.h.b16 %v104
  %v110 = vunpack.c.l.b16 %v105
  %v111 = vunpack.c.h.b16 %v105
  %v112 = vpack.c.b16 %v108, %v108
  %v113 = vpack.c.b16 %v109, %v109
  %v114 = vpack.c.b16 %v110, %v110
  %v115 = vpack.c.b16 %v111, %v111
  %120 = vst [vmem:[%s4] sm:$0xf] %v112
  %121 = vst [vmem:[%s4 + $0x4] sm:$0xf] %v113
  %122 = vst [vmem:[%s4 + $0x8] sm:$0xf] %v114
  %123 = vst [vmem:[%s4 + $0xc] sm:$0xf] %v115
  // Predicated region
  $region18: #{segmenter_vit_forward.27} parent=0 // pred_check
    _
  $region19: #{segmenter_vit_forward.27} parent=0 // pred_check_branch
    %125 = sbr.rel (0) target = $region21
  $region20: #{segmenter_vit_forward.27} parent=0 // pred_region
    _
  $region21: #{segmenter_vit_forward.27} parent=0 // pred_fallthru
    _
  // Predicated region
  $region22: #{segmenter_vit_forward.27} parent=0 // pred_check
    _
  $region23: #{segmenter_vit_forward.27} parent=0 // pred_check_branch
    %127 = sbr.rel (0) target = $region25
  $region24: #{segmenter_vit_forward.27} parent=0 // pred_region
    _
  $region25: #{segmenter_vit_forward.27} parent=0 // pred_fallthru
    _

// kernel: segmenter_vit_forward.32
$region0: #{segmenter_vit_forward.32}
  #allocation0 [shape = 'u32[]', space=smem, size = 0x4, offset = 0x4, fixed_abs, tag = 'smem constant byte address 0x4 - core index']
  #allocation1 [shape = 'u32[144,128]{1,0:T(1,128)}', space=vmem, size = 0x12000, scoped, tag = 'internal scratch']
  #allocation2 [shape = 'f32[32,256]{1,0:T(8,128)}', space=vmem, size = 0x8000, scoped, tag = 'scratch operand']
  %s0 = inlined_call_operand.vmem [shape: bf16[32,128], index: 0, kind: input, shape index: {}]
  %s1 = inlined_call_operand.vmem [shape: bf16[128,512], index: 1, kind: input, shape index: {}]
  %s2 = inlined_call_operand.vmem [shape: f32[1,512], index: 2, kind: input, shape index: {}]
  %s3 = inlined_call_operand.vmem [shape: bf16[32,512], index: 3, kind: output, shape index: {}]
  %s4 = sld [smem:[#allocation0]]
  $region125: #{segmenter_vit_forward.32} parent=0
    _
  %s6 = ssub.s32 1, %s4
  %s7 = scalar_select 0, %s6, %s4
  $region1: #{segmenter_vit_forward.32} parent=0
    #allocation3 [shape = 'u8[131072]{0}', space=vmem, size = 0x20000, scoped, tag = 'input window, operand 1']
    #allocation4 [shape = 'u8[32768]{0}', space=vmem, size = 0x8000, scoped, tag = 'output window, operand 0']
    loop: start=0, step=1, limit=4
    $region2: #{segmenter_vit_forward.32} parent=1 // loop_pre_header
      _
    $region3: #{segmenter_vit_forward.32} parent=1 // loop_header
      %s9 = sphi 0, %s13
      %p10 = scmp.ge.s32.totalorder %s9, 4
      %s16 = sphi 0, %s35
      %s17 = sphi 0, %s31
      %s18 = sphi 0, %s27
      %s19 = sphi 0, %s16
      %s20 = sphi 0, %s17
      %s21 = sphi 0, %s18
      %s22 = sphi 0, %s19
      %s23 = sphi 0, %s20
      %s24 = sphi 0, %s21
      %s40 = sphi 0, %s42
      %s43 = sphi 0, %s40
      %s44 = sphi 0, %s43
      %s60 = sphi 0, %s44
      %s68 = sphi 0, %s70
      %s71 = sphi 0, %s68
      %s72 = sphi 0, %s71
      %s88 = sphi 0, %s72
      %s94 = sphi 0, %s96
      %s97 = sphi 0, %s94
      %s98 = sphi 0, %s97
      %s114 = sphi 0, %s98
      %s122 = sphi 0, %s124
      %s125 = sphi 0, %s122
      %s126 = sphi 0, %s125
      %s142 = sphi 0, %s126
    $region4: #{segmenter_vit_forward.32} parent=1 // loop_header_branch
      %12 = sbr.rel (%p10) target = $region8
    $region5: #{segmenter_vit_forward.32} parent=1 // loop_body
      %s14 = ssub.s32 %s9, 1
      %s15 = ssub.s32 %s9, 2
      %s25 = sadd.s32 1, %s18
      %p26 = scmp.ge.s32.totalorder %s25, 1
      %s27 = scalar_select %p26, 0, %s25
      %s28 = sadd.s32 1, %s17
      %s29 = scalar_select %p26, %s28, %s17
      %p30 = scmp.ge.s32.totalorder %s29, 2
      %s31 = scalar_select %p30, 0, %s29
      %s32 = sadd.s32 1, %s16
      %s33 = scalar_select %p30, %s32, %s16
      %p34 = scmp.ge.s32.totalorder %s33, 1
      %s35 = scalar_select %p34, 0, %s33
      %s36 = ssub.s32 %s16, %s35
      %s37 = ssub.s32 %s18, %s27
      %s38 = sor.u32 %s36, %s37
      %p39 = scmp.eq.s32.totalorder %s38, 0
      %s41 = sadd.s32 %s40, 1
      %s42 = scalar_select %p39, %s40, %s41
      %p45 = pneg %p39
      %p46 = scmp.eq.s32.totalorder %s9, 1
      %p47 = por %p45, %p46
      %p48 = scmp.ne.s32.totalorder %s40, %s43
      %p49 = scmp.eq.s32.totalorder %s9, 0
      %p50 = por %p48, %p49
      %p51 = scmp.ne.s32.totalorder %s40, %s43
      %p52 = scmp.eq.s32.totalorder %s14, 1
      %p53 = por %p51, %p52
      %p54 = scmp.ne.s32.totalorder %s43, %s44
      %p55 = scmp.eq.s32.totalorder %s14, 0
      %p56 = por %p54, %p55
      %p57 = scmp.ne.s32.totalorder %s43, %s44
      %p58 = scmp.eq.s32.totalorder %s15, 1
      %p59 = por %p57, %p58
      %p61 = scmp.ne.s32.totalorder %s44, %s60
      %p62 = scmp.eq.s32.totalorder %s15, 0
      %p63 = por %p61, %p62
      %s64 = ssub.s32 %s18, %s27
      %s65 = ssub.s32 %s17, %s31
      %s66 = sor.u32 %s64, %s65
      %p67 = scmp.eq.s32.totalorder %s66, 0
      %s69 = sadd.s32 %s68, 1
      %s70 = scalar_select %p67, %s68, %s69
      %p73 = pneg %p67
      %p74 = scmp.eq.s32.totalorder %s9, 1
      %p75 = por %p73, %p74
      %p76 = scmp.ne.s32.totalorder %s68, %s71
      %p77 = scmp.eq.s32.totalorder %s9, 0
      %p78 = por %p76, %p77
      %p79 = scmp.ne.s32.totalorder %s68, %s71
      %p80 = scmp.eq.s32.totalorder %s14, 1
      %p81 = por %p79, %p80
      %p82 = scmp.ne.s32.totalorder %s71, %s72
      %p83 = scmp.eq.s32.totalorder %s14, 0
      %p84 = por %p82, %p83
      %p85 = scmp.ne.s32.totalorder %s71, %s72
      %p86 = scmp.eq.s32.totalorder %s15, 1
      %p87 = por %p85, %p86
      %p89 = scmp.ne.s32.totalorder %s72, %s88
      %p90 = scmp.eq.s32.totalorder %s15, 0
      %p91 = por %p89, %p90
      %s92 = ssub.s32 %s17, %s31
      %p93 = scmp.eq.s32.totalorder %s92, 0
      %s95 = sadd.s32 %s94, 1
      %s96 = scalar_select %p93, %s94, %s95
      %p99 = pneg %p93
      %p100 = scmp.eq.s32.totalorder %s9, 1
      %p101 = por %p99, %p100
      %p102 = scmp.ne.s32.totalorder %s94, %s97
      %p103 = scmp.eq.s32.totalorder %s9, 0
      %p104 = por %p102, %p103
      %p105 = scmp.ne.s32.totalorder %s94, %s97
      %p106 = scmp.eq.s32.totalorder %s14, 1
      %p107 = por %p105, %p106
      %p108 = scmp.ne.s32.totalorder %s97, %s98
      %p109 = scmp.eq.s32.totalorder %s14, 0
      %p110 = por %p108, %p109
      %p111 = scmp.ne.s32.totalorder %s97, %s98
      %p112 = scmp.eq.s32.totalorder %s15, 1
      %p113 = por %p111, %p112
      %p115 = scmp.ne.s32.totalorder %s98, %s114
      %p116 = scmp.eq.s32.totalorder %s15, 0
      %p117 = por %p115, %p116
      %s118 = ssub.s32 %s16, %s35
      %s119 = ssub.s32 %s17, %s31
      %s120 = sor.u32 %s118, %s119
      %p121 = scmp.eq.s32.totalorder %s120, 0
      %s123 = sadd.s32 %s122, 1
      %s124 = scalar_select %p121, %s122, %s123
      %p127 = pneg %p121
      %p128 = scmp.eq.s32.totalorder %s9, 1
      %p129 = por %p127, %p128
      %p130 = scmp.ne.s32.totalorder %s122, %s125
      %p131 = scmp.eq.s32.totalorder %s9, 0
      %p132 = por %p130, %p131
      %p133 = scmp.ne.s32.totalorder %s122, %s125
      %p134 = scmp.eq.s32.totalorder %s14, 1
      %p135 = por %p133, %p134
      %p136 = scmp.ne.s32.totalorder %s125, %s126
      %p137 = scmp.eq.s32.totalorder %s14, 0
      %p138 = por %p136, %p137
      %p139 = scmp.ne.s32.totalorder %s125, %s126
      %p140 = scmp.eq.s32.totalorder %s15, 1
      %p141 = por %p139, %p140
      %p143 = scmp.ne.s32.totalorder %s126, %s142
      %p144 = scmp.eq.s32.totalorder %s15, 0
      %p145 = por %p143, %p144
      %p146 = scmp.le.s32.totalorder 1, %s9
      %p147 = scmp.lt.s32.totalorder %s9, 3
      %p148 = pnand %p146, %p147
      %p149 = pneg %p148
      // Predicated region
      $region9: #{segmenter_vit_forward.32} parent=5 // pred_check
        _
      $region10: #{segmenter_vit_forward.32} parent=5 // pred_check_branch
        %151 = sbr.rel (%p148) target = $region12
      $region11: #{segmenter_vit_forward.32} parent=5 // pred_region
        %s152 = ssub.s32 %s9, 1
        // Predicated region
        $region13: #{segmenter_vit_forward.32} parent=11 // pred_check
          %p153 = pneg %p56
        $region14: #{segmenter_vit_forward.32} parent=11 // pred_check_branch
          %155 = sbr.rel (%p153) target = $region16
        $region15: #{segmenter_vit_forward.32} parent=11 // pred_region
          %s156 = smul.u32 4, %s19
          %p157 = scmp.lt.s32.totalorder %s156, 3
          %s158 = scalar_select %p157, %s156, 3
          %p159 = scmp.lt.s32.totalorder %s21, 0
          %s160 = scalar_select %p159, %s21, 0
          %s161 = sadd.s32 %s160, %s158
          %s162 = smul.addr %s161, 4
          %s163 = scalar_lea.vmem %s0, %s162
          %s164 = smul.u32 4, %s19
        $region16: #{segmenter_vit_forward.32} parent=11 // pred_fallthru
          _
      $region12: #{segmenter_vit_forward.32} parent=5 // pred_fallthru
        _
      %p165 = scmp.lt.s32.totalorder %s9, 2
      // Predicated region
      $region17: #{segmenter_vit_forward.32} parent=5 // pred_check
        %p166 = pneg %p165
      $region18: #{segmenter_vit_forward.32} parent=5 // pred_check_branch
        %168 = sbr.rel (%p166) target = $region20
      $region19: #{segmenter_vit_forward.32} parent=5 // pred_region
        // Predicated region
        $region21: #{segmenter_vit_forward.32} parent=19 // pred_check
          %p169 = pneg %p78
        $region22: #{segmenter_vit_forward.32} parent=19 // pred_check_branch
          %171 = sbr.rel (%p169) target = $region24
        $region23: #{segmenter_vit_forward.32} parent=19 // pred_region
          %s172 = sand.u32 %s68, 1
          %s173 = sand.u32 %s68, 1
          %s174 = smul.addr %s173, 128
          %s175 = scalar_lea.vmem [#allocation3], %s174
          %s176 = smul.u32 16, %s18
          %s177 = smul.u32 2, %s17
          %s178 = smul.addr %s176, 4
          %s179 = sadd.s32 %s177, %s178
          %s180 = smul.addr %s179, 4
          %s181 = scalar_lea.vmem %s1, %s180
          // Predicated region
          $region25: #{segmenter_vit_forward.32} parent=23 // pred_check
            _
          $region26: #{segmenter_vit_forward.32} parent=23 // pred_check_branch
            %183 = sbr.rel (0) target = $region28
          $region27: #{segmenter_vit_forward.32} parent=23 // pred_region
            // Predicated region
            $region29: #{segmenter_vit_forward.32} parent=27 // pred_check
              _
            $region30: #{segmenter_vit_forward.32} parent=27 // pred_check_branch
              %185 = sbr.rel (0) target = $region32
            $region31: #{segmenter_vit_forward.32} parent=27 // pred_region
              // Predicated region
              $region44: #{segmenter_vit_forward.32} parent=31 // pred_check
                _
              $region45: #{segmenter_vit_forward.32} parent=31 // pred_check_branch
                %230 = sbr.rel (0) target = $region47
              $region46: #{segmenter_vit_forward.32} parent=31 // pred_region
                loop: start=0, step=1, limit=1
                $region48: #{segmenter_vit_forward.32} parent=46 // loop_pre_header
                  _
                $region49: #{segmenter_vit_forward.32} parent=46 // loop_header
                  %s232 = sphi 0, %s236
                  %p233 = scmp.ge.s32.totalorder %s232, 1
                  %s237 = sphi %s181, %s181
                  %s238 = sphi %s175, %s175
                $region50: #{segmenter_vit_forward.32} parent=46 // loop_header_branch
                  %235 = sbr.rel (%p233) target = $region54
                $region51: #{segmenter_vit_forward.32} parent=46 // loop_body
                  %v239 = vld [vmem:[%s237] sm:$0xff]
                  %240 = vst [vmem:[%s238] sm:$0xff] %v239
                  %v241 = vld [vmem:[%s237 + $0x10] sm:$0xff]
                  %242 = vst [vmem:[%s238 + $0x8] sm:$0xff] %v241
                  %v243 = vld [vmem:[%s237 + $0x20] sm:$0xff]
                  %244 = vst [vmem:[%s238 + $0x10] sm:$0xff] %v243
                  %v245 = vld [vmem:[%s237 + $0x30] sm:$0xff]
                  %246 = vst [vmem:[%s238 + $0x18] sm:$0xff] %v245
                  %v247 = vld [vmem:[%s237 + $0x40] sm:$0xff]
                  %248 = vst [vmem:[%s238 + $0x20] sm:$0xff] %v247
                  %v249 = vld [vmem:[%s237 + $0x50] sm:$0xff]
                  %250 = vst [vmem:[%s238 + $0x28] sm:$0xff] %v249
                  %v251 = vld [vmem:[%s237 + $0x60] sm:$0xff]
                  %252 = vst [vmem:[%s238 + $0x30] sm:$0xff] %v251
                  %v253 = vld [vmem:[%s237 + $0x70] sm:$0xff]
                  %254 = vst [vmem:[%s238 + $0x38] sm:$0xff] %v253
                  %v255 = vld [vmem:[%s237 + $0x80] sm:$0xff]
                  %256 = vst [vmem:[%s238 + $0x40] sm:$0xff] %v255
                  %v257 = vld [vmem:[%s237 + $0x90] sm:$0xff]
                  %258 = vst [vmem:[%s238 + $0x48] sm:$0xff] %v257
                  %v259 = vld [vmem:[%s237 + $0xa0] sm:$0xff]
                  %260 = vst [vmem:[%s238 + $0x50] sm:$0xff] %v259
                  %v261 = vld [vmem:[%s237 + $0xb0] sm:$0xff]
                  %262 = vst [vmem:[%s238 + $0x58] sm:$0xff] %v261
                  %v263 = vld [vmem:[%s237 + $0xc0] sm:$0xff]
                  %264 = vst [vmem:[%s238 + $0x60] sm:$0xff] %v263
                  %v265 = vld [vmem:[%s237 + $0xd0] sm:$0xff]
                  %266 = vst [vmem:[%s238 + $0x68] sm:$0xff] %v265
                  %v267 = vld [vmem:[%s237 + $0xe0] sm:$0xff]
                  %268 = vst [vmem:[%s238 + $0x70] sm:$0xff] %v267
                  %v269 = vld [vmem:[%s237 + $0xf0] sm:$0xff]
                  %270 = vst [vmem:[%s238 + $0x78] sm:$0xff] %v269
                $region52: #{segmenter_vit_forward.32} parent=46 // loop_footer
                  %s236 = sadd.s32 1, %s232
                $region53: #{segmenter_vit_forward.32} parent=46 // loop_footer_branch
                  %231 = sbr.rel target = $region49
                $region54: #{segmenter_vit_forward.32} parent=46 // loop_exit
                  _
              $region47: #{segmenter_vit_forward.32} parent=31 // pred_fallthru
                _
              // Predicated region
              $region55: #{segmenter_vit_forward.32} parent=31 // pred_check
                _
              $region56: #{segmenter_vit_forward.32} parent=31 // pred_check_branch
                %272 = sbr.rel target = $region58
              $region57: #{segmenter_vit_forward.32} parent=31 // pred_region
                _
              $region58: #{segmenter_vit_forward.32} parent=31 // pred_fallthru
                _
            $region32: #{segmenter_vit_forward.32} parent=27 // pred_fallthru
              _
            // Predicated region
            $region33: #{segmenter_vit_forward.32} parent=27 // pred_check
              _
            $region34: #{segmenter_vit_forward.32} parent=27 // pred_check_branch
              %187 = sbr.rel target = $region36
            $region35: #{segmenter_vit_forward.32} parent=27 // pred_region
              loop: start=0, step=1, limit=1
              $region37: #{segmenter_vit_forward.32} parent=35 // loop_pre_header
                _
              $region38: #{segmenter_vit_forward.32} parent=35 // loop_header
                %s190 = sphi 0, %s194
                %p191 = scmp.ge.s32.totalorder %s190, 1
                %s195 = sphi %s181, %s181
                %s196 = sphi %s175, %s175
              $region39: #{segmenter_vit_forward.32} parent=35 // loop_header_branch
                %193 = sbr.rel (%p191) target = $region43
              $region40: #{segmenter_vit_forward.32} parent=35 // loop_body
                %v197 = vld [vmem:[%s195] sm:$0xff]
                %198 = vst [vmem:[%s196] sm:$0xff] %v197
                %v199 = vld [vmem:[%s195 + $0x10] sm:$0xff]
                %200 = vst [vmem:[%s196 + $0x8] sm:$0xff] %v199
                %v201 = vld [vmem:[%s195 + $0x20] sm:$0xff]
                %202 = vst [vmem:[%s196 + $0x10] sm:$0xff] %v201
                %v203 = vld [vmem:[%s195 + $0x30] sm:$0xff]
                %204 = vst [vmem:[%s196 + $0x18] sm:$0xff] %v203
                %v205 = vld [vmem:[%s195 + $0x40] sm:$0xff]
                %206 = vst [vmem:[%s196 + $0x20] sm:$0xff] %v205
                %v207 = vld [vmem:[%s195 + $0x50] sm:$0xff]
                %208 = vst [vmem:[%s196 + $0x28] sm:$0xff] %v207
                %v209 = vld [vmem:[%s195 + $0x60] sm:$0xff]
                %210 = vst [vmem:[%s196 + $0x30] sm:$0xff] %v209
                %v211 = vld [vmem:[%s195 + $0x70] sm:$0xff]
                %212 = vst [vmem:[%s196 + $0x38] sm:$0xff] %v211
                %v213 = vld [vmem:[%s195 + $0x80] sm:$0xff]
                %214 = vst [vmem:[%s196 + $0x40] sm:$0xff] %v213
                %v215 = vld [vmem:[%s195 + $0x90] sm:$0xff]
                %216 = vst [vmem:[%s196 + $0x48] sm:$0xff] %v215
                %v217 = vld [vmem:[%s195 + $0xa0] sm:$0xff]
                %218 = vst [vmem:[%s196 + $0x50] sm:$0xff] %v217
                %v219 = vld [vmem:[%s195 + $0xb0] sm:$0xff]
                %220 = vst [vmem:[%s196 + $0x58] sm:$0xff] %v219
                %v221 = vld [vmem:[%s195 + $0xc0] sm:$0xff]
                %222 = vst [vmem:[%s196 + $0x60] sm:$0xff] %v221
                %v223 = vld [vmem:[%s195 + $0xd0] sm:$0xff]
                %224 = vst [vmem:[%s196 + $0x68] sm:$0xff] %v223
                %v225 = vld [vmem:[%s195 + $0xe0] sm:$0xff]
                %226 = vst [vmem:[%s196 + $0x70] sm:$0xff] %v225
                %v227 = vld [vmem:[%s195 + $0xf0] sm:$0xff]
                %228 = vst [vmem:[%s196 + $0x78] sm:$0xff] %v227
              $region41: #{segmenter_vit_forward.32} parent=35 // loop_footer
                %s194 = sadd.s32 1, %s190
              $region42: #{segmenter_vit_forward.32} parent=35 // loop_footer_branch
                %189 = sbr.rel target = $region38
              $region43: #{segmenter_vit_forward.32} parent=35 // loop_exit
                _
            $region36: #{segmenter_vit_forward.32} parent=27 // pred_fallthru
              _
          $region28: #{segmenter_vit_forward.32} parent=23 // pred_fallthru
            _
          %273 = vnop
        $region24: #{segmenter_vit_forward.32} parent=19 // pred_fallthru
          _
        // Predicated region
        $region59: #{segmenter_vit_forward.32} parent=19 // pred_check
          %p274 = pneg %p104
        $region60: #{segmenter_vit_forward.32} parent=19 // pred_check_branch
          %276 = sbr.rel (%p274) target = $region62
        $region61: #{segmenter_vit_forward.32} parent=19 // pred_region
          %s277 = smul.u32 2, %s17
          %p278 = scmp.lt.s32.totalorder %s277, 3
          %s279 = scalar_select %p278, %s277, 3
          %s280 = scalar_lea.vmem %s2, %s279
          %s281 = smul.u32 2, %s17
        $region62: #{segmenter_vit_forward.32} parent=19 // pred_fallthru
          _
      $region20: #{segmenter_vit_forward.32} parent=5 // pred_fallthru
        _
      %p282 = scmp.le.s32.totalorder 1, %s9
      %p283 = scmp.lt.s32.totalorder %s9, 3
      %p284 = pnand %p282, %p283
      %p285 = pneg %p284
      // Predicated region
      $region63: #{segmenter_vit_forward.32} parent=5 // pred_check
        _
      $region64: #{segmenter_vit_forward.32} parent=5 // pred_check_branch
        %287 = sbr.rel (%p284) target = $region66
      $region65: #{segmenter_vit_forward.32} parent=5 // pred_region
        %s288 = ssub.s32 %s9, 1
        %s289 = sand.u32 %s71, 1
        %s290 = sand.u32 %s71, 1
        %s291 = smul.addr %s290, 128
        %s292 = scalar_lea.vmem [#allocation3], %s291
        // Predicated region
        $region67: #{segmenter_vit_forward.32} parent=65 // pred_check
          %p293 = pneg %p84
        $region68: #{segmenter_vit_forward.32} parent=65 // pred_check_branch
          %295 = sbr.rel (%p293) target = $region70
        $region69: #{segmenter_vit_forward.32} parent=65 // pred_region
          _
        $region70: #{segmenter_vit_forward.32} parent=65 // pred_fallthru
          _
        %s296 = smul.u32 4, %s19
        %p297 = scmp.lt.s32.totalorder %s296, 3
        %s298 = scalar_select %p297, %s296, 3
        %p299 = scmp.lt.s32.totalorder %s21, 0
        %s300 = scalar_select %p299, %s21, 0
        %s301 = sadd.s32 %s300, %s298
        %s302 = smul.addr %s301, 4
        %s303 = scalar_lea.vmem %s0, %s302
        %p304 = pneg %p56
        %p305 = pneg %p53
        %s306 = sand.u32 %s71, 1
        %s307 = sand.u32 %s71, 1
        %s308 = smul.addr %s307, 128
        %s309 = scalar_lea.vmem [#allocation3], %s308
        %p310 = pneg %p84
        %p311 = pneg %p81
        %s312 = smul.u32 2, %s20
        %p313 = scmp.lt.s32.totalorder %s312, 3
        %s314 = scalar_select %p313, %s312, 3
        %s315 = scalar_lea.vmem %s2, %s314
        %p316 = pneg %p110
        %p317 = pneg %p107
        %p318 = pneg %p138
        %p319 = pneg %p135
        %s320 = sand.u32 %s125, 1
        %s321 = sand.u32 %s125, 1
        %s322 = smul.addr %s321, 32
        %s323 = scalar_lea.vmem [#allocation4], %s322
        %s324 = smul.u32 4, %s19
        %p325 = scmp.lt.s32.totalorder %s324, 3
        %s326 = scalar_select %p325, %s324, 3
        %p327 = scmp.lt.s32.totalorder %s21, 0
        %s328 = scalar_select %p327, %s21, 0
        %s329 = sadd.s32 %s328, %s326
        %s330 = smul.addr %s329, 4
        %s331 = scalar_lea.vmem %s0, %s330
        %s332 = smul.u32 4, %s19
        %s333 = smul.u32 16, %s21
        %s334 = smul.u32 2, %s20
        %s335 = smul.u32 2, %s20
        %p336 = scmp.lt.s32.totalorder %s335, 3
        %s337 = scalar_select %p336, %s335, 3
        %s338 = scalar_lea.vmem %s2, %s337
        %s339 = smul.u32 2, %s20
        %s340 = smul.u32 4, %s19
        %s341 = smul.u32 2, %s20
        %p343 = scmp.eq.s32.totalorder %s21, 0
        // Predicated region
        $region71: #{segmenter_vit_forward.32} parent=65 // pred_check
          %p344 = pneg %p343
        $region72: #{segmenter_vit_forward.32} parent=65 // pred_check_branch
          %346 = sbr.rel (%p344) target = $region74
        $region73: #{segmenter_vit_forward.32} parent=65 // pred_region
          %347 = vst [vmem:[#allocation2] sm:$0xff] 0.0
          %348 = vst [vmem:[#allocation2 + $0x8] sm:$0xff] 0.0
          %349 = vst [vmem:[#allocation2 + $0x10] sm:$0xff] 0.0
          %350 = vst [vmem:[#allocation2 + $0x18] sm:$0xff] 0.0
          %351 = vst [vmem:[#allocation2 + $0x20] sm:$0xff] 0.0
          %352 = vst [vmem:[#allocation2 + $0x28] sm:$0xff] 0.0
          %353 = vst [vmem:[#allocation2 + $0x30] sm:$0xff] 0.0
          %354 = vst [vmem:[#allocation2 + $0x38] sm:$0xff] 0.0
        $region74: #{segmenter_vit_forward.32} parent=65 // pred_fallthru
          _
        %v355 = vld [vmem:[#allocation2] sm:$0xff]
        %v356 = vld [vmem:[#allocation2 + $0x8] sm:$0xff]
        %v357 = vld [vmem:[#allocation2 + $0x10] sm:$0xff]
        %v358 = vld [vmem:[#allocation2 + $0x18] sm:$0xff]
        %v359 = vld [vmem:[#allocation2 + $0x20] sm:$0xff]
        %v360 = vld [vmem:[#allocation2 + $0x28] sm:$0xff]
        %v361 = vld [vmem:[#allocation2 + $0x30] sm:$0xff]
        %v362 = vld [vmem:[#allocation2 + $0x38] sm:$0xff]
        %v363 = vld [vmem:[%s331] sm:$0xf]
        %v364 = vld [vmem:[%s331 + $0x4] sm:$0xf]
        %v365 = vld [vmem:[%s331 + $0x8] sm:$0xf]
        %v366 = vld [vmem:[%s331 + $0xc] sm:$0xf]
        %v367 = vld [vmem:[%s292] sm:$0xff]
        %v368 = vld [vmem:[%s292 + $0x8] sm:$0xff]
        %v369 = vld [vmem:[%s292 + $0x10] sm:$0xff]
        %v370 = vld [vmem:[%s292 + $0x18] sm:$0xff]
        %v371 = vld [vmem:[%s292 + $0x20] sm:$0xff]
        %v372 = vld [vmem:[%s292 + $0x28] sm:$0xff]
        %v373 = vld [vmem:[%s292 + $0x30] sm:$0xff]
        %v374 = vld [vmem:[%s292 + $0x38] sm:$0xff]
        %v375 = vld [vmem:[%s292 + $0x40] sm:$0xff]
        %v376 = vld [vmem:[%s292 + $0x48] sm:$0xff]
        %v377 = vld [vmem:[%s292 + $0x50] sm:$0xff]
        %v378 = vld [vmem:[%s292 + $0x58] sm:$0xff]
        %v379 = vld [vmem:[%s292 + $0x60] sm:$0xff]
        %v380 = vld [vmem:[%s292 + $0x68] sm:$0xff]
        %v381 = vld [vmem:[%s292 + $0x70] sm:$0xff]
        %v382 = vld [vmem:[%s292 + $0x78] sm:$0xff]
        %v387 = vunpack.c.l.b16 %v363
        %v388 = vunpack.c.l.b16 %v364
        %v389 = vunpack.c.l.b16 %v365
        %v390 = vunpack.c.l.b16 %v366
        %v391 = vpack.c.b16 %v388, %v387
        %v392 = vpack.c.b16 %v390, %v389
        %v411 = vunpack.c.l.b16 %v367
        %v412 = vunpack.c.h.b16 %v367
        %v413 = vunpack.c.l.b16 %v368
        %v414 = vunpack.c.h.b16 %v368
        %v415 = vunpack.c.l.b16 %v369
        %v416 = vunpack.c.h.b16 %v369
        %v417 = vunpack.c.l.b16 %v370
        %v418 = vunpack.c.h.b16 %v370
        %v419 = vunpack.c.l.b16 %v371
        %v420 = vunpack.c.h.b16 %v371
        %v421 = vunpack.c.l.b16 %v372
        %v422 = vunpack.c.h.b16 %v372
        %v423 = vunpack.c.l.b16 %v373
        %v424 = vunpack.c.h.b16 %v373
        %v425 = vunpack.c.l.b16 %v374
        %v426 = vunpack.c.h.b16 %v374
        %v427 = vunpack.c.l.b16 %v375
        %v428 = vunpack.c.h.b16 %v375
        %v429 = vunpack.c.l.b16 %v376
        %v430 = vunpack.c.h.b16 %v376
        %v431 = vunpack.c.l.b16 %v377
        %v432 = vunpack.c.h.b16 %v377
        %v433 = vunpack.c.l.b16 %v378
        %v434 = vunpack.c.h.b16 %v378
        %v435 = vunpack.c.l.b16 %v379
        %v436 = vunpack.c.h.b16 %v379
        %v437 = vunpack.c.l.b16 %v380
        %v438 = vunpack.c.h.b16 %v380
        %v439 = vunpack.c.l.b16 %v381
        %v440 = vunpack.c.h.b16 %v381
        %v441 = vunpack.c.l.b16 %v382
        %v442 = vunpack.c.h.b16 %v382
        %v443 = vpack.c.b16 %v413, %v411
        %v444 = vpack.c.b16 %v414, %v412
        %v445 = vpack.c.b16 %v417, %v415
        %v446 = vpack.c.b16 %v418, %v416
        %v447 = vpack.c.b16 %v421, %v419
        %v448 = vpack.c.b16 %v422, %v420
        %v449 = vpack.c.b16 %v425, %v423
        %v450 = vpack.c.b16 %v426, %v424
        %v451 = vpack.c.b16 %v429, %v427
        %v452 = vpack.c.b16 %v430, %v428
        %v453 = vpack.c.b16 %v433, %v431
        %v454 = vpack.c.b16 %v434, %v432
        %v455 = vpack.c.b16 %v437, %v435
        %v456 = vpack.c.b16 %v438, %v436
        %v457 = vpack.c.b16 %v441, %v439
        %v458 = vpack.c.b16 %v442, %v440
        %475 = vmatprep.subr.bf16.mxu0 %v444
        %476 = vmatpush1.bf16.msra.mxu0 %v443
        %477 = vmatprep.subr.bf16.mxu0 %v446
        %478 = vmatpush1.bf16.msra.mxu0 %v445
        %479 = vmatprep.subr.bf16.mxu0 %v448
        %480 = vmatpush1.bf16.msra.mxu0 %v447
        %481 = vmatprep.subr.bf16.mxu0 %v450
        %482 = vmatpush1.bf16.msra.mxu0 %v449
        %483 = vmatprep.subr.bf16.mxu0 %v452
        %484 = vmatpush1.bf16.msra.mxu0 %v451
        %485 = vmatprep.subr.bf16.mxu0 %v454
        %486 = vmatpush1.bf16.msra.mxu0 %v453
        %487 = vmatprep.subr.bf16.mxu0 %v456
        %488 = vmatpush1.bf16.msra.mxu0 %v455
        %489 = vmatprep.subr.bf16.mxu0 %v458
        %490 = vmatpush1.bf16.msra.mxu0 %v457
        %491 = vmatprep.subr.bf16.mxu0 0
        %492 = vmatpush1.bf16.msra.mxu0 0
        %493 = vmatprep.subr.bf16.mxu0 0
        %494 = vmatpush1.bf16.msra.mxu0 0
        %495 = vmatprep.subr.bf16.mxu0 0
        %496 = vmatpush1.bf16.msra.mxu0 0
        %497 = vmatprep.subr.bf16.mxu0 0
        %498 = vmatpush1.bf16.msra.mxu0 0
        %499 = vmatprep.subr.bf16.mxu0 0
        %500 = vmatpush1.bf16.msra.mxu0 0
        %501 = vmatprep.subr.bf16.mxu0 0
        %502 = vmatpush1.bf16.msra.mxu0 0
        %503 = vmatprep.subr.bf16.mxu0 0
        %504 = vmatpush1.bf16.msra.mxu0 0
        %505 = vmatprep.subr.bf16.mxu0 0
        %506 = vmatpush1.bf16.msra.mxu0 0
        %507 = vmatprep.mubr.bf16.mxu0 0
        %508 = vmatmul.mubr.bf16.gmra.mrb[0].mxu0 %v391
        %v509 = vpop.f32.mrb[0].mxu0
        %v510 = vadd.f32 0.0, %v509
        %v511 = vpop.f32.mrb[0].mxu0
        %v512 = vadd.f32 0.0, %v511
        %v513 = vpop.f32.mrb[0].mxu0
        %v514 = vadd.f32 0.0, %v513
        %v515 = vpop.f32.mrb[0].mxu0
        %v516 = vadd.f32 0.0, %v515
        %517 = vmatprep.mubr.bf16.mxu0 0
        %518 = vmatmul.mubr.bf16.gmra.mrb[0].mxu0 %v392
        %v519 = vpop.f32.mrb[0].mxu0
        %v520 = vadd.f32 0.0, %v519
        %v521 = vpop.f32.mrb[0].mxu0
        %v522 = vadd.f32 0.0, %v521
        %v523 = vpop.f32.mrb[0].mxu0
        %v524 = vadd.f32 0.0, %v523
        %v525 = vpop.f32.mrb[0].mxu0
        %v526 = vadd.f32 0.0, %v525
        %527 = vdwg.mxu0
        %v528 = vadd.f32 %v355, %v510
        %v529 = vadd.f32 %v356, %v512
        %v530 = vadd.f32 %v357, %v514
        %v531 = vadd.f32 %v358, %v516
        %v532 = vadd.f32 %v359, %v520
        %v533 = vadd.f32 %v360, %v522
        %v534 = vadd.f32 %v361, %v524
        %v535 = vadd.f32 %v362, %v526
        %536 = vst [vmem:[#allocation2] sm:$0xff] %v528
        %537 = vst [vmem:[#allocation2 + $0x8] sm:$0xff] %v529
        %538 = vst [vmem:[#allocation2 + $0x10] sm:$0xff] %v530
        %539 = vst [vmem:[#allocation2 + $0x18] sm:$0xff] %v531
        %540 = vst [vmem:[#allocation2 + $0x20] sm:$0xff] %v532
        %541 = vst [vmem:[#allocation2 + $0x28] sm:$0xff] %v533
        %542 = vst [vmem:[#allocation2 + $0x30] sm:$0xff] %v534
        %543 = vst [vmem:[#allocation2 + $0x38] sm:$0xff] %v535
        // Predicated region
        $region75: #{segmenter_vit_forward.32} parent=65 // pred_check
          %p544 = pneg %p343
        $region76: #{segmenter_vit_forward.32} parent=65 // pred_check_branch
          %546 = sbr.rel (%p544) target = $region78
        $region77: #{segmenter_vit_forward.32} parent=65 // pred_region
          %v547 = vld [vmem:[#allocation2] sm:$0xff]
          %v548 = vld [vmem:[#allocation2 + $0x8] sm:$0xff]
          %v549 = vld [vmem:[#allocation2 + $0x10] sm:$0xff]
          %v550 = vld [vmem:[#allocation2 + $0x18] sm:$0xff]
          %v551 = vld [vmem:[#allocation2 + $0x20] sm:$0xff]
          %v552 = vld [vmem:[#allocation2 + $0x28] sm:$0xff]
          %v553 = vld [vmem:[#allocation2 + $0x30] sm:$0xff]
          %v554 = vld [vmem:[#allocation2 + $0x38] sm:$0xff]
          %v555 = vld [vmem:[%s338] sm:$0x3]
          %v557 = vlaneseq
          %v558 = vshrl.u32 %v557, 7
          %v559 = vsub.s32 0, %v558
          %v560 = vrot.slane %v555, %v559
          %v561 = vlaneseq
          %v562 = vshrl.u32 %v561, 7
          %v563 = vsub.s32 1, %v562
          %v564 = vrot.slane %v555, %v563
          %v567 = vadd.f32 %v547, %v560
          %v568 = vadd.f32 %v548, %v564
          %v569 = vadd.f32 %v549, %v560
          %v570 = vadd.f32 %v550, %v564
          %v571 = vadd.f32 %v551, %v560
          %v572 = vadd.f32 %v552, %v564
          %v573 = vadd.f32 %v553, %v560
          %v574 = vadd.f32 %v554, %v564
          %v575 = vmul.f32 %v567, 0.5
          %v576 = vmul.f32 %v568, 0.5
          %v577 = vmul.f32 %v569, 0.5
          %v578 = vmul.f32 %v570, 0.5
          %v579 = vmul.f32 %v571, 0.5
          %v580 = vmul.f32 %v572, 0.5
          %v581 = vmul.f32 %v573, 0.5
          %v582 = vmul.f32 %v574, 0.5
          %v583 = vmul.f32 %v567, 0.70710677
          %v584 = vmul.f32 %v568, 0.70710677
          %v585 = vmul.f32 %v569, 0.70710677
          %v586 = vmul.f32 %v570, 0.70710677
          %v587 = vmul.f32 %v571, 0.70710677
          %v588 = vmul.f32 %v572, 0.70710677
          %v589 = vmul.f32 %v573, 0.70710677
          %v590 = vmul.f32 %v574, 0.70710677
          %v591 = verf.f32.pop %v583
          %v592 = verf.f32.pop %v584
          %v593 = verf.f32.pop %v585
          %v594 = verf.f32.pop %v586
          %v595 = verf.f32.pop %v587
          %v596 = verf.f32.pop %v588
          %v597 = verf.f32.pop %v589
          %v598 = verf.f32.pop %v590
          %v599 = vadd.f32 %v591, 1.0
          %v600 = vadd.f32 %v592, 1.0
          %v601 = vadd.f32 %v593, 1.0
          %v602 = vadd.f32 %v594, 1.0
          %v603 = vadd.f32 %v595, 1.0
          %v604 = vadd.f32 %v596, 1.0
          %v605 = vadd.f32 %v597, 1.0
          %v606 = vadd.f32 %v598, 1.0
          %v607 = vmul.f32 %v575, %v599
          %v608 = vmul.f32 %v576, %v600
          %v609 = vmul.f32 %v577, %v601
          %v610 = vmul.f32 %v578, %v602
          %v611 = vmul.f32 %v579, %v603
          %v612 = vmul.f32 %v580, %v604
          %v613 = vmul.f32 %v581, %v605
          %v614 = vmul.f32 %v582, %v606
          %v615 = vpack.c.bf16 %v609, %v607
          %v616 = vpack.c.bf16 %v610, %v608
          %v617 = vpack.c.bf16 %v613, %v611
          %v618 = vpack.c.bf16 %v614, %v612
          %v623 = vunpack.c.l.b16 %v615
          %v624 = vunpack.c.l.b16 %v616
          %v625 = vunpack.c.h.b16 %v615
          %v626 = vunpack.c.h.b16 %v616
          %v627 = vunpack.c.l.b16 %v617
          %v628 = vunpack.c.l.b16 %v618
          %v629 = vunpack.c.h.b16 %v617
          %v630 = vunpack.c.h.b16 %v618
          %v631 = vpack.c.b16 %v624, %v623
          %v632 = vpack.c.b16 %v626, %v625
          %v633 = vpack.c.b16 %v628, %v627
          %v634 = vpack.c.b16 %v630, %v629
          %639 = vst [vmem:[%s323] sm:$0xff] %v631
          %640 = vst [vmem:[%s323 + $0x8] sm:$0xff] %v632
          %641 = vst [vmem:[%s323 + $0x10] sm:$0xff] %v633
          %642 = vst [vmem:[%s323 + $0x18] sm:$0xff] %v634
        $region78: #{segmenter_vit_forward.32} parent=65 // pred_fallthru
          _
        %s643 = sand.u32 %s125, 1
        %s644 = sand.u32 %s125, 1
        %s645 = smul.addr %s644, 32
        %s646 = scalar_lea.vmem [#allocation4], %s645
        // Predicated region
        $region79: #{segmenter_vit_forward.32} parent=65 // pred_check
          %p647 = pneg %p135
        $region80: #{segmenter_vit_forward.32} parent=65 // pred_check_branch
          %649 = sbr.rel (%p647) target = $region82
        $region81: #{segmenter_vit_forward.32} parent=65 // pred_region
          %s650 = smul.u32 4, %s19
          %s651 = smul.u32 2, %s20
          %s652 = smul.addr %s650, 4
          %s653 = sadd.s32 %s651, %s652
          %s654 = smul.addr %s653, 4
          %s655 = scalar_lea.vmem %s3, %s654
          // Predicated region
          $region83: #{segmenter_vit_forward.32} parent=81 // pred_check
            _
          $region84: #{segmenter_vit_forward.32} parent=81 // pred_check_branch
            %657 = sbr.rel (0) target = $region86
          $region85: #{segmenter_vit_forward.32} parent=81 // pred_region
            // Predicated region
            $region87: #{segmenter_vit_forward.32} parent=85 // pred_check
              _
            $region88: #{segmenter_vit_forward.32} parent=85 // pred_check_branch
              %659 = sbr.rel (0) target = $region90
            $region89: #{segmenter_vit_forward.32} parent=85 // pred_region
              // Predicated region
              $region102: #{segmenter_vit_forward.32} parent=89 // pred_check
                _
              $region103: #{segmenter_vit_forward.32} parent=89 // pred_check_branch
                %680 = sbr.rel (0) target = $region105
              $region104: #{segmenter_vit_forward.32} parent=89 // pred_region
                loop: start=0, step=1, limit=1
                $region106: #{segmenter_vit_forward.32} parent=104 // loop_pre_header
                  _
                $region107: #{segmenter_vit_forward.32} parent=104 // loop_header
                  %s682 = sphi 0, %s686
                  %p683 = scmp.ge.s32.totalorder %s682, 1
                  %s687 = sphi %s646, %s646
                  %s688 = sphi %s655, %s655
                $region108: #{segmenter_vit_forward.32} parent=104 // loop_header_branch
                  %685 = sbr.rel (%p683) target = $region112
                $region109: #{segmenter_vit_forward.32} parent=104 // loop_body
                  %v689 = vld [vmem:[%s687] sm:$0xff]
                  %690 = vst [vmem:[%s688] sm:$0xff] %v689
                  %v691 = vld [vmem:[%s687 + $0x8] sm:$0xff]
                  %692 = vst [vmem:[%s688 + $0x10] sm:$0xff] %v691
                  %v693 = vld [vmem:[%s687 + $0x10] sm:$0xff]
                  %694 = vst [vmem:[%s688 + $0x20] sm:$0xff] %v693
                  %v695 = vld [vmem:[%s687 + $0x18] sm:$0xff]
                  %696 = vst [vmem:[%s688 + $0x30] sm:$0xff] %v695
                $region110: #{segmenter_vit_forward.32} parent=104 // loop_footer
                  %s686 = sadd.s32 1, %s682
                $region111: #{segmenter_vit_forward.32} parent=104 // loop_footer_branch
                  %681 = sbr.rel target = $region107
                $region112: #{segmenter_vit_forward.32} parent=104 // loop_exit
                  _
              $region105: #{segmenter_vit_forward.32} parent=89 // pred_fallthru
                _
              // Predicated region
              $region113: #{segmenter_vit_forward.32} parent=89 // pred_check
                _
              $region114: #{segmenter_vit_forward.32} parent=89 // pred_check_branch
                %698 = sbr.rel target = $region116
              $region115: #{segmenter_vit_forward.32} parent=89 // pred_region
                _
              $region116: #{segmenter_vit_forward.32} parent=89 // pred_fallthru
                _
            $region90: #{segmenter_vit_forward.32} parent=85 // pred_fallthru
              _
            // Predicated region
            $region91: #{segmenter_vit_forward.32} parent=85 // pred_check
              _
            $region92: #{segmenter_vit_forward.32} parent=85 // pred_check_branch
              %661 = sbr.rel target = $region94
            $region93: #{segmenter_vit_forward.32} parent=85 // pred_region
              loop: start=0, step=1, limit=1
              $region95: #{segmenter_vit_forward.32} parent=93 // loop_pre_header
                _
              $region96: #{segmenter_vit_forward.32} parent=93 // loop_header
                %s664 = sphi 0, %s668
                %p665 = scmp.ge.s32.totalorder %s664, 1
                %s669 = sphi %s646, %s646
                %s670 = sphi %s655, %s655
              $region97: #{segmenter_vit_forward.32} parent=93 // loop_header_branch
                %667 = sbr.rel (%p665) target = $region101
              $region98: #{segmenter_vit_forward.32} parent=93 // loop_body
                %v671 = vld [vmem:[%s669] sm:$0xff]
                %672 = vst [vmem:[%s670] sm:$0xff] %v671
                %v673 = vld [vmem:[%s669 + $0x8] sm:$0xff]
                %674 = vst [vmem:[%s670 + $0x10] sm:$0xff] %v673
                %v675 = vld [vmem:[%s669 + $0x10] sm:$0xff]
                %676 = vst [vmem:[%s670 + $0x20] sm:$0xff] %v675
                %v677 = vld [vmem:[%s669 + $0x18] sm:$0xff]
                %678 = vst [vmem:[%s670 + $0x30] sm:$0xff] %v677
              $region99: #{segmenter_vit_forward.32} parent=93 // loop_footer
                %s668 = sadd.s32 1, %s664
              $region100: #{segmenter_vit_forward.32} parent=93 // loop_footer_branch
                %663 = sbr.rel target = $region96
              $region101: #{segmenter_vit_forward.32} parent=93 // loop_exit
                _
            $region94: #{segmenter_vit_forward.32} parent=85 // pred_fallthru
              _
          $region86: #{segmenter_vit_forward.32} parent=81 // pred_fallthru
            _
          %699 = vnop
        $region82: #{segmenter_vit_forward.32} parent=65 // pred_fallthru
          _
      $region66: #{segmenter_vit_forward.32} parent=5 // pred_fallthru
        _
      %p700 = scmp.le.s32.totalorder 2, %s9
      // Predicated region
      $region117: #{segmenter_vit_forward.32} parent=5 // pred_check
        %p701 = pneg %p700
      $region118: #{segmenter_vit_forward.32} parent=5 // pred_check_branch
        %703 = sbr.rel (%p701) target = $region120
      $region119: #{segmenter_vit_forward.32} parent=5 // pred_region
        %s704 = ssub.s32 %s9, 2
        // Predicated region
        $region121: #{segmenter_vit_forward.32} parent=119 // pred_check
          %p705 = pneg %p141
        $region122: #{segmenter_vit_forward.32} parent=119 // pred_check_branch
          %707 = sbr.rel (%p705) target = $region124
        $region123: #{segmenter_vit_forward.32} parent=119 // pred_region
          %s708 = sand.u32 %s126, 1
          %s709 = sand.u32 %s126, 1
          %s710 = smul.addr %s709, 32
          %s711 = scalar_lea.vmem [#allocation4], %s710
        $region124: #{segmenter_vit_forward.32} parent=119 // pred_fallthru
          _
      $region120: #{segmenter_vit_forward.32} parent=5 // pred_fallthru
        _
    $region6: #{segmenter_vit_forward.32} parent=1 // loop_footer
      %s13 = sadd.s32 1, %s9
    $region7: #{segmenter_vit_forward.32} parent=1 // loop_footer_branch
      %8 = sbr.rel target = $region3
    $region8: #{segmenter_vit_forward.32} parent=1 // loop_exit
      _

// kernel: segmenter_vit_forward.34
$region0: #{segmenter_vit_forward.34}
  #allocation0 [shape = 'u32[]', space=smem, size = 0x4, offset = 0x4, fixed_abs, tag = 'smem constant byte address 0x4 - core index']
  #allocation1 [shape = 'u32[144,128]{1,0:T(1,128)}', space=vmem, size = 0x12000, scoped, tag = 'internal scratch']
  %s0 = inlined_call_operand.vmem [shape: bf16[32,128], index: 0, kind: input, shape index: {}]
  %s1 = inlined_call_operand.vmem [shape: bf16[32,128], index: 1, kind: input, shape index: {}]
  %s2 = inlined_call_operand.vmem [shape: f32[1,128], index: 2, kind: input, shape index: {}]
  %s3 = inlined_call_operand.vmem [shape: f32[1,128], index: 3, kind: input, shape index: {}]
  %s4 = inlined_call_operand.vmem [shape: bf16[32,128], index: 4, kind: input, shape index: {}]
  %s5 = inlined_call_operand.vmem [shape: bf16[32,128], index: 5, kind: output, shape index: {}]
  %s6 = sld [smem:[#allocation0]]
  $region30: #{segmenter_vit_forward.34} parent=0
    _
  %s8 = ssub.s32 1, %s6
  %s9 = scalar_select 0, %s8, %s6
  // Predicated region
  $region2: #{segmenter_vit_forward.34} parent=0 // pred_check
    _
  $region3: #{segmenter_vit_forward.34} parent=0 // pred_check_branch
    %11 = sbr.rel (0) target = $region5
  $region4: #{segmenter_vit_forward.34} parent=0 // pred_region
    _
  $region5: #{segmenter_vit_forward.34} parent=0 // pred_fallthru
    _
  // Predicated region
  $region6: #{segmenter_vit_forward.34} parent=0 // pred_check
    _
  $region7: #{segmenter_vit_forward.34} parent=0 // pred_check_branch
    %13 = sbr.rel (0) target = $region9
  $region8: #{segmenter_vit_forward.34} parent=0 // pred_region
    _
  $region9: #{segmenter_vit_forward.34} parent=0 // pred_fallthru
    _
  // Predicated region
  $region10: #{segmenter_vit_forward.34} parent=0 // pred_check
    _
  $region11: #{segmenter_vit_forward.34} parent=0 // pred_check_branch
    %15 = sbr.rel (0) target = $region13
  $region12: #{segmenter_vit_forward.34} parent=0 // pred_region
    _
  $region13: #{segmenter_vit_forward.34} parent=0 // pred_fallthru
    _
  // Predicated region
  $region14: #{segmenter_vit_forward.34} parent=0 // pred_check
    _
  $region15: #{segmenter_vit_forward.34} parent=0 // pred_check_branch
    %17 = sbr.rel (0) target = $region17
  $region16: #{segmenter_vit_forward.34} parent=0 // pred_region
    _
  $region17: #{segmenter_vit_forward.34} parent=0 // pred_fallthru
    _
  // Predicated region
  $region18: #{segmenter_vit_forward.34} parent=0 // pred_check
    _
  $region19: #{segmenter_vit_forward.34} parent=0 // pred_check_branch
    %19 = sbr.rel (0) target = $region21
  $region20: #{segmenter_vit_forward.34} parent=0 // pred_region
    _
  $region21: #{segmenter_vit_forward.34} parent=0 // pred_fallthru
    _
  %v20 = vld [vmem:[%s0] sm:$0xf]
  %v21 = vld [vmem:[%s0 + $0x4] sm:$0xf]
  %v22 = vld [vmem:[%s0 + $0x8] sm:$0xf]
  %v23 = vld [vmem:[%s0 + $0xc] sm:$0xf]
  %v24 = vunpack.c.l.bf16 %v20
  %v25 = vunpack.c.l.bf16 %v21
  %v26 = vunpack.c.l.bf16 %v22
  %v27 = vunpack.c.l.bf16 %v23
  %v28 = vld [vmem:[%s1] sm:$0xf]
  %v29 = vld [vmem:[%s1 + $0x4] sm:$0xf]
  %v30 = vld [vmem:[%s1 + $0x8] sm:$0xf]
  %v31 = vld [vmem:[%s1 + $0xc] sm:$0xf]
  %v32 = vunpack.c.l.bf16 %v28
  %v33 = vunpack.c.l.bf16 %v29
  %v34 = vunpack.c.l.bf16 %v30
  %v35 = vunpack.c.l.bf16 %v31
  %v36 = vadd.f32 %v24, %v32
  %v37 = vadd.f32 %v25, %v33
  %v38 = vadd.f32 %v26, %v34
  %v39 = vadd.f32 %v27, %v35
  %40 = vadd.xlane.f32.xlu0 %v36
  %v41 = vpop.xlane.xlu0 %40
  %42 = vadd.xlane.f32.xlu0 %v37
  %v43 = vpop.xlane.xlu0 %42
  %44 = vadd.xlane.f32.xlu0 %v38
  %v45 = vpop.xlane.xlu0 %44
  %46 = vadd.xlane.f32.xlu0 %v39
  %v47 = vpop.xlane.xlu0 %46
  %v48 = vrcp.pop 128.0
  %v49 = vmul.f32 %v41, %v48
  %v50 = vmul.f32 %v43, %v48
  %v51 = vmul.f32 %v45, %v48
  %v52 = vmul.f32 %v47, %v48
  %v53 = vsub.f32 %v36, %v49
  %v54 = vsub.f32 %v37, %v50
  %v55 = vsub.f32 %v38, %v51
  %v56 = vsub.f32 %v39, %v52
  %v57 = vmul.f32 %v53, %v53
  %v58 = vmul.f32 %v54, %v54
  %v59 = vmul.f32 %v55, %v55
  %v60 = vmul.f32 %v56, %v56
  %61 = vadd.xlane.f32.xlu0 %v57
  %v62 = vpop.xlane.xlu0 %61
  %63 = vadd.xlane.f32.xlu0 %v58
  %v64 = vpop.xlane.xlu0 %63
  %65 = vadd.xlane.f32.xlu0 %v59
  %v66 = vpop.xlane.xlu0 %65
  %67 = vadd.xlane.f32.xlu0 %v60
  %v68 = vpop.xlane.xlu0 %67
  %v69 = vmul.f32 %v62, %v48
  %v70 = vmul.f32 %v64, %v48
  %v71 = vmul.f32 %v66, %v48
  %v72 = vmul.f32 %v68, %v48
  %v73 = vadd.f32 %v69, 1e-05
  %v74 = vadd.f32 %v70, 1e-05
  %v75 = vadd.f32 %v71, 1e-05
  %v76 = vadd.f32 %v72, 1e-05
  %v77 = vrsqrt.pop %v73
  %v78 = vrsqrt.pop %v74
  %v79 = vrsqrt.pop %v75
  %v80 = vrsqrt.pop %v76
  %v81 = vmul.f32 %v53, %v77
  %v82 = vmul.f32 %v54, %v78
  %v83 = vmul.f32 %v55, %v79
  %v84 = vmul.f32 %v56, %v80
  %v85 = vld [vmem:[%s2] sm:$0x1]
  %v87 = vlaneseq
  %v88 = vshrl.u32 %v87, 7
  %v89 = vsub.s32 0, %v88
  %v90 = vrot.slane %v85, %v89
  %v92 = vmul.f32 %v81, %v90
  %v93 = vmul.f32 %v82, %v90
  %v94 = vmul.f32 %v83, %v90
  %v95 = vmul.f32 %v84, %v90
  %v96 = vld [vmem:[%s3] sm:$0x1]
  %v98 = vlaneseq
  %v99 = vshrl.u32 %v98, 7
  %v100 = vsub.s32 0, %v99
  %v101 = vrot.slane %v96, %v100
  %v103 = vadd.f32 %v92, %v101
  %v104 = vadd.f32 %v93, %v101
  %v105 = vadd.f32 %v94, %v101
  %v106 = vadd.f32 %v95, %v101
  %v107 = vld [vmem:[%s4] sm:$0xf]
  %v108 = vld [vmem:[%s4 + $0x4] sm:$0xf]
  %v109 = vld [vmem:[%s4 + $0x8] sm:$0xf]
  %v110 = vld [vmem:[%s4 + $0xc] sm:$0xf]
  %v111 = vunpack.c.l.bf16 %v107
  %v112 = vunpack.c.l.bf16 %v108
  %v113 = vunpack.c.l.bf16 %v109
  %v114 = vunpack.c.l.bf16 %v110
  %v115 = vadd.f32 %v103, %v111
  %v116 = vadd.f32 %v104, %v112
  %v117 = vadd.f32 %v105, %v113
  %v118 = vadd.f32 %v106, %v114
  %v119 = vpack.c.bf16 %v116, %v115
  %v120 = vpack.c.bf16 %v118, %v117
  %v123 = vunpack.c.l.b16 %v119
  %v124 = vunpack.c.h.b16 %v119
  %v125 = vunpack.c.l.b16 %v120
  %v126 = vunpack.c.h.b16 %v120
  %v127 = vpack.c.b16 %v123, %v123
  %v128 = vpack.c.b16 %v124, %v124
  %v129 = vpack.c.b16 %v125, %v125
  %v130 = vpack.c.b16 %v126, %v126
  %135 = vst [vmem:[%s5] sm:$0xf] %v127
  %136 = vst [vmem:[%s5 + $0x4] sm:$0xf] %v128
  %137 = vst [vmem:[%s5 + $0x8] sm:$0xf] %v129
  %138 = vst [vmem:[%s5 + $0xc] sm:$0xf] %v130
  // Predicated region
  $region22: #{segmenter_vit_forward.34} parent=0 // pred_check
    _
  $region23: #{segmenter_vit_forward.34} parent=0 // pred_check_branch
    %140 = sbr.rel (0) target = $region25
  $region24: #{segmenter_vit_forward.34} parent=0 // pred_region
    _
  $region25: #{segmenter_vit_forward.34} parent=0 // pred_fallthru
    _
  // Predicated region
  $region26: #{segmenter_vit_forward.34} parent=0 // pred_check
    _
  $region27: #{segmenter_vit_forward.34} parent=0 // pred_check_branch
    %142 = sbr.rel (0) target = $region29
  $region28: #{segmenter_vit_forward.34} parent=0 // pred_region
    _
  $region29: #{segmenter_vit_forward.34} parent=0 // pred_fallthru
    _

// kernel: segmenter_vit_forward.41
$region0: #{segmenter_vit_forward.41}
  #allocation0 [shape = 'u32[]', space=smem, size = 0x4, offset = 0x4, fixed_abs, tag = 'smem constant byte address 0x4 - core index']
  #allocation1 [shape = 'u32[144,128]{1,0:T(1,128)}', space=vmem, size = 0x12000, scoped, tag = 'internal scratch']
  %s0 = inlined_call_operand.vmem [shape: bf16[32,128], index: 0, kind: input, shape index: {}]
  %s1 = inlined_call_operand.vmem [shape: bf16[32,128], index: 1, kind: input, shape index: {}]
  %s2 = inlined_call_operand.vmem [shape: f32[1,128], index: 2, kind: input, shape index: {}]
  %s3 = inlined_call_operand.vmem [shape: f32[1,128], index: 3, kind: input, shape index: {}]
  %s4 = inlined_call_operand.vmem [shape: bf16[32,128], index: 4, kind: input, shape index: {}]
  %s5 = inlined_call_operand.vmem [shape: bf16[32,128], index: 5, kind: output, shape index: {}]
  %s6 = sld [smem:[#allocation0]]
  $region30: #{segmenter_vit_forward.41} parent=0
    _
  %s8 = ssub.s32 1, %s6
  %s9 = scalar_select 0, %s8, %s6
  // Predicated region
  $region2: #{segmenter_vit_forward.41} parent=0 // pred_check
    _
  $region3: #{segmenter_vit_forward.41} parent=0 // pred_check_branch
    %11 = sbr.rel (0) target = $region5
  $region4: #{segmenter_vit_forward.41} parent=0 // pred_region
    _
  $region5: #{segmenter_vit_forward.41} parent=0 // pred_fallthru
    _
  // Predicated region
  $region6: #{segmenter_vit_forward.41} parent=0 // pred_check
    _
  $region7: #{segmenter_vit_forward.41} parent=0 // pred_check_branch
    %13 = sbr.rel (0) target = $region9
  $region8: #{segmenter_vit_forward.41} parent=0 // pred_region
    _
  $region9: #{segmenter_vit_forward.41} parent=0 // pred_fallthru
    _
  // Predicated region
  $region10: #{segmenter_vit_forward.41} parent=0 // pred_check
    _
  $region11: #{segmenter_vit_forward.41} parent=0 // pred_check_branch
    %15 = sbr.rel (0) target = $region13
  $region12: #{segmenter_vit_forward.41} parent=0 // pred_region
    _
  $region13: #{segmenter_vit_forward.41} parent=0 // pred_fallthru
    _
  // Predicated region
  $region14: #{segmenter_vit_forward.41} parent=0 // pred_check
    _
  $region15: #{segmenter_vit_forward.41} parent=0 // pred_check_branch
    %17 = sbr.rel (0) target = $region17
  $region16: #{segmenter_vit_forward.41} parent=0 // pred_region
    _
  $region17: #{segmenter_vit_forward.41} parent=0 // pred_fallthru
    _
  // Predicated region
  $region18: #{segmenter_vit_forward.41} parent=0 // pred_check
    _
  $region19: #{segmenter_vit_forward.41} parent=0 // pred_check_branch
    %19 = sbr.rel (0) target = $region21
  $region20: #{segmenter_vit_forward.41} parent=0 // pred_region
    _
  $region21: #{segmenter_vit_forward.41} parent=0 // pred_fallthru
    _
  %v20 = vld [vmem:[%s0] sm:$0xf]
  %v21 = vld [vmem:[%s0 + $0x4] sm:$0xf]
  %v22 = vld [vmem:[%s0 + $0x8] sm:$0xf]
  %v23 = vld [vmem:[%s0 + $0xc] sm:$0xf]
  %v24 = vunpack.c.l.bf16 %v20
  %v25 = vunpack.c.l.bf16 %v21
  %v26 = vunpack.c.l.bf16 %v22
  %v27 = vunpack.c.l.bf16 %v23
  %v28 = vld [vmem:[%s1] sm:$0xf]
  %v29 = vld [vmem:[%s1 + $0x4] sm:$0xf]
  %v30 = vld [vmem:[%s1 + $0x8] sm:$0xf]
  %v31 = vld [vmem:[%s1 + $0xc] sm:$0xf]
  %v32 = vunpack.c.l.bf16 %v28
  %v33 = vunpack.c.l.bf16 %v29
  %v34 = vunpack.c.l.bf16 %v30
  %v35 = vunpack.c.l.bf16 %v31
  %v36 = vadd.f32 %v24, %v32
  %v37 = vadd.f32 %v25, %v33
  %v38 = vadd.f32 %v26, %v34
  %v39 = vadd.f32 %v27, %v35
  %40 = vadd.xlane.f32.xlu0 %v36
  %v41 = vpop.xlane.xlu0 %40
  %42 = vadd.xlane.f32.xlu0 %v37
  %v43 = vpop.xlane.xlu0 %42
  %44 = vadd.xlane.f32.xlu0 %v38
  %v45 = vpop.xlane.xlu0 %44
  %46 = vadd.xlane.f32.xlu0 %v39
  %v47 = vpop.xlane.xlu0 %46
  %v48 = vrcp.pop 128.0
  %v49 = vmul.f32 %v41, %v48
  %v50 = vmul.f32 %v43, %v48
  %v51 = vmul.f32 %v45, %v48
  %v52 = vmul.f32 %v47, %v48
  %v53 = vsub.f32 %v36, %v49
  %v54 = vsub.f32 %v37, %v50
  %v55 = vsub.f32 %v38, %v51
  %v56 = vsub.f32 %v39, %v52
  %v57 = vmul.f32 %v53, %v53
  %v58 = vmul.f32 %v54, %v54
  %v59 = vmul.f32 %v55, %v55
  %v60 = vmul.f32 %v56, %v56
  %61 = vadd.xlane.f32.xlu0 %v57
  %v62 = vpop.xlane.xlu0 %61
  %63 = vadd.xlane.f32.xlu0 %v58
  %v64 = vpop.xlane.xlu0 %63
  %65 = vadd.xlane.f32.xlu0 %v59
  %v66 = vpop.xlane.xlu0 %65
  %67 = vadd.xlane.f32.xlu0 %v60
  %v68 = vpop.xlane.xlu0 %67
  %v69 = vmul.f32 %v62, %v48
  %v70 = vmul.f32 %v64, %v48
  %v71 = vmul.f32 %v66, %v48
  %v72 = vmul.f32 %v68, %v48
  %v73 = vadd.f32 %v69, 1e-05
  %v74 = vadd.f32 %v70, 1e-05
  %v75 = vadd.f32 %v71, 1e-05
  %v76 = vadd.f32 %v72, 1e-05
  %v77 = vrsqrt.pop %v73
  %v78 = vrsqrt.pop %v74
  %v79 = vrsqrt.pop %v75
  %v80 = vrsqrt.pop %v76
  %v81 = vmul.f32 %v53, %v77
  %v82 = vmul.f32 %v54, %v78
  %v83 = vmul.f32 %v55, %v79
  %v84 = vmul.f32 %v56, %v80
  %v85 = vld [vmem:[%s2] sm:$0x1]
  %v87 = vlaneseq
  %v88 = vshrl.u32 %v87, 7
  %v89 = vsub.s32 0, %v88
  %v90 = vrot.slane %v85, %v89
  %v92 = vmul.f32 %v81, %v90
  %v93 = vmul.f32 %v82, %v90
  %v94 = vmul.f32 %v83, %v90
  %v95 = vmul.f32 %v84, %v90
  %v96 = vld [vmem:[%s3] sm:$0x1]
  %v98 = vlaneseq
  %v99 = vshrl.u32 %v98, 7
  %v100 = vsub.s32 0, %v99
  %v101 = vrot.slane %v96, %v100
  %v103 = vadd.f32 %v92, %v101
  %v104 = vadd.f32 %v93, %v101
  %v105 = vadd.f32 %v94, %v101
  %v106 = vadd.f32 %v95, %v101
  %v107 = vmul.f32 %v103, 0.5
  %v108 = vmul.f32 %v104, 0.5
  %v109 = vmul.f32 %v105, 0.5
  %v110 = vmul.f32 %v106, 0.5
  %v111 = vld [vmem:[%s4] sm:$0xf]
  %v112 = vld [vmem:[%s4 + $0x4] sm:$0xf]
  %v113 = vld [vmem:[%s4 + $0x8] sm:$0xf]
  %v114 = vld [vmem:[%s4 + $0xc] sm:$0xf]
  %v115 = vunpack.c.l.bf16 %v111
  %v116 = vunpack.c.l.bf16 %v112
  %v117 = vunpack.c.l.bf16 %v113
  %v118 = vunpack.c.l.bf16 %v114
  %v119 = vadd.f32 %v107, %v115
  %v120 = vadd.f32 %v108, %v116
  %v121 = vadd.f32 %v109, %v117
  %v122 = vadd.f32 %v110, %v118
  %v123 = vpack.c.bf16 %v120, %v119
  %v124 = vpack.c.bf16 %v122, %v121
  %v127 = vunpack.c.l.b16 %v123
  %v128 = vunpack.c.h.b16 %v123
  %v129 = vunpack.c.l.b16 %v124
  %v130 = vunpack.c.h.b16 %v124
  %v131 = vpack.c.b16 %v127, %v127
  %v132 = vpack.c.b16 %v128, %v128
  %v133 = vpack.c.b16 %v129, %v129
  %v134 = vpack.c.b16 %v130, %v130
  %139 = vst [vmem:[%s5] sm:$0xf] %v131
  %140 = vst [vmem:[%s5 + $0x4] sm:$0xf] %v132
  %141 = vst [vmem:[%s5 + $0x8] sm:$0xf] %v133
  %142 = vst [vmem:[%s5 + $0xc] sm:$0xf] %v134
  // Predicated region
  $region22: #{segmenter_vit_forward.41} parent=0 // pred_check
    _
  $region23: #{segmenter_vit_forward.41} parent=0 // pred_check_branch
    %144 = sbr.rel (0) target = $region25
  $region24: #{segmenter_vit_forward.41} parent=0 // pred_region
    _
  $region25: #{segmenter_vit_forward.41} parent=0 // pred_fallthru
    _
  // Predicated region
  $region26: #{segmenter_vit_forward.41} parent=0 // pred_check
    _
  $region27: #{segmenter_vit_forward.41} parent=0 // pred_check_branch
    %146 = sbr.rel (0) target = $region29
  $region28: #{segmenter_vit_forward.41} parent=0 // pred_region
    _
  $region29: #{segmenter_vit_forward.41} parent=0 // pred_fallthru
    _

// kernel: segmenter_vit_forward.33
$region0: #{segmenter_vit_forward.33}
  #allocation0 [shape = 'u32[]', space=smem, size = 0x4, offset = 0x4, fixed_abs, tag = 'smem constant byte address 0x4 - core index']
  #allocation1 [shape = 'u32[144,128]{1,0:T(1,128)}', space=vmem, size = 0x12000, scoped, tag = 'internal scratch']
  #allocation2 [shape = 'f32[32,128]{1,0:T(8,128)}', space=vmem, size = 0x4000, scoped, tag = 'scratch operand']
  %s0 = inlined_call_operand.vmem [shape: bf16[32,512], index: 0, kind: input, shape index: {}]
  %s1 = inlined_call_operand.vmem [shape: bf16[512,128], index: 1, kind: input, shape index: {}]
  %s2 = inlined_call_operand.vmem [shape: f32[1,128], index: 2, kind: input, shape index: {}]
  %s3 = inlined_call_operand.vmem [shape: bf16[32,128], index: 3, kind: output, shape index: {}]
  %s4 = sld [smem:[#allocation0]]
  $region30: #{segmenter_vit_forward.33} parent=0
    _
  %s6 = ssub.s32 1, %s4
  %s7 = scalar_select 0, %s6, %s4
  // Predicated region
  $region2: #{segmenter_vit_forward.33} parent=0 // pred_check
    _
  $region3: #{segmenter_vit_forward.33} parent=0 // pred_check_branch
    %9 = sbr.rel (0) target = $region5
  $region4: #{segmenter_vit_forward.33} parent=0 // pred_region
    _
  $region5: #{segmenter_vit_forward.33} parent=0 // pred_fallthru
    _
  // Predicated region
  $region6: #{segmenter_vit_forward.33} parent=0 // pred_check
    _
  $region7: #{segmenter_vit_forward.33} parent=0 // pred_check_branch
    %11 = sbr.rel (0) target = $region9
  $region8: #{segmenter_vit_forward.33} parent=0 // pred_region
    _
  $region9: #{segmenter_vit_forward.33} parent=0 // pred_fallthru
    _
  // Predicated region
  $region10: #{segmenter_vit_forward.33} parent=0 // pred_check
    _
  $region11: #{segmenter_vit_forward.33} parent=0 // pred_check_branch
    %13 = sbr.rel (0) target = $region13
  $region12: #{segmenter_vit_forward.33} parent=0 // pred_region
    _
  $region13: #{segmenter_vit_forward.33} parent=0 // pred_fallthru
    _
  %p15 = scmp.eq.s32.totalorder 0, 0
  // Predicated region
  $region14: #{segmenter_vit_forward.33} parent=0 // pred_check
    %p16 = pneg %p15
  $region15: #{segmenter_vit_forward.33} parent=0 // pred_check_branch
    %18 = sbr.rel (%p16) target = $region17
  $region16: #{segmenter_vit_forward.33} parent=0 // pred_region
    %19 = vst [vmem:[#allocation2] sm:$0xff] 0.0
    %20 = vst [vmem:[#allocation2 + $0x8] sm:$0xff] 0.0
    %21 = vst [vmem:[#allocation2 + $0x10] sm:$0xff] 0.0
    %22 = vst [vmem:[#allocation2 + $0x18] sm:$0xff] 0.0
  $region17: #{segmenter_vit_forward.33} parent=0 // pred_fallthru
    _
  %v23 = vld [vmem:[#allocation2] sm:$0xff]
  %v24 = vld [vmem:[#allocation2 + $0x8] sm:$0xff]
  %v25 = vld [vmem:[#allocation2 + $0x10] sm:$0xff]
  %v26 = vld [vmem:[#allocation2 + $0x18] sm:$0xff]
  %v27 = vld [vmem:[%s0] sm:$0xff]
  %v28 = vld [vmem:[%s0 + $0x8] sm:$0xff]
  %v29 = vld [vmem:[%s0 + $0x10] sm:$0xff]
  %v30 = vld [vmem:[%s0 + $0x18] sm:$0xff]
  %v31 = vld [vmem:[%s0 + $0x20] sm:$0xff]
  %v32 = vld [vmem:[%s0 + $0x28] sm:$0xff]
  %v33 = vld [vmem:[%s0 + $0x30] sm:$0xff]
  %v34 = vld [vmem:[%s0 + $0x38] sm:$0xff]
  %v35 = vld [vmem:[%s1] sm:$0xf]
  %v36 = vld [vmem:[%s1 + $0x4] sm:$0xf]
  %v37 = vld [vmem:[%s1 + $0x8] sm:$0xf]
  %v38 = vld [vmem:[%s1 + $0xc] sm:$0xf]
  %v39 = vld [vmem:[%s1 + $0x10] sm:$0xf]
  %v40 = vld [vmem:[%s1 + $0x14] sm:$0xf]
  %v41 = vld [vmem:[%s1 + $0x18] sm:$0xf]
  %v42 = vld [vmem:[%s1 + $0x1c] sm:$0xf]
  %v43 = vld [vmem:[%s1 + $0x20] sm:$0xf]
  %v44 = vld [vmem:[%s1 + $0x24] sm:$0xf]
  %v45 = vld [vmem:[%s1 + $0x28] sm:$0xf]
  %v46 = vld [vmem:[%s1 + $0x2c] sm:$0xf]
  %v47 = vld [vmem:[%s1 + $0x30] sm:$0xf]
  %v48 = vld [vmem:[%s1 + $0x34] sm:$0xf]
  %v49 = vld [vmem:[%s1 + $0x38] sm:$0xf]
  %v50 = vld [vmem:[%s1 + $0x3c] sm:$0xf]
  %v51 = vld [vmem:[%s1 + $0x40] sm:$0xf]
  %v52 = vld [vmem:[%s1 + $0x44] sm:$0xf]
  %v53 = vld [vmem:[%s1 + $0x48] sm:$0xf]
  %v54 = vld [vmem:[%s1 + $0x4c] sm:$0xf]
  %v55 = vld [vmem:[%s1 + $0x50] sm:$0xf]
  %v56 = vld [vmem:[%s1 + $0x54] sm:$0xf]
  %v57 = vld [vmem:[%s1 + $0x58] sm:$0xf]
  %v58 = vld [vmem:[%s1 + $0x5c] sm:$0xf]
  %v59 = vld [vmem:[%s1 + $0x60] sm:$0xf]
  %v60 = vld [vmem:[%s1 + $0x64] sm:$0xf]
  %v61 = vld [vmem:[%s1 + $0x68] sm:$0xf]
  %v62 = vld [vmem:[%s1 + $0x6c] sm:$0xf]
  %v63 = vld [vmem:[%s1 + $0x70] sm:$0xf]
  %v64 = vld [vmem:[%s1 + $0x74] sm:$0xf]
  %v65 = vld [vmem:[%s1 + $0x78] sm:$0xf]
  %v66 = vld [vmem:[%s1 + $0x7c] sm:$0xf]
  %v67 = vld [vmem:[%s1 + $0x80] sm:$0xf]
  %v68 = vld [vmem:[%s1 + $0x84] sm:$0xf]
  %v69 = vld [vmem:[%s1 + $0x88] sm:$0xf]
  %v70 = vld [vmem:[%s1 + $0x8c] sm:$0xf]
  %v71 = vld [vmem:[%s1 + $0x90] sm:$0xf]
  %v72 = vld [vmem:[%s1 + $0x94] sm:$0xf]
  %v73 = vld [vmem:[%s1 + $0x98] sm:$0xf]
  %v74 = vld [vmem:[%s1 + $0x9c] sm:$0xf]
  %v75 = vld [vmem:[%s1 + $0xa0] sm:$0xf]
  %v76 = vld [vmem:[%s1 + $0xa4] sm:$0xf]
  %v77 = vld [vmem:[%s1 + $0xa8] sm:$0xf]
  %v78 = vld [vmem:[%s1 + $0xac] sm:$0xf]
  %v79 = vld [vmem:[%s1 + $0xb0] sm:$0xf]
  %v80 = vld [vmem:[%s1 + $0xb4] sm:$0xf]
  %v81 = vld [vmem:[%s1 + $0xb8] sm:$0xf]
  %v82 = vld [vmem:[%s1 + $0xbc] sm:$0xf]
  %v83 = vld [vmem:[%s1 + $0xc0] sm:$0xf]
  %v84 = vld [vmem:[%s1 + $0xc4] sm:$0xf]
  %v85 = vld [vmem:[%s1 + $0xc8] sm:$0xf]
  %v86 = vld [vmem:[%s1 + $0xcc] sm:$0xf]
  %v87 = vld [vmem:[%s1 + $0xd0] sm:$0xf]
  %v88 = vld [vmem:[%s1 + $0xd4] sm:$0xf]
  %v89 = vld [vmem:[%s1 + $0xd8] sm:$0xf]
  %v90 = vld [vmem:[%s1 + $0xdc] sm:$0xf]
  %v91 = vld [vmem:[%s1 + $0xe0] sm:$0xf]
  %v92 = vld [vmem:[%s1 + $0xe4] sm:$0xf]
  %v93 = vld [vmem:[%s1 + $0xe8] sm:$0xf]
  %v94 = vld [vmem:[%s1 + $0xec] sm:$0xf]
  %v95 = vld [vmem:[%s1 + $0xf0] sm:$0xf]
  %v96 = vld [vmem:[%s1 + $0xf4] sm:$0xf]
  %v97 = vld [vmem:[%s1 + $0xf8] sm:$0xf]
  %v98 = vld [vmem:[%s1 + $0xfc] sm:$0xf]
  %v107 = vunpack.c.l.b16 %v27
  %v108 = vunpack.c.h.b16 %v27
  %v109 = vunpack.c.l.b16 %v28
  %v110 = vunpack.c.h.b16 %v28
  %v111 = vunpack.c.l.b16 %v29
  %v112 = vunpack.c.h.b16 %v29
  %v113 = vunpack.c.l.b16 %v30
  %v114 = vunpack.c.h.b16 %v30
  %v115 = vunpack.c.l.b16 %v31
  %v116 = vunpack.c.h.b16 %v31
  %v117 = vunpack.c.l.b16 %v32
  %v118 = vunpack.c.h.b16 %v32
  %v119 = vunpack.c.l.b16 %v33
  %v120 = vunpack.c.h.b16 %v33
  %v121 = vunpack.c.l.b16 %v34
  %v122 = vunpack.c.h.b16 %v34
  %v123 = vpack.c.b16 %v111, %v107
  %v124 = vpack.c.b16 %v112, %v108
  %v125 = vpack.c.b16 %v113, %v109
  %v126 = vpack.c.b16 %v114, %v110
  %v127 = vpack.c.b16 %v119, %v115
  %v128 = vpack.c.b16 %v120, %v116
  %v129 = vpack.c.b16 %v121, %v117
  %v130 = vpack.c.b16 %v122, %v118
  %v203 = vunpack.c.l.b16 %v35
  %v204 = vunpack.c.l.b16 %v36
  %v205 = vunpack.c.l.b16 %v37
  %v206 = vunpack.c.l.b16 %v38
  %v207 = vunpack.c.l.b16 %v39
  %v208 = vunpack.c.l.b16 %v40
  %v209 = vunpack.c.l.b16 %v41
  %v210 = vunpack.c.l.b16 %v42
  %v211 = vunpack.c.l.b16 %v43
  %v212 = vunpack.c.l.b16 %v44
  %v213 = vunpack.c.l.b16 %v45
  %v214 = vunpack.c.l.b16 %v46
  %v215 = vunpack.c.l.b16 %v47
  %v216 = vunpack.c.l.b16 %v48
  %v217 = vunpack.c.l.b16 %v49
  %v218 = vunpack.c.l.b16 %v50
  %v219 = vunpack.c.l.b16 %v51
  %v220 = vunpack.c.l.b16 %v52
  %v221 = vunpack.c.l.b16 %v53
  %v222 = vunpack.c.l.b16 %v54
  %v223 = vunpack.c.l.b16 %v55
  %v224 = vunpack.c.l.b16 %v56
  %v225 = vunpack.c.l.b16 %v57
  %v226 = vunpack.c.l.b16 %v58
  %v227 = vunpack.c.l.b16 %v59
  %v228 = vunpack.c.l.b16 %v60
  %v229 = vunpack.c.l.b16 %v61
  %v230 = vunpack.c.l.b16 %v62
  %v231 = vunpack.c.l.b16 %v63
  %v232 = vunpack.c.l.b16 %v64
  %v233 = vunpack.c.l.b16 %v65
  %v234 = vunpack.c.l.b16 %v66
  %v235 = vunpack.c.l.b16 %v67
  %v236 = vunpack.c.l.b16 %v68
  %v237 = vunpack.c.l.b16 %v69
  %v238 = vunpack.c.l.b16 %v70
  %v239 = vunpack.c.l.b16 %v71
  %v240 = vunpack.c.l.b16 %v72
  %v241 = vunpack.c.l.b16 %v73
  %v242 = vunpack.c.l.b16 %v74
  %v243 = vunpack.c.l.b16 %v75
  %v244 = vunpack.c.l.b16 %v76
  %v245 = vunpack.c.l.b16 %v77
  %v246 = vunpack.c.l.b16 %v78
  %v247 = vunpack.c.l.b16 %v79
  %v248 = vunpack.c.l.b16 %v80
  %v249 = vunpack.c.l.b16 %v81
  %v250 = vunpack.c.l.b16 %v82
  %v251 = vunpack.c.l.b16 %v83
  %v252 = vunpack.c.l.b16 %v84
  %v253 = vunpack.c.l.b16 %v85
  %v254 = vunpack.c.l.b16 %v86
  %v255 = vunpack.c.l.b16 %v87
  %v256 = vunpack.c.l.b16 %v88
  %v257 = vunpack.c.l.b16 %v89
  %v258 = vunpack.c.l.b16 %v90
  %v259 = vunpack.c.l.b16 %v91
  %v260 = vunpack.c.l.b16 %v92
  %v261 = vunpack.c.l.b16 %v93
  %v262 = vunpack.c.l.b16 %v94
  %v263 = vunpack.c.l.b16 %v95
  %v264 = vunpack.c.l.b16 %v96
  %v265 = vunpack.c.l.b16 %v97
  %v266 = vunpack.c.l.b16 %v98
  %v267 = vpack.c.b16 %v204, %v203
  %v268 = vpack.c.b16 %v206, %v205
  %v269 = vpack.c.b16 %v208, %v207
  %v270 = vpack.c.b16 %v210, %v209
  %v271 = vpack.c.b16 %v212, %v211
  %v272 = vpack.c.b16 %v214, %v213
  %v273 = vpack.c.b16 %v216, %v215
  %v274 = vpack.c.b16 %v218, %v217
  %v275 = vpack.c.b16 %v220, %v219
  %v276 = vpack.c.b16 %v222, %v221
  %v277 = vpack.c.b16 %v224, %v223
  %v278 = vpack.c.b16 %v226, %v225
  %v279 = vpack.c.b16 %v228, %v227
  %v280 = vpack.c.b16 %v230, %v229
  %v281 = vpack.c.b16 %v232, %v231
  %v282 = vpack.c.b16 %v234, %v233
  %v283 = vpack.c.b16 %v236, %v235
  %v284 = vpack.c.b16 %v238, %v237
  %v285 = vpack.c.b16 %v240, %v239
  %v286 = vpack.c.b16 %v242, %v241
  %v287 = vpack.c.b16 %v244, %v243
  %v288 = vpack.c.b16 %v246, %v245
  %v289 = vpack.c.b16 %v248, %v247
  %v290 = vpack.c.b16 %v250, %v249
  %v291 = vpack.c.b16 %v252, %v251
  %v292 = vpack.c.b16 %v254, %v253
  %v293 = vpack.c.b16 %v256, %v255
  %v294 = vpack.c.b16 %v258, %v257
  %v295 = vpack.c.b16 %v260, %v259
  %v296 = vpack.c.b16 %v262, %v261
  %v297 = vpack.c.b16 %v264, %v263
  %v298 = vpack.c.b16 %v266, %v265
  %331 = vmatprep.subr.bf16.mxu0 0
  %332 = vmatpush1.bf16.msra.mxu0 %v267
  %333 = vmatprep.subr.bf16.mxu0 0
  %334 = vmatpush1.bf16.msra.mxu0 %v268
  %335 = vmatprep.subr.bf16.mxu0 0
  %336 = vmatpush1.bf16.msra.mxu0 %v269
  %337 = vmatprep.subr.bf16.mxu0 0
  %338 = vmatpush1.bf16.msra.mxu0 %v270
  %339 = vmatprep.subr.bf16.mxu0 0
  %340 = vmatpush1.bf16.msra.mxu0 %v271
  %341 = vmatprep.subr.bf16.mxu0 0
  %342 = vmatpush1.bf16.msra.mxu0 %v272
  %343 = vmatprep.subr.bf16.mxu0 0
  %344 = vmatpush1.bf16.msra.mxu0 %v273
  %345 = vmatprep.subr.bf16.mxu0 0
  %346 = vmatpush1.bf16.msra.mxu0 %v274
  %347 = vmatprep.subr.bf16.mxu0 0
  %348 = vmatpush1.bf16.msra.mxu0 %v275
  %349 = vmatprep.subr.bf16.mxu0 0
  %350 = vmatpush1.bf16.msra.mxu0 %v276
  %351 = vmatprep.subr.bf16.mxu0 0
  %352 = vmatpush1.bf16.msra.mxu0 %v277
  %353 = vmatprep.subr.bf16.mxu0 0
  %354 = vmatpush1.bf16.msra.mxu0 %v278
  %355 = vmatprep.subr.bf16.mxu0 0
  %356 = vmatpush1.bf16.msra.mxu0 %v279
  %357 = vmatprep.subr.bf16.mxu0 0
  %358 = vmatpush1.bf16.msra.mxu0 %v280
  %359 = vmatprep.subr.bf16.mxu0 0
  %360 = vmatpush1.bf16.msra.mxu0 %v281
  %361 = vmatprep.subr.bf16.mxu0 0
  %362 = vmatpush1.bf16.msra.mxu0 %v282
  %363 = vmatprep.mubr.bf16.mxu0 %v124
  %364 = vmatmul.mubr.bf16.gmra.mrb[0].mxu0 %v123
  %v365 = vpop.f32.mrb[0].mxu0
  %v366 = vadd.f32 0.0, %v365
  %v367 = vpop.f32.mrb[0].mxu0
  %v368 = vpop.f32.mrb[0].mxu0
  %v369 = vadd.f32 0.0, %v368
  %v370 = vpop.f32.mrb[0].mxu0
  %371 = vmatprep.mubr.bf16.mxu0 %v128
  %372 = vmatmul.mubr.bf16.gmra.mrb[0].mxu0 %v127
  %v373 = vpop.f32.mrb[0].mxu0
  %v374 = vadd.f32 0.0, %v373
  %v375 = vpop.f32.mrb[0].mxu0
  %v376 = vpop.f32.mrb[0].mxu0
  %v377 = vadd.f32 0.0, %v376
  %v378 = vpop.f32.mrb[0].mxu0
  %379 = vdwg.mxu0
  %380 = vmatprep.subr.bf16.mxu0 0
  %381 = vmatpush1.bf16.msra.mxu0 %v283
  %382 = vmatprep.subr.bf16.mxu0 0
  %383 = vmatpush1.bf16.msra.mxu0 %v284
  %384 = vmatprep.subr.bf16.mxu0 0
  %385 = vmatpush1.bf16.msra.mxu0 %v285
  %386 = vmatprep.subr.bf16.mxu0 0
  %387 = vmatpush1.bf16.msra.mxu0 %v286
  %388 = vmatprep.subr.bf16.mxu0 0
  %389 = vmatpush1.bf16.msra.mxu0 %v287
  %390 = vmatprep.subr.bf16.mxu0 0
  %391 = vmatpush1.bf16.msra.mxu0 %v288
  %392 = vmatprep.subr.bf16.mxu0 0
  %393 = vmatpush1.bf16.msra.mxu0 %v289
  %394 = vmatprep.subr.bf16.mxu0 0
  %395 = vmatpush1.bf16.msra.mxu0 %v290
  %396 = vmatprep.subr.bf16.mxu0 0
  %397 = vmatpush1.bf16.msra.mxu0 %v291
  %398 = vmatprep.subr.bf16.mxu0 0
  %399 = vmatpush1.bf16.msra.mxu0 %v292
  %400 = vmatprep.subr.bf16.mxu0 0
  %401 = vmatpush1.bf16.msra.mxu0 %v293
  %402 = vmatprep.subr.bf16.mxu0 0
  %403 = vmatpush1.bf16.msra.mxu0 %v294
  %404 = vmatprep.subr.bf16.mxu0 0
  %405 = vmatpush1.bf16.msra.mxu0 %v295
  %406 = vmatprep.subr.bf16.mxu0 0
  %407 = vmatpush1.bf16.msra.mxu0 %v296
  %408 = vmatprep.subr.bf16.mxu0 0
  %409 = vmatpush1.bf16.msra.mxu0 %v297
  %410 = vmatprep.subr.bf16.mxu0 0
  %411 = vmatpush1.bf16.msra.mxu0 %v298
  %412 = vmatprep.mubr.bf16.mxu0 %v126
  %413 = vmatmul.mubr.bf16.gmra.mrb[0].mxu0 %v125
  %v414 = vpop.f32.mrb[0].mxu0
  %v415 = vadd.f32 %v366, %v414
  %v416 = vpop.f32.mrb[0].mxu0
  %v417 = vpop.f32.mrb[0].mxu0
  %v418 = vadd.f32 %v369, %v417
  %v419 = vpop.f32.mrb[0].mxu0
  %420 = vmatprep.mubr.bf16.mxu0 %v130
  %421 = vmatmul.mubr.bf16.gmra.mrb[0].mxu0 %v129
  %v422 = vpop.f32.mrb[0].mxu0
  %v423 = vadd.f32 %v374, %v422
  %v424 = vpop.f32.mrb[0].mxu0
  %v425 = vpop.f32.mrb[0].mxu0
  %v426 = vadd.f32 %v377, %v425
  %v427 = vpop.f32.mrb[0].mxu0
  %428 = vdwg.mxu0
  %v429 = vadd.f32 %v23, %v415
  %v430 = vadd.f32 %v24, %v418
  %v431 = vadd.f32 %v25, %v423
  %v432 = vadd.f32 %v26, %v426
  %433 = vst [vmem:[#allocation2] sm:$0xff] %v429
  %434 = vst [vmem:[#allocation2 + $0x8] sm:$0xff] %v430
  %435 = vst [vmem:[#allocation2 + $0x10] sm:$0xff] %v431
  %436 = vst [vmem:[#allocation2 + $0x18] sm:$0xff] %v432
  // Predicated region
  $region18: #{segmenter_vit_forward.33} parent=0 // pred_check
    %p437 = pneg %p15
  $region19: #{segmenter_vit_forward.33} parent=0 // pred_check_branch
    %439 = sbr.rel (%p437) target = $region21
  $region20: #{segmenter_vit_forward.33} parent=0 // pred_region
    %v440 = vld [vmem:[#allocation2] sm:$0xff]
    %v441 = vld [vmem:[#allocation2 + $0x8] sm:$0xff]
    %v442 = vld [vmem:[#allocation2 + $0x10] sm:$0xff]
    %v443 = vld [vmem:[#allocation2 + $0x18] sm:$0xff]
    %v444 = vld [vmem:[%s2] sm:$0x1]
    %v446 = vlaneseq
    %v447 = vshrl.u32 %v446, 7
    %v448 = vsub.s32 0, %v447
    %v449 = vrot.slane %v444, %v448
    %v451 = vadd.f32 %v440, %v449
    %v452 = vadd.f32 %v441, %v449
    %v453 = vadd.f32 %v442, %v449
    %v454 = vadd.f32 %v443, %v449
    %v455 = vpack.c.bf16 %v452, %v451
    %v456 = vpack.c.bf16 %v454, %v453
    %v459 = vunpack.c.l.b16 %v455
    %v460 = vunpack.c.h.b16 %v455
    %v461 = vunpack.c.l.b16 %v456
    %v462 = vunpack.c.h.b16 %v456
    %v463 = vpack.c.b16 %v459, %v459
    %v464 = vpack.c.b16 %v460, %v460
    %v465 = vpack.c.b16 %v461, %v461
    %v466 = vpack.c.b16 %v462, %v462
    %471 = vst [vmem:[%s3] sm:$0xf] %v463
    %472 = vst [vmem:[%s3 + $0x4] sm:$0xf] %v464
    %473 = vst [vmem:[%s3 + $0x8] sm:$0xf] %v465
    %474 = vst [vmem:[%s3 + $0xc] sm:$0xf] %v466
  $region21: #{segmenter_vit_forward.33} parent=0 // pred_fallthru
    _
  // Predicated region
  $region22: #{segmenter_vit_forward.33} parent=0 // pred_check
    _
  $region23: #{segmenter_vit_forward.33} parent=0 // pred_check_branch
    %476 = sbr.rel (0) target = $region25
  $region24: #{segmenter_vit_forward.33} parent=0 // pred_region
    _
  $region25: #{segmenter_vit_forward.33} parent=0 // pred_fallthru
    _
  // Predicated region
  $region26: #{segmenter_vit_forward.33} parent=0 // pred_check
    _
  $region27: #{segmenter_vit_forward.33} parent=0 // pred_check_branch
    %478 = sbr.rel (0) target = $region29
  $region28: #{segmenter_vit_forward.33} parent=0 // pred_region
    _
  $region29: #{segmenter_vit_forward.33} parent=0 // pred_fallthru
    _

// kernel: segmenter_vit_forward.42
$region0: #{segmenter_vit_forward.42}
  #allocation0 [shape = 'u32[]', space=smem, size = 0x4, offset = 0x4, fixed_abs, tag = 'smem constant byte address 0x4 - core index']
  #allocation1 [shape = 'u32[144,128]{1,0:T(1,128)}', space=vmem, size = 0x12000, scoped, tag = 'internal scratch']
  %s0 = inlined_call_operand.vmem [shape: bf16[16,4], index: 0, kind: input, shape index: {}]
  %s1 = inlined_call_operand.vmem [shape: bf16[2,4,512], index: 1, kind: input, shape index: {}]
  %s2 = inlined_call_operand.vmem [shape: bf16[2,16,512], index: 2, kind: output, shape index: {}]
  %s3 = sld [smem:[#allocation0]]
  $region18: #{segmenter_vit_forward.42} parent=0
    _
  %s5 = ssub.s32 1, %s3
  %s6 = scalar_select 0, %s5, %s3
  // Predicated region
  $region2: #{segmenter_vit_forward.42} parent=0 // pred_check
    _
  $region3: #{segmenter_vit_forward.42} parent=0 // pred_check_branch
    %8 = sbr.rel (0) target = $region5
  $region4: #{segmenter_vit_forward.42} parent=0 // pred_region
    _
  $region5: #{segmenter_vit_forward.42} parent=0 // pred_fallthru
    _
  // Predicated region
  $region6: #{segmenter_vit_forward.42} parent=0 // pred_check
    _
  $region7: #{segmenter_vit_forward.42} parent=0 // pred_check_branch
    %10 = sbr.rel (0) target = $region9
  $region8: #{segmenter_vit_forward.42} parent=0 // pred_region
    _
  $region9: #{segmenter_vit_forward.42} parent=0 // pred_fallthru
    _
  %v12 = vld [vmem:[%s0] sm:$0xf]
  %v13 = vld [vmem:[%s0 + $0x4] sm:$0xf]
  %v14 = vld [vmem:[%s1] sm:$0xff]
  %v17 = vunpack.c.l.b16 %v12
  %v18 = vunpack.c.l.b16 %v13
  %v19 = vpack.c.b16 %v18, %v17
  %v21 = vcombine.high %v14, %v14
  %v23 = vunpack.c.l.s4 1983009808
  %v24 = vunpack.c.0.s8 %v23
  %v25 = vlaneseq
  %v26 = vshrl.u32 %v25, 7
  %v27 = vsub.s32 %v24, %v26
  %v28 = vrot.slane %v14, %v27
  %v30 = vunpack.c.l.s4 1983009808
  %v31 = vunpack.c.0.s8 %v30
  %v32 = vlaneseq
  %v33 = vshrl.u32 %v32, 7
  %v34 = vsub.s32 %v31, %v33
  %v35 = vrot.slane %v21, %v34
  %v36 = vcombine.high %v28, %v28
  %v37 = vcombine.high %v35, %v35
  %vm38 = vcmask 31744
  %v40 = vsel %vm38, %v19, 0
  %vm42 = vcmask 1041408
  %v44 = vsel %vm42, %v28, 0
  %v47 = vsel %vm42, %v36, 0
  %v50 = vsel %vm42, %v35, 0
  %v53 = vsel %vm42, %v37, 0
  %55 = vmatprep.subr.bf16.mxu0 %v47
  %56 = vmatpush1.bf16.msra.mxu0 %v44
  %57 = vmatprep.subr.bf16.mxu0 0
  %58 = vmatpush1.bf16.msra.mxu0 0
  %59 = vmatprep.subr.bf16.mxu0 0
  %60 = vmatpush1.bf16.msra.mxu0 0
  %61 = vmatprep.subr.bf16.mxu0 0
  %62 = vmatpush1.bf16.msra.mxu0 0
  %63 = vmatprep.subr.bf16.mxu0 0
  %64 = vmatpush1.bf16.msra.mxu0 0
  %65 = vmatprep.subr.bf16.mxu0 0
  %66 = vmatpush1.bf16.msra.mxu0 0
  %67 = vmatprep.subr.bf16.mxu0 0
  %68 = vmatpush1.bf16.msra.mxu0 0
  %69 = vmatprep.subr.bf16.mxu0 0
  %70 = vmatpush1.bf16.msra.mxu0 0
  %71 = vmatprep.subr.bf16.mxu0 0
  %72 = vmatpush1.bf16.msra.mxu0 0
  %73 = vmatprep.subr.bf16.mxu0 0
  %74 = vmatpush1.bf16.msra.mxu0 0
  %75 = vmatprep.subr.bf16.mxu0 0
  %76 = vmatpush1.bf16.msra.mxu0 0
  %77 = vmatprep.subr.bf16.mxu0 0
  %78 = vmatpush1.bf16.msra.mxu0 0
  %79 = vmatprep.subr.bf16.mxu0 0
  %80 = vmatpush1.bf16.msra.mxu0 0
  %81 = vmatprep.subr.bf16.mxu0 0
  %82 = vmatpush1.bf16.msra.mxu0 0
  %83 = vmatprep.subr.bf16.mxu0 0
  %84 = vmatpush1.bf16.msra.mxu0 0
  %85 = vmatprep.subr.bf16.mxu0 0
  %86 = vmatpush1.bf16.msra.mxu0 0
  %87 = vmatprep.mubr.bf16.mxu0 0
  %88 = vmatmul.mubr.bf16.gmra.mrb[0].mxu0 %v40
  %v89 = vpop.f32.mrb[0].mxu0
  %v90 = vadd.f32 0.0, %v89
  %v91 = vpop.f32.mrb[0].mxu0
  %v92 = vadd.f32 0.0, %v91
  %v93 = vpop.f32.mrb[0].mxu0
  %v94 = vadd.f32 0.0, %v93
  %v95 = vpop.f32.mrb[0].mxu0
  %v96 = vadd.f32 0.0, %v95
  %97 = vdwg.mxu0
  %98 = vmatprep.subr.bf16.mxu0 %v53
  %99 = vmatpush1.bf16.msra.mxu0 %v50
  %100 = vmatprep.subr.bf16.mxu0 0
  %101 = vmatpush1.bf16.msra.mxu0 0
  %102 = vmatprep.subr.bf16.mxu0 0
  %103 = vmatpush1.bf16.msra.mxu0 0
  %104 = vmatprep.subr.bf16.mxu0 0
  %105 = vmatpush1.bf16.msra.mxu0 0
  %106 = vmatprep.subr.bf16.mxu0 0
  %107 = vmatpush1.bf16.msra.mxu0 0
  %108 = vmatprep.subr.bf16.mxu0 0
  %109 = vmatpush1.bf16.msra.mxu0 0
  %110 = vmatprep.subr.bf16.mxu0 0
  %111 = vmatpush1.bf16.msra.mxu0 0
  %112 = vmatprep.subr.bf16.mxu0 0
  %113 = vmatpush1.bf16.msra.mxu0 0
  %114 = vmatprep.subr.bf16.mxu0 0
  %115 = vmatpush1.bf16.msra.mxu0 0
  %116 = vmatprep.subr.bf16.mxu0 0
  %117 = vmatpush1.bf16.msra.mxu0 0
  %118 = vmatprep.subr.bf16.mxu0 0
  %119 = vmatpush1.bf16.msra.mxu0 0
  %120 = vmatprep.subr.bf16.mxu0 0
  %121 = vmatpush1.bf16.msra.mxu0 0
  %122 = vmatprep.subr.bf16.mxu0 0
  %123 = vmatpush1.bf16.msra.mxu0 0
  %124 = vmatprep.subr.bf16.mxu0 0
  %125 = vmatpush1.bf16.msra.mxu0 0
  %126 = vmatprep.subr.bf16.mxu0 0
  %127 = vmatpush1.bf16.msra.mxu0 0
  %128 = vmatprep.subr.bf16.mxu0 0
  %129 = vmatpush1.bf16.msra.mxu0 0
  %130 = vmatprep.mubr.bf16.mxu0 0
  %131 = vmatmul.mubr.bf16.gmra.mrb[0].mxu0 %v40
  %v132 = vpop.f32.mrb[0].mxu0
  %v133 = vadd.f32 0.0, %v132
  %v134 = vpop.f32.mrb[0].mxu0
  %v135 = vadd.f32 0.0, %v134
  %v136 = vpop.f32.mrb[0].mxu0
  %v137 = vadd.f32 0.0, %v136
  %v138 = vpop.f32.mrb[0].mxu0
  %v139 = vadd.f32 0.0, %v138
  %140 = vdwg.mxu0
  %v141 = vpack.c.bf16 %v94, %v90
  %v142 = vpack.c.bf16 %v96, %v92
  %v143 = vpack.c.bf16 %v137, %v133
  %v144 = vpack.c.bf16 %v139, %v135
  %v149 = vunpack.c.l.b16 %v141
  %v150 = vunpack.c.l.b16 %v142
  %v151 = vunpack.c.l.b16 %v143
  %v152 = vunpack.c.l.b16 %v144
  %v153 = vunpack.c.h.b16 %v141
  %v154 = vunpack.c.h.b16 %v142
  %v155 = vunpack.c.h.b16 %v143
  %v156 = vunpack.c.h.b16 %v144
  %v157 = vpack.c.b16 %v150, %v149
  %v158 = vpack.c.b16 %v152, %v151
  %v159 = vpack.c.b16 %v154, %v153
  %v160 = vpack.c.b16 %v156, %v155
  %165 = vst [vmem:[%s2] sm:$0xff] %v157
  %166 = vst [vmem:[%s2 + $0x8] sm:$0xff] %v158
  %167 = vst [vmem:[%s2 + $0x10] sm:$0xff] %v159
  %168 = vst [vmem:[%s2 + $0x18] sm:$0xff] %v160
  %s169 = scalar_lea.vmem %s1, 8
  %v170 = vld [vmem:[%s169] sm:$0xff]
  %v172 = vcombine.high %v170, %v170
  %v174 = vunpack.c.l.s4 1983009808
  %v175 = vunpack.c.0.s8 %v174
  %v176 = vlaneseq
  %v177 = vshrl.u32 %v176, 7
  %v178 = vsub.s32 %v175, %v177
  %v179 = vrot.slane %v170, %v178
  %v181 = vunpack.c.l.s4 1983009808
  %v182 = vunpack.c.0.s8 %v181
  %v183 = vlaneseq
  %v184 = vshrl.u32 %v183, 7
  %v185 = vsub.s32 %v182, %v184
  %v186 = vrot.slane %v172, %v185
  %v187 = vcombine.high %v179, %v179
  %v188 = vcombine.high %v186, %v186
  %v190 = vsel %vm42, %v179, 0
  %v193 = vsel %vm42, %v187, 0
  %v196 = vsel %vm42, %v186, 0
  %v199 = vsel %vm42, %v188, 0
  %201 = vmatprep.subr.bf16.mxu0 %v193
  %202 = vmatpush1.bf16.msra.mxu0 %v190
  %203 = vmatprep.subr.bf16.mxu0 0
  %204 = vmatpush1.bf16.msra.mxu0 0
  %205 = vmatprep.subr.bf16.mxu0 0
  %206 = vmatpush1.bf16.msra.mxu0 0
  %207 = vmatprep.subr.bf16.mxu0 0
  %208 = vmatpush1.bf16.msra.mxu0 0
  %209 = vmatprep.subr.bf16.mxu0 0
  %210 = vmatpush1.bf16.msra.mxu0 0
  %211 = vmatprep.subr.bf16.mxu0 0
  %212 = vmatpush1.bf16.msra.mxu0 0
  %213 = vmatprep.subr.bf16.mxu0 0
  %214 = vmatpush1.bf16.msra.mxu0 0
  %215 = vmatprep.subr.bf16.mxu0 0
  %216 = vmatpush1.bf16.msra.mxu0 0
  %217 = vmatprep.subr.bf16.mxu0 0
  %218 = vmatpush1.bf16.msra.mxu0 0
  %219 = vmatprep.subr.bf16.mxu0 0
  %220 = vmatpush1.bf16.msra.mxu0 0
  %221 = vmatprep.subr.bf16.mxu0 0
  %222 = vmatpush1.bf16.msra.mxu0 0
  %223 = vmatprep.subr.bf16.mxu0 0
  %224 = vmatpush1.bf16.msra.mxu0 0
  %225 = vmatprep.subr.bf16.mxu0 0
  %226 = vmatpush1.bf16.msra.mxu0 0
  %227 = vmatprep.subr.bf16.mxu0 0
  %228 = vmatpush1.bf16.msra.mxu0 0
  %229 = vmatprep.subr.bf16.mxu0 0
  %230 = vmatpush1.bf16.msra.mxu0 0
  %231 = vmatprep.subr.bf16.mxu0 0
  %232 = vmatpush1.bf16.msra.mxu0 0
  %233 = vmatprep.mubr.bf16.mxu0 0
  %234 = vmatmul.mubr.bf16.gmra.mrb[0].mxu0 %v40
  %v235 = vpop.f32.mrb[0].mxu0
  %v236 = vadd.f32 0.0, %v235
  %v237 = vpop.f32.mrb[0].mxu0
  %v238 = vadd.f32 0.0, %v237
  %v239 = vpop.f32.mrb[0].mxu0
  %v240 = vadd.f32 0.0, %v239
  %v241 = vpop.f32.mrb[0].mxu0
  %v242 = vadd.f32 0.0, %v241
  %243 = vdwg.mxu0
  %244 = vmatprep.subr.bf16.mxu0 %v199
  %245 = vmatpush1.bf16.msra.mxu0 %v196
  %246 = vmatprep.subr.bf16.mxu0 0
  %247 = vmatpush1.bf16.msra.mxu0 0
  %248 = vmatprep.subr.bf16.mxu0 0
  %249 = vmatpush1.bf16.msra.mxu0 0
  %250 = vmatprep.subr.bf16.mxu0 0
  %251 = vmatpush1.bf16.msra.mxu0 0
  %252 = vmatprep.subr.bf16.mxu0 0
  %253 = vmatpush1.bf16.msra.mxu0 0
  %254 = vmatprep.subr.bf16.mxu0 0
  %255 = vmatpush1.bf16.msra.mxu0 0
  %256 = vmatprep.subr.bf16.mxu0 0
  %257 = vmatpush1.bf16.msra.mxu0 0
  %258 = vmatprep.subr.bf16.mxu0 0
  %259 = vmatpush1.bf16.msra.mxu0 0
  %260 = vmatprep.subr.bf16.mxu0 0
  %261 = vmatpush1.bf16.msra.mxu0 0
  %262 = vmatprep.subr.bf16.mxu0 0
  %263 = vmatpush1.bf16.msra.mxu0 0
  %264 = vmatprep.subr.bf16.mxu0 0
  %265 = vmatpush1.bf16.msra.mxu0 0
  %266 = vmatprep.subr.bf16.mxu0 0
  %267 = vmatpush1.bf16.msra.mxu0 0
  %268 = vmatprep.subr.bf16.mxu0 0
  %269 = vmatpush1.bf16.msra.mxu0 0
  %270 = vmatprep.subr.bf16.mxu0 0
  %271 = vmatpush1.bf16.msra.mxu0 0
  %272 = vmatprep.subr.bf16.mxu0 0
  %273 = vmatpush1.bf16.msra.mxu0 0
  %274 = vmatprep.subr.bf16.mxu0 0
  %275 = vmatpush1.bf16.msra.mxu0 0
  %276 = vmatprep.mubr.bf16.mxu0 0
  %277 = vmatmul.mubr.bf16.gmra.mrb[0].mxu0 %v40
  %v278 = vpop.f32.mrb[0].mxu0
  %v279 = vadd.f32 0.0, %v278
  %v280 = vpop.f32.mrb[0].mxu0
  %v281 = vadd.f32 0.0, %v280
  %v282 = vpop.f32.mrb[0].mxu0
  %v283 = vadd.f32 0.0, %v282
  %v284 = vpop.f32.mrb[0].mxu0
  %v285 = vadd.f32 0.0, %v284
  %286 = vdwg.mxu0
  %v287 = vpack.c.bf16 %v240, %v236
  %v288 = vpack.c.bf16 %v242, %v238
  %v289 = vpack.c.bf16 %v283, %v279
  %v290 = vpack.c.bf16 %v285, %v281
  %v295 = vunpack.c.l.b16 %v287
  %v296 = vunpack.c.l.b16 %v288
  %v297 = vunpack.c.l.b16 %v289
  %v298 = vunpack.c.l.b16 %v290
  %v299 = vunpack.c.h.b16 %v287
  %v300 = vunpack.c.h.b16 %v288
  %v301 = vunpack.c.h.b16 %v289
  %v302 = vunpack.c.h.b16 %v290
  %v303 = vpack.c.b16 %v296, %v295
  %v304 = vpack.c.b16 %v298, %v297
  %v305 = vpack.c.b16 %v300, %v299
  %v306 = vpack.c.b16 %v302, %v301
  %s311 = scalar_lea.vmem %s2, 32
  %312 = vst [vmem:[%s311] sm:$0xff] %v303
  %313 = vst [vmem:[%s311 + $0x8] sm:$0xff] %v304
  %314 = vst [vmem:[%s311 + $0x10] sm:$0xff] %v305
  %315 = vst [vmem:[%s311 + $0x18] sm:$0xff] %v306
  // Predicated region
  $region10: #{segmenter_vit_forward.42} parent=0 // pred_check
    _
  $region11: #{segmenter_vit_forward.42} parent=0 // pred_check_branch
    %317 = sbr.rel (0) target = $region13
  $region12: #{segmenter_vit_forward.42} parent=0 // pred_region
    _
  $region13: #{segmenter_vit_forward.42} parent=0 // pred_fallthru
    _
  // Predicated region
  $region14: #{segmenter_vit_forward.42} parent=0 // pred_check
    _
  $region15: #{segmenter_vit_forward.42} parent=0 // pred_check_branch
    %319 = sbr.rel (0) target = $region17
  $region16: #{segmenter_vit_forward.42} parent=0 // pred_region
    _
  $region17: #{segmenter_vit_forward.42} parent=0 // pred_fallthru
    _

// kernel: segmenter_vit_forward.43
$region0: #{segmenter_vit_forward.43}
  #allocation0 [shape = 'u32[]', space=smem, size = 0x4, offset = 0x4, fixed_abs, tag = 'smem constant byte address 0x4 - core index']
  #allocation1 [shape = 'u32[144,128]{1,0:T(1,128)}', space=vmem, size = 0x12000, scoped, tag = 'internal scratch']
  %s0 = inlined_call_operand.vmem [shape: bf16[16,4], index: 0, kind: input, shape index: {}]
  %s1 = inlined_call_operand.vmem [shape: bf16[32,4,128], index: 1, kind: input, shape index: {}]
  %s2 = inlined_call_operand.vmem [shape: bf16[32,16,128], index: 2, kind: output, shape index: {}]
  %s3 = sld [smem:[#allocation0]]
  $region41: #{segmenter_vit_forward.43} parent=0
    _
  %s5 = ssub.s32 1, %s3
  %s6 = scalar_select 0, %s5, %s3
  loop: start=0, step=1, limit=6
  $region2: #{segmenter_vit_forward.43} parent=0 // loop_pre_header
    _
  $region3: #{segmenter_vit_forward.43} parent=0 // loop_header
    %s8 = sphi 0, %s12
    %p9 = scmp.ge.s32.totalorder %s8, 6
    %s15 = sphi 0, %s27
    %s16 = sphi 0, %s23
    %s17 = sphi 0, %s15
    %s18 = sphi 0, %s16
    %s19 = sphi 0, %s17
    %s20 = sphi 0, %s18
    %s28 = sphi 0, %s28
    %s30 = sphi 0, %s28
    %s31 = sphi 0, %s30
    %s45 = sphi 0, %s31
    %s53 = sphi 0, %s55
    %s56 = sphi 0, %s53
    %s57 = sphi 0, %s56
    %s73 = sphi 0, %s57
    %s81 = sphi 0, %s83
    %s84 = sphi 0, %s81
    %s85 = sphi 0, %s84
    %s101 = sphi 0, %s85
  $region4: #{segmenter_vit_forward.43} parent=0 // loop_header_branch
    %11 = sbr.rel (%p9) target = $region8
  $region5: #{segmenter_vit_forward.43} parent=0 // loop_body
    %s13 = ssub.s32 %s8, 1
    %s14 = ssub.s32 %s8, 2
    %s21 = sadd.s32 1, %s16
    %p22 = scmp.ge.s32.totalorder %s21, 1
    %s23 = scalar_select %p22, 0, %s21
    %s24 = sadd.s32 1, %s15
    %s25 = scalar_select %p22, %s24, %s15
    %p26 = scmp.ge.s32.totalorder %s25, 4
    %s27 = scalar_select %p26, 0, %s25
    %s29 = sadd.s32 %s28, 1
    %p32 = scmp.eq.s32.totalorder %s8, 3
    %p33 = scmp.ne.s32.totalorder %s28, %s30
    %p34 = scmp.eq.s32.totalorder %s8, 0
    %p35 = por %p33, %p34
    %p36 = scmp.ne.s32.totalorder %s28, %s30
    %p37 = scmp.eq.s32.totalorder %s13, 3
    %p38 = por %p36, %p37
    %p39 = scmp.ne.s32.totalorder %s30, %s31
    %p40 = scmp.eq.s32.totalorder %s13, 0
    %p41 = por %p39, %p40
    %p42 = scmp.ne.s32.totalorder %s30, %s31
    %p43 = scmp.eq.s32.totalorder %s14, 3
    %p44 = por %p42, %p43
    %p46 = scmp.ne.s32.totalorder %s31, %s45
    %p47 = scmp.eq.s32.totalorder %s14, 0
    %p48 = por %p46, %p47
    %s49 = ssub.s32 %s15, %s27
    %s50 = ssub.s32 %s16, %s23
    %s51 = sor.u32 %s49, %s50
    %p52 = scmp.eq.s32.totalorder %s51, 0
    %s54 = sadd.s32 %s53, 1
    %s55 = scalar_select %p52, %s53, %s54
    %p58 = pneg %p52
    %p59 = scmp.eq.s32.totalorder %s8, 3
    %p60 = por %p58, %p59
    %p61 = scmp.ne.s32.totalorder %s53, %s56
    %p62 = scmp.eq.s32.totalorder %s8, 0
    %p63 = por %p61, %p62
    %p64 = scmp.ne.s32.totalorder %s53, %s56
    %p65 = scmp.eq.s32.totalorder %s13, 3
    %p66 = por %p64, %p65
    %p67 = scmp.ne.s32.totalorder %s56, %s57
    %p68 = scmp.eq.s32.totalorder %s13, 0
    %p69 = por %p67, %p68
    %p70 = scmp.ne.s32.totalorder %s56, %s57
    %p71 = scmp.eq.s32.totalorder %s14, 3
    %p72 = por %p70, %p71
    %p74 = scmp.ne.s32.totalorder %s57, %s73
    %p75 = scmp.eq.s32.totalorder %s14, 0
    %p76 = por %p74, %p75
    %s77 = ssub.s32 %s15, %s27
    %s78 = ssub.s32 %s16, %s23
    %s79 = sor.u32 %s77, %s78
    %p80 = scmp.eq.s32.totalorder %s79, 0
    %s82 = sadd.s32 %s81, 1
    %s83 = scalar_select %p80, %s81, %s82
    %p86 = pneg %p80
    %p87 = scmp.eq.s32.totalorder %s8, 3
    %p88 = por %p86, %p87
    %p89 = scmp.ne.s32.totalorder %s81, %s84
    %p90 = scmp.eq.s32.totalorder %s8, 0
    %p91 = por %p89, %p90
    %p92 = scmp.ne.s32.totalorder %s81, %s84
    %p93 = scmp.eq.s32.totalorder %s13, 3
    %p94 = por %p92, %p93
    %p95 = scmp.ne.s32.totalorder %s84, %s85
    %p96 = scmp.eq.s32.totalorder %s13, 0
    %p97 = por %p95, %p96
    %p98 = scmp.ne.s32.totalorder %s84, %s85
    %p99 = scmp.eq.s32.totalorder %s14, 3
    %p100 = por %p98, %p99
    %p102 = scmp.ne.s32.totalorder %s85, %s101
    %p103 = scmp.eq.s32.totalorder %s14, 0
    %p104 = por %p102, %p103
    %p105 = scmp.le.s32.totalorder 1, %s8
    %p106 = scmp.lt.s32.totalorder %s8, 5
    %p107 = pnand %p105, %p106
    %p108 = pneg %p107
    // Predicated region
    $region9: #{segmenter_vit_forward.43} parent=5 // pred_check
      _
    $region10: #{segmenter_vit_forward.43} parent=5 // pred_check_branch
      %110 = sbr.rel (%p107) target = $region12
    $region11: #{segmenter_vit_forward.43} parent=5 // pred_region
      %s111 = ssub.s32 %s8, 1
      // Predicated region
      $region13: #{segmenter_vit_forward.43} parent=11 // pred_check
        %p112 = pneg %p41
      $region14: #{segmenter_vit_forward.43} parent=11 // pred_check_branch
        %114 = sbr.rel (%p112) target = $region16
      $region15: #{segmenter_vit_forward.43} parent=11 // pred_region
        _
      $region16: #{segmenter_vit_forward.43} parent=11 // pred_fallthru
        _
    $region12: #{segmenter_vit_forward.43} parent=5 // pred_fallthru
      _
    %p115 = scmp.lt.s32.totalorder %s8, 4
    // Predicated region
    $region17: #{segmenter_vit_forward.43} parent=5 // pred_check
      %p116 = pneg %p115
    $region18: #{segmenter_vit_forward.43} parent=5 // pred_check_branch
      %118 = sbr.rel (%p116) target = $region20
    $region19: #{segmenter_vit_forward.43} parent=5 // pred_region
      // Predicated region
      $region21: #{segmenter_vit_forward.43} parent=19 // pred_check
        %p119 = pneg %p63
      $region22: #{segmenter_vit_forward.43} parent=19 // pred_check_branch
        %121 = sbr.rel (%p119) target = $region24
      $region23: #{segmenter_vit_forward.43} parent=19 // pred_region
        %s122 = smul.u32 8, %s15
        %p123 = scmp.lt.s32.totalorder %s122, 31
        %s124 = scalar_select %p123, %s122, 31
        %p125 = scmp.lt.s32.totalorder %s16, 0
        %s126 = scalar_select %p125, %s16, 0
        %s127 = sadd.s32 %s126, %s124
        %s128 = smul.addr %s127, 2
        %s129 = scalar_lea.vmem %s1, %s128
        %s130 = smul.u32 8, %s15
      $region24: #{segmenter_vit_forward.43} parent=19 // pred_fallthru
        _
    $region20: #{segmenter_vit_forward.43} parent=5 // pred_fallthru
      _
    %p131 = scmp.le.s32.totalorder 1, %s8
    %p132 = scmp.lt.s32.totalorder %s8, 5
    %p133 = pnand %p131, %p132
    %p134 = pneg %p133
    // Predicated region
    $region25: #{segmenter_vit_forward.43} parent=5 // pred_check
      _
    $region26: #{segmenter_vit_forward.43} parent=5 // pred_check_branch
      %136 = sbr.rel (%p133) target = $region28
    $region27: #{segmenter_vit_forward.43} parent=5 // pred_region
      %s137 = ssub.s32 %s8, 1
      %p138 = pneg %p41
      %p139 = pneg %p38
      %s140 = smul.u32 8, %s17
      %p141 = scmp.lt.s32.totalorder %s140, 31
      %s142 = scalar_select %p141, %s140, 31
      %p143 = scmp.lt.s32.totalorder %s18, 0
      %s144 = scalar_select %p143, %s18, 0
      %s145 = sadd.s32 %s144, %s142
      %s146 = smul.addr %s145, 2
      %s147 = scalar_lea.vmem %s1, %s146
      %p148 = pneg %p69
      %p149 = pneg %p66
      %p150 = pneg %p97
      %p151 = pneg %p94
      %s152 = smul.u32 8, %s17
      %p153 = scmp.lt.s32.totalorder %s152, 31
      %s154 = scalar_select %p153, %s152, 31
      %p155 = scmp.lt.s32.totalorder %s18, 0
      %s156 = scalar_select %p155, %s18, 0
      %s157 = smul.addr %s154, 2
      %s158 = sadd.s32 %s156, %s157
      %s159 = smul.addr %s158, 4
      %s160 = scalar_lea.vmem %s2, %s159
      %s161 = smul.u32 8, %s17
      %p162 = scmp.lt.s32.totalorder %s161, 31
      %s163 = scalar_select %p162, %s161, 31
      %p164 = scmp.lt.s32.totalorder %s18, 0
      %s165 = scalar_select %p164, %s18, 0
      %s166 = sadd.s32 %s165, %s163
      %s167 = smul.addr %s166, 2
      %s168 = scalar_lea.vmem %s1, %s167
      %s169 = smul.u32 8, %s17
      %s170 = smul.u32 8, %s17
      %p171 = scmp.lt.s32.totalorder %s170, 31
      %s172 = scalar_select %p171, %s170, 31
      %p173 = scmp.lt.s32.totalorder %s18, 0
      %s174 = scalar_select %p173, %s18, 0
      %s175 = smul.addr %s172, 2
      %s176 = sadd.s32 %s174, %s175
      %s177 = smul.addr %s176, 4
      %s178 = scalar_lea.vmem %s2, %s177
      %s179 = smul.u32 8, %s17
      %v181 = vld [vmem:[%s0] sm:$0xf]
      %v182 = vld [vmem:[%s0 + $0x4] sm:$0xf]
      %v183 = vld [vmem:[%s168] sm:$0x3]
      %v186 = vunpack.c.l.b16 %v181
      %v187 = vunpack.c.l.b16 %v182
      %v188 = vpack.c.b16 %v187, %v186
      %vm189 = vcmask 31744
      %v191 = vsel %vm189, %v188, 0
      %vm193 = vcmask 1041408
      %v195 = vsel %vm193, %v183, 0
      %197 = vmatprep.subr.bf16.mxu0 0
      %198 = vmatpush1.bf16.msra.mxu0 %v195
      %199 = vmatprep.subr.bf16.mxu0 0
      %200 = vmatpush1.bf16.msra.mxu0 0
      %201 = vmatprep.subr.bf16.mxu0 0
      %202 = vmatpush1.bf16.msra.mxu0 0
      %203 = vmatprep.subr.bf16.mxu0 0
      %204 = vmatpush1.bf16.msra.mxu0 0
      %205 = vmatprep.subr.bf16.mxu0 0
      %206 = vmatpush1.bf16.msra.mxu0 0
      %207 = vmatprep.subr.bf16.mxu0 0
      %208 = vmatpush1.bf16.msra.mxu0 0
      %209 = vmatprep.subr.bf16.mxu0 0
      %210 = vmatpush1.bf16.msra.mxu0 0
      %211 = vmatprep.subr.bf16.mxu0 0
      %212 = vmatpush1.bf16.msra.mxu0 0
      %213 = vmatprep.subr.bf16.mxu0 0
      %214 = vmatpush1.bf16.msra.mxu0 0
      %215 = vmatprep.subr.bf16.mxu0 0
      %216 = vmatpush1.bf16.msra.mxu0 0
      %217 = vmatprep.subr.bf16.mxu0 0
      %218 = vmatpush1.bf16.msra.mxu0 0
      %219 = vmatprep.subr.bf16.mxu0 0
      %220 = vmatpush1.bf16.msra.mxu0 0
      %221 = vmatprep.subr.bf16.mxu0 0
      %222 = vmatpush1.bf16.msra.mxu0 0
      %223 = vmatprep.subr.bf16.mxu0 0
      %224 = vmatpush1.bf16.msra.mxu0 0
      %225 = vmatprep.subr.bf16.mxu0 0
      %226 = vmatpush1.bf16.msra.mxu0 0
      %227 = vmatprep.subr.bf16.mxu0 0
      %228 = vmatpush1.bf16.msra.mxu0 0
      %229 = vmatprep.mubr.bf16.mxu0 0
      %230 = vmatmul.mubr.bf16.gmra.mrb[0].mxu0 %v191
      %v231 = vpop.f32.mrb[0].mxu0
      %v232 = vadd.f32 0.0, %v231
      %v233 = vpop.f32.mrb[0].mxu0
      %v234 = vpop.f32.mrb[0].mxu0
      %v235 = vadd.f32 0.0, %v234
      %v236 = vpop.f32.mrb[0].mxu0
      %237 = vdwg.mxu0
      %v238 = vpack.c.bf16 %v235, %v232
      %v240 = vunpack.c.l.b16 %v238
      %v241 = vunpack.c.h.b16 %v238
      %v242 = vpack.c.b16 %v240, %v240
      %v243 = vpack.c.b16 %v241, %v241
      %246 = vst [vmem:[%s178] sm:$0xf] %v242
      %247 = vst [vmem:[%s178 + $0x4] sm:$0xf] %v243
      %s248 = scalar_lea.vmem %s168, 2
      %v249 = vld [vmem:[%s248] sm:$0x3]
      %v251 = vsel %vm193, %v249, 0
      %253 = vmatprep.subr.bf16.mxu0 0
      %254 = vmatpush1.bf16.msra.mxu0 %v251
      %255 = vmatprep.subr.bf16.mxu0 0
      %256 = vmatpush1.bf16.msra.mxu0 0
      %257 = vmatprep.subr.bf16.mxu0 0
      %258 = vmatpush1.bf16.msra.mxu0 0
      %259 = vmatprep.subr.bf16.mxu0 0
      %260 = vmatpush1.bf16.msra.mxu0 0
      %261 = vmatprep.subr.bf16.mxu0 0
      %262 = vmatpush1.bf16.msra.mxu0 0
      %263 = vmatprep.subr.bf16.mxu0 0
      %264 = vmatpush1.bf16.msra.mxu0 0
      %265 = vmatprep.subr.bf16.mxu0 0
      %266 = vmatpush1.bf16.msra.mxu0 0
      %267 = vmatprep.subr.bf16.mxu0 0
      %268 = vmatpush1.bf16.msra.mxu0 0
      %269 = vmatprep.subr.bf16.mxu0 0
      %270 = vmatpush1.bf16.msra.mxu0 0
      %271 = vmatprep.subr.bf16.mxu0 0
      %272 = vmatpush1.bf16.msra.mxu0 0
      %273 = vmatprep.subr.bf16.mxu0 0
      %274 = vmatpush1.bf16.msra.mxu0 0
      %275 = vmatprep.subr.bf16.mxu0 0
      %276 = vmatpush1.bf16.msra.mxu0 0
      %277 = vmatprep.subr.bf16.mxu0 0
      %278 = vmatpush1.bf16.msra.mxu0 0
      %279 = vmatprep.subr.bf16.mxu0 0
      %280 = vmatpush1.bf16.msra.mxu0 0
      %281 = vmatprep.subr.bf16.mxu0 0
      %282 = vmatpush1.bf16.msra.mxu0 0
      %283 = vmatprep.subr.bf16.mxu0 0
      %284 = vmatpush1.bf16.msra.mxu0 0
      %285 = vmatprep.mubr.bf16.mxu0 0
      %286 = vmatmul.mubr.bf16.gmra.mrb[0].mxu0 %v191
      %v287 = vpop.f32.mrb[0].mxu0
      %v288 = vadd.f32 0.0, %v287
      %v289 = vpop.f32.mrb[0].mxu0
      %v290 = vpop.f32.mrb[0].mxu0
      %v291 = vadd.f32 0.0, %v290
      %v292 = vpop.f32.mrb[0].mxu0
      %293 = vdwg.mxu0
      %v294 = vpack.c.bf16 %v291, %v288
      %v296 = vunpack.c.l.b16 %v294
      %v297 = vunpack.c.h.b16 %v294
      %v298 = vpack.c.b16 %v296, %v296
      %v299 = vpack.c.b16 %v297, %v297
      %s302 = scalar_lea.vmem %s178, 8
      %303 = vst [vmem:[%s302] sm:$0xf] %v298
      %304 = vst [vmem:[%s302 + $0x4] sm:$0xf] %v299
      %s305 = scalar_lea.vmem %s168, 4
      %v306 = vld [vmem:[%s305] sm:$0x3]
      %v308 = vsel %vm193, %v306, 0
      %310 = vmatprep.subr.bf16.mxu0 0
      %311 = vmatpush1.bf16.msra.mxu0 %v308
      %312 = vmatprep.subr.bf16.mxu0 0
      %313 = vmatpush1.bf16.msra.mxu0 0
      %314 = vmatprep.subr.bf16.mxu0 0
      %315 = vmatpush1.bf16.msra.mxu0 0
      %316 = vmatprep.subr.bf16.mxu0 0
      %317 = vmatpush1.bf16.msra.mxu0 0
      %318 = vmatprep.subr.bf16.mxu0 0
      %319 = vmatpush1.bf16.msra.mxu0 0
      %320 = vmatprep.subr.bf16.mxu0 0
      %321 = vmatpush1.bf16.msra.mxu0 0
      %322 = vmatprep.subr.bf16.mxu0 0
      %323 = vmatpush1.bf16.msra.mxu0 0
      %324 = vmatprep.subr.bf16.mxu0 0
      %325 = vmatpush1.bf16.msra.mxu0 0
      %326 = vmatprep.subr.bf16.mxu0 0
      %327 = vmatpush1.bf16.msra.mxu0 0
      %328 = vmatprep.subr.bf16.mxu0 0
      %329 = vmatpush1.bf16.msra.mxu0 0
      %330 = vmatprep.subr.bf16.mxu0 0
      %331 = vmatpush1.bf16.msra.mxu0 0
      %332 = vmatprep.subr.bf16.mxu0 0
      %333 = vmatpush1.bf16.msra.mxu0 0
      %334 = vmatprep.subr.bf16.mxu0 0
      %335 = vmatpush1.bf16.msra.mxu0 0
      %336 = vmatprep.subr.bf16.mxu0 0
      %337 = vmatpush1.bf16.msra.mxu0 0
      %338 = vmatprep.subr.bf16.mxu0 0
      %339 = vmatpush1.bf16.msra.mxu0 0
      %340 = vmatprep.subr.bf16.mxu0 0
      %341 = vmatpush1.bf16.msra.mxu0 0
      %342 = vmatprep.mubr.bf16.mxu0 0
      %343 = vmatmul.mubr.bf16.gmra.mrb[0].mxu0 %v191
      %v344 = vpop.f32.mrb[0].mxu0
      %v345 = vadd.f32 0.0, %v344
      %v346 = vpop.f32.mrb[0].mxu0
      %v347 = vpop.f32.mrb[0].mxu0
      %v348 = vadd.f32 0.0, %v347
      %v349 = vpop.f32.mrb[0].mxu0
      %350 = vdwg.mxu0
      %v351 = vpack.c.bf16 %v348, %v345
      %v353 = vunpack.c.l.b16 %v351
      %v354 = vunpack.c.h.b16 %v351
      %v355 = vpack.c.b16 %v353, %v353
      %v356 = vpack.c.b16 %v354, %v354
      %s359 = scalar_lea.vmem %s178, 16
      %360 = vst [vmem:[%s359] sm:$0xf] %v355
      %361 = vst [vmem:[%s359 + $0x4] sm:$0xf] %v356
      %s362 = scalar_lea.vmem %s168, 6
      %v363 = vld [vmem:[%s362] sm:$0x3]
      %v365 = vsel %vm193, %v363, 0
      %367 = vmatprep.subr.bf16.mxu0 0
      %368 = vmatpush1.bf16.msra.mxu0 %v365
      %369 = vmatprep.subr.bf16.mxu0 0
      %370 = vmatpush1.bf16.msra.mxu0 0
      %371 = vmatprep.subr.bf16.mxu0 0
      %372 = vmatpush1.bf16.msra.mxu0 0
      %373 = vmatprep.subr.bf16.mxu0 0
      %374 = vmatpush1.bf16.msra.mxu0 0
      %375 = vmatprep.subr.bf16.mxu0 0
      %376 = vmatpush1.bf16.msra.mxu0 0
      %377 = vmatprep.subr.bf16.mxu0 0
      %378 = vmatpush1.bf16.msra.mxu0 0
      %379 = vmatprep.subr.bf16.mxu0 0
      %380 = vmatpush1.bf16.msra.mxu0 0
      %381 = vmatprep.subr.bf16.mxu0 0
      %382 = vmatpush1.bf16.msra.mxu0 0
      %383 = vmatprep.subr.bf16.mxu0 0
      %384 = vmatpush1.bf16.msra.mxu0 0
      %385 = vmatprep.subr.bf16.mxu0 0
      %386 = vmatpush1.bf16.msra.mxu0 0
      %387 = vmatprep.subr.bf16.mxu0 0
      %388 = vmatpush1.bf16.msra.mxu0 0
      %389 = vmatprep.subr.bf16.mxu0 0
      %390 = vmatpush1.bf16.msra.mxu0 0
      %391 = vmatprep.subr.bf16.mxu0 0
      %392 = vmatpush1.bf16.msra.mxu0 0
      %393 = vmatprep.subr.bf16.mxu0 0
      %394 = vmatpush1.bf16.msra.mxu0 0
      %395 = vmatprep.subr.bf16.mxu0 0
      %396 = vmatpush1.bf16.msra.mxu0 0
      %397 = vmatprep.subr.bf16.mxu0 0
      %398 = vmatpush1.bf16.msra.mxu0 0
      %399 = vmatprep.mubr.bf16.mxu0 0
      %400 = vmatmul.mubr.bf16.gmra.mrb[0].mxu0 %v191
      %v401 = vpop.f32.mrb[0].mxu0
      %v402 = vadd.f32 0.0, %v401
      %v403 = vpop.f32.mrb[0].mxu0
      %v404 = vpop.f32.mrb[0].mxu0
      %v405 = vadd.f32 0.0, %v404
      %v406 = vpop.f32.mrb[0].mxu0
      %407 = vdwg.mxu0
      %v408 = vpack.c.bf16 %v405, %v402
      %v410 = vunpack.c.l.b16 %v408
      %v411 = vunpack.c.h.b16 %v408
      %v412 = vpack.c.b16 %v410, %v410
      %v413 = vpack.c.b16 %v411, %v411
      %s416 = scalar_lea.vmem %s178, 24
      %417 = vst [vmem:[%s416] sm:$0xf] %v412
      %418 = vst [vmem:[%s416 + $0x4] sm:$0xf] %v413
      %s419 = scalar_lea.vmem %s168, 8
      %v420 = vld [vmem:[%s419] sm:$0x3]
      %v422 = vsel %vm193, %v420, 0
      %424 = vmatprep.subr.bf16.mxu0 0
      %425 = vmatpush1.bf16.msra.mxu0 %v422
      %426 = vmatprep.subr.bf16.mxu0 0
      %427 = vmatpush1.bf16.msra.mxu0 0
      %428 = vmatprep.subr.bf16.mxu0 0
      %429 = vmatpush1.bf16.msra.mxu0 0
      %430 = vmatprep.subr.bf16.mxu0 0
      %431 = vmatpush1.bf16.msra.mxu0 0
      %432 = vmatprep.subr.bf16.mxu0 0
      %433 = vmatpush1.bf16.msra.mxu0 0
      %434 = vmatprep.subr.bf16.mxu0 0
      %435 = vmatpush1.bf16.msra.mxu0 0
      %436 = vmatprep.subr.bf16.mxu0 0
      %437 = vmatpush1.bf16.msra.mxu0 0
      %438 = vmatprep.subr.bf16.mxu0 0
      %439 = vmatpush1.bf16.msra.mxu0 0
      %440 = vmatprep.subr.bf16.mxu0 0
      %441 = vmatpush1.bf16.msra.mxu0 0
      %442 = vmatprep.subr.bf16.mxu0 0
      %443 = vmatpush1.bf16.msra.mxu0 0
      %444 = vmatprep.subr.bf16.mxu0 0
      %445 = vmatpush1.bf16.msra.mxu0 0
      %446 = vmatprep.subr.bf16.mxu0 0
      %447 = vmatpush1.bf16.msra.mxu0 0
      %448 = vmatprep.subr.bf16.mxu0 0
      %449 = vmatpush1.bf16.msra.mxu0 0
      %450 = vmatprep.subr.bf16.mxu0 0
      %451 = vmatpush1.bf16.msra.mxu0 0
      %452 = vmatprep.subr.bf16.mxu0 0
      %453 = vmatpush1.bf16.msra.mxu0 0
      %454 = vmatprep.subr.bf16.mxu0 0
      %455 = vmatpush1.bf16.msra.mxu0 0
      %456 = vmatprep.mubr.bf16.mxu0 0
      %457 = vmatmul.mubr.bf16.gmra.mrb[0].mxu0 %v191
      %v458 = vpop.f32.mrb[0].mxu0
      %v459 = vadd.f32 0.0, %v458
      %v460 = vpop.f32.mrb[0].mxu0
      %v461 = vpop.f32.mrb[0].mxu0
      %v462 = vadd.f32 0.0, %v461
      %v463 = vpop.f32.mrb[0].mxu0
      %464 = vdwg.mxu0
      %v465 = vpack.c.bf16 %v462, %v459
      %v467 = vunpack.c.l.b16 %v465
      %v468 = vunpack.c.h.b16 %v465
      %v469 = vpack.c.b16 %v467, %v467
      %v470 = vpack.c.b16 %v468, %v468
      %s473 = scalar_lea.vmem %s178, 32
      %474 = vst [vmem:[%s473] sm:$0xf] %v469
      %475 = vst [vmem:[%s473 + $0x4] sm:$0xf] %v470
      %s476 = scalar_lea.vmem %s168, 10
      %v477 = vld [vmem:[%s476] sm:$0x3]
      %v479 = vsel %vm193, %v477, 0
      %481 = vmatprep.subr.bf16.mxu0 0
      %482 = vmatpush1.bf16.msra.mxu0 %v479
      %483 = vmatprep.subr.bf16.mxu0 0
      %484 = vmatpush1.bf16.msra.mxu0 0
      %485 = vmatprep.subr.bf16.mxu0 0
      %486 = vmatpush1.bf16.msra.mxu0 0
      %487 = vmatprep.subr.bf16.mxu0 0
      %488 = vmatpush1.bf16.msra.mxu0 0
      %489 = vmatprep.subr.bf16.mxu0 0
      %490 = vmatpush1.bf16.msra.mxu0 0
      %491 = vmatprep.subr.bf16.mxu0 0
      %492 = vmatpush1.bf16.msra.mxu0 0
      %493 = vmatprep.subr.bf16.mxu0 0
      %494 = vmatpush1.bf16.msra.mxu0 0
      %495 = vmatprep.subr.bf16.mxu0 0
      %496 = vmatpush1.bf16.msra.mxu0 0
      %497 = vmatprep.subr.bf16.mxu0 0
      %498 = vmatpush1.bf16.msra.mxu0 0
      %499 = vmatprep.subr.bf16.mxu0 0
      %500 = vmatpush1.bf16.msra.mxu0 0
      %501 = vmatprep.subr.bf16.mxu0 0
      %502 = vmatpush1.bf16.msra.mxu0 0
      %503 = vmatprep.subr.bf16.mxu0 0
      %504 = vmatpush1.bf16.msra.mxu0 0
      %505 = vmatprep.subr.bf16.mxu0 0
      %506 = vmatpush1.bf16.msra.mxu0 0
      %507 = vmatprep.subr.bf16.mxu0 0
      %508 = vmatpush1.bf16.msra.mxu0 0
      %509 = vmatprep.subr.bf16.mxu0 0
      %510 = vmatpush1.bf16.msra.mxu0 0
      %511 = vmatprep.subr.bf16.mxu0 0
      %512 = vmatpush1.bf16.msra.mxu0 0
      %513 = vmatprep.mubr.bf16.mxu0 0
      %514 = vmatmul.mubr.bf16.gmra.mrb[0].mxu0 %v191
      %v515 = vpop.f32.mrb[0].mxu0
      %v516 = vadd.f32 0.0, %v515
      %v517 = vpop.f32.mrb[0].mxu0
      %v518 = vpop.f32.mrb[0].mxu0
      %v519 = vadd.f32 0.0, %v518
      %v520 = vpop.f32.mrb[0].mxu0
      %521 = vdwg.mxu0
      %v522 = vpack.c.bf16 %v519, %v516
      %v524 = vunpack.c.l.b16 %v522
      %v525 = vunpack.c.h.b16 %v522
      %v526 = vpack.c.b16 %v524, %v524
      %v527 = vpack.c.b16 %v525, %v525
      %s530 = scalar_lea.vmem %s178, 40
      %531 = vst [vmem:[%s530] sm:$0xf] %v526
      %532 = vst [vmem:[%s530 + $0x4] sm:$0xf] %v527
      %s533 = scalar_lea.vmem %s168, 12
      %v534 = vld [vmem:[%s533] sm:$0x3]
      %v536 = vsel %vm193, %v534, 0
      %538 = vmatprep.subr.bf16.mxu0 0
      %539 = vmatpush1.bf16.msra.mxu0 %v536
      %540 = vmatprep.subr.bf16.mxu0 0
      %541 = vmatpush1.bf16.msra.mxu0 0
      %542 = vmatprep.subr.bf16.mxu0 0
      %543 = vmatpush1.bf16.msra.mxu0 0
      %544 = vmatprep.subr.bf16.mxu0 0
      %545 = vmatpush1.bf16.msra.mxu0 0
      %546 = vmatprep.subr.bf16.mxu0 0
      %547 = vmatpush1.bf16.msra.mxu0 0
      %548 = vmatprep.subr.bf16.mxu0 0
      %549 = vmatpush1.bf16.msra.mxu0 0
      %550 = vmatprep.subr.bf16.mxu0 0
      %551 = vmatpush1.bf16.msra.mxu0 0
      %552 = vmatprep.subr.bf16.mxu0 0
      %553 = vmatpush1.bf16.msra.mxu0 0
      %554 = vmatprep.subr.bf16.mxu0 0
      %555 = vmatpush1.bf16.msra.mxu0 0
      %556 = vmatprep.subr.bf16.mxu0 0
      %557 = vmatpush1.bf16.msra.mxu0 0
      %558 = vmatprep.subr.bf16.mxu0 0
      %559 = vmatpush1.bf16.msra.mxu0 0
      %560 = vmatprep.subr.bf16.mxu0 0
      %561 = vmatpush1.bf16.msra.mxu0 0
      %562 = vmatprep.subr.bf16.mxu0 0
      %563 = vmatpush1.bf16.msra.mxu0 0
      %564 = vmatprep.subr.bf16.mxu0 0
      %565 = vmatpush1.bf16.msra.mxu0 0
      %566 = vmatprep.subr.bf16.mxu0 0
      %567 = vmatpush1.bf16.msra.mxu0 0
      %568 = vmatprep.subr.bf16.mxu0 0
      %569 = vmatpush1.bf16.msra.mxu0 0
      %570 = vmatprep.mubr.bf16.mxu0 0
      %571 = vmatmul.mubr.bf16.gmra.mrb[0].mxu0 %v191
      %v572 = vpop.f32.mrb[0].mxu0
      %v573 = vadd.f32 0.0, %v572
      %v574 = vpop.f32.mrb[0].mxu0
      %v575 = vpop.f32.mrb[0].mxu0
      %v576 = vadd.f32 0.0, %v575
      %v577 = vpop.f32.mrb[0].mxu0
      %578 = vdwg.mxu0
      %v579 = vpack.c.bf16 %v576, %v573
      %v581 = vunpack.c.l.b16 %v579
      %v582 = vunpack.c.h.b16 %v579
      %v583 = vpack.c.b16 %v581, %v581
      %v584 = vpack.c.b16 %v582, %v582
      %s587 = scalar_lea.vmem %s178, 48
      %588 = vst [vmem:[%s587] sm:$0xf] %v583
      %589 = vst [vmem:[%s587 + $0x4] sm:$0xf] %v584
      %s590 = scalar_lea.vmem %s168, 14
      %v591 = vld [vmem:[%s590] sm:$0x3]
      %v593 = vsel %vm193, %v591, 0
      %595 = vmatprep.subr.bf16.mxu0 0
      %596 = vmatpush1.bf16.msra.mxu0 %v593
      %597 = vmatprep.subr.bf16.mxu0 0
      %598 = vmatpush1.bf16.msra.mxu0 0
      %599 = vmatprep.subr.bf16.mxu0 0
      %600 = vmatpush1.bf16.msra.mxu0 0
      %601 = vmatprep.subr.bf16.mxu0 0
      %602 = vmatpush1.bf16.msra.mxu0 0
      %603 = vmatprep.subr.bf16.mxu0 0
      %604 = vmatpush1.bf16.msra.mxu0 0
      %605 = vmatprep.subr.bf16.mxu0 0
      %606 = vmatpush1.bf16.msra.mxu0 0
      %607 = vmatprep.subr.bf16.mxu0 0
      %608 = vmatpush1.bf16.msra.mxu0 0
      %609 = vmatprep.subr.bf16.mxu0 0
      %610 = vmatpush1.bf16.msra.mxu0 0
      %611 = vmatprep.subr.bf16.mxu0 0
      %612 = vmatpush1.bf16.msra.mxu0 0
      %613 = vmatprep.subr.bf16.mxu0 0
      %614 = vmatpush1.bf16.msra.mxu0 0
      %615 = vmatprep.subr.bf16.mxu0 0
      %616 = vmatpush1.bf16.msra.mxu0 0
      %617 = vmatprep.subr.bf16.mxu0 0
      %618 = vmatpush1.bf16.msra.mxu0 0
      %619 = vmatprep.subr.bf16.mxu0 0
      %620 = vmatpush1.bf16.msra.mxu0 0
      %621 = vmatprep.subr.bf16.mxu0 0
      %622 = vmatpush1.bf16.msra.mxu0 0
      %623 = vmatprep.subr.bf16.mxu0 0
      %624 = vmatpush1.bf16.msra.mxu0 0
      %625 = vmatprep.subr.bf16.mxu0 0
      %626 = vmatpush1.bf16.msra.mxu0 0
      %627 = vmatprep.mubr.bf16.mxu0 0
      %628 = vmatmul.mubr.bf16.gmra.mrb[0].mxu0 %v191
      %v629 = vpop.f32.mrb[0].mxu0
      %v630 = vadd.f32 0.0, %v629
      %v631 = vpop.f32.mrb[0].mxu0
      %v632 = vpop.f32.mrb[0].mxu0
      %v633 = vadd.f32 0.0, %v632
      %v634 = vpop.f32.mrb[0].mxu0
      %635 = vdwg.mxu0
      %v636 = vpack.c.bf16 %v633, %v630
      %v638 = vunpack.c.l.b16 %v636
      %v639 = vunpack.c.h.b16 %v636
      %v640 = vpack.c.b16 %v638, %v638
      %v641 = vpack.c.b16 %v639, %v639
      %s644 = scalar_lea.vmem %s178, 56
      %645 = vst [vmem:[%s644] sm:$0xf] %v640
      %646 = vst [vmem:[%s644 + $0x4] sm:$0xf] %v641
      %s647 = smul.u32 8, %s17
      %p648 = scmp.lt.s32.totalorder %s647, 31
      %s649 = scalar_select %p648, %s647, 31
      %p650 = scmp.lt.s32.totalorder %s18, 0
      %s651 = scalar_select %p650, %s18, 0
      %s652 = smul.addr %s649, 2
      %s653 = sadd.s32 %s651, %s652
      %s654 = smul.addr %s653, 4
      %s655 = scalar_lea.vmem %s2, %s654
      // Predicated region
      $region29: #{segmenter_vit_forward.43} parent=27 // pred_check
        %p656 = pneg %p94
      $region30: #{segmenter_vit_forward.43} parent=27 // pred_check_branch
        %658 = sbr.rel (%p656) target = $region32
      $region31: #{segmenter_vit_forward.43} parent=27 // pred_region
        %s659 = smul.u32 8, %s17
      $region32: #{segmenter_vit_forward.43} parent=27 // pred_fallthru
        _
    $region28: #{segmenter_vit_forward.43} parent=5 // pred_fallthru
      _
    %p660 = scmp.le.s32.totalorder 2, %s8
    // Predicated region
    $region33: #{segmenter_vit_forward.43} parent=5 // pred_check
      %p661 = pneg %p660
    $region34: #{segmenter_vit_forward.43} parent=5 // pred_check_branch
      %663 = sbr.rel (%p661) target = $region36
    $region35: #{segmenter_vit_forward.43} parent=5 // pred_region
      %s664 = ssub.s32 %s8, 2
      // Predicated region
      $region37: #{segmenter_vit_forward.43} parent=35 // pred_check
        %p665 = pneg %p100
      $region38: #{segmenter_vit_forward.43} parent=35 // pred_check_branch
        %667 = sbr.rel (%p665) target = $region40
      $region39: #{segmenter_vit_forward.43} parent=35 // pred_region
        %s668 = smul.u32 8, %s19
        %p669 = scmp.lt.s32.totalorder %s668, 31
        %s670 = scalar_select %p669, %s668, 31
        %p671 = scmp.lt.s32.totalorder %s20, 0
        %s672 = scalar_select %p671, %s20, 0
        %s673 = smul.addr %s670, 2
        %s674 = sadd.s32 %s672, %s673
        %s675 = smul.addr %s674, 4
        %s676 = scalar_lea.vmem %s2, %s675
      $region40: #{segmenter_vit_forward.43} parent=35 // pred_fallthru
        _
    $region36: #{segmenter_vit_forward.43} parent=5 // pred_fallthru
      _
  $region6: #{segmenter_vit_forward.43} parent=0 // loop_footer
    %s12 = sadd.s32 1, %s8
  $region7: #{segmenter_vit_forward.43} parent=0 // loop_footer_branch
    %7 = sbr.rel target = $region3
  $region8: #{segmenter_vit_forward.43} parent=0 // loop_exit
    _

// kernel: segmenter_vit_forward.45
$region0: #{segmenter_vit_forward.45}
  #allocation0 [shape = 'u32[]', space=smem, size = 0x4, offset = 0x4, fixed_abs, tag = 'smem constant byte address 0x4 - core index']
  #allocation1 [shape = 'u32[144,128]{1,0:T(1,128)}', space=vmem, size = 0x12000, scoped, tag = 'internal scratch']
  #allocation2 [shape = 'f32[512,128]{1,0:T(8,128)}', space=vmem, size = 0x40000, scoped, tag = 'scratch operand']
  %s0 = inlined_call_operand.vmem [shape: bf16[512,128], index: 0, kind: input, shape index: {}]
  %s1 = inlined_call_operand.vmem [shape: bf16[128,128], index: 1, kind: input, shape index: {}]
  %s2 = inlined_call_operand.vmem [shape: f32[1,128], index: 2, kind: input, shape index: {}]
  %s3 = inlined_call_operand.hbm [shape: f32[512,128], index: 3, kind: output, shape index: {}]
  %s4 = sld [smem:[#allocation0]]
  $region30: #{segmenter_vit_forward.45} parent=0
    _
  %s6 = ssub.s32 1, %s4
  %s7 = scalar_select 0, %s6, %s4
  $region1: #{segmenter_vit_forward.45} parent=0
    #allocation3 [shape = 'u8[262144]{0}', space=vmem, size = 0x40000, scoped, tag = 'output window, operand 0, single buffered']
    #allocation4 [shape = 's32[1]{0}', space=sflag, size = 0x4, scoped, tag = 'scoped memory for segmenter_vit_forward.45']
    %8 = vsyncpa [#allocation4], 0
    // Predicated region
    $region2: #{segmenter_vit_forward.45} parent=1 // pred_check
      _
    $region3: #{segmenter_vit_forward.45} parent=1 // pred_check_branch
      %10 = sbr.rel (0) target = $region5
    $region4: #{segmenter_vit_forward.45} parent=1 // pred_region
      _
    $region5: #{segmenter_vit_forward.45} parent=1 // pred_fallthru
      _
    // Predicated region
    $region6: #{segmenter_vit_forward.45} parent=1 // pred_check
      _
    $region7: #{segmenter_vit_forward.45} parent=1 // pred_check_branch
      %12 = sbr.rel (0) target = $region9
    $region8: #{segmenter_vit_forward.45} parent=1 // pred_region
      _
    $region9: #{segmenter_vit_forward.45} parent=1 // pred_fallthru
      _
    // Predicated region
    $region10: #{segmenter_vit_forward.45} parent=1 // pred_check
      _
    $region11: #{segmenter_vit_forward.45} parent=1 // pred_check_branch
      %14 = sbr.rel (0) target = $region13
    $region12: #{segmenter_vit_forward.45} parent=1 // pred_region
      _
    $region13: #{segmenter_vit_forward.45} parent=1 // pred_fallthru
      _
    %p16 = scmp.eq.s32.totalorder 0, 0
    // Predicated region
    $region14: #{segmenter_vit_forward.45} parent=1 // pred_check
      %p17 = pneg %p16
    $region15: #{segmenter_vit_forward.45} parent=1 // pred_check_branch
      %19 = sbr.rel (%p17) target = $region17
    $region16: #{segmenter_vit_forward.45} parent=1 // pred_region
      %20 = vst [vmem:[#allocation2] sm:$0xff] 0.0
      %21 = vst [vmem:[#allocation2 + $0x8] sm:$0xff] 0.0
      %22 = vst [vmem:[#allocation2 + $0x10] sm:$0xff] 0.0
      %23 = vst [vmem:[#allocation2 + $0x18] sm:$0xff] 0.0
      %24 = vst [vmem:[#allocation2 + $0x20] sm:$0xff] 0.0
      %25 = vst [vmem:[#allocation2 + $0x28] sm:$0xff] 0.0
      %26 = vst [vmem:[#allocation2 + $0x30] sm:$0xff] 0.0
      %27 = vst [vmem:[#allocation2 + $0x38] sm:$0xff] 0.0
      %28 = vst [vmem:[#allocation2 + $0x40] sm:$0xff] 0.0
      %29 = vst [vmem:[#allocation2 + $0x48] sm:$0xff] 0.0
      %30 = vst [vmem:[#allocation2 + $0x50] sm:$0xff] 0.0
      %31 = vst [vmem:[#allocation2 + $0x58] sm:$0xff] 0.0
      %32 = vst [vmem:[#allocation2 + $0x60] sm:$0xff] 0.0
      %33 = vst [vmem:[#allocation2 + $0x68] sm:$0xff] 0.0
      %34 = vst [vmem:[#allocation2 + $0x70] sm:$0xff] 0.0
      %35 = vst [vmem:[#allocation2 + $0x78] sm:$0xff] 0.0
      %36 = vst [vmem:[#allocation2 + $0x80] sm:$0xff] 0.0
      %37 = vst [vmem:[#allocation2 + $0x88] sm:$0xff] 0.0
      %38 = vst [vmem:[#allocation2 + $0x90] sm:$0xff] 0.0
      %39 = vst [vmem:[#allocation2 + $0x98] sm:$0xff] 0.0
      %40 = vst [vmem:[#allocation2 + $0xa0] sm:$0xff] 0.0
      %41 = vst [vmem:[#allocation2 + $0xa8] sm:$0xff] 0.0
      %42 = vst [vmem:[#allocation2 + $0xb0] sm:$0xff] 0.0
      %43 = vst [vmem:[#allocation2 + $0xb8] sm:$0xff] 0.0
      %44 = vst [vmem:[#allocation2 + $0xc0] sm:$0xff] 0.0
      %45 = vst [vmem:[#allocation2 + $0xc8] sm:$0xff] 0.0
      %46 = vst [vmem:[#allocation2 + $0xd0] sm:$0xff] 0.0
      %47 = vst [vmem:[#allocation2 + $0xd8] sm:$0xff] 0.0
      %48 = vst [vmem:[#allocation2 + $0xe0] sm:$0xff] 0.0
      %49 = vst [vmem:[#allocation2 + $0xe8] sm:$0xff] 0.0
      %50 = vst [vmem:[#allocation2 + $0xf0] sm:$0xff] 0.0
      %51 = vst [vmem:[#allocation2 + $0xf8] sm:$0xff] 0.0
      %52 = vst [vmem:[#allocation2 + $0x100] sm:$0xff] 0.0
      %53 = vst [vmem:[#allocation2 + $0x108] sm:$0xff] 0.0
      %54 = vst [vmem:[#allocation2 + $0x110] sm:$0xff] 0.0
      %55 = vst [vmem:[#allocation2 + $0x118] sm:$0xff] 0.0
      %56 = vst [vmem:[#allocation2 + $0x120] sm:$0xff] 0.0
      %57 = vst [vmem:[#allocation2 + $0x128] sm:$0xff] 0.0
      %58 = vst [vmem:[#allocation2 + $0x130] sm:$0xff] 0.0
      %59 = vst [vmem:[#allocation2 + $0x138] sm:$0xff] 0.0
      %60 = vst [vmem:[#allocation2 + $0x140] sm:$0xff] 0.0
      %61 = vst [vmem:[#allocation2 + $0x148] sm:$0xff] 0.0
      %62 = vst [vmem:[#allocation2 + $0x150] sm:$0xff] 0.0
      %63 = vst [vmem:[#allocation2 + $0x158] sm:$0xff] 0.0
      %64 = vst [vmem:[#allocation2 + $0x160] sm:$0xff] 0.0
      %65 = vst [vmem:[#allocation2 + $0x168] sm:$0xff] 0.0
      %66 = vst [vmem:[#allocation2 + $0x170] sm:$0xff] 0.0
      %67 = vst [vmem:[#allocation2 + $0x178] sm:$0xff] 0.0
      %68 = vst [vmem:[#allocation2 + $0x180] sm:$0xff] 0.0
      %69 = vst [vmem:[#allocation2 + $0x188] sm:$0xff] 0.0
      %70 = vst [vmem:[#allocation2 + $0x190] sm:$0xff] 0.0
      %71 = vst [vmem:[#allocation2 + $0x198] sm:$0xff] 0.0
      %72 = vst [vmem:[#allocation2 + $0x1a0] sm:$0xff] 0.0
      %73 = vst [vmem:[#allocation2 + $0x1a8] sm:$0xff] 0.0
      %74 = vst [vmem:[#allocation2 + $0x1b0] sm:$0xff] 0.0
      %75 = vst [vmem:[#allocation2 + $0x1b8] sm:$0xff] 0.0
      %76 = vst [vmem:[#allocation2 + $0x1c0] sm:$0xff] 0.0
      %77 = vst [vmem:[#allocation2 + $0x1c8] sm:$0xff] 0.0
      %78 = vst [vmem:[#allocation2 + $0x1d0] sm:$0xff] 0.0
      %79 = vst [vmem:[#allocation2 + $0x1d8] sm:$0xff] 0.0
      %80 = vst [vmem:[#allocation2 + $0x1e0] sm:$0xff] 0.0
      %81 = vst [vmem:[#allocation2 + $0x1e8] sm:$0xff] 0.0
      %82 = vst [vmem:[#allocation2 + $0x1f0] sm:$0xff] 0.0
      %83 = vst [vmem:[#allocation2 + $0x1f8] sm:$0xff] 0.0
    $region17: #{segmenter_vit_forward.45} parent=1 // pred_fallthru
      _
    %v84 = vld [vmem:[#allocation2] sm:$0xff]
    %v85 = vld [vmem:[#allocation2 + $0x8] sm:$0xff]
    %v86 = vld [vmem:[#allocation2 + $0x10] sm:$0xff]
    %v87 = vld [vmem:[#allocation2 + $0x18] sm:$0xff]
    %v88 = vld [vmem:[#allocation2 + $0x20] sm:$0xff]
    %v89 = vld [vmem:[#allocation2 + $0x28] sm:$0xff]
    %v90 = vld [vmem:[#allocation2 + $0x30] sm:$0xff]
    %v91 = vld [vmem:[#allocation2 + $0x38] sm:$0xff]
    %v92 = vld [vmem:[#allocation2 + $0x40] sm:$0xff]
    %v93 = vld [vmem:[#allocation2 + $0x48] sm:$0xff]
    %v94 = vld [vmem:[#allocation2 + $0x50] sm:$0xff]
    %v95 = vld [vmem:[#allocation2 + $0x58] sm:$0xff]
    %v96 = vld [vmem:[#allocation2 + $0x60] sm:$0xff]
    %v97 = vld [vmem:[#allocation2 + $0x68] sm:$0xff]
    %v98 = vld [vmem:[#allocation2 + $0x70] sm:$0xff]
    %v99 = vld [vmem:[#allocation2 + $0x78] sm:$0xff]
    %v100 = vld [vmem:[#allocation2 + $0x80] sm:$0xff]
    %v101 = vld [vmem:[#allocation2 + $0x88] sm:$0xff]
    %v102 = vld [vmem:[#allocation2 + $0x90] sm:$0xff]
    %v103 = vld [vmem:[#allocation2 + $0x98] sm:$0xff]
    %v104 = vld [vmem:[#allocation2 + $0xa0] sm:$0xff]
    %v105 = vld [vmem:[#allocation2 + $0xa8] sm:$0xff]
    %v106 = vld [vmem:[#allocation2 + $0xb0] sm:$0xff]
    %v107 = vld [vmem:[#allocation2 + $0xb8] sm:$0xff]
    %v108 = vld [vmem:[#allocation2 + $0xc0] sm:$0xff]
    %v109 = vld [vmem:[#allocation2 + $0xc8] sm:$0xff]
    %v110 = vld [vmem:[#allocation2 + $0xd0] sm:$0xff]
    %v111 = vld [vmem:[#allocation2 + $0xd8] sm:$0xff]
    %v112 = vld [vmem:[#allocation2 + $0xe0] sm:$0xff]
    %v113 = vld [vmem:[#allocation2 + $0xe8] sm:$0xff]
    %v114 = vld [vmem:[#allocation2 + $0xf0] sm:$0xff]
    %v115 = vld [vmem:[#allocation2 + $0xf8] sm:$0xff]
    %v116 = vld [vmem:[#allocation2 + $0x100] sm:$0xff]
    %v117 = vld [vmem:[#allocation2 + $0x108] sm:$0xff]
    %v118 = vld [vmem:[#allocation2 + $0x110] sm:$0xff]
    %v119 = vld [vmem:[#allocation2 + $0x118] sm:$0xff]
    %v120 = vld [vmem:[#allocation2 + $0x120] sm:$0xff]
    %v121 = vld [vmem:[#allocation2 + $0x128] sm:$0xff]
    %v122 = vld [vmem:[#allocation2 + $0x130] sm:$0xff]
    %v123 = vld [vmem:[#allocation2 + $0x138] sm:$0xff]
    %v124 = vld [vmem:[#allocation2 + $0x140] sm:$0xff]
    %v125 = vld [vmem:[#allocation2 + $0x148] sm:$0xff]
    %v126 = vld [vmem:[#allocation2 + $0x150] sm:$0xff]
    %v127 = vld [vmem:[#allocation2 + $0x158] sm:$0xff]
    %v128 = vld [vmem:[#allocation2 + $0x160] sm:$0xff]
    %v129 = vld [vmem:[#allocation2 + $0x168] sm:$0xff]
    %v130 = vld [vmem:[#allocation2 + $0x170] sm:$0xff]
    %v131 = vld [vmem:[#allocation2 + $0x178] sm:$0xff]
    %v132 = vld [vmem:[#allocation2 + $0x180] sm:$0xff]
    %v133 = vld [vmem:[#allocation2 + $0x188] sm:$0xff]
    %v134 = vld [vmem:[#allocation2 + $0x190] sm:$0xff]
    %v135 = vld [vmem:[#allocation2 + $0x198] sm:$0xff]
    %v136 = vld [vmem:[#allocation2 + $0x1a0] sm:$0xff]
    %v137 = vld [vmem:[#allocation2 + $0x1a8] sm:$0xff]
    %v138 = vld [vmem:[#allocation2 + $0x1b0] sm:$0xff]
    %v139 = vld [vmem:[#allocation2 + $0x1b8] sm:$0xff]
    %v140 = vld [vmem:[#allocation2 + $0x1c0] sm:$0xff]
    %v141 = vld [vmem:[#allocation2 + $0x1c8] sm:$0xff]
    %v142 = vld [vmem:[#allocation2 + $0x1d0] sm:$0xff]
    %v143 = vld [vmem:[#allocation2 + $0x1d8] sm:$0xff]
    %v144 = vld [vmem:[#allocation2 + $0x1e0] sm:$0xff]
    %v145 = vld [vmem:[#allocation2 + $0x1e8] sm:$0xff]
    %v146 = vld [vmem:[#allocation2 + $0x1f0] sm:$0xff]
    %v147 = vld [vmem:[#allocation2 + $0x1f8] sm:$0xff]
    %v148 = vld [vmem:[%s0] sm:$0xf]
    %v149 = vld [vmem:[%s0 + $0x4] sm:$0xf]
    %v150 = vld [vmem:[%s0 + $0x8] sm:$0xf]
    %v151 = vld [vmem:[%s0 + $0xc] sm:$0xf]
    %v152 = vld [vmem:[%s0 + $0x10] sm:$0xf]
    %v153 = vld [vmem:[%s0 + $0x14] sm:$0xf]
    %v154 = vld [vmem:[%s0 + $0x18] sm:$0xf]
    %v155 = vld [vmem:[%s0 + $0x1c] sm:$0xf]
    %v156 = vld [vmem:[%s0 + $0x20] sm:$0xf]
    %v157 = vld [vmem:[%s0 + $0x24] sm:$0xf]
    %v158 = vld [vmem:[%s0 + $0x28] sm:$0xf]
    %v159 = vld [vmem:[%s0 + $0x2c] sm:$0xf]
    %v160 = vld [vmem:[%s0 + $0x30] sm:$0xf]
    %v161 = vld [vmem:[%s0 + $0x34] sm:$0xf]
    %v162 = vld [vmem:[%s0 + $0x38] sm:$0xf]
    %v163 = vld [vmem:[%s0 + $0x3c] sm:$0xf]
    %v164 = vld [vmem:[%s0 + $0x40] sm:$0xf]
    %v165 = vld [vmem:[%s0 + $0x44] sm:$0xf]
    %v166 = vld [vmem:[%s0 + $0x48] sm:$0xf]
    %v167 = vld [vmem:[%s0 + $0x4c] sm:$0xf]
    %v168 = vld [vmem:[%s0 + $0x50] sm:$0xf]
    %v169 = vld [vmem:[%s0 + $0x54] sm:$0xf]
    %v170 = vld [vmem:[%s0 + $0x58] sm:$0xf]
    %v171 = vld [vmem:[%s0 + $0x5c] sm:$0xf]
    %v172 = vld [vmem:[%s0 + $0x60] sm:$0xf]
    %v173 = vld [vmem:[%s0 + $0x64] sm:$0xf]
    %v174 = vld [vmem:[%s0 + $0x68] sm:$0xf]
    %v175 = vld [vmem:[%s0 + $0x6c] sm:$0xf]
    %v176 = vld [vmem:[%s0 + $0x70] sm:$0xf]
    %v177 = vld [vmem:[%s0 + $0x74] sm:$0xf]
    %v178 = vld [vmem:[%s0 + $0x78] sm:$0xf]
    %v179 = vld [vmem:[%s0 + $0x7c] sm:$0xf]
    %v180 = vld [vmem:[%s0 + $0x80] sm:$0xf]
    %v181 = vld [vmem:[%s0 + $0x84] sm:$0xf]
    %v182 = vld [vmem:[%s0 + $0x88] sm:$0xf]
    %v183 = vld [vmem:[%s0 + $0x8c] sm:$0xf]
    %v184 = vld [vmem:[%s0 + $0x90] sm:$0xf]
    %v185 = vld [vmem:[%s0 + $0x94] sm:$0xf]
    %v186 = vld [vmem:[%s0 + $0x98] sm:$0xf]
    %v187 = vld [vmem:[%s0 + $0x9c] sm:$0xf]
    %v188 = vld [vmem:[%s0 + $0xa0] sm:$0xf]
    %v189 = vld [vmem:[%s0 + $0xa4] sm:$0xf]
    %v190 = vld [vmem:[%s0 + $0xa8] sm:$0xf]
    %v191 = vld [vmem:[%s0 + $0xac] sm:$0xf]
    %v192 = vld [vmem:[%s0 + $0xb0] sm:$0xf]
    %v193 = vld [vmem:[%s0 + $0xb4] sm:$0xf]
    %v194 = vld [vmem:[%s0 + $0xb8] sm:$0xf]
    %v195 = vld [vmem:[%s0 + $0xbc] sm:$0xf]
    %v196 = vld [vmem:[%s0 + $0xc0] sm:$0xf]
    %v197 = vld [vmem:[%s0 + $0xc4] sm:$0xf]
    %v198 = vld [vmem:[%s0 + $0xc8] sm:$0xf]
    %v199 = vld [vmem:[%s0 + $0xcc] sm:$0xf]
    %v200 = vld [vmem:[%s0 + $0xd0] sm:$0xf]
    %v201 = vld [vmem:[%s0 + $0xd4] sm:$0xf]
    %v202 = vld [vmem:[%s0 + $0xd8] sm:$0xf]
    %v203 = vld [vmem:[%s0 + $0xdc] sm:$0xf]
    %v204 = vld [vmem:[%s0 + $0xe0] sm:$0xf]
    %v205 = vld [vmem:[%s0 + $0xe4] sm:$0xf]
    %v206 = vld [vmem:[%s0 + $0xe8] sm:$0xf]
    %v207 = vld [vmem:[%s0 + $0xec] sm:$0xf]
    %v208 = vld [vmem:[%s0 + $0xf0] sm:$0xf]
    %v209 = vld [vmem:[%s0 + $0xf4] sm:$0xf]
    %v210 = vld [vmem:[%s0 + $0xf8] sm:$0xf]
    %v211 = vld [vmem:[%s0 + $0xfc] sm:$0xf]
    %v212 = vld [vmem:[%s1] sm:$0xf]
    %v213 = vld [vmem:[%s1 + $0x4] sm:$0xf]
    %v214 = vld [vmem:[%s1 + $0x8] sm:$0xf]
    %v215 = vld [vmem:[%s1 + $0xc] sm:$0xf]
    %v216 = vld [vmem:[%s1 + $0x10] sm:$0xf]
    %v217 = vld [vmem:[%s1 + $0x14] sm:$0xf]
    %v218 = vld [vmem:[%s1 + $0x18] sm:$0xf]
    %v219 = vld [vmem:[%s1 + $0x1c] sm:$0xf]
    %v220 = vld [vmem:[%s1 + $0x20] sm:$0xf]
    %v221 = vld [vmem:[%s1 + $0x24] sm:$0xf]
    %v222 = vld [vmem:[%s1 + $0x28] sm:$0xf]
    %v223 = vld [vmem:[%s1 + $0x2c] sm:$0xf]
    %v224 = vld [vmem:[%s1 + $0x30] sm:$0xf]
    %v225 = vld [vmem:[%s1 + $0x34] sm:$0xf]
    %v226 = vld [vmem:[%s1 + $0x38] sm:$0xf]
    %v227 = vld [vmem:[%s1 + $0x3c] sm:$0xf]
    %v292 = vunpack.c.l.b16 %v148
    %v293 = vunpack.c.l.b16 %v149
    %v294 = vunpack.c.l.b16 %v150
    %v295 = vunpack.c.l.b16 %v151
    %v296 = vunpack.c.l.b16 %v152
    %v297 = vunpack.c.l.b16 %v153
    %v298 = vunpack.c.l.b16 %v154
    %v299 = vunpack.c.l.b16 %v155
    %v300 = vunpack.c.l.b16 %v156
    %v301 = vunpack.c.l.b16 %v157
    %v302 = vunpack.c.l.b16 %v158
    %v303 = vunpack.c.l.b16 %v159
    %v304 = vunpack.c.l.b16 %v160
    %v305 = vunpack.c.l.b16 %v161
    %v306 = vunpack.c.l.b16 %v162
    %v307 = vunpack.c.l.b16 %v163
    %v308 = vunpack.c.l.b16 %v164
    %v309 = vunpack.c.l.b16 %v165
    %v310 = vunpack.c.l.b16 %v166
    %v311 = vunpack.c.l.b16 %v167
    %v312 = vunpack.c.l.b16 %v168
    %v313 = vunpack.c.l.b16 %v169
    %v314 = vunpack.c.l.b16 %v170
    %v315 = vunpack.c.l.b16 %v171
    %v316 = vunpack.c.l.b16 %v172
    %v317 = vunpack.c.l.b16 %v173
    %v318 = vunpack.c.l.b16 %v174
    %v319 = vunpack.c.l.b16 %v175
    %v320 = vunpack.c.l.b16 %v176
    %v321 = vunpack.c.l.b16 %v177
    %v322 = vunpack.c.l.b16 %v178
    %v323 = vunpack.c.l.b16 %v179
    %v324 = vunpack.c.l.b16 %v180
    %v325 = vunpack.c.l.b16 %v181
    %v326 = vunpack.c.l.b16 %v182
    %v327 = vunpack.c.l.b16 %v183
    %v328 = vunpack.c.l.b16 %v184
    %v329 = vunpack.c.l.b16 %v185
    %v330 = vunpack.c.l.b16 %v186
    %v331 = vunpack.c.l.b16 %v187
    %v332 = vunpack.c.l.b16 %v188
    %v333 = vunpack.c.l.b16 %v189
    %v334 = vunpack.c.l.b16 %v190
    %v335 = vunpack.c.l.b16 %v191
    %v336 = vunpack.c.l.b16 %v192
    %v337 = vunpack.c.l.b16 %v193
    %v338 = vunpack.c.l.b16 %v194
    %v339 = vunpack.c.l.b16 %v195
    %v340 = vunpack.c.l.b16 %v196
    %v341 = vunpack.c.l.b16 %v197
    %v342 = vunpack.c.l.b16 %v198
    %v343 = vunpack.c.l.b16 %v199
    %v344 = vunpack.c.l.b16 %v200
    %v345 = vunpack.c.l.b16 %v201
    %v346 = vunpack.c.l.b16 %v202
    %v347 = vunpack.c.l.b16 %v203
    %v348 = vunpack.c.l.b16 %v204
    %v349 = vunpack.c.l.b16 %v205
    %v350 = vunpack.c.l.b16 %v206
    %v351 = vunpack.c.l.b16 %v207
    %v352 = vunpack.c.l.b16 %v208
    %v353 = vunpack.c.l.b16 %v209
    %v354 = vunpack.c.l.b16 %v210
    %v355 = vunpack.c.l.b16 %v211
    %v356 = vpack.c.b16 %v293, %v292
    %v357 = vpack.c.b16 %v295, %v294
    %v358 = vpack.c.b16 %v297, %v296
    %v359 = vpack.c.b16 %v299, %v298
    %v360 = vpack.c.b16 %v301, %v300
    %v361 = vpack.c.b16 %v303, %v302
    %v362 = vpack.c.b16 %v305, %v304
    %v363 = vpack.c.b16 %v307, %v306
    %v364 = vpack.c.b16 %v309, %v308
    %v365 = vpack.c.b16 %v311, %v310
    %v366 = vpack.c.b16 %v313, %v312
    %v367 = vpack.c.b16 %v315, %v314
    %v368 = vpack.c.b16 %v317, %v316
    %v369 = vpack.c.b16 %v319, %v318
    %v370 = vpack.c.b16 %v321, %v320
    %v371 = vpack.c.b16 %v323, %v322
    %v372 = vpack.c.b16 %v325, %v324
    %v373 = vpack.c.b16 %v327, %v326
    %v374 = vpack.c.b16 %v329, %v328
    %v375 = vpack.c.b16 %v331, %v330
    %v376 = vpack.c.b16 %v333, %v332
    %v377 = vpack.c.b16 %v335, %v334
    %v378 = vpack.c.b16 %v337, %v336
    %v379 = vpack.c.b16 %v339, %v338
    %v380 = vpack.c.b16 %v341, %v340
    %v381 = vpack.c.b16 %v343, %v342
    %v382 = vpack.c.b16 %v345, %v344
    %v383 = vpack.c.b16 %v347, %v346
    %v384 = vpack.c.b16 %v349, %v348
    %v385 = vpack.c.b16 %v351, %v350
    %v386 = vpack.c.b16 %v353, %v352
    %v387 = vpack.c.b16 %v355, %v354
    %v436 = vunpack.c.l.b16 %v212
    %v437 = vunpack.c.l.b16 %v213
    %v438 = vunpack.c.l.b16 %v214
    %v439 = vunpack.c.l.b16 %v215
    %v440 = vunpack.c.l.b16 %v216
    %v441 = vunpack.c.l.b16 %v217
    %v442 = vunpack.c.l.b16 %v218
    %v443 = vunpack.c.l.b16 %v219
    %v444 = vunpack.c.l.b16 %v220
    %v445 = vunpack.c.l.b16 %v221
    %v446 = vunpack.c.l.b16 %v222
    %v447 = vunpack.c.l.b16 %v223
    %v448 = vunpack.c.l.b16 %v224
    %v449 = vunpack.c.l.b16 %v225
    %v450 = vunpack.c.l.b16 %v226
    %v451 = vunpack.c.l.b16 %v227
    %v452 = vpack.c.b16 %v437, %v436
    %v453 = vpack.c.b16 %v439, %v438
    %v454 = vpack.c.b16 %v441, %v440
    %v455 = vpack.c.b16 %v443, %v442
    %v456 = vpack.c.b16 %v445, %v444
    %v457 = vpack.c.b16 %v447, %v446
    %v458 = vpack.c.b16 %v449, %v448
    %v459 = vpack.c.b16 %v451, %v450
    %468 = vmatprep.subr.bf16.mxu0 0
    %469 = vmatpush1.bf16.msra.mxu0 %v452
    %470 = vmatprep.subr.bf16.mxu0 0
    %471 = vmatpush1.bf16.msra.mxu0 %v453
    %472 = vmatprep.subr.bf16.mxu0 0
    %473 = vmatpush1.bf16.msra.mxu0 %v454
    %474 = vmatprep.subr.bf16.mxu0 0
    %475 = vmatpush1.bf16.msra.mxu0 %v455
    %476 = vmatprep.subr.bf16.mxu0 0
    %477 = vmatpush1.bf16.msra.mxu0 %v456
    %478 = vmatprep.subr.bf16.mxu0 0
    %479 = vmatpush1.bf16.msra.mxu0 %v457
    %480 = vmatprep.subr.bf16.mxu0 0
    %481 = vmatpush1.bf16.msra.mxu0 %v458
    %482 = vmatprep.subr.bf16.mxu0 0
    %483 = vmatpush1.bf16.msra.mxu0 %v459
    %484 = vmatprep.subr.bf16.mxu0 0
    %485 = vmatpush1.bf16.msra.mxu0 0
    %486 = vmatprep.subr.bf16.mxu0 0
    %487 = vmatpush1.bf16.msra.mxu0 0
    %488 = vmatprep.subr.bf16.mxu0 0
    %489 = vmatpush1.bf16.msra.mxu0 0
    %490 = vmatprep.subr.bf16.mxu0 0
    %491 = vmatpush1.bf16.msra.mxu0 0
    %492 = vmatprep.subr.bf16.mxu0 0
    %493 = vmatpush1.bf16.msra.mxu0 0
    %494 = vmatprep.subr.bf16.mxu0 0
    %495 = vmatpush1.bf16.msra.mxu0 0
    %496 = vmatprep.subr.bf16.mxu0 0
    %497 = vmatpush1.bf16.msra.mxu0 0
    %498 = vmatprep.subr.bf16.mxu0 0
    %499 = vmatpush1.bf16.msra.mxu0 0
    %500 = vmatprep.mubr.bf16.mxu0 0
    %501 = vmatmul.mubr.bf16.gmra.mrb[0].mxu0 %v356
    %v502 = vpop.f32.mrb[0].mxu0
    %v503 = vadd.f32 0.0, %v502
    %v504 = vpop.f32.mrb[0].mxu0
    %v505 = vpop.f32.mrb[0].mxu0
    %v506 = vadd.f32 0.0, %v505
    %v507 = vpop.f32.mrb[0].mxu0
    %508 = vmatprep.mubr.bf16.mxu0 0
    %509 = vmatmul.mubr.bf16.gmra.mrb[0].mxu0 %v357
    %v510 = vpop.f32.mrb[0].mxu0
    %v511 = vadd.f32 0.0, %v510
    %v512 = vpop.f32.mrb[0].mxu0
    %v513 = vpop.f32.mrb[0].mxu0
    %v514 = vadd.f32 0.0, %v513
    %v515 = vpop.f32.mrb[0].mxu0
    %516 = vmatprep.mubr.bf16.mxu0 0
    %517 = vmatmul.mubr.bf16.gmra.mrb[0].mxu0 %v358
    %v518 = vpop.f32.mrb[0].mxu0
    %v519 = vadd.f32 0.0, %v518
    %v520 = vpop.f32.mrb[0].mxu0
    %v521 = vpop.f32.mrb[0].mxu0
    %v522 = vadd.f32 0.0, %v521
    %v523 = vpop.f32.mrb[0].mxu0
    %524 = vmatprep.mubr.bf16.mxu0 0
    %525 = vmatmul.mubr.bf16.gmra.mrb[0].mxu0 %v359
    %v526 = vpop.f32.mrb[0].mxu0
    %v527 = vadd.f32 0.0, %v526
    %v528 = vpop.f32.mrb[0].mxu0
    %v529 = vpop.f32.mrb[0].mxu0
    %v530 = vadd.f32 0.0, %v529
    %v531 = vpop.f32.mrb[0].mxu0
    %532 = vmatprep.mubr.bf16.mxu0 0
    %533 = vmatmul.mubr.bf16.gmra.mrb[0].mxu0 %v360
    %v534 = vpop.f32.mrb[0].mxu0
    %v535 = vadd.f32 0.0, %v534
    %v536 = vpop.f32.mrb[0].mxu0
    %v537 = vpop.f32.mrb[0].mxu0
    %v538 = vadd.f32 0.0, %v537
    %v539 = vpop.f32.mrb[0].mxu0
    %540 = vmatprep.mubr.bf16.mxu0 0
    %541 = vmatmul.mubr.bf16.gmra.mrb[0].mxu0 %v361
    %v542 = vpop.f32.mrb[0].mxu0
    %v543 = vadd.f32 0.0, %v542
    %v544 = vpop.f32.mrb[0].mxu0
    %v545 = vpop.f32.mrb[0].mxu0
    %v546 = vadd.f32 0.0, %v545
    %v547 = vpop.f32.mrb[0].mxu0
    %548 = vmatprep.mubr.bf16.mxu0 0
    %549 = vmatmul.mubr.bf16.gmra.mrb[0].mxu0 %v362
    %v550 = vpop.f32.mrb[0].mxu0
    %v551 = vadd.f32 0.0, %v550
    %v552 = vpop.f32.mrb[0].mxu0
    %v553 = vpop.f32.mrb[0].mxu0
    %v554 = vadd.f32 0.0, %v553
    %v555 = vpop.f32.mrb[0].mxu0
    %556 = vmatprep.mubr.bf16.mxu0 0
    %557 = vmatmul.mubr.bf16.gmra.mrb[0].mxu0 %v363
    %v558 = vpop.f32.mrb[0].mxu0
    %v559 = vadd.f32 0.0, %v558
    %v560 = vpop.f32.mrb[0].mxu0
    %v561 = vpop.f32.mrb[0].mxu0
    %v562 = vadd.f32 0.0, %v561
    %v563 = vpop.f32.mrb[0].mxu0
    %564 = vmatprep.mubr.bf16.mxu0 0
    %565 = vmatmul.mubr.bf16.gmra.mrb[0].mxu0 %v364
    %v566 = vpop.f32.mrb[0].mxu0
    %v567 = vadd.f32 0.0, %v566
    %v568 = vpop.f32.mrb[0].mxu0
    %v569 = vpop.f32.mrb[0].mxu0
    %v570 = vadd.f32 0.0, %v569
    %v571 = vpop.f32.mrb[0].mxu0
    %572 = vmatprep.mubr.bf16.mxu0 0
    %573 = vmatmul.mubr.bf16.gmra.mrb[0].mxu0 %v365
    %v574 = vpop.f32.mrb[0].mxu0
    %v575 = vadd.f32 0.0, %v574
    %v576 = vpop.f32.mrb[0].mxu0
    %v577 = vpop.f32.mrb[0].mxu0
    %v578 = vadd.f32 0.0, %v577
    %v579 = vpop.f32.mrb[0].mxu0
    %580 = vmatprep.mubr.bf16.mxu0 0
    %581 = vmatmul.mubr.bf16.gmra.mrb[0].mxu0 %v366
    %v582 = vpop.f32.mrb[0].mxu0
    %v583 = vadd.f32 0.0, %v582
    %v584 = vpop.f32.mrb[0].mxu0
    %v585 = vpop.f32.mrb[0].mxu0
    %v586 = vadd.f32 0.0, %v585
    %v587 = vpop.f32.mrb[0].mxu0
    %588 = vmatprep.mubr.bf16.mxu0 0
    %589 = vmatmul.mubr.bf16.gmra.mrb[0].mxu0 %v367
    %v590 = vpop.f32.mrb[0].mxu0
    %v591 = vadd.f32 0.0, %v590
    %v592 = vpop.f32.mrb[0].mxu0
    %v593 = vpop.f32.mrb[0].mxu0
    %v594 = vadd.f32 0.0, %v593
    %v595 = vpop.f32.mrb[0].mxu0
    %596 = vmatprep.mubr.bf16.mxu0 0
    %597 = vmatmul.mubr.bf16.gmra.mrb[0].mxu0 %v368
    %v598 = vpop.f32.mrb[0].mxu0
    %v599 = vadd.f32 0.0, %v598
    %v600 = vpop.f32.mrb[0].mxu0
    %v601 = vpop.f32.mrb[0].mxu0
    %v602 = vadd.f32 0.0, %v601
    %v603 = vpop.f32.mrb[0].mxu0
    %604 = vmatprep.mubr.bf16.mxu0 0
    %605 = vmatmul.mubr.bf16.gmra.mrb[0].mxu0 %v369
    %v606 = vpop.f32.mrb[0].mxu0
    %v607 = vadd.f32 0.0, %v606
    %v608 = vpop.f32.mrb[0].mxu0
    %v609 = vpop.f32.mrb[0].mxu0
    %v610 = vadd.f32 0.0, %v609
    %v611 = vpop.f32.mrb[0].mxu0
    %612 = vmatprep.mubr.bf16.mxu0 0
    %613 = vmatmul.mubr.bf16.gmra.mrb[0].mxu0 %v370
    %v614 = vpop.f32.mrb[0].mxu0
    %v615 = vadd.f32 0.0, %v614
    %v616 = vpop.f32.mrb[0].mxu0
    %v617 = vpop.f32.mrb[0].mxu0
    %v618 = vadd.f32 0.0, %v617
    %v619 = vpop.f32.mrb[0].mxu0
    %620 = vmatprep.mubr.bf16.mxu0 0
    %621 = vmatmul.mubr.bf16.gmra.mrb[0].mxu0 %v371
    %v622 = vpop.f32.mrb[0].mxu0
    %v623 = vadd.f32 0.0, %v622
    %v624 = vpop.f32.mrb[0].mxu0
    %v625 = vpop.f32.mrb[0].mxu0
    %v626 = vadd.f32 0.0, %v625
    %v627 = vpop.f32.mrb[0].mxu0
    %628 = vmatprep.mubr.bf16.mxu0 0
    %629 = vmatmul.mubr.bf16.gmra.mrb[0].mxu0 %v372
    %v630 = vpop.f32.mrb[0].mxu0
    %v631 = vadd.f32 0.0, %v630
    %v632 = vpop.f32.mrb[0].mxu0
    %v633 = vpop.f32.mrb[0].mxu0
    %v634 = vadd.f32 0.0, %v633
    %v635 = vpop.f32.mrb[0].mxu0
    %636 = vmatprep.mubr.bf16.mxu0 0
    %637 = vmatmul.mubr.bf16.gmra.mrb[0].mxu0 %v373
    %v638 = vpop.f32.mrb[0].mxu0
    %v639 = vadd.f32 0.0, %v638
    %v640 = vpop.f32.mrb[0].mxu0
    %v641 = vpop.f32.mrb[0].mxu0
    %v642 = vadd.f32 0.0, %v641
    %v643 = vpop.f32.mrb[0].mxu0
    %644 = vmatprep.mubr.bf16.mxu0 0
    %645 = vmatmul.mubr.bf16.gmra.mrb[0].mxu0 %v374
    %v646 = vpop.f32.mrb[0].mxu0
    %v647 = vadd.f32 0.0, %v646
    %v648 = vpop.f32.mrb[0].mxu0
    %v649 = vpop.f32.mrb[0].mxu0
    %v650 = vadd.f32 0.0, %v649
    %v651 = vpop.f32.mrb[0].mxu0
    %652 = vmatprep.mubr.bf16.mxu0 0
    %653 = vmatmul.mubr.bf16.gmra.mrb[0].mxu0 %v375
    %v654 = vpop.f32.mrb[0].mxu0
    %v655 = vadd.f32 0.0, %v654
    %v656 = vpop.f32.mrb[0].mxu0
    %v657 = vpop.f32.mrb[0].mxu0
    %v658 = vadd.f32 0.0, %v657
    %v659 = vpop.f32.mrb[0].mxu0
    %660 = vmatprep.mubr.bf16.mxu0 0
    %661 = vmatmul.mubr.bf16.gmra.mrb[0].mxu0 %v376
    %v662 = vpop.f32.mrb[0].mxu0
    %v663 = vadd.f32 0.0, %v662
    %v664 = vpop.f32.mrb[0].mxu0
    %v665 = vpop.f32.mrb[0].mxu0
    %v666 = vadd.f32 0.0, %v665
    %v667 = vpop.f32.mrb[0].mxu0
    %668 = vmatprep.mubr.bf16.mxu0 0
    %669 = vmatmul.mubr.bf16.gmra.mrb[0].mxu0 %v377
    %v670 = vpop.f32.mrb[0].mxu0
    %v671 = vadd.f32 0.0, %v670
    %v672 = vpop.f32.mrb[0].mxu0
    %v673 = vpop.f32.mrb[0].mxu0
    %v674 = vadd.f32 0.0, %v673
    %v675 = vpop.f32.mrb[0].mxu0
    %676 = vmatprep.mubr.bf16.mxu0 0
    %677 = vmatmul.mubr.bf16.gmra.mrb[0].mxu0 %v378
    %v678 = vpop.f32.mrb[0].mxu0
    %v679 = vadd.f32 0.0, %v678
    %v680 = vpop.f32.mrb[0].mxu0
    %v681 = vpop.f32.mrb[0].mxu0
    %v682 = vadd.f32 0.0, %v681
    %v683 = vpop.f32.mrb[0].mxu0
    %684 = vmatprep.mubr.bf16.mxu0 0
    %685 = vmatmul.mubr.bf16.gmra.mrb[0].mxu0 %v379
    %v686 = vpop.f32.mrb[0].mxu0
    %v687 = vadd.f32 0.0, %v686
    %v688 = vpop.f32.mrb[0].mxu0
    %v689 = vpop.f32.mrb[0].mxu0
    %v690 = vadd.f32 0.0, %v689
    %v691 = vpop.f32.mrb[0].mxu0
    %692 = vmatprep.mubr.bf16.mxu0 0
    %693 = vmatmul.mubr.bf16.gmra.mrb[0].mxu0 %v380
    %v694 = vpop.f32.mrb[0].mxu0
    %v695 = vadd.f32 0.0, %v694
    %v696 = vpop.f32.mrb[0].mxu0
    %v697 = vpop.f32.mrb[0].mxu0
    %v698 = vadd.f32 0.0, %v697
    %v699 = vpop.f32.mrb[0].mxu0
    %700 = vmatprep.mubr.bf16.mxu0 0
    %701 = vmatmul.mubr.bf16.gmra.mrb[0].mxu0 %v381
    %v702 = vpop.f32.mrb[0].mxu0
    %v703 = vadd.f32 0.0, %v702
    %v704 = vpop.f32.mrb[0].mxu0
    %v705 = vpop.f32.mrb[0].mxu0
    %v706 = vadd.f32 0.0, %v705
    %v707 = vpop.f32.mrb[0].mxu0
    %708 = vmatprep.mubr.bf16.mxu0 0
    %709 = vmatmul.mubr.bf16.gmra.mrb[0].mxu0 %v382
    %v710 = vpop.f32.mrb[0].mxu0
    %v711 = vadd.f32 0.0, %v710
    %v712 = vpop.f32.mrb[0].mxu0
    %v713 = vpop.f32.mrb[0].mxu0
    %v714 = vadd.f32 0.0, %v713
    %v715 = vpop.f32.mrb[0].mxu0
    %716 = vmatprep.mubr.bf16.mxu0 0
    %717 = vmatmul.mubr.bf16.gmra.mrb[0].mxu0 %v383
    %v718 = vpop.f32.mrb[0].mxu0
    %v719 = vadd.f32 0.0, %v718
    %v720 = vpop.f32.mrb[0].mxu0
    %v721 = vpop.f32.mrb[0].mxu0
    %v722 = vadd.f32 0.0, %v721
    %v723 = vpop.f32.mrb[0].mxu0
    %724 = vmatprep.mubr.bf16.mxu0 0
    %725 = vmatmul.mubr.bf16.gmra.mrb[0].mxu0 %v384
    %v726 = vpop.f32.mrb[0].mxu0
    %v727 = vadd.f32 0.0, %v726
    %v728 = vpop.f32.mrb[0].mxu0
    %v729 = vpop.f32.mrb[0].mxu0
    %v730 = vadd.f32 0.0, %v729
    %v731 = vpop.f32.mrb[0].mxu0
    %732 = vmatprep.mubr.bf16.mxu0 0
    %733 = vmatmul.mubr.bf16.gmra.mrb[0].mxu0 %v385
    %v734 = vpop.f32.mrb[0].mxu0
    %v735 = vadd.f32 0.0, %v734
    %v736 = vpop.f32.mrb[0].mxu0
    %v737 = vpop.f32.mrb[0].mxu0
    %v738 = vadd.f32 0.0, %v737
    %v739 = vpop.f32.mrb[0].mxu0
    %740 = vmatprep.mubr.bf16.mxu0 0
    %741 = vmatmul.mubr.bf16.gmra.mrb[0].mxu0 %v386
    %v742 = vpop.f32.mrb[0].mxu0
    %v743 = vadd.f32 0.0, %v742
    %v744 = vpop.f32.mrb[0].mxu0
    %v745 = vpop.f32.mrb[0].mxu0
    %v746 = vadd.f32 0.0, %v745
    %v747 = vpop.f32.mrb[0].mxu0
    %748 = vmatprep.mubr.bf16.mxu0 0
    %749 = vmatmul.mubr.bf16.gmra.mrb[0].mxu0 %v387
    %v750 = vpop.f32.mrb[0].mxu0
    %v751 = vadd.f32 0.0, %v750
    %v752 = vpop.f32.mrb[0].mxu0
    %v753 = vpop.f32.mrb[0].mxu0
    %v754 = vadd.f32 0.0, %v753
    %v755 = vpop.f32.mrb[0].mxu0
    %756 = vdwg.mxu0
    %v757 = vadd.f32 %v84, %v503
    %v758 = vadd.f32 %v85, %v506
    %v759 = vadd.f32 %v86, %v511
    %v760 = vadd.f32 %v87, %v514
    %v761 = vadd.f32 %v88, %v519
    %v762 = vadd.f32 %v89, %v522
    %v763 = vadd.f32 %v90, %v527
    %v764 = vadd.f32 %v91, %v530
    %v765 = vadd.f32 %v92, %v535
    %v766 = vadd.f32 %v93, %v538
    %v767 = vadd.f32 %v94, %v543
    %v768 = vadd.f32 %v95, %v546
    %v769 = vadd.f32 %v96, %v551
    %v770 = vadd.f32 %v97, %v554
    %v771 = vadd.f32 %v98, %v559
    %v772 = vadd.f32 %v99, %v562
    %v773 = vadd.f32 %v100, %v567
    %v774 = vadd.f32 %v101, %v570
    %v775 = vadd.f32 %v102, %v575
    %v776 = vadd.f32 %v103, %v578
    %v777 = vadd.f32 %v104, %v583
    %v778 = vadd.f32 %v105, %v586
    %v779 = vadd.f32 %v106, %v591
    %v780 = vadd.f32 %v107, %v594
    %v781 = vadd.f32 %v108, %v599
    %v782 = vadd.f32 %v109, %v602
    %v783 = vadd.f32 %v110, %v607
    %v784 = vadd.f32 %v111, %v610
    %v785 = vadd.f32 %v112, %v615
    %v786 = vadd.f32 %v113, %v618
    %v787 = vadd.f32 %v114, %v623
    %v788 = vadd.f32 %v115, %v626
    %v789 = vadd.f32 %v116, %v631
    %v790 = vadd.f32 %v117, %v634
    %v791 = vadd.f32 %v118, %v639
    %v792 = vadd.f32 %v119, %v642
    %v793 = vadd.f32 %v120, %v647
    %v794 = vadd.f32 %v121, %v650
    %v795 = vadd.f32 %v122, %v655
    %v796 = vadd.f32 %v123, %v658
    %v797 = vadd.f32 %v124, %v663
    %v798 = vadd.f32 %v125, %v666
    %v799 = vadd.f32 %v126, %v671
    %v800 = vadd.f32 %v127, %v674
    %v801 = vadd.f32 %v128, %v679
    %v802 = vadd.f32 %v129, %v682
    %v803 = vadd.f32 %v130, %v687
    %v804 = vadd.f32 %v131, %v690
    %v805 = vadd.f32 %v132, %v695
    %v806 = vadd.f32 %v133, %v698
    %v807 = vadd.f32 %v134, %v703
    %v808 = vadd.f32 %v135, %v706
    %v809 = vadd.f32 %v136, %v711
    %v810 = vadd.f32 %v137, %v714
    %v811 = vadd.f32 %v138, %v719
    %v812 = vadd.f32 %v139, %v722
    %v813 = vadd.f32 %v140, %v727
    %v814 = vadd.f32 %v141, %v730
    %v815 = vadd.f32 %v142, %v735
    %v816 = vadd.f32 %v143, %v738
    %v817 = vadd.f32 %v144, %v743
    %v818 = vadd.f32 %v145, %v746
    %v819 = vadd.f32 %v146, %v751
    %v820 = vadd.f32 %v147, %v754
    %821 = vst [vmem:[#allocation2] sm:$0xff] %v757
    %822 = vst [vmem:[#allocation2 + $0x8] sm:$0xff] %v758
    %823 = vst [vmem:[#allocation2 + $0x10] sm:$0xff] %v759
    %824 = vst [vmem:[#allocation2 + $0x18] sm:$0xff] %v760
    %825 = vst [vmem:[#allocation2 + $0x20] sm:$0xff] %v761
    %826 = vst [vmem:[#allocation2 + $0x28] sm:$0xff] %v762
    %827 = vst [vmem:[#allocation2 + $0x30] sm:$0xff] %v763
    %828 = vst [vmem:[#allocation2 + $0x38] sm:$0xff] %v764
    %829 = vst [vmem:[#allocation2 + $0x40] sm:$0xff] %v765
    %830 = vst [vmem:[#allocation2 + $0x48] sm:$0xff] %v766
    %831 = vst [vmem:[#allocation2 + $0x50] sm:$0xff] %v767
    %832 = vst [vmem:[#allocation2 + $0x58] sm:$0xff] %v768
    %833 = vst [vmem:[#allocation2 + $0x60] sm:$0xff] %v769
    %834 = vst [vmem:[#allocation2 + $0x68] sm:$0xff] %v770
    %835 = vst [vmem:[#allocation2 + $0x70] sm:$0xff] %v771
    %836 = vst [vmem:[#allocation2 + $0x78] sm:$0xff] %v772
    %837 = vst [vmem:[#allocation2 + $0x80] sm:$0xff] %v773
    %838 = vst [vmem:[#allocation2 + $0x88] sm:$0xff] %v774
    %839 = vst [vmem:[#allocation2 + $0x90] sm:$0xff] %v775
    %840 = vst [vmem:[#allocation2 + $0x98] sm:$0xff] %v776
    %841 = vst [vmem:[#allocation2 + $0xa0] sm:$0xff] %v777
    %842 = vst [vmem:[#allocation2 + $0xa8] sm:$0xff] %v778
    %843 = vst [vmem:[#allocation2 + $0xb0] sm:$0xff] %v779
    %844 = vst [vmem:[#allocation2 + $0xb8] sm:$0xff] %v780
    %845 = vst [vmem:[#allocation2 + $0xc0] sm:$0xff] %v781
    %846 = vst [vmem:[#allocation2 + $0xc8] sm:$0xff] %v782
    %847 = vst [vmem:[#allocation2 + $0xd0] sm:$0xff] %v783
    %848 = vst [vmem:[#allocation2 + $0xd8] sm:$0xff] %v784
    %849 = vst [vmem:[#allocation2 + $0xe0] sm:$0xff] %v785
    %850 = vst [vmem:[#allocation2 + $0xe8] sm:$0xff] %v786
    %851 = vst [vmem:[#allocation2 + $0xf0] sm:$0xff] %v787
    %852 = vst [vmem:[#allocation2 + $0xf8] sm:$0xff] %v788
    %853 = vst [vmem:[#allocation2 + $0x100] sm:$0xff] %v789
    %854 = vst [vmem:[#allocation2 + $0x108] sm:$0xff] %v790
    %855 = vst [vmem:[#allocation2 + $0x110] sm:$0xff] %v791
    %856 = vst [vmem:[#allocation2 + $0x118] sm:$0xff] %v792
    %857 = vst [vmem:[#allocation2 + $0x120] sm:$0xff] %v793
    %858 = vst [vmem:[#allocation2 + $0x128] sm:$0xff] %v794
    %859 = vst [vmem:[#allocation2 + $0x130] sm:$0xff] %v795
    %860 = vst [vmem:[#allocation2 + $0x138] sm:$0xff] %v796
    %861 = vst [vmem:[#allocation2 + $0x140] sm:$0xff] %v797
    %862 = vst [vmem:[#allocation2 + $0x148] sm:$0xff] %v798
    %863 = vst [vmem:[#allocation2 + $0x150] sm:$0xff] %v799
    %864 = vst [vmem:[#allocation2 + $0x158] sm:$0xff] %v800
    %865 = vst [vmem:[#allocation2 + $0x160] sm:$0xff] %v801
    %866 = vst [vmem:[#allocation2 + $0x168] sm:$0xff] %v802
    %867 = vst [vmem:[#allocation2 + $0x170] sm:$0xff] %v803
    %868 = vst [vmem:[#allocation2 + $0x178] sm:$0xff] %v804
    %869 = vst [vmem:[#allocation2 + $0x180] sm:$0xff] %v805
    %870 = vst [vmem:[#allocation2 + $0x188] sm:$0xff] %v806
    %871 = vst [vmem:[#allocation2 + $0x190] sm:$0xff] %v807
    %872 = vst [vmem:[#allocation2 + $0x198] sm:$0xff] %v808
    %873 = vst [vmem:[#allocation2 + $0x1a0] sm:$0xff] %v809
    %874 = vst [vmem:[#allocation2 + $0x1a8] sm:$0xff] %v810
    %875 = vst [vmem:[#allocation2 + $0x1b0] sm:$0xff] %v811
    %876 = vst [vmem:[#allocation2 + $0x1b8] sm:$0xff] %v812
    %877 = vst [vmem:[#allocation2 + $0x1c0] sm:$0xff] %v813
    %878 = vst [vmem:[#allocation2 + $0x1c8] sm:$0xff] %v814
    %879 = vst [vmem:[#allocation2 + $0x1d0] sm:$0xff] %v815
    %880 = vst [vmem:[#allocation2 + $0x1d8] sm:$0xff] %v816
    %881 = vst [vmem:[#allocation2 + $0x1e0] sm:$0xff] %v817
    %882 = vst [vmem:[#allocation2 + $0x1e8] sm:$0xff] %v818
    %883 = vst [vmem:[#allocation2 + $0x1f0] sm:$0xff] %v819
    %884 = vst [vmem:[#allocation2 + $0x1f8] sm:$0xff] %v820
    // Predicated region
    $region18: #{segmenter_vit_forward.45} parent=1 // pred_check
      %p885 = pneg %p16
    $region19: #{segmenter_vit_forward.45} parent=1 // pred_check_branch
      %887 = sbr.rel (%p885) target = $region21
    $region20: #{segmenter_vit_forward.45} parent=1 // pred_region
      %v888 = vld [vmem:[#allocation2] sm:$0xff]
      %v889 = vld [vmem:[#allocation2 + $0x8] sm:$0xff]
      %v890 = vld [vmem:[#allocation2 + $0x10] sm:$0xff]
      %v891 = vld [vmem:[#allocation2 + $0x18] sm:$0xff]
      %v892 = vld [vmem:[#allocation2 + $0x20] sm:$0xff]
      %v893 = vld [vmem:[#allocation2 + $0x28] sm:$0xff]
      %v894 = vld [vmem:[#allocation2 + $0x30] sm:$0xff]
      %v895 = vld [vmem:[#allocation2 + $0x38] sm:$0xff]
      %v896 = vld [vmem:[#allocation2 + $0x40] sm:$0xff]
      %v897 = vld [vmem:[#allocation2 + $0x48] sm:$0xff]
      %v898 = vld [vmem:[#allocation2 + $0x50] sm:$0xff]
      %v899 = vld [vmem:[#allocation2 + $0x58] sm:$0xff]
      %v900 = vld [vmem:[#allocation2 + $0x60] sm:$0xff]
      %v901 = vld [vmem:[#allocation2 + $0x68] sm:$0xff]
      %v902 = vld [vmem:[#allocation2 + $0x70] sm:$0xff]
      %v903 = vld [vmem:[#allocation2 + $0x78] sm:$0xff]
      %v904 = vld [vmem:[#allocation2 + $0x80] sm:$0xff]
      %v905 = vld [vmem:[#allocation2 + $0x88] sm:$0xff]
      %v906 = vld [vmem:[#allocation2 + $0x90] sm:$0xff]
      %v907 = vld [vmem:[#allocation2 + $0x98] sm:$0xff]
      %v908 = vld [vmem:[#allocation2 + $0xa0] sm:$0xff]
      %v909 = vld [vmem:[#allocation2 + $0xa8] sm:$0xff]
      %v910 = vld [vmem:[#allocation2 + $0xb0] sm:$0xff]
      %v911 = vld [vmem:[#allocation2 + $0xb8] sm:$0xff]
      %v912 = vld [vmem:[#allocation2 + $0xc0] sm:$0xff]
      %v913 = vld [vmem:[#allocation2 + $0xc8] sm:$0xff]
      %v914 = vld [vmem:[#allocation2 + $0xd0] sm:$0xff]
      %v915 = vld [vmem:[#allocation2 + $0xd8] sm:$0xff]
      %v916 = vld [vmem:[#allocation2 + $0xe0] sm:$0xff]
      %v917 = vld [vmem:[#allocation2 + $0xe8] sm:$0xff]
      %v918 = vld [vmem:[#allocation2 + $0xf0] sm:$0xff]
      %v919 = vld [vmem:[#allocation2 + $0xf8] sm:$0xff]
      %v920 = vld [vmem:[#allocation2 + $0x100] sm:$0xff]
      %v921 = vld [vmem:[#allocation2 + $0x108] sm:$0xff]
      %v922 = vld [vmem:[#allocation2 + $0x110] sm:$0xff]
      %v923 = vld [vmem:[#allocation2 + $0x118] sm:$0xff]
      %v924 = vld [vmem:[#allocation2 + $0x120] sm:$0xff]
      %v925 = vld [vmem:[#allocation2 + $0x128] sm:$0xff]
      %v926 = vld [vmem:[#allocation2 + $0x130] sm:$0xff]
      %v927 = vld [vmem:[#allocation2 + $0x138] sm:$0xff]
      %v928 = vld [vmem:[#allocation2 + $0x140] sm:$0xff]
      %v929 = vld [vmem:[#allocation2 + $0x148] sm:$0xff]
      %v930 = vld [vmem:[#allocation2 + $0x150] sm:$0xff]
      %v931 = vld [vmem:[#allocation2 + $0x158] sm:$0xff]
      %v932 = vld [vmem:[#allocation2 + $0x160] sm:$0xff]
      %v933 = vld [vmem:[#allocation2 + $0x168] sm:$0xff]
      %v934 = vld [vmem:[#allocation2 + $0x170] sm:$0xff]
      %v935 = vld [vmem:[#allocation2 + $0x178] sm:$0xff]
      %v936 = vld [vmem:[#allocation2 + $0x180] sm:$0xff]
      %v937 = vld [vmem:[#allocation2 + $0x188] sm:$0xff]
      %v938 = vld [vmem:[#allocation2 + $0x190] sm:$0xff]
      %v939 = vld [vmem:[#allocation2 + $0x198] sm:$0xff]
      %v940 = vld [vmem:[#allocation2 + $0x1a0] sm:$0xff]
      %v941 = vld [vmem:[#allocation2 + $0x1a8] sm:$0xff]
      %v942 = vld [vmem:[#allocation2 + $0x1b0] sm:$0xff]
      %v943 = vld [vmem:[#allocation2 + $0x1b8] sm:$0xff]
      %v944 = vld [vmem:[#allocation2 + $0x1c0] sm:$0xff]
      %v945 = vld [vmem:[#allocation2 + $0x1c8] sm:$0xff]
      %v946 = vld [vmem:[#allocation2 + $0x1d0] sm:$0xff]
      %v947 = vld [vmem:[#allocation2 + $0x1d8] sm:$0xff]
      %v948 = vld [vmem:[#allocation2 + $0x1e0] sm:$0xff]
      %v949 = vld [vmem:[#allocation2 + $0x1e8] sm:$0xff]
      %v950 = vld [vmem:[#allocation2 + $0x1f0] sm:$0xff]
      %v951 = vld [vmem:[#allocation2 + $0x1f8] sm:$0xff]
      %v952 = vld [vmem:[%s2] sm:$0x1]
      %v954 = vlaneseq
      %v955 = vshrl.u32 %v954, 7
      %v956 = vsub.s32 0, %v955
      %v957 = vrot.slane %v952, %v956
      %v959 = vadd.f32 %v888, %v957
      %v960 = vadd.f32 %v889, %v957
      %v961 = vadd.f32 %v890, %v957
      %v962 = vadd.f32 %v891, %v957
      %v963 = vadd.f32 %v892, %v957
      %v964 = vadd.f32 %v893, %v957
      %v965 = vadd.f32 %v894, %v957
      %v966 = vadd.f32 %v895, %v957
      %v967 = vadd.f32 %v896, %v957
      %v968 = vadd.f32 %v897, %v957
      %v969 = vadd.f32 %v898, %v957
      %v970 = vadd.f32 %v899, %v957
      %v971 = vadd.f32 %v900, %v957
      %v972 = vadd.f32 %v901, %v957
      %v973 = vadd.f32 %v902, %v957
      %v974 = vadd.f32 %v903, %v957
      %v975 = vadd.f32 %v904, %v957
      %v976 = vadd.f32 %v905, %v957
      %v977 = vadd.f32 %v906, %v957
      %v978 = vadd.f32 %v907, %v957
      %v979 = vadd.f32 %v908, %v957
      %v980 = vadd.f32 %v909, %v957
      %v981 = vadd.f32 %v910, %v957
      %v982 = vadd.f32 %v911, %v957
      %v983 = vadd.f32 %v912, %v957
      %v984 = vadd.f32 %v913, %v957
      %v985 = vadd.f32 %v914, %v957
      %v986 = vadd.f32 %v915, %v957
      %v987 = vadd.f32 %v916, %v957
      %v988 = vadd.f32 %v917, %v957
      %v989 = vadd.f32 %v918, %v957
      %v990 = vadd.f32 %v919, %v957
      %v991 = vadd.f32 %v920, %v957
      %v992 = vadd.f32 %v921, %v957
      %v993 = vadd.f32 %v922, %v957
      %v994 = vadd.f32 %v923, %v957
      %v995 = vadd.f32 %v924, %v957
      %v996 = vadd.f32 %v925, %v957
      %v997 = vadd.f32 %v926, %v957
      %v998 = vadd.f32 %v927, %v957
      %v999 = vadd.f32 %v928, %v957
      %v1000 = vadd.f32 %v929, %v957
      %v1001 = vadd.f32 %v930, %v957
      %v1002 = vadd.f32 %v931, %v957
      %v1003 = vadd.f32 %v932, %v957
      %v1004 = vadd.f32 %v933, %v957
      %v1005 = vadd.f32 %v934, %v957
      %v1006 = vadd.f32 %v935, %v957
      %v1007 = vadd.f32 %v936, %v957
      %v1008 = vadd.f32 %v937, %v957
      %v1009 = vadd.f32 %v938, %v957
      %v1010 = vadd.f32 %v939, %v957
      %v1011 = vadd.f32 %v940, %v957
      %v1012 = vadd.f32 %v941, %v957
      %v1013 = vadd.f32 %v942, %v957
      %v1014 = vadd.f32 %v943, %v957
      %v1015 = vadd.f32 %v944, %v957
      %v1016 = vadd.f32 %v945, %v957
      %v1017 = vadd.f32 %v946, %v957
      %v1018 = vadd.f32 %v947, %v957
      %v1019 = vadd.f32 %v948, %v957
      %v1020 = vadd.f32 %v949, %v957
      %v1021 = vadd.f32 %v950, %v957
      %v1022 = vadd.f32 %v951, %v957
      %1023 = vst [vmem:[#allocation3] sm:$0xff] %v959
      %1024 = vst [vmem:[#allocation3 + $0x8] sm:$0xff] %v960
      %1025 = vst [vmem:[#allocation3 + $0x10] sm:$0xff] %v961
      %1026 = vst [vmem:[#allocation3 + $0x18] sm:$0xff] %v962
      %1027 = vst [vmem:[#allocation3 + $0x20] sm:$0xff] %v963
      %1028 = vst [vmem:[#allocation3 + $0x28] sm:$0xff] %v964
      %1029 = vst [vmem:[#allocation3 + $0x30] sm:$0xff] %v965
      %1030 = vst [vmem:[#allocation3 + $0x38] sm:$0xff] %v966
      %1031 = vst [vmem:[#allocation3 + $0x40] sm:$0xff] %v967
      %1032 = vst [vmem:[#allocation3 + $0x48] sm:$0xff] %v968
      %1033 = vst [vmem:[#allocation3 + $0x50] sm:$0xff] %v969
      %1034 = vst [vmem:[#allocation3 + $0x58] sm:$0xff] %v970
      %1035 = vst [vmem:[#allocation3 + $0x60] sm:$0xff] %v971
      %1036 = vst [vmem:[#allocation3 + $0x68] sm:$0xff] %v972
      %1037 = vst [vmem:[#allocation3 + $0x70] sm:$0xff] %v973
      %1038 = vst [vmem:[#allocation3 + $0x78] sm:$0xff] %v974
      %1039 = vst [vmem:[#allocation3 + $0x80] sm:$0xff] %v975
      %1040 = vst [vmem:[#allocation3 + $0x88] sm:$0xff] %v976
      %1041 = vst [vmem:[#allocation3 + $0x90] sm:$0xff] %v977
      %1042 = vst [vmem:[#allocation3 + $0x98] sm:$0xff] %v978
      %1043 = vst [vmem:[#allocation3 + $0xa0] sm:$0xff] %v979
      %1044 = vst [vmem:[#allocation3 + $0xa8] sm:$0xff] %v980
      %1045 = vst [vmem:[#allocation3 + $0xb0] sm:$0xff] %v981
      %1046 = vst [vmem:[#allocation3 + $0xb8] sm:$0xff] %v982
      %1047 = vst [vmem:[#allocation3 + $0xc0] sm:$0xff] %v983
      %1048 = vst [vmem:[#allocation3 + $0xc8] sm:$0xff] %v984
      %1049 = vst [vmem:[#allocation3 + $0xd0] sm:$0xff] %v985
      %1050 = vst [vmem:[#allocation3 + $0xd8] sm:$0xff] %v986
      %1051 = vst [vmem:[#allocation3 + $0xe0] sm:$0xff] %v987
      %1052 = vst [vmem:[#allocation3 + $0xe8] sm:$0xff] %v988
      %1053 = vst [vmem:[#allocation3 + $0xf0] sm:$0xff] %v989
      %1054 = vst [vmem:[#allocation3 + $0xf8] sm:$0xff] %v990
      %1055 = vst [vmem:[#allocation3 + $0x100] sm:$0xff] %v991
      %1056 = vst [vmem:[#allocation3 + $0x108] sm:$0xff] %v992
      %1057 = vst [vmem:[#allocation3 + $0x110] sm:$0xff] %v993
      %1058 = vst [vmem:[#allocation3 + $0x118] sm:$0xff] %v994
      %1059 = vst [vmem:[#allocation3 + $0x120] sm:$0xff] %v995
      %1060 = vst [vmem:[#allocation3 + $0x128] sm:$0xff] %v996
      %1061 = vst [vmem:[#allocation3 + $0x130] sm:$0xff] %v997
      %1062 = vst [vmem:[#allocation3 + $0x138] sm:$0xff] %v998
      %1063 = vst [vmem:[#allocation3 + $0x140] sm:$0xff] %v999
      %1064 = vst [vmem:[#allocation3 + $0x148] sm:$0xff] %v1000
      %1065 = vst [vmem:[#allocation3 + $0x150] sm:$0xff] %v1001
      %1066 = vst [vmem:[#allocation3 + $0x158] sm:$0xff] %v1002
      %1067 = vst [vmem:[#allocation3 + $0x160] sm:$0xff] %v1003
      %1068 = vst [vmem:[#allocation3 + $0x168] sm:$0xff] %v1004
      %1069 = vst [vmem:[#allocation3 + $0x170] sm:$0xff] %v1005
      %1070 = vst [vmem:[#allocation3 + $0x178] sm:$0xff] %v1006
      %1071 = vst [vmem:[#allocation3 + $0x180] sm:$0xff] %v1007
      %1072 = vst [vmem:[#allocation3 + $0x188] sm:$0xff] %v1008
      %1073 = vst [vmem:[#allocation3 + $0x190] sm:$0xff] %v1009
      %1074 = vst [vmem:[#allocation3 + $0x198] sm:$0xff] %v1010
      %1075 = vst [vmem:[#allocation3 + $0x1a0] sm:$0xff] %v1011
      %1076 = vst [vmem:[#allocation3 + $0x1a8] sm:$0xff] %v1012
      %1077 = vst [vmem:[#allocation3 + $0x1b0] sm:$0xff] %v1013
      %1078 = vst [vmem:[#allocation3 + $0x1b8] sm:$0xff] %v1014
      %1079 = vst [vmem:[#allocation3 + $0x1c0] sm:$0xff] %v1015
      %1080 = vst [vmem:[#allocation3 + $0x1c8] sm:$0xff] %v1016
      %1081 = vst [vmem:[#allocation3 + $0x1d0] sm:$0xff] %v1017
      %1082 = vst [vmem:[#allocation3 + $0x1d8] sm:$0xff] %v1018
      %1083 = vst [vmem:[#allocation3 + $0x1e0] sm:$0xff] %v1019
      %1084 = vst [vmem:[#allocation3 + $0x1e8] sm:$0xff] %v1020
      %1085 = vst [vmem:[#allocation3 + $0x1f0] sm:$0xff] %v1021
      %1086 = vst [vmem:[#allocation3 + $0x1f8] sm:$0xff] %v1022
    $region21: #{segmenter_vit_forward.45} parent=1 // pred_fallthru
      _
    // Predicated region
    $region22: #{segmenter_vit_forward.45} parent=1 // pred_check
      _
    $region23: #{segmenter_vit_forward.45} parent=1 // pred_check_branch
      %1088 = sbr.rel (0) target = $region25
    $region24: #{segmenter_vit_forward.45} parent=1 // pred_region
      %s1090 = ssub.s32 8192, 8192
      %1091 = vsyncadd [#allocation4], %s1090
      %s1092 = sshll.u32 [#allocation3], 4
      %s1093 = int_to_ptr.vmem [resolvable:$true] %s1092
      %1098 = dma.vmem_to_hbm [thread:$0]  %s1093, 8192, %s3, [#allocation4], 128, 128, 8
    $region25: #{segmenter_vit_forward.45} parent=1 // pred_fallthru
      _
    // Predicated region
    $region26: #{segmenter_vit_forward.45} parent=1 // pred_check
      _
    $region27: #{segmenter_vit_forward.45} parent=1 // pred_check_branch
      %1100 = sbr.rel (0) target = $region29
    $region28: #{segmenter_vit_forward.45} parent=1 // pred_region
      %1101 = dma.done [#allocation4], 8192
    $region29: #{segmenter_vit_forward.45} parent=1 // pred_fallthru
      _
    %1102 = vsyncpa [#allocation4], 1

// kernel: segmenter_vit_forward.44
$region0: #{segmenter_vit_forward.44}
  #allocation0 [shape = 'u32[]', space=smem, size = 0x4, offset = 0x4, fixed_abs, tag = 'smem constant byte address 0x4 - core index']
  #allocation1 [shape = 'u32[144,128]{1,0:T(1,128)}', space=vmem, size = 0x12000, scoped, tag = 'internal scratch']
  #allocation2 [shape = 'f32[512,128]{1,0:T(8,128)}', space=vmem, size = 0x40000, scoped, tag = 'scratch operand']
  %s0 = inlined_call_operand.vmem [shape: bf16[512,128], index: 0, kind: input, shape index: {}]
  %s1 = inlined_call_operand.vmem [shape: bf16[128,128], index: 1, kind: input, shape index: {}]
  %s2 = inlined_call_operand.vmem [shape: f32[1,128], index: 2, kind: input, shape index: {}]
  %s3 = inlined_call_operand.vmem [shape: bf16[512,128], index: 3, kind: output, shape index: {}]
  %s4 = sld [smem:[#allocation0]]
  $region30: #{segmenter_vit_forward.44} parent=0
    _
  %s6 = ssub.s32 1, %s4
  %s7 = scalar_select 0, %s6, %s4
  // Predicated region
  $region2: #{segmenter_vit_forward.44} parent=0 // pred_check
    _
  $region3: #{segmenter_vit_forward.44} parent=0 // pred_check_branch
    %9 = sbr.rel (0) target = $region5
  $region4: #{segmenter_vit_forward.44} parent=0 // pred_region
    _
  $region5: #{segmenter_vit_forward.44} parent=0 // pred_fallthru
    _
  // Predicated region
  $region6: #{segmenter_vit_forward.44} parent=0 // pred_check
    _
  $region7: #{segmenter_vit_forward.44} parent=0 // pred_check_branch
    %11 = sbr.rel (0) target = $region9
  $region8: #{segmenter_vit_forward.44} parent=0 // pred_region
    _
  $region9: #{segmenter_vit_forward.44} parent=0 // pred_fallthru
    _
  // Predicated region
  $region10: #{segmenter_vit_forward.44} parent=0 // pred_check
    _
  $region11: #{segmenter_vit_forward.44} parent=0 // pred_check_branch
    %13 = sbr.rel (0) target = $region13
  $region12: #{segmenter_vit_forward.44} parent=0 // pred_region
    _
  $region13: #{segmenter_vit_forward.44} parent=0 // pred_fallthru
    _
  %p15 = scmp.eq.s32.totalorder 0, 0
  // Predicated region
  $region14: #{segmenter_vit_forward.44} parent=0 // pred_check
    %p16 = pneg %p15
  $region15: #{segmenter_vit_forward.44} parent=0 // pred_check_branch
    %18 = sbr.rel (%p16) target = $region17
  $region16: #{segmenter_vit_forward.44} parent=0 // pred_region
    %19 = vst [vmem:[#allocation2] sm:$0xff] 0.0
    %20 = vst [vmem:[#allocation2 + $0x8] sm:$0xff] 0.0
    %21 = vst [vmem:[#allocation2 + $0x10] sm:$0xff] 0.0
    %22 = vst [vmem:[#allocation2 + $0x18] sm:$0xff] 0.0
    %23 = vst [vmem:[#allocation2 + $0x20] sm:$0xff] 0.0
    %24 = vst [vmem:[#allocation2 + $0x28] sm:$0xff] 0.0
    %25 = vst [vmem:[#allocation2 + $0x30] sm:$0xff] 0.0
    %26 = vst [vmem:[#allocation2 + $0x38] sm:$0xff] 0.0
    %27 = vst [vmem:[#allocation2 + $0x40] sm:$0xff] 0.0
    %28 = vst [vmem:[#allocation2 + $0x48] sm:$0xff] 0.0
    %29 = vst [vmem:[#allocation2 + $0x50] sm:$0xff] 0.0
    %30 = vst [vmem:[#allocation2 + $0x58] sm:$0xff] 0.0
    %31 = vst [vmem:[#allocation2 + $0x60] sm:$0xff] 0.0
    %32 = vst [vmem:[#allocation2 + $0x68] sm:$0xff] 0.0
    %33 = vst [vmem:[#allocation2 + $0x70] sm:$0xff] 0.0
    %34 = vst [vmem:[#allocation2 + $0x78] sm:$0xff] 0.0
    %35 = vst [vmem:[#allocation2 + $0x80] sm:$0xff] 0.0
    %36 = vst [vmem:[#allocation2 + $0x88] sm:$0xff] 0.0
    %37 = vst [vmem:[#allocation2 + $0x90] sm:$0xff] 0.0
    %38 = vst [vmem:[#allocation2 + $0x98] sm:$0xff] 0.0
    %39 = vst [vmem:[#allocation2 + $0xa0] sm:$0xff] 0.0
    %40 = vst [vmem:[#allocation2 + $0xa8] sm:$0xff] 0.0
    %41 = vst [vmem:[#allocation2 + $0xb0] sm:$0xff] 0.0
    %42 = vst [vmem:[#allocation2 + $0xb8] sm:$0xff] 0.0
    %43 = vst [vmem:[#allocation2 + $0xc0] sm:$0xff] 0.0
    %44 = vst [vmem:[#allocation2 + $0xc8] sm:$0xff] 0.0
    %45 = vst [vmem:[#allocation2 + $0xd0] sm:$0xff] 0.0
    %46 = vst [vmem:[#allocation2 + $0xd8] sm:$0xff] 0.0
    %47 = vst [vmem:[#allocation2 + $0xe0] sm:$0xff] 0.0
    %48 = vst [vmem:[#allocation2 + $0xe8] sm:$0xff] 0.0
    %49 = vst [vmem:[#allocation2 + $0xf0] sm:$0xff] 0.0
    %50 = vst [vmem:[#allocation2 + $0xf8] sm:$0xff] 0.0
    %51 = vst [vmem:[#allocation2 + $0x100] sm:$0xff] 0.0
    %52 = vst [vmem:[#allocation2 + $0x108] sm:$0xff] 0.0
    %53 = vst [vmem:[#allocation2 + $0x110] sm:$0xff] 0.0
    %54 = vst [vmem:[#allocation2 + $0x118] sm:$0xff] 0.0
    %55 = vst [vmem:[#allocation2 + $0x120] sm:$0xff] 0.0
    %56 = vst [vmem:[#allocation2 + $0x128] sm:$0xff] 0.0
    %57 = vst [vmem:[#allocation2 + $0x130] sm:$0xff] 0.0
    %58 = vst [vmem:[#allocation2 + $0x138] sm:$0xff] 0.0
    %59 = vst [vmem:[#allocation2 + $0x140] sm:$0xff] 0.0
    %60 = vst [vmem:[#allocation2 + $0x148] sm:$0xff] 0.0
    %61 = vst [vmem:[#allocation2 + $0x150] sm:$0xff] 0.0
    %62 = vst [vmem:[#allocation2 + $0x158] sm:$0xff] 0.0
    %63 = vst [vmem:[#allocation2 + $0x160] sm:$0xff] 0.0
    %64 = vst [vmem:[#allocation2 + $0x168] sm:$0xff] 0.0
    %65 = vst [vmem:[#allocation2 + $0x170] sm:$0xff] 0.0
    %66 = vst [vmem:[#allocation2 + $0x178] sm:$0xff] 0.0
    %67 = vst [vmem:[#allocation2 + $0x180] sm:$0xff] 0.0
    %68 = vst [vmem:[#allocation2 + $0x188] sm:$0xff] 0.0
    %69 = vst [vmem:[#allocation2 + $0x190] sm:$0xff] 0.0
    %70 = vst [vmem:[#allocation2 + $0x198] sm:$0xff] 0.0
    %71 = vst [vmem:[#allocation2 + $0x1a0] sm:$0xff] 0.0
    %72 = vst [vmem:[#allocation2 + $0x1a8] sm:$0xff] 0.0
    %73 = vst [vmem:[#allocation2 + $0x1b0] sm:$0xff] 0.0
    %74 = vst [vmem:[#allocation2 + $0x1b8] sm:$0xff] 0.0
    %75 = vst [vmem:[#allocation2 + $0x1c0] sm:$0xff] 0.0
    %76 = vst [vmem:[#allocation2 + $0x1c8] sm:$0xff] 0.0
    %77 = vst [vmem:[#allocation2 + $0x1d0] sm:$0xff] 0.0
    %78 = vst [vmem:[#allocation2 + $0x1d8] sm:$0xff] 0.0
    %79 = vst [vmem:[#allocation2 + $0x1e0] sm:$0xff] 0.0
    %80 = vst [vmem:[#allocation2 + $0x1e8] sm:$0xff] 0.0
    %81 = vst [vmem:[#allocation2 + $0x1f0] sm:$0xff] 0.0
    %82 = vst [vmem:[#allocation2 + $0x1f8] sm:$0xff] 0.0
  $region17: #{segmenter_vit_forward.44} parent=0 // pred_fallthru
    _
  %v83 = vld [vmem:[#allocation2] sm:$0xff]
  %v84 = vld [vmem:[#allocation2 + $0x8] sm:$0xff]
  %v85 = vld [vmem:[#allocation2 + $0x10] sm:$0xff]
  %v86 = vld [vmem:[#allocation2 + $0x18] sm:$0xff]
  %v87 = vld [vmem:[#allocation2 + $0x20] sm:$0xff]
  %v88 = vld [vmem:[#allocation2 + $0x28] sm:$0xff]
  %v89 = vld [vmem:[#allocation2 + $0x30] sm:$0xff]
  %v90 = vld [vmem:[#allocation2 + $0x38] sm:$0xff]
  %v91 = vld [vmem:[#allocation2 + $0x40] sm:$0xff]
  %v92 = vld [vmem:[#allocation2 + $0x48] sm:$0xff]
  %v93 = vld [vmem:[#allocation2 + $0x50] sm:$0xff]
  %v94 = vld [vmem:[#allocation2 + $0x58] sm:$0xff]
  %v95 = vld [vmem:[#allocation2 + $0x60] sm:$0xff]
  %v96 = vld [vmem:[#allocation2 + $0x68] sm:$0xff]
  %v97 = vld [vmem:[#allocation2 + $0x70] sm:$0xff]
  %v98 = vld [vmem:[#allocation2 + $0x78] sm:$0xff]
  %v99 = vld [vmem:[#allocation2 + $0x80] sm:$0xff]
  %v100 = vld [vmem:[#allocation2 + $0x88] sm:$0xff]
  %v101 = vld [vmem:[#allocation2 + $0x90] sm:$0xff]
  %v102 = vld [vmem:[#allocation2 + $0x98] sm:$0xff]
  %v103 = vld [vmem:[#allocation2 + $0xa0] sm:$0xff]
  %v104 = vld [vmem:[#allocation2 + $0xa8] sm:$0xff]
  %v105 = vld [vmem:[#allocation2 + $0xb0] sm:$0xff]
  %v106 = vld [vmem:[#allocation2 + $0xb8] sm:$0xff]
  %v107 = vld [vmem:[#allocation2 + $0xc0] sm:$0xff]
  %v108 = vld [vmem:[#allocation2 + $0xc8] sm:$0xff]
  %v109 = vld [vmem:[#allocation2 + $0xd0] sm:$0xff]
  %v110 = vld [vmem:[#allocation2 + $0xd8] sm:$0xff]
  %v111 = vld [vmem:[#allocation2 + $0xe0] sm:$0xff]
  %v112 = vld [vmem:[#allocation2 + $0xe8] sm:$0xff]
  %v113 = vld [vmem:[#allocation2 + $0xf0] sm:$0xff]
  %v114 = vld [vmem:[#allocation2 + $0xf8] sm:$0xff]
  %v115 = vld [vmem:[#allocation2 + $0x100] sm:$0xff]
  %v116 = vld [vmem:[#allocation2 + $0x108] sm:$0xff]
  %v117 = vld [vmem:[#allocation2 + $0x110] sm:$0xff]
  %v118 = vld [vmem:[#allocation2 + $0x118] sm:$0xff]
  %v119 = vld [vmem:[#allocation2 + $0x120] sm:$0xff]
  %v120 = vld [vmem:[#allocation2 + $0x128] sm:$0xff]
  %v121 = vld [vmem:[#allocation2 + $0x130] sm:$0xff]
  %v122 = vld [vmem:[#allocation2 + $0x138] sm:$0xff]
  %v123 = vld [vmem:[#allocation2 + $0x140] sm:$0xff]
  %v124 = vld [vmem:[#allocation2 + $0x148] sm:$0xff]
  %v125 = vld [vmem:[#allocation2 + $0x150] sm:$0xff]
  %v126 = vld [vmem:[#allocation2 + $0x158] sm:$0xff]
  %v127 = vld [vmem:[#allocation2 + $0x160] sm:$0xff]
  %v128 = vld [vmem:[#allocation2 + $0x168] sm:$0xff]
  %v129 = vld [vmem:[#allocation2 + $0x170] sm:$0xff]
  %v130 = vld [vmem:[#allocation2 + $0x178] sm:$0xff]
  %v131 = vld [vmem:[#allocation2 + $0x180] sm:$0xff]
  %v132 = vld [vmem:[#allocation2 + $0x188] sm:$0xff]
  %v133 = vld [vmem:[#allocation2 + $0x190] sm:$0xff]
  %v134 = vld [vmem:[#allocation2 + $0x198] sm:$0xff]
  %v135 = vld [vmem:[#allocation2 + $0x1a0] sm:$0xff]
  %v136 = vld [vmem:[#allocation2 + $0x1a8] sm:$0xff]
  %v137 = vld [vmem:[#allocation2 + $0x1b0] sm:$0xff]
  %v138 = vld [vmem:[#allocation2 + $0x1b8] sm:$0xff]
  %v139 = vld [vmem:[#allocation2 + $0x1c0] sm:$0xff]
  %v140 = vld [vmem:[#allocation2 + $0x1c8] sm:$0xff]
  %v141 = vld [vmem:[#allocation2 + $0x1d0] sm:$0xff]
  %v142 = vld [vmem:[#allocation2 + $0x1d8] sm:$0xff]
  %v143 = vld [vmem:[#allocation2 + $0x1e0] sm:$0xff]
  %v144 = vld [vmem:[#allocation2 + $0x1e8] sm:$0xff]
  %v145 = vld [vmem:[#allocation2 + $0x1f0] sm:$0xff]
  %v146 = vld [vmem:[#allocation2 + $0x1f8] sm:$0xff]
  %v147 = vld [vmem:[%s0] sm:$0xf]
  %v148 = vld [vmem:[%s0 + $0x4] sm:$0xf]
  %v149 = vld [vmem:[%s0 + $0x8] sm:$0xf]
  %v150 = vld [vmem:[%s0 + $0xc] sm:$0xf]
  %v151 = vld [vmem:[%s0 + $0x10] sm:$0xf]
  %v152 = vld [vmem:[%s0 + $0x14] sm:$0xf]
  %v153 = vld [vmem:[%s0 + $0x18] sm:$0xf]
  %v154 = vld [vmem:[%s0 + $0x1c] sm:$0xf]
  %v155 = vld [vmem:[%s0 + $0x20] sm:$0xf]
  %v156 = vld [vmem:[%s0 + $0x24] sm:$0xf]
  %v157 = vld [vmem:[%s0 + $0x28] sm:$0xf]
  %v158 = vld [vmem:[%s0 + $0x2c] sm:$0xf]
  %v159 = vld [vmem:[%s0 + $0x30] sm:$0xf]
  %v160 = vld [vmem:[%s0 + $0x34] sm:$0xf]
  %v161 = vld [vmem:[%s0 + $0x38] sm:$0xf]
  %v162 = vld [vmem:[%s0 + $0x3c] sm:$0xf]
  %v163 = vld [vmem:[%s0 + $0x40] sm:$0xf]
  %v164 = vld [vmem:[%s0 + $0x44] sm:$0xf]
  %v165 = vld [vmem:[%s0 + $0x48] sm:$0xf]
  %v166 = vld [vmem:[%s0 + $0x4c] sm:$0xf]
  %v167 = vld [vmem:[%s0 + $0x50] sm:$0xf]
  %v168 = vld [vmem:[%s0 + $0x54] sm:$0xf]
  %v169 = vld [vmem:[%s0 + $0x58] sm:$0xf]
  %v170 = vld [vmem:[%s0 + $0x5c] sm:$0xf]
  %v171 = vld [vmem:[%s0 + $0x60] sm:$0xf]
  %v172 = vld [vmem:[%s0 + $0x64] sm:$0xf]
  %v173 = vld [vmem:[%s0 + $0x68] sm:$0xf]
  %v174 = vld [vmem:[%s0 + $0x6c] sm:$0xf]
  %v175 = vld [vmem:[%s0 + $0x70] sm:$0xf]
  %v176 = vld [vmem:[%s0 + $0x74] sm:$0xf]
  %v177 = vld [vmem:[%s0 + $0x78] sm:$0xf]
  %v178 = vld [vmem:[%s0 + $0x7c] sm:$0xf]
  %v179 = vld [vmem:[%s0 + $0x80] sm:$0xf]
  %v180 = vld [vmem:[%s0 + $0x84] sm:$0xf]
  %v181 = vld [vmem:[%s0 + $0x88] sm:$0xf]
  %v182 = vld [vmem:[%s0 + $0x8c] sm:$0xf]
  %v183 = vld [vmem:[%s0 + $0x90] sm:$0xf]
  %v184 = vld [vmem:[%s0 + $0x94] sm:$0xf]
  %v185 = vld [vmem:[%s0 + $0x98] sm:$0xf]
  %v186 = vld [vmem:[%s0 + $0x9c] sm:$0xf]
  %v187 = vld [vmem:[%s0 + $0xa0] sm:$0xf]
  %v188 = vld [vmem:[%s0 + $0xa4] sm:$0xf]
  %v189 = vld [vmem:[%s0 + $0xa8] sm:$0xf]
  %v190 = vld [vmem:[%s0 + $0xac] sm:$0xf]
  %v191 = vld [vmem:[%s0 + $0xb0] sm:$0xf]
  %v192 = vld [vmem:[%s0 + $0xb4] sm:$0xf]
  %v193 = vld [vmem:[%s0 + $0xb8] sm:$0xf]
  %v194 = vld [vmem:[%s0 + $0xbc] sm:$0xf]
  %v195 = vld [vmem:[%s0 + $0xc0] sm:$0xf]
  %v196 = vld [vmem:[%s0 + $0xc4] sm:$0xf]
  %v197 = vld [vmem:[%s0 + $0xc8] sm:$0xf]
  %v198 = vld [vmem:[%s0 + $0xcc] sm:$0xf]
  %v199 = vld [vmem:[%s0 + $0xd0] sm:$0xf]
  %v200 = vld [vmem:[%s0 + $0xd4] sm:$0xf]
  %v201 = vld [vmem:[%s0 + $0xd8] sm:$0xf]
  %v202 = vld [vmem:[%s0 + $0xdc] sm:$0xf]
  %v203 = vld [vmem:[%s0 + $0xe0] sm:$0xf]
  %v204 = vld [vmem:[%s0 + $0xe4] sm:$0xf]
  %v205 = vld [vmem:[%s0 + $0xe8] sm:$0xf]
  %v206 = vld [vmem:[%s0 + $0xec] sm:$0xf]
  %v207 = vld [vmem:[%s0 + $0xf0] sm:$0xf]
  %v208 = vld [vmem:[%s0 + $0xf4] sm:$0xf]
  %v209 = vld [vmem:[%s0 + $0xf8] sm:$0xf]
  %v210 = vld [vmem:[%s0 + $0xfc] sm:$0xf]
  %v211 = vld [vmem:[%s1] sm:$0xf]
  %v212 = vld [vmem:[%s1 + $0x4] sm:$0xf]
  %v213 = vld [vmem:[%s1 + $0x8] sm:$0xf]
  %v214 = vld [vmem:[%s1 + $0xc] sm:$0xf]
  %v215 = vld [vmem:[%s1 + $0x10] sm:$0xf]
  %v216 = vld [vmem:[%s1 + $0x14] sm:$0xf]
  %v217 = vld [vmem:[%s1 + $0x18] sm:$0xf]
  %v218 = vld [vmem:[%s1 + $0x1c] sm:$0xf]
  %v219 = vld [vmem:[%s1 + $0x20] sm:$0xf]
  %v220 = vld [vmem:[%s1 + $0x24] sm:$0xf]
  %v221 = vld [vmem:[%s1 + $0x28] sm:$0xf]
  %v222 = vld [vmem:[%s1 + $0x2c] sm:$0xf]
  %v223 = vld [vmem:[%s1 + $0x30] sm:$0xf]
  %v224 = vld [vmem:[%s1 + $0x34] sm:$0xf]
  %v225 = vld [vmem:[%s1 + $0x38] sm:$0xf]
  %v226 = vld [vmem:[%s1 + $0x3c] sm:$0xf]
  %v291 = vunpack.c.l.b16 %v147
  %v292 = vunpack.c.l.b16 %v148
  %v293 = vunpack.c.l.b16 %v149
  %v294 = vunpack.c.l.b16 %v150
  %v295 = vunpack.c.l.b16 %v151
  %v296 = vunpack.c.l.b16 %v152
  %v297 = vunpack.c.l.b16 %v153
  %v298 = vunpack.c.l.b16 %v154
  %v299 = vunpack.c.l.b16 %v155
  %v300 = vunpack.c.l.b16 %v156
  %v301 = vunpack.c.l.b16 %v157
  %v302 = vunpack.c.l.b16 %v158
  %v303 = vunpack.c.l.b16 %v159
  %v304 = vunpack.c.l.b16 %v160
  %v305 = vunpack.c.l.b16 %v161
  %v306 = vunpack.c.l.b16 %v162
  %v307 = vunpack.c.l.b16 %v163
  %v308 = vunpack.c.l.b16 %v164
  %v309 = vunpack.c.l.b16 %v165
  %v310 = vunpack.c.l.b16 %v166
  %v311 = vunpack.c.l.b16 %v167
  %v312 = vunpack.c.l.b16 %v168
  %v313 = vunpack.c.l.b16 %v169
  %v314 = vunpack.c.l.b16 %v170
  %v315 = vunpack.c.l.b16 %v171
  %v316 = vunpack.c.l.b16 %v172
  %v317 = vunpack.c.l.b16 %v173
  %v318 = vunpack.c.l.b16 %v174
  %v319 = vunpack.c.l.b16 %v175
  %v320 = vunpack.c.l.b16 %v176
  %v321 = vunpack.c.l.b16 %v177
  %v322 = vunpack.c.l.b16 %v178
  %v323 = vunpack.c.l.b16 %v179
  %v324 = vunpack.c.l.b16 %v180
  %v325 = vunpack.c.l.b16 %v181
  %v326 = vunpack.c.l.b16 %v182
  %v327 = vunpack.c.l.b16 %v183
  %v328 = vunpack.c.l.b16 %v184
  %v329 = vunpack.c.l.b16 %v185
  %v330 = vunpack.c.l.b16 %v186
  %v331 = vunpack.c.l.b16 %v187
  %v332 = vunpack.c.l.b16 %v188
  %v333 = vunpack.c.l.b16 %v189
  %v334 = vunpack.c.l.b16 %v190
  %v335 = vunpack.c.l.b16 %v191
  %v336 = vunpack.c.l.b16 %v192
  %v337 = vunpack.c.l.b16 %v193
  %v338 = vunpack.c.l.b16 %v194
  %v339 = vunpack.c.l.b16 %v195
  %v340 = vunpack.c.l.b16 %v196
  %v341 = vunpack.c.l.b16 %v197
  %v342 = vunpack.c.l.b16 %v198
  %v343 = vunpack.c.l.b16 %v199
  %v344 = vunpack.c.l.b16 %v200
  %v345 = vunpack.c.l.b16 %v201
  %v346 = vunpack.c.l.b16 %v202
  %v347 = vunpack.c.l.b16 %v203
  %v348 = vunpack.c.l.b16 %v204
  %v349 = vunpack.c.l.b16 %v205
  %v350 = vunpack.c.l.b16 %v206
  %v351 = vunpack.c.l.b16 %v207
  %v352 = vunpack.c.l.b16 %v208
  %v353 = vunpack.c.l.b16 %v209
  %v354 = vunpack.c.l.b16 %v210
  %v355 = vpack.c.b16 %v292, %v291
  %v356 = vpack.c.b16 %v294, %v293
  %v357 = vpack.c.b16 %v296, %v295
  %v358 = vpack.c.b16 %v298, %v297
  %v359 = vpack.c.b16 %v300, %v299
  %v360 = vpack.c.b16 %v302, %v301
  %v361 = vpack.c.b16 %v304, %v303
  %v362 = vpack.c.b16 %v306, %v305
  %v363 = vpack.c.b16 %v308, %v307
  %v364 = vpack.c.b16 %v310, %v309
  %v365 = vpack.c.b16 %v312, %v311
  %v366 = vpack.c.b16 %v314, %v313
  %v367 = vpack.c.b16 %v316, %v315
  %v368 = vpack.c.b16 %v318, %v317
  %v369 = vpack.c.b16 %v320, %v319
  %v370 = vpack.c.b16 %v322, %v321
  %v371 = vpack.c.b16 %v324, %v323
  %v372 = vpack.c.b16 %v326, %v325
  %v373 = vpack.c.b16 %v328, %v327
  %v374 = vpack.c.b16 %v330, %v329
  %v375 = vpack.c.b16 %v332, %v331
  %v376 = vpack.c.b16 %v334, %v333
  %v377 = vpack.c.b16 %v336, %v335
  %v378 = vpack.c.b16 %v338, %v337
  %v379 = vpack.c.b16 %v340, %v339
  %v380 = vpack.c.b16 %v342, %v341
  %v381 = vpack.c.b16 %v344, %v343
  %v382 = vpack.c.b16 %v346, %v345
  %v383 = vpack.c.b16 %v348, %v347
  %v384 = vpack.c.b16 %v350, %v349
  %v385 = vpack.c.b16 %v352, %v351
  %v386 = vpack.c.b16 %v354, %v353
  %v435 = vunpack.c.l.b16 %v211
  %v436 = vunpack.c.l.b16 %v212
  %v437 = vunpack.c.l.b16 %v213
  %v438 = vunpack.c.l.b16 %v214
  %v439 = vunpack.c.l.b16 %v215
  %v440 = vunpack.c.l.b16 %v216
  %v441 = vunpack.c.l.b16 %v217
  %v442 = vunpack.c.l.b16 %v218
  %v443 = vunpack.c.l.b16 %v219
  %v444 = vunpack.c.l.b16 %v220
  %v445 = vunpack.c.l.b16 %v221
  %v446 = vunpack.c.l.b16 %v222
  %v447 = vunpack.c.l.b16 %v223
  %v448 = vunpack.c.l.b16 %v224
  %v449 = vunpack.c.l.b16 %v225
  %v450 = vunpack.c.l.b16 %v226
  %v451 = vpack.c.b16 %v436, %v435
  %v452 = vpack.c.b16 %v438, %v437
  %v453 = vpack.c.b16 %v440, %v439
  %v454 = vpack.c.b16 %v442, %v441
  %v455 = vpack.c.b16 %v444, %v443
  %v456 = vpack.c.b16 %v446, %v445
  %v457 = vpack.c.b16 %v448, %v447
  %v458 = vpack.c.b16 %v450, %v449
  %467 = vmatprep.subr.bf16.mxu0 0
  %468 = vmatpush1.bf16.msra.mxu0 %v451
  %469 = vmatprep.subr.bf16.mxu0 0
  %470 = vmatpush1.bf16.msra.mxu0 %v452
  %471 = vmatprep.subr.bf16.mxu0 0
  %472 = vmatpush1.bf16.msra.mxu0 %v453
  %473 = vmatprep.subr.bf16.mxu0 0
  %474 = vmatpush1.bf16.msra.mxu0 %v454
  %475 = vmatprep.subr.bf16.mxu0 0
  %476 = vmatpush1.bf16.msra.mxu0 %v455
  %477 = vmatprep.subr.bf16.mxu0 0
  %478 = vmatpush1.bf16.msra.mxu0 %v456
  %479 = vmatprep.subr.bf16.mxu0 0
  %480 = vmatpush1.bf16.msra.mxu0 %v457
  %481 = vmatprep.subr.bf16.mxu0 0
  %482 = vmatpush1.bf16.msra.mxu0 %v458
  %483 = vmatprep.subr.bf16.mxu0 0
  %484 = vmatpush1.bf16.msra.mxu0 0
  %485 = vmatprep.subr.bf16.mxu0 0
  %486 = vmatpush1.bf16.msra.mxu0 0
  %487 = vmatprep.subr.bf16.mxu0 0
  %488 = vmatpush1.bf16.msra.mxu0 0
  %489 = vmatprep.subr.bf16.mxu0 0
  %490 = vmatpush1.bf16.msra.mxu0 0
  %491 = vmatprep.subr.bf16.mxu0 0
  %492 = vmatpush1.bf16.msra.mxu0 0
  %493 = vmatprep.subr.bf16.mxu0 0
  %494 = vmatpush1.bf16.msra.mxu0 0
  %495 = vmatprep.subr.bf16.mxu0 0
  %496 = vmatpush1.bf16.msra.mxu0 0
  %497 = vmatprep.subr.bf16.mxu0 0
  %498 = vmatpush1.bf16.msra.mxu0 0
  %499 = vmatprep.mubr.bf16.mxu0 0
  %500 = vmatmul.mubr.bf16.gmra.mrb[0].mxu0 %v355
  %v501 = vpop.f32.mrb[0].mxu0
  %v502 = vadd.f32 0.0, %v501
  %v503 = vpop.f32.mrb[0].mxu0
  %v504 = vpop.f32.mrb[0].mxu0
  %v505 = vadd.f32 0.0, %v504
  %v506 = vpop.f32.mrb[0].mxu0
  %507 = vmatprep.mubr.bf16.mxu0 0
  %508 = vmatmul.mubr.bf16.gmra.mrb[0].mxu0 %v356
  %v509 = vpop.f32.mrb[0].mxu0
  %v510 = vadd.f32 0.0, %v509
  %v511 = vpop.f32.mrb[0].mxu0
  %v512 = vpop.f32.mrb[0].mxu0
  %v513 = vadd.f32 0.0, %v512
  %v514 = vpop.f32.mrb[0].mxu0
  %515 = vmatprep.mubr.bf16.mxu0 0
  %516 = vmatmul.mubr.bf16.gmra.mrb[0].mxu0 %v357
  %v517 = vpop.f32.mrb[0].mxu0
  %v518 = vadd.f32 0.0, %v517
  %v519 = vpop.f32.mrb[0].mxu0
  %v520 = vpop.f32.mrb[0].mxu0
  %v521 = vadd.f32 0.0, %v520
  %v522 = vpop.f32.mrb[0].mxu0
  %523 = vmatprep.mubr.bf16.mxu0 0
  %524 = vmatmul.mubr.bf16.gmra.mrb[0].mxu0 %v358
  %v525 = vpop.f32.mrb[0].mxu0
  %v526 = vadd.f32 0.0, %v525
  %v527 = vpop.f32.mrb[0].mxu0
  %v528 = vpop.f32.mrb[0].mxu0
  %v529 = vadd.f32 0.0, %v528
  %v530 = vpop.f32.mrb[0].mxu0
  %531 = vmatprep.mubr.bf16.mxu0 0
  %532 = vmatmul.mubr.bf16.gmra.mrb[0].mxu0 %v359
  %v533 = vpop.f32.mrb[0].mxu0
  %v534 = vadd.f32 0.0, %v533
  %v535 = vpop.f32.mrb[0].mxu0
  %v536 = vpop.f32.mrb[0].mxu0
  %v537 = vadd.f32 0.0, %v536
  %v538 = vpop.f32.mrb[0].mxu0
  %539 = vmatprep.mubr.bf16.mxu0 0
  %540 = vmatmul.mubr.bf16.gmra.mrb[0].mxu0 %v360
  %v541 = vpop.f32.mrb[0].mxu0
  %v542 = vadd.f32 0.0, %v541
  %v543 = vpop.f32.mrb[0].mxu0
  %v544 = vpop.f32.mrb[0].mxu0
  %v545 = vadd.f32 0.0, %v544
  %v546 = vpop.f32.mrb[0].mxu0
  %547 = vmatprep.mubr.bf16.mxu0 0
  %548 = vmatmul.mubr.bf16.gmra.mrb[0].mxu0 %v361
  %v549 = vpop.f32.mrb[0].mxu0
  %v550 = vadd.f32 0.0, %v549
  %v551 = vpop.f32.mrb[0].mxu0
  %v552 = vpop.f32.mrb[0].mxu0
  %v553 = vadd.f32 0.0, %v552
  %v554 = vpop.f32.mrb[0].mxu0
  %555 = vmatprep.mubr.bf16.mxu0 0
  %556 = vmatmul.mubr.bf16.gmra.mrb[0].mxu0 %v362
  %v557 = vpop.f32.mrb[0].mxu0
  %v558 = vadd.f32 0.0, %v557
  %v559 = vpop.f32.mrb[0].mxu0
  %v560 = vpop.f32.mrb[0].mxu0
  %v561 = vadd.f32 0.0, %v560
  %v562 = vpop.f32.mrb[0].mxu0
  %563 = vmatprep.mubr.bf16.mxu0 0
  %564 = vmatmul.mubr.bf16.gmra.mrb[0].mxu0 %v363
  %v565 = vpop.f32.mrb[0].mxu0
  %v566 = vadd.f32 0.0, %v565
  %v567 = vpop.f32.mrb[0].mxu0
  %v568 = vpop.f32.mrb[0].mxu0
  %v569 = vadd.f32 0.0, %v568
  %v570 = vpop.f32.mrb[0].mxu0
  %571 = vmatprep.mubr.bf16.mxu0 0
  %572 = vmatmul.mubr.bf16.gmra.mrb[0].mxu0 %v364
  %v573 = vpop.f32.mrb[0].mxu0
  %v574 = vadd.f32 0.0, %v573
  %v575 = vpop.f32.mrb[0].mxu0
  %v576 = vpop.f32.mrb[0].mxu0
  %v577 = vadd.f32 0.0, %v576
  %v578 = vpop.f32.mrb[0].mxu0
  %579 = vmatprep.mubr.bf16.mxu0 0
  %580 = vmatmul.mubr.bf16.gmra.mrb[0].mxu0 %v365
  %v581 = vpop.f32.mrb[0].mxu0
  %v582 = vadd.f32 0.0, %v581
  %v583 = vpop.f32.mrb[0].mxu0
  %v584 = vpop.f32.mrb[0].mxu0
  %v585 = vadd.f32 0.0, %v584
  %v586 = vpop.f32.mrb[0].mxu0
  %587 = vmatprep.mubr.bf16.mxu0 0
  %588 = vmatmul.mubr.bf16.gmra.mrb[0].mxu0 %v366
  %v589 = vpop.f32.mrb[0].mxu0
  %v590 = vadd.f32 0.0, %v589
  %v591 = vpop.f32.mrb[0].mxu0
  %v592 = vpop.f32.mrb[0].mxu0
  %v593 = vadd.f32 0.0, %v592
  %v594 = vpop.f32.mrb[0].mxu0
  %595 = vmatprep.mubr.bf16.mxu0 0
  %596 = vmatmul.mubr.bf16.gmra.mrb[0].mxu0 %v367
  %v597 = vpop.f32.mrb[0].mxu0
  %v598 = vadd.f32 0.0, %v597
  %v599 = vpop.f32.mrb[0].mxu0
  %v600 = vpop.f32.mrb[0].mxu0
  %v601 = vadd.f32 0.0, %v600
  %v602 = vpop.f32.mrb[0].mxu0
  %603 = vmatprep.mubr.bf16.mxu0 0
  %604 = vmatmul.mubr.bf16.gmra.mrb[0].mxu0 %v368
  %v605 = vpop.f32.mrb[0].mxu0
  %v606 = vadd.f32 0.0, %v605
  %v607 = vpop.f32.mrb[0].mxu0
  %v608 = vpop.f32.mrb[0].mxu0
  %v609 = vadd.f32 0.0, %v608
  %v610 = vpop.f32.mrb[0].mxu0
  %611 = vmatprep.mubr.bf16.mxu0 0
  %612 = vmatmul.mubr.bf16.gmra.mrb[0].mxu0 %v369
  %v613 = vpop.f32.mrb[0].mxu0
  %v614 = vadd.f32 0.0, %v613
  %v615 = vpop.f32.mrb[0].mxu0
  %v616 = vpop.f32.mrb[0].mxu0
  %v617 = vadd.f32 0.0, %v616
  %v618 = vpop.f32.mrb[0].mxu0
  %619 = vmatprep.mubr.bf16.mxu0 0
  %620 = vmatmul.mubr.bf16.gmra.mrb[0].mxu0 %v370
  %v621 = vpop.f32.mrb[0].mxu0
  %v622 = vadd.f32 0.0, %v621
  %v623 = vpop.f32.mrb[0].mxu0
  %v624 = vpop.f32.mrb[0].mxu0
  %v625 = vadd.f32 0.0, %v624
  %v626 = vpop.f32.mrb[0].mxu0
  %627 = vmatprep.mubr.bf16.mxu0 0
  %628 = vmatmul.mubr.bf16.gmra.mrb[0].mxu0 %v371
  %v629 = vpop.f32.mrb[0].mxu0
  %v630 = vadd.f32 0.0, %v629
  %v631 = vpop.f32.mrb[0].mxu0
  %v632 = vpop.f32.mrb[0].mxu0
  %v633 = vadd.f32 0.0, %v632
  %v634 = vpop.f32.mrb[0].mxu0
  %635 = vmatprep.mubr.bf16.mxu0 0
  %636 = vmatmul.mubr.bf16.gmra.mrb[0].mxu0 %v372
  %v637 = vpop.f32.mrb[0].mxu0
  %v638 = vadd.f32 0.0, %v637
  %v639 = vpop.f32.mrb[0].mxu0
  %v640 = vpop.f32.mrb[0].mxu0
  %v641 = vadd.f32 0.0, %v640
  %v642 = vpop.f32.mrb[0].mxu0
  %643 = vmatprep.mubr.bf16.mxu0 0
  %644 = vmatmul.mubr.bf16.gmra.mrb[0].mxu0 %v373
  %v645 = vpop.f32.mrb[0].mxu0
  %v646 = vadd.f32 0.0, %v645
  %v647 = vpop.f32.mrb[0].mxu0
  %v648 = vpop.f32.mrb[0].mxu0
  %v649 = vadd.f32 0.0, %v648
  %v650 = vpop.f32.mrb[0].mxu0
  %651 = vmatprep.mubr.bf16.mxu0 0
  %652 = vmatmul.mubr.bf16.gmra.mrb[0].mxu0 %v374
  %v653 = vpop.f32.mrb[0].mxu0
  %v654 = vadd.f32 0.0, %v653
  %v655 = vpop.f32.mrb[0].mxu0
  %v656 = vpop.f32.mrb[0].mxu0
  %v657 = vadd.f32 0.0, %v656
  %v658 = vpop.f32.mrb[0].mxu0
  %659 = vmatprep.mubr.bf16.mxu0 0
  %660 = vmatmul.mubr.bf16.gmra.mrb[0].mxu0 %v375
  %v661 = vpop.f32.mrb[0].mxu0
  %v662 = vadd.f32 0.0, %v661
  %v663 = vpop.f32.mrb[0].mxu0
  %v664 = vpop.f32.mrb[0].mxu0
  %v665 = vadd.f32 0.0, %v664
  %v666 = vpop.f32.mrb[0].mxu0
  %667 = vmatprep.mubr.bf16.mxu0 0
  %668 = vmatmul.mubr.bf16.gmra.mrb[0].mxu0 %v376
  %v669 = vpop.f32.mrb[0].mxu0
  %v670 = vadd.f32 0.0, %v669
  %v671 = vpop.f32.mrb[0].mxu0
  %v672 = vpop.f32.mrb[0].mxu0
  %v673 = vadd.f32 0.0, %v672
  %v674 = vpop.f32.mrb[0].mxu0
  %675 = vmatprep.mubr.bf16.mxu0 0
  %676 = vmatmul.mubr.bf16.gmra.mrb[0].mxu0 %v377
  %v677 = vpop.f32.mrb[0].mxu0
  %v678 = vadd.f32 0.0, %v677
  %v679 = vpop.f32.mrb[0].mxu0
  %v680 = vpop.f32.mrb[0].mxu0
  %v681 = vadd.f32 0.0, %v680
  %v682 = vpop.f32.mrb[0].mxu0
  %683 = vmatprep.mubr.bf16.mxu0 0
  %684 = vmatmul.mubr.bf16.gmra.mrb[0].mxu0 %v378
  %v685 = vpop.f32.mrb[0].mxu0
  %v686 = vadd.f32 0.0, %v685
  %v687 = vpop.f32.mrb[0].mxu0
  %v688 = vpop.f32.mrb[0].mxu0
  %v689 = vadd.f32 0.0, %v688
  %v690 = vpop.f32.mrb[0].mxu0
  %691 = vmatprep.mubr.bf16.mxu0 0
  %692 = vmatmul.mubr.bf16.gmra.mrb[0].mxu0 %v379
  %v693 = vpop.f32.mrb[0].mxu0
  %v694 = vadd.f32 0.0, %v693
  %v695 = vpop.f32.mrb[0].mxu0
  %v696 = vpop.f32.mrb[0].mxu0
  %v697 = vadd.f32 0.0, %v696
  %v698 = vpop.f32.mrb[0].mxu0
  %699 = vmatprep.mubr.bf16.mxu0 0
  %700 = vmatmul.mubr.bf16.gmra.mrb[0].mxu0 %v380
  %v701 = vpop.f32.mrb[0].mxu0
  %v702 = vadd.f32 0.0, %v701
  %v703 = vpop.f32.mrb[0].mxu0
  %v704 = vpop.f32.mrb[0].mxu0
  %v705 = vadd.f32 0.0, %v704
  %v706 = vpop.f32.mrb[0].mxu0
  %707 = vmatprep.mubr.bf16.mxu0 0
  %708 = vmatmul.mubr.bf16.gmra.mrb[0].mxu0 %v381
  %v709 = vpop.f32.mrb[0].mxu0
  %v710 = vadd.f32 0.0, %v709
  %v711 = vpop.f32.mrb[0].mxu0
  %v712 = vpop.f32.mrb[0].mxu0
  %v713 = vadd.f32 0.0, %v712
  %v714 = vpop.f32.mrb[0].mxu0
  %715 = vmatprep.mubr.bf16.mxu0 0
  %716 = vmatmul.mubr.bf16.gmra.mrb[0].mxu0 %v382
  %v717 = vpop.f32.mrb[0].mxu0
  %v718 = vadd.f32 0.0, %v717
  %v719 = vpop.f32.mrb[0].mxu0
  %v720 = vpop.f32.mrb[0].mxu0
  %v721 = vadd.f32 0.0, %v720
  %v722 = vpop.f32.mrb[0].mxu0
  %723 = vmatprep.mubr.bf16.mxu0 0
  %724 = vmatmul.mubr.bf16.gmra.mrb[0].mxu0 %v383
  %v725 = vpop.f32.mrb[0].mxu0
  %v726 = vadd.f32 0.0, %v725
  %v727 = vpop.f32.mrb[0].mxu0
  %v728 = vpop.f32.mrb[0].mxu0
  %v729 = vadd.f32 0.0, %v728
  %v730 = vpop.f32.mrb[0].mxu0
  %731 = vmatprep.mubr.bf16.mxu0 0
  %732 = vmatmul.mubr.bf16.gmra.mrb[0].mxu0 %v384
  %v733 = vpop.f32.mrb[0].mxu0
  %v734 = vadd.f32 0.0, %v733
  %v735 = vpop.f32.mrb[0].mxu0
  %v736 = vpop.f32.mrb[0].mxu0
  %v737 = vadd.f32 0.0, %v736
  %v738 = vpop.f32.mrb[0].mxu0
  %739 = vmatprep.mubr.bf16.mxu0 0
  %740 = vmatmul.mubr.bf16.gmra.mrb[0].mxu0 %v385
  %v741 = vpop.f32.mrb[0].mxu0
  %v742 = vadd.f32 0.0, %v741
  %v743 = vpop.f32.mrb[0].mxu0
  %v744 = vpop.f32.mrb[0].mxu0
  %v745 = vadd.f32 0.0, %v744
  %v746 = vpop.f32.mrb[0].mxu0
  %747 = vmatprep.mubr.bf16.mxu0 0
  %748 = vmatmul.mubr.bf16.gmra.mrb[0].mxu0 %v386
  %v749 = vpop.f32.mrb[0].mxu0
  %v750 = vadd.f32 0.0, %v749
  %v751 = vpop.f32.mrb[0].mxu0
  %v752 = vpop.f32.mrb[0].mxu0
  %v753 = vadd.f32 0.0, %v752
  %v754 = vpop.f32.mrb[0].mxu0
  %755 = vdwg.mxu0
  %v756 = vadd.f32 %v83, %v502
  %v757 = vadd.f32 %v84, %v505
  %v758 = vadd.f32 %v85, %v510
  %v759 = vadd.f32 %v86, %v513
  %v760 = vadd.f32 %v87, %v518
  %v761 = vadd.f32 %v88, %v521
  %v762 = vadd.f32 %v89, %v526
  %v763 = vadd.f32 %v90, %v529
  %v764 = vadd.f32 %v91, %v534
  %v765 = vadd.f32 %v92, %v537
  %v766 = vadd.f32 %v93, %v542
  %v767 = vadd.f32 %v94, %v545
  %v768 = vadd.f32 %v95, %v550
  %v769 = vadd.f32 %v96, %v553
  %v770 = vadd.f32 %v97, %v558
  %v771 = vadd.f32 %v98, %v561
  %v772 = vadd.f32 %v99, %v566
  %v773 = vadd.f32 %v100, %v569
  %v774 = vadd.f32 %v101, %v574
  %v775 = vadd.f32 %v102, %v577
  %v776 = vadd.f32 %v103, %v582
  %v777 = vadd.f32 %v104, %v585
  %v778 = vadd.f32 %v105, %v590
  %v779 = vadd.f32 %v106, %v593
  %v780 = vadd.f32 %v107, %v598
  %v781 = vadd.f32 %v108, %v601
  %v782 = vadd.f32 %v109, %v606
  %v783 = vadd.f32 %v110, %v609
  %v784 = vadd.f32 %v111, %v614
  %v785 = vadd.f32 %v112, %v617
  %v786 = vadd.f32 %v113, %v622
  %v787 = vadd.f32 %v114, %v625
  %v788 = vadd.f32 %v115, %v630
  %v789 = vadd.f32 %v116, %v633
  %v790 = vadd.f32 %v117, %v638
  %v791 = vadd.f32 %v118, %v641
  %v792 = vadd.f32 %v119, %v646
  %v793 = vadd.f32 %v120, %v649
  %v794 = vadd.f32 %v121, %v654
  %v795 = vadd.f32 %v122, %v657
  %v796 = vadd.f32 %v123, %v662
  %v797 = vadd.f32 %v124, %v665
  %v798 = vadd.f32 %v125, %v670
  %v799 = vadd.f32 %v126, %v673
  %v800 = vadd.f32 %v127, %v678
  %v801 = vadd.f32 %v128, %v681
  %v802 = vadd.f32 %v129, %v686
  %v803 = vadd.f32 %v130, %v689
  %v804 = vadd.f32 %v131, %v694
  %v805 = vadd.f32 %v132, %v697
  %v806 = vadd.f32 %v133, %v702
  %v807 = vadd.f32 %v134, %v705
  %v808 = vadd.f32 %v135, %v710
  %v809 = vadd.f32 %v136, %v713
  %v810 = vadd.f32 %v137, %v718
  %v811 = vadd.f32 %v138, %v721
  %v812 = vadd.f32 %v139, %v726
  %v813 = vadd.f32 %v140, %v729
  %v814 = vadd.f32 %v141, %v734
  %v815 = vadd.f32 %v142, %v737
  %v816 = vadd.f32 %v143, %v742
  %v817 = vadd.f32 %v144, %v745
  %v818 = vadd.f32 %v145, %v750
  %v819 = vadd.f32 %v146, %v753
  %820 = vst [vmem:[#allocation2] sm:$0xff] %v756
  %821 = vst [vmem:[#allocation2 + $0x8] sm:$0xff] %v757
  %822 = vst [vmem:[#allocation2 + $0x10] sm:$0xff] %v758
  %823 = vst [vmem:[#allocation2 + $0x18] sm:$0xff] %v759
  %824 = vst [vmem:[#allocation2 + $0x20] sm:$0xff] %v760
  %825 = vst [vmem:[#allocation2 + $0x28] sm:$0xff] %v761
  %826 = vst [vmem:[#allocation2 + $0x30] sm:$0xff] %v762
  %827 = vst [vmem:[#allocation2 + $0x38] sm:$0xff] %v763
  %828 = vst [vmem:[#allocation2 + $0x40] sm:$0xff] %v764
  %829 = vst [vmem:[#allocation2 + $0x48] sm:$0xff] %v765
  %830 = vst [vmem:[#allocation2 + $0x50] sm:$0xff] %v766
  %831 = vst [vmem:[#allocation2 + $0x58] sm:$0xff] %v767
  %832 = vst [vmem:[#allocation2 + $0x60] sm:$0xff] %v768
  %833 = vst [vmem:[#allocation2 + $0x68] sm:$0xff] %v769
  %834 = vst [vmem:[#allocation2 + $0x70] sm:$0xff] %v770
  %835 = vst [vmem:[#allocation2 + $0x78] sm:$0xff] %v771
  %836 = vst [vmem:[#allocation2 + $0x80] sm:$0xff] %v772
  %837 = vst [vmem:[#allocation2 + $0x88] sm:$0xff] %v773
  %838 = vst [vmem:[#allocation2 + $0x90] sm:$0xff] %v774
  %839 = vst [vmem:[#allocation2 + $0x98] sm:$0xff] %v775
  %840 = vst [vmem:[#allocation2 + $0xa0] sm:$0xff] %v776
  %841 = vst [vmem:[#allocation2 + $0xa8] sm:$0xff] %v777
  %842 = vst [vmem:[#allocation2 + $0xb0] sm:$0xff] %v778
  %843 = vst [vmem:[#allocation2 + $0xb8] sm:$0xff] %v779
  %844 = vst [vmem:[#allocation2 + $0xc0] sm:$0xff] %v780
  %845 = vst [vmem:[#allocation2 + $0xc8] sm:$0xff] %v781
  %846 = vst [vmem:[#allocation2 + $0xd0] sm:$0xff] %v782
  %847 = vst [vmem:[#allocation2 + $0xd8] sm:$0xff] %v783
  %848 = vst [vmem:[#allocation2 + $0xe0] sm:$0xff] %v784
  %849 = vst [vmem:[#allocation2 + $0xe8] sm:$0xff] %v785
  %850 = vst [vmem:[#allocation2 + $0xf0] sm:$0xff] %v786
  %851 = vst [vmem:[#allocation2 + $0xf8] sm:$0xff] %v787
  %852 = vst [vmem:[#allocation2 + $0x100] sm:$0xff] %v788
  %853 = vst [vmem:[#allocation2 + $0x108] sm:$0xff] %v789
  %854 = vst [vmem:[#allocation2 + $0x110] sm:$0xff] %v790
  %855 = vst [vmem:[#allocation2 + $0x118] sm:$0xff] %v791
  %856 = vst [vmem:[#allocation2 + $0x120] sm:$0xff] %v792
  %857 = vst [vmem:[#allocation2 + $0x128] sm:$0xff] %v793
  %858 = vst [vmem:[#allocation2 + $0x130] sm:$0xff] %v794
  %859 = vst [vmem:[#allocation2 + $0x138] sm:$0xff] %v795
  %860 = vst [vmem:[#allocation2 + $0x140] sm:$0xff] %v796
  %861 = vst [vmem:[#allocation2 + $0x148] sm:$0xff] %v797
  %862 = vst [vmem:[#allocation2 + $0x150] sm:$0xff] %v798
  %863 = vst [vmem:[#allocation2 + $0x158] sm:$0xff] %v799
  %864 = vst [vmem:[#allocation2 + $0x160] sm:$0xff] %v800
  %865 = vst [vmem:[#allocation2 + $0x168] sm:$0xff] %v801
  %866 = vst [vmem:[#allocation2 + $0x170] sm:$0xff] %v802
  %867 = vst [vmem:[#allocation2 + $0x178] sm:$0xff] %v803
  %868 = vst [vmem:[#allocation2 + $0x180] sm:$0xff] %v804
  %869 = vst [vmem:[#allocation2 + $0x188] sm:$0xff] %v805
  %870 = vst [vmem:[#allocation2 + $0x190] sm:$0xff] %v806
  %871 = vst [vmem:[#allocation2 + $0x198] sm:$0xff] %v807
  %872 = vst [vmem:[#allocation2 + $0x1a0] sm:$0xff] %v808
  %873 = vst [vmem:[#allocation2 + $0x1a8] sm:$0xff] %v809
  %874 = vst [vmem:[#allocation2 + $0x1b0] sm:$0xff] %v810
  %875 = vst [vmem:[#allocation2 + $0x1b8] sm:$0xff] %v811
  %876 = vst [vmem:[#allocation2 + $0x1c0] sm:$0xff] %v812
  %877 = vst [vmem:[#allocation2 + $0x1c8] sm:$0xff] %v813
  %878 = vst [vmem:[#allocation2 + $0x1d0] sm:$0xff] %v814
  %879 = vst [vmem:[#allocation2 + $0x1d8] sm:$0xff] %v815
  %880 = vst [vmem:[#allocation2 + $0x1e0] sm:$0xff] %v816
  %881 = vst [vmem:[#allocation2 + $0x1e8] sm:$0xff] %v817
  %882 = vst [vmem:[#allocation2 + $0x1f0] sm:$0xff] %v818
  %883 = vst [vmem:[#allocation2 + $0x1f8] sm:$0xff] %v819
  // Predicated region
  $region18: #{segmenter_vit_forward.44} parent=0 // pred_check
    %p884 = pneg %p15
  $region19: #{segmenter_vit_forward.44} parent=0 // pred_check_branch
    %886 = sbr.rel (%p884) target = $region21
  $region20: #{segmenter_vit_forward.44} parent=0 // pred_region
    %v887 = vld [vmem:[#allocation2] sm:$0xff]
    %v888 = vld [vmem:[#allocation2 + $0x8] sm:$0xff]
    %v889 = vld [vmem:[#allocation2 + $0x10] sm:$0xff]
    %v890 = vld [vmem:[#allocation2 + $0x18] sm:$0xff]
    %v891 = vld [vmem:[#allocation2 + $0x20] sm:$0xff]
    %v892 = vld [vmem:[#allocation2 + $0x28] sm:$0xff]
    %v893 = vld [vmem:[#allocation2 + $0x30] sm:$0xff]
    %v894 = vld [vmem:[#allocation2 + $0x38] sm:$0xff]
    %v895 = vld [vmem:[#allocation2 + $0x40] sm:$0xff]
    %v896 = vld [vmem:[#allocation2 + $0x48] sm:$0xff]
    %v897 = vld [vmem:[#allocation2 + $0x50] sm:$0xff]
    %v898 = vld [vmem:[#allocation2 + $0x58] sm:$0xff]
    %v899 = vld [vmem:[#allocation2 + $0x60] sm:$0xff]
    %v900 = vld [vmem:[#allocation2 + $0x68] sm:$0xff]
    %v901 = vld [vmem:[#allocation2 + $0x70] sm:$0xff]
    %v902 = vld [vmem:[#allocation2 + $0x78] sm:$0xff]
    %v903 = vld [vmem:[#allocation2 + $0x80] sm:$0xff]
    %v904 = vld [vmem:[#allocation2 + $0x88] sm:$0xff]
    %v905 = vld [vmem:[#allocation2 + $0x90] sm:$0xff]
    %v906 = vld [vmem:[#allocation2 + $0x98] sm:$0xff]
    %v907 = vld [vmem:[#allocation2 + $0xa0] sm:$0xff]
    %v908 = vld [vmem:[#allocation2 + $0xa8] sm:$0xff]
    %v909 = vld [vmem:[#allocation2 + $0xb0] sm:$0xff]
    %v910 = vld [vmem:[#allocation2 + $0xb8] sm:$0xff]
    %v911 = vld [vmem:[#allocation2 + $0xc0] sm:$0xff]
    %v912 = vld [vmem:[#allocation2 + $0xc8] sm:$0xff]
    %v913 = vld [vmem:[#allocation2 + $0xd0] sm:$0xff]
    %v914 = vld [vmem:[#allocation2 + $0xd8] sm:$0xff]
    %v915 = vld [vmem:[#allocation2 + $0xe0] sm:$0xff]
    %v916 = vld [vmem:[#allocation2 + $0xe8] sm:$0xff]
    %v917 = vld [vmem:[#allocation2 + $0xf0] sm:$0xff]
    %v918 = vld [vmem:[#allocation2 + $0xf8] sm:$0xff]
    %v919 = vld [vmem:[#allocation2 + $0x100] sm:$0xff]
    %v920 = vld [vmem:[#allocation2 + $0x108] sm:$0xff]
    %v921 = vld [vmem:[#allocation2 + $0x110] sm:$0xff]
    %v922 = vld [vmem:[#allocation2 + $0x118] sm:$0xff]
    %v923 = vld [vmem:[#allocation2 + $0x120] sm:$0xff]
    %v924 = vld [vmem:[#allocation2 + $0x128] sm:$0xff]
    %v925 = vld [vmem:[#allocation2 + $0x130] sm:$0xff]
    %v926 = vld [vmem:[#allocation2 + $0x138] sm:$0xff]
    %v927 = vld [vmem:[#allocation2 + $0x140] sm:$0xff]
    %v928 = vld [vmem:[#allocation2 + $0x148] sm:$0xff]
    %v929 = vld [vmem:[#allocation2 + $0x150] sm:$0xff]
    %v930 = vld [vmem:[#allocation2 + $0x158] sm:$0xff]
    %v931 = vld [vmem:[#allocation2 + $0x160] sm:$0xff]
    %v932 = vld [vmem:[#allocation2 + $0x168] sm:$0xff]
    %v933 = vld [vmem:[#allocation2 + $0x170] sm:$0xff]
    %v934 = vld [vmem:[#allocation2 + $0x178] sm:$0xff]
    %v935 = vld [vmem:[#allocation2 + $0x180] sm:$0xff]
    %v936 = vld [vmem:[#allocation2 + $0x188] sm:$0xff]
    %v937 = vld [vmem:[#allocation2 + $0x190] sm:$0xff]
    %v938 = vld [vmem:[#allocation2 + $0x198] sm:$0xff]
    %v939 = vld [vmem:[#allocation2 + $0x1a0] sm:$0xff]
    %v940 = vld [vmem:[#allocation2 + $0x1a8] sm:$0xff]
    %v941 = vld [vmem:[#allocation2 + $0x1b0] sm:$0xff]
    %v942 = vld [vmem:[#allocation2 + $0x1b8] sm:$0xff]
    %v943 = vld [vmem:[#allocation2 + $0x1c0] sm:$0xff]
    %v944 = vld [vmem:[#allocation2 + $0x1c8] sm:$0xff]
    %v945 = vld [vmem:[#allocation2 + $0x1d0] sm:$0xff]
    %v946 = vld [vmem:[#allocation2 + $0x1d8] sm:$0xff]
    %v947 = vld [vmem:[#allocation2 + $0x1e0] sm:$0xff]
    %v948 = vld [vmem:[#allocation2 + $0x1e8] sm:$0xff]
    %v949 = vld [vmem:[#allocation2 + $0x1f0] sm:$0xff]
    %v950 = vld [vmem:[#allocation2 + $0x1f8] sm:$0xff]
    %v951 = vld [vmem:[%s2] sm:$0x1]
    %v953 = vlaneseq
    %v954 = vshrl.u32 %v953, 7
    %v955 = vsub.s32 0, %v954
    %v956 = vrot.slane %v951, %v955
    %v958 = vadd.f32 %v887, %v956
    %v959 = vadd.f32 %v888, %v956
    %v960 = vadd.f32 %v889, %v956
    %v961 = vadd.f32 %v890, %v956
    %v962 = vadd.f32 %v891, %v956
    %v963 = vadd.f32 %v892, %v956
    %v964 = vadd.f32 %v893, %v956
    %v965 = vadd.f32 %v894, %v956
    %v966 = vadd.f32 %v895, %v956
    %v967 = vadd.f32 %v896, %v956
    %v968 = vadd.f32 %v897, %v956
    %v969 = vadd.f32 %v898, %v956
    %v970 = vadd.f32 %v899, %v956
    %v971 = vadd.f32 %v900, %v956
    %v972 = vadd.f32 %v901, %v956
    %v973 = vadd.f32 %v902, %v956
    %v974 = vadd.f32 %v903, %v956
    %v975 = vadd.f32 %v904, %v956
    %v976 = vadd.f32 %v905, %v956
    %v977 = vadd.f32 %v906, %v956
    %v978 = vadd.f32 %v907, %v956
    %v979 = vadd.f32 %v908, %v956
    %v980 = vadd.f32 %v909, %v956
    %v981 = vadd.f32 %v910, %v956
    %v982 = vadd.f32 %v911, %v956
    %v983 = vadd.f32 %v912, %v956
    %v984 = vadd.f32 %v913, %v956
    %v985 = vadd.f32 %v914, %v956
    %v986 = vadd.f32 %v915, %v956
    %v987 = vadd.f32 %v916, %v956
    %v988 = vadd.f32 %v917, %v956
    %v989 = vadd.f32 %v918, %v956
    %v990 = vadd.f32 %v919, %v956
    %v991 = vadd.f32 %v920, %v956
    %v992 = vadd.f32 %v921, %v956
    %v993 = vadd.f32 %v922, %v956
    %v994 = vadd.f32 %v923, %v956
    %v995 = vadd.f32 %v924, %v956
    %v996 = vadd.f32 %v925, %v956
    %v997 = vadd.f32 %v926, %v956
    %v998 = vadd.f32 %v927, %v956
    %v999 = vadd.f32 %v928, %v956
    %v1000 = vadd.f32 %v929, %v956
    %v1001 = vadd.f32 %v930, %v956
    %v1002 = vadd.f32 %v931, %v956
    %v1003 = vadd.f32 %v932, %v956
    %v1004 = vadd.f32 %v933, %v956
    %v1005 = vadd.f32 %v934, %v956
    %v1006 = vadd.f32 %v935, %v956
    %v1007 = vadd.f32 %v936, %v956
    %v1008 = vadd.f32 %v937, %v956
    %v1009 = vadd.f32 %v938, %v956
    %v1010 = vadd.f32 %v939, %v956
    %v1011 = vadd.f32 %v940, %v956
    %v1012 = vadd.f32 %v941, %v956
    %v1013 = vadd.f32 %v942, %v956
    %v1014 = vadd.f32 %v943, %v956
    %v1015 = vadd.f32 %v944, %v956
    %v1016 = vadd.f32 %v945, %v956
    %v1017 = vadd.f32 %v946, %v956
    %v1018 = vadd.f32 %v947, %v956
    %v1019 = vadd.f32 %v948, %v956
    %v1020 = vadd.f32 %v949, %v956
    %v1021 = vadd.f32 %v950, %v956
    %v1022 = vmax.f32 %v958, 0.0
    %v1023 = vmax.f32 %v959, 0.0
    %v1024 = vmax.f32 %v960, 0.0
    %v1025 = vmax.f32 %v961, 0.0
    %v1026 = vmax.f32 %v962, 0.0
    %v1027 = vmax.f32 %v963, 0.0
    %v1028 = vmax.f32 %v964, 0.0
    %v1029 = vmax.f32 %v965, 0.0
    %v1030 = vmax.f32 %v966, 0.0
    %v1031 = vmax.f32 %v967, 0.0
    %v1032 = vmax.f32 %v968, 0.0
    %v1033 = vmax.f32 %v969, 0.0
    %v1034 = vmax.f32 %v970, 0.0
    %v1035 = vmax.f32 %v971, 0.0
    %v1036 = vmax.f32 %v972, 0.0
    %v1037 = vmax.f32 %v973, 0.0
    %v1038 = vmax.f32 %v974, 0.0
    %v1039 = vmax.f32 %v975, 0.0
    %v1040 = vmax.f32 %v976, 0.0
    %v1041 = vmax.f32 %v977, 0.0
    %v1042 = vmax.f32 %v978, 0.0
    %v1043 = vmax.f32 %v979, 0.0
    %v1044 = vmax.f32 %v980, 0.0
    %v1045 = vmax.f32 %v981, 0.0
    %v1046 = vmax.f32 %v982, 0.0
    %v1047 = vmax.f32 %v983, 0.0
    %v1048 = vmax.f32 %v984, 0.0
    %v1049 = vmax.f32 %v985, 0.0
    %v1050 = vmax.f32 %v986, 0.0
    %v1051 = vmax.f32 %v987, 0.0
    %v1052 = vmax.f32 %v988, 0.0
    %v1053 = vmax.f32 %v989, 0.0
    %v1054 = vmax.f32 %v990, 0.0
    %v1055 = vmax.f32 %v991, 0.0
    %v1056 = vmax.f32 %v992, 0.0
    %v1057 = vmax.f32 %v993, 0.0
    %v1058 = vmax.f32 %v994, 0.0
    %v1059 = vmax.f32 %v995, 0.0
    %v1060 = vmax.f32 %v996, 0.0
    %v1061 = vmax.f32 %v997, 0.0
    %v1062 = vmax.f32 %v998, 0.0
    %v1063 = vmax.f32 %v999, 0.0
    %v1064 = vmax.f32 %v1000, 0.0
    %v1065 = vmax.f32 %v1001, 0.0
    %v1066 = vmax.f32 %v1002, 0.0
    %v1067 = vmax.f32 %v1003, 0.0
    %v1068 = vmax.f32 %v1004, 0.0
    %v1069 = vmax.f32 %v1005, 0.0
    %v1070 = vmax.f32 %v1006, 0.0
    %v1071 = vmax.f32 %v1007, 0.0
    %v1072 = vmax.f32 %v1008, 0.0
    %v1073 = vmax.f32 %v1009, 0.0
    %v1074 = vmax.f32 %v1010, 0.0
    %v1075 = vmax.f32 %v1011, 0.0
    %v1076 = vmax.f32 %v1012, 0.0
    %v1077 = vmax.f32 %v1013, 0.0
    %v1078 = vmax.f32 %v1014, 0.0
    %v1079 = vmax.f32 %v1015, 0.0
    %v1080 = vmax.f32 %v1016, 0.0
    %v1081 = vmax.f32 %v1017, 0.0
    %v1082 = vmax.f32 %v1018, 0.0
    %v1083 = vmax.f32 %v1019, 0.0
    %v1084 = vmax.f32 %v1020, 0.0
    %v1085 = vmax.f32 %v1021, 0.0
    %v1086 = vpack.c.bf16 %v1023, %v1022
    %v1087 = vpack.c.bf16 %v1025, %v1024
    %v1088 = vpack.c.bf16 %v1027, %v1026
    %v1089 = vpack.c.bf16 %v1029, %v1028
    %v1090 = vpack.c.bf16 %v1031, %v1030
    %v1091 = vpack.c.bf16 %v1033, %v1032
    %v1092 = vpack.c.bf16 %v1035, %v1034
    %v1093 = vpack.c.bf16 %v1037, %v1036
    %v1094 = vpack.c.bf16 %v1039, %v1038
    %v1095 = vpack.c.bf16 %v1041, %v1040
    %v1096 = vpack.c.bf16 %v1043, %v1042
    %v1097 = vpack.c.bf16 %v1045, %v1044
    %v1098 = vpack.c.bf16 %v1047, %v1046
    %v1099 = vpack.c.bf16 %v1049, %v1048
    %v1100 = vpack.c.bf16 %v1051, %v1050
    %v1101 = vpack.c.bf16 %v1053, %v1052
    %v1102 = vpack.c.bf16 %v1055, %v1054
    %v1103 = vpack.c.bf16 %v1057, %v1056
    %v1104 = vpack.c.bf16 %v1059, %v1058
    %v1105 = vpack.c.bf16 %v1061, %v1060
    %v1106 = vpack.c.bf16 %v1063, %v1062
    %v1107 = vpack.c.bf16 %v1065, %v1064
    %v1108 = vpack.c.bf16 %v1067, %v1066
    %v1109 = vpack.c.bf16 %v1069, %v1068
    %v1110 = vpack.c.bf16 %v1071, %v1070
    %v1111 = vpack.c.bf16 %v1073, %v1072
    %v1112 = vpack.c.bf16 %v1075, %v1074
    %v1113 = vpack.c.bf16 %v1077, %v1076
    %v1114 = vpack.c.bf16 %v1079, %v1078
    %v1115 = vpack.c.bf16 %v1081, %v1080
    %v1116 = vpack.c.bf16 %v1083, %v1082
    %v1117 = vpack.c.bf16 %v1085, %v1084
    %v1150 = vunpack.c.l.b16 %v1086
    %v1151 = vunpack.c.h.b16 %v1086
    %v1152 = vunpack.c.l.b16 %v1087
    %v1153 = vunpack.c.h.b16 %v1087
    %v1154 = vunpack.c.l.b16 %v1088
    %v1155 = vunpack.c.h.b16 %v1088
    %v1156 = vunpack.c.l.b16 %v1089
    %v1157 = vunpack.c.h.b16 %v1089
    %v1158 = vunpack.c.l.b16 %v1090
    %v1159 = vunpack.c.h.b16 %v1090
    %v1160 = vunpack.c.l.b16 %v1091
    %v1161 = vunpack.c.h.b16 %v1091
    %v1162 = vunpack.c.l.b16 %v1092
    %v1163 = vunpack.c.h.b16 %v1092
    %v1164 = vunpack.c.l.b16 %v1093
    %v1165 = vunpack.c.h.b16 %v1093
    %v1166 = vunpack.c.l.b16 %v1094
    %v1167 = vunpack.c.h.b16 %v1094
    %v1168 = vunpack.c.l.b16 %v1095
    %v1169 = vunpack.c.h.b16 %v1095
    %v1170 = vunpack.c.l.b16 %v1096
    %v1171 = vunpack.c.h.b16 %v1096
    %v1172 = vunpack.c.l.b16 %v1097
    %v1173 = vunpack.c.h.b16 %v1097
    %v1174 = vunpack.c.l.b16 %v1098
    %v1175 = vunpack.c.h.b16 %v1098
    %v1176 = vunpack.c.l.b16 %v1099
    %v1177 = vunpack.c.h.b16 %v1099
    %v1178 = vunpack.c.l.b16 %v1100
    %v1179 = vunpack.c.h.b16 %v1100
    %v1180 = vunpack.c.l.b16 %v1101
    %v1181 = vunpack.c.h.b16 %v1101
    %v1182 = vunpack.c.l.b16 %v1102
    %v1183 = vunpack.c.h.b16 %v1102
    %v1184 = vunpack.c.l.b16 %v1103
    %v1185 = vunpack.c.h.b16 %v1103
    %v1186 = vunpack.c.l.b16 %v1104
    %v1187 = vunpack.c.h.b16 %v1104
    %v1188 = vunpack.c.l.b16 %v1105
    %v1189 = vunpack.c.h.b16 %v1105
    %v1190 = vunpack.c.l.b16 %v1106
    %v1191 = vunpack.c.h.b16 %v1106
    %v1192 = vunpack.c.l.b16 %v1107
    %v1193 = vunpack.c.h.b16 %v1107
    %v1194 = vunpack.c.l.b16 %v1108
    %v1195 = vunpack.c.h.b16 %v1108
    %v1196 = vunpack.c.l.b16 %v1109
    %v1197 = vunpack.c.h.b16 %v1109
    %v1198 = vunpack.c.l.b16 %v1110
    %v1199 = vunpack.c.h.b16 %v1110
    %v1200 = vunpack.c.l.b16 %v1111
    %v1201 = vunpack.c.h.b16 %v1111
    %v1202 = vunpack.c.l.b16 %v1112
    %v1203 = vunpack.c.h.b16 %v1112
    %v1204 = vunpack.c.l.b16 %v1113
    %v1205 = vunpack.c.h.b16 %v1113
    %v1206 = vunpack.c.l.b16 %v1114
    %v1207 = vunpack.c.h.b16 %v1114
    %v1208 = vunpack.c.l.b16 %v1115
    %v1209 = vunpack.c.h.b16 %v1115
    %v1210 = vunpack.c.l.b16 %v1116
    %v1211 = vunpack.c.h.b16 %v1116
    %v1212 = vunpack.c.l.b16 %v1117
    %v1213 = vunpack.c.h.b16 %v1117
    %v1214 = vpack.c.b16 %v1150, %v1150
    %v1215 = vpack.c.b16 %v1151, %v1151
    %v1216 = vpack.c.b16 %v1152, %v1152
    %v1217 = vpack.c.b16 %v1153, %v1153
    %v1218 = vpack.c.b16 %v1154, %v1154
    %v1219 = vpack.c.b16 %v1155, %v1155
    %v1220 = vpack.c.b16 %v1156, %v1156
    %v1221 = vpack.c.b16 %v1157, %v1157
    %v1222 = vpack.c.b16 %v1158, %v1158
    %v1223 = vpack.c.b16 %v1159, %v1159
    %v1224 = vpack.c.b16 %v1160, %v1160
    %v1225 = vpack.c.b16 %v1161, %v1161
    %v1226 = vpack.c.b16 %v1162, %v1162
    %v1227 = vpack.c.b16 %v1163, %v1163
    %v1228 = vpack.c.b16 %v1164, %v1164
    %v1229 = vpack.c.b16 %v1165, %v1165
    %v1230 = vpack.c.b16 %v1166, %v1166
    %v1231 = vpack.c.b16 %v1167, %v1167
    %v1232 = vpack.c.b16 %v1168, %v1168
    %v1233 = vpack.c.b16 %v1169, %v1169
    %v1234 = vpack.c.b16 %v1170, %v1170
    %v1235 = vpack.c.b16 %v1171, %v1171
    %v1236 = vpack.c.b16 %v1172, %v1172
    %v1237 = vpack.c.b16 %v1173, %v1173
    %v1238 = vpack.c.b16 %v1174, %v1174
    %v1239 = vpack.c.b16 %v1175, %v1175
    %v1240 = vpack.c.b16 %v1176, %v1176
    %v1241 = vpack.c.b16 %v1177, %v1177
    %v1242 = vpack.c.b16 %v1178, %v1178
    %v1243 = vpack.c.b16 %v1179, %v1179
    %v1244 = vpack.c.b16 %v1180, %v1180
    %v1245 = vpack.c.b16 %v1181, %v1181
    %v1246 = vpack.c.b16 %v1182, %v1182
    %v1247 = vpack.c.b16 %v1183, %v1183
    %v1248 = vpack.c.b16 %v1184, %v1184
    %v1249 = vpack.c.b16 %v1185, %v1185
    %v1250 = vpack.c.b16 %v1186, %v1186
    %v1251 = vpack.c.b16 %v1187, %v1187
    %v1252 = vpack.c.b16 %v1188, %v1188
    %v1253 = vpack.c.b16 %v1189, %v1189
    %v1254 = vpack.c.b16 %v1190, %v1190
    %v1255 = vpack.c.b16 %v1191, %v1191
    %v1256 = vpack.c.b16 %v1192, %v1192
    %v1257 = vpack.c.b16 %v1193, %v1193
    %v1258 = vpack.c.b16 %v1194, %v1194
    %v1259 = vpack.c.b16 %v1195, %v1195
    %v1260 = vpack.c.b16 %v1196, %v1196
    %v1261 = vpack.c.b16 %v1197, %v1197
    %v1262 = vpack.c.b16 %v1198, %v1198
    %v1263 = vpack.c.b16 %v1199, %v1199
    %v1264 = vpack.c.b16 %v1200, %v1200
    %v1265 = vpack.c.b16 %v1201, %v1201
    %v1266 = vpack.c.b16 %v1202, %v1202
    %v1267 = vpack.c.b16 %v1203, %v1203
    %v1268 = vpack.c.b16 %v1204, %v1204
    %v1269 = vpack.c.b16 %v1205, %v1205
    %v1270 = vpack.c.b16 %v1206, %v1206
    %v1271 = vpack.c.b16 %v1207, %v1207
    %v1272 = vpack.c.b16 %v1208, %v1208
    %v1273 = vpack.c.b16 %v1209, %v1209
    %v1274 = vpack.c.b16 %v1210, %v1210
    %v1275 = vpack.c.b16 %v1211, %v1211
    %v1276 = vpack.c.b16 %v1212, %v1212
    %v1277 = vpack.c.b16 %v1213, %v1213
    %1342 = vst [vmem:[%s3] sm:$0xf] %v1214
    %1343 = vst [vmem:[%s3 + $0x4] sm:$0xf] %v1215
    %1344 = vst [vmem:[%s3 + $0x8] sm:$0xf] %v1216
    %1345 = vst [vmem:[%s3 + $0xc] sm:$0xf] %v1217
    %1346 = vst [vmem:[%s3 + $0x10] sm:$0xf] %v1218
    %1347 = vst [vmem:[%s3 + $0x14] sm:$0xf] %v1219
    %1348 = vst [vmem:[%s3 + $0x18] sm:$0xf] %v1220
    %1349 = vst [vmem:[%s3 + $0x1c] sm:$0xf] %v1221
    %1350 = vst [vmem:[%s3 + $0x20] sm:$0xf] %v1222
    %1351 = vst [vmem:[%s3 + $0x24] sm:$0xf] %v1223
    %1352 = vst [vmem:[%s3 + $0x28] sm:$0xf] %v1224
    %1353 = vst [vmem:[%s3 + $0x2c] sm:$0xf] %v1225
    %1354 = vst [vmem:[%s3 + $0x30] sm:$0xf] %v1226
    %1355 = vst [vmem:[%s3 + $0x34] sm:$0xf] %v1227
    %1356 = vst [vmem:[%s3 + $0x38] sm:$0xf] %v1228
    %1357 = vst [vmem:[%s3 + $0x3c] sm:$0xf] %v1229
    %1358 = vst [vmem:[%s3 + $0x40] sm:$0xf] %v1230
    %1359 = vst [vmem:[%s3 + $0x44] sm:$0xf] %v1231
    %1360 = vst [vmem:[%s3 + $0x48] sm:$0xf] %v1232
    %1361 = vst [vmem:[%s3 + $0x4c] sm:$0xf] %v1233
    %1362 = vst [vmem:[%s3 + $0x50] sm:$0xf] %v1234
    %1363 = vst [vmem:[%s3 + $0x54] sm:$0xf] %v1235
    %1364 = vst [vmem:[%s3 + $0x58] sm:$0xf] %v1236
    %1365 = vst [vmem:[%s3 + $0x5c] sm:$0xf] %v1237
    %1366 = vst [vmem:[%s3 + $0x60] sm:$0xf] %v1238
    %1367 = vst [vmem:[%s3 + $0x64] sm:$0xf] %v1239
    %1368 = vst [vmem:[%s3 + $0x68] sm:$0xf] %v1240
    %1369 = vst [vmem:[%s3 + $0x6c] sm:$0xf] %v1241
    %1370 = vst [vmem:[%s3 + $0x70] sm:$0xf] %v1242
    %1371 = vst [vmem:[%s3 + $0x74] sm:$0xf] %v1243
    %1372 = vst [vmem:[%s3 + $0x78] sm:$0xf] %v1244
    %1373 = vst [vmem:[%s3 + $0x7c] sm:$0xf] %v1245
    %1374 = vst [vmem:[%s3 + $0x80] sm:$0xf] %v1246
    %1375 = vst [vmem:[%s3 + $0x84] sm:$0xf] %v1247
    %1376 = vst [vmem:[%s3 + $0x88] sm:$0xf] %v1248
    %1377 = vst [vmem:[%s3 + $0x8c] sm:$0xf] %v1249
    %1378 = vst [vmem:[%s3 + $0x90] sm:$0xf] %v1250
    %1379 = vst [vmem:[%s3 + $0x94] sm:$0xf] %v1251
    %1380 = vst [vmem:[%s3 + $0x98] sm:$0xf] %v1252
    %1381 = vst [vmem:[%s3 + $0x9c] sm:$0xf] %v1253
    %1382 = vst [vmem:[%s3 + $0xa0] sm:$0xf] %v1254
    %1383 = vst [vmem:[%s3 + $0xa4] sm:$0xf] %v1255
    %1384 = vst [vmem:[%s3 + $0xa8] sm:$0xf] %v1256
    %1385 = vst [vmem:[%s3 + $0xac] sm:$0xf] %v1257
    %1386 = vst [vmem:[%s3 + $0xb0] sm:$0xf] %v1258
    %1387 = vst [vmem:[%s3 + $0xb4] sm:$0xf] %v1259
    %1388 = vst [vmem:[%s3 + $0xb8] sm:$0xf] %v1260
    %1389 = vst [vmem:[%s3 + $0xbc] sm:$0xf] %v1261
    %1390 = vst [vmem:[%s3 + $0xc0] sm:$0xf] %v1262
    %1391 = vst [vmem:[%s3 + $0xc4] sm:$0xf] %v1263
    %1392 = vst [vmem:[%s3 + $0xc8] sm:$0xf] %v1264
    %1393 = vst [vmem:[%s3 + $0xcc] sm:$0xf] %v1265
    %1394 = vst [vmem:[%s3 + $0xd0] sm:$0xf] %v1266
    %1395 = vst [vmem:[%s3 + $0xd4] sm:$0xf] %v1267
    %1396 = vst [vmem:[%s3 + $0xd8] sm:$0xf] %v1268
    %1397 = vst [vmem:[%s3 + $0xdc] sm:$0xf] %v1269
    %1398 = vst [vmem:[%s3 + $0xe0] sm:$0xf] %v1270
    %1399 = vst [vmem:[%s3 + $0xe4] sm:$0xf] %v1271
    %1400 = vst [vmem:[%s3 + $0xe8] sm:$0xf] %v1272
    %1401 = vst [vmem:[%s3 + $0xec] sm:$0xf] %v1273
    %1402 = vst [vmem:[%s3 + $0xf0] sm:$0xf] %v1274
    %1403 = vst [vmem:[%s3 + $0xf4] sm:$0xf] %v1275
    %1404 = vst [vmem:[%s3 + $0xf8] sm:$0xf] %v1276
    %1405 = vst [vmem:[%s3 + $0xfc] sm:$0xf] %v1277
  $region21: #{segmenter_vit_forward.44} parent=0 // pred_fallthru
    _
  // Predicated region
  $region22: #{segmenter_vit_forward.44} parent=0 // pred_check
    _
  $region23: #{segmenter_vit_forward.44} parent=0 // pred_check_branch
    %1407 = sbr.rel (0) target = $region25
  $region24: #{segmenter_vit_forward.44} parent=0 // pred_region
    _
  $region25: #{segmenter_vit_forward.44} parent=0 // pred_fallthru
    _
  // Predicated region
  $region26: #{segmenter_vit_forward.44} parent=0 // pred_check
    _
  $region27: #{segmenter_vit_forward.44} parent=0 // pred_check_branch
    %1409 = sbr.rel (0) target = $region29
  $region28: #{segmenter_vit_forward.44} parent=0 // pred_region
    _
  $region29: #{segmenter_vit_forward.44} parent=0 // pred_fallthru
    _

</llo_original>
